<compile_context>
chip_gen: v5e
topology: v5e:2x2
jax: 0.10.0
libtpu: 0.0.40
codegen_flags: <defaults>
</compile_context>

<pallas_src>
import math

import jax
import jax.numpy as jnp
from jax import lax
from jax.experimental import pallas as pl
from jax.experimental.pallas import tpu as pltpu


# ------------------------------- fused kernel --------------------------------

def _fused_transformer_kernel(
    # per-batch activations
    src_ref, tgt_ref,
    # constants (prepared once on host, VMEM-resident across grid steps)
    pe_src_ref, pe_tgt_ref, tgt_mask_ref,
    enc_emb_w_ref, enc_emb_b_ref, dec_emb_w_ref, dec_emb_b_ref,
    enc_wqkv_ref, enc_bqkv_ref, enc_wo_ref, enc_bo_ref,
    enc_w1_ref, enc_b1_ref, enc_w2_ref, enc_b2_ref, enc_ln_ref,
    dec_sa_wqkv_ref, dec_sa_bqkv_ref, dec_sa_wo_ref, dec_sa_bo_ref,
    dec_ca_wq_ref, dec_ca_bq_ref, dec_ca_wkv_ref, dec_ca_bkv_ref,
    dec_ca_wo_ref, dec_ca_bo_ref,
    dec_w1_ref, dec_b1_ref, dec_w2_ref, dec_b2_ref, dec_ln_ref,
    out_w_ref, out_b_ref,
    # output
    o_ref):
    """Whole encoder-decoder forward for one batch element, entirely in VMEM."""
    f32 = jnp.float32
    n_enc = enc_wqkv_ref.shape[0]
    n_dec = dec_sa_wqkv_ref.shape[0]
    H = enc_wqkv_ref.shape[1] // 3          # packed Q/K/V -> 3H head-groups

    def layer_norm(z, g, b):
        # PyTorch LayerNorm: biased variance, eps=1e-5.
        mu = jnp.mean(z, axis=-1, keepdims=True)
        var = jnp.mean((z - mu) ** 2, axis=-1, keepdims=True)
        return (z - mu) * lax.rsqrt(var + 1e-5) * g + b

    def project(x, w_h, b_h):
        # x: (S, D); w_h: (G, D, dk); b_h: (G, 1, dk) -> (G, S, dk)
        # One batched dot_general over the head-group axis; no activation
        # reshapes or transposes needed (splits are free leading-axis slices).
        xb = jnp.broadcast_to(x[None], (w_h.shape[0],) + x.shape)
        y = lax.dot_general(xb, w_h, (((2,), (1,)), ((0,), (0,))),
                            preferred_element_type=f32)
        return y + b_h

    def attend(q, k, v, wo_h, bo, mask):
        # q: (H, Sq, dk)  (1/sqrt(dk) folded into the Q weights at prep time)
        # k, v: (H, Sk, dk); wo_h: (H, dk, D); bo: (1, D); mask: (Sq, Sk) | None
        s = lax.dot_general(q, k, (((2,), (2,)), ((0,), (0,))),
                            preferred_element_type=f32)          # (H, Sq, Sk)
        if mask is not None:
            s = s + mask                                         # bcast over H
        # Softmax packed across all heads: one max/exp/sum/recip on the slab.
        s = s - jnp.max(s, axis=-1, keepdims=True)
        p = jnp.exp(s)
        denom = jnp.sum(p, axis=-1, keepdims=True)
        # EUP approximate reciprocal + one Newton step; denom guarded so a
        # fully-masked row can never produce inf/NaN.
        r = pl.reciprocal(jnp.maximum(denom, 1e-30), approx=True)
        r = r * (2.0 - denom * r)
        ctx = lax.dot_general(p * r, v, (((2,), (1,)), ((0,), (0,))),
                              preferred_element_type=f32)        # (H, Sq, dk)
        o = lax.dot_general(ctx, wo_h, (((2,), (1,)), ((0,), (0,))),
                            preferred_element_type=f32)          # (H, Sq, D)
        # sum_h ctx_h @ Wo[h] == concat_h(ctx_h) @ Wo (no head transpose needed)
        return jnp.sum(o, axis=0) + bo                           # (Sq, D)

    def ffn(x, w1, b1, w2, b2):
        h = jnp.maximum(jnp.dot(x, w1, preferred_element_type=f32) + b1, 0.0)
        return jnp.dot(h, w2, preferred_element_type=f32) + b2

    # -------------------------------- encoder --------------------------------
    mem = (jnp.dot(src_ref[...], enc_emb_w_ref[...], preferred_element_type=f32)
           + enc_emb_b_ref[...] + pe_src_ref[...])                # (Ss, D)
    for l in range(n_enc):                                        # static unroll
        ln = enc_ln_ref[l]                                        # (4, D)
        qkv = project(mem, enc_wqkv_ref[l], enc_bqkv_ref[l])      # (3H, Ss, dk)
        attn = attend(qkv[:H], qkv[H:2 * H], qkv[2 * H:],
                      enc_wo_ref[l], enc_bo_ref[l], None)         # mask-free
        mem = layer_norm(mem + attn, ln[0:1], ln[1:2])
        mem = layer_norm(mem + ffn(mem, enc_w1_ref[l], enc_b1_ref[l],
                                   enc_w2_ref[l], enc_b2_ref[l]),
                         ln[2:3], ln[3:4])

    # -------------------------------- decoder --------------------------------
    out = (jnp.dot(tgt_ref[...], dec_emb_w_ref[...], preferred_element_type=f32)
           + dec_emb_b_ref[...] + pe_tgt_ref[...])                # (St, D)
    tmask = tgt_mask_ref[...]
    for l in range(n_dec):
        ln = dec_ln_ref[l]                                        # (6, D)
        # causal self-attention
        qkv = project(out, dec_sa_wqkv_ref[l], dec_sa_bqkv_ref[l])
        attn = attend(qkv[:H], qkv[H:2 * H], qkv[2 * H:],
                      dec_sa_wo_ref[l], dec_sa_bo_ref[l], tmask)
        out = layer_norm(out + attn, ln[0:1], ln[1:2])
        # cross-attention over the encoder memory (memory_mask is None)
        q = project(out, dec_ca_wq_ref[l], dec_ca_bq_ref[l])      # (H, St, dk)
        kv = project(mem, dec_ca_wkv_ref[l], dec_ca_bkv_ref[l])   # (2H, Ss, dk)
        attn = attend(q, kv[:H], kv[H:],
                      dec_ca_wo_ref[l], dec_ca_bo_ref[l], None)
        out = layer_norm(out + attn, ln[2:3], ln[3:4])
        # feed-forward
        out = layer_norm(out + ffn(out, dec_w1_ref[l], dec_b1_ref[l],
                                   dec_w2_ref[l], dec_b2_ref[l]),
                         ln[4:5], ln[5:6])

    # ------- final d_model -> 1 projection (128-lane padded, dense vst) -------
    o_ref[...] = (jnp.dot(out, out_w_ref[...], preferred_element_type=f32)
                  + out_b_ref[...]).astype(o_ref.dtype)


# ---------------------------- one-time param prep ------------------------------

def positional_encoding_table(max_len, d_model):
    position = jnp.arange(max_len, dtype=jnp.float32)[:, None]
    div_term = jnp.exp(jnp.arange(0, d_model, 2, dtype=jnp.float32)
                       * (-math.log(10000.0) / d_model))
    pe = jnp.zeros((max_len, d_model), jnp.float32)
    pe = pe.at[:, 0::2].set(jnp.sin(position * div_term))
    pe = pe.at[:, 1::2].set(jnp.cos(position * div_term))
    return pe


def generate_square_subsequent_mask(sz):
    return jnp.triu(jnp.full((sz, sz), -jnp.inf, jnp.float32), k=1)


def prepare_fused_params(params, n_heads, src_len, tgt_len):
    """One-time re-layout of the PyTorch-style parameters into the stacked,
    head-major form the fused kernel consumes (hoisted out of the forward)."""
    D = params["enc_emb_w"].shape[1]
    H = n_heads
    dk = D // H
    scale = 1.0 / math.sqrt(dk)

    def head_major(w):                       # (D, D) -> (H, D, dk)
        return w.reshape(D, H, dk).transpose(1, 0, 2)

    def head_bias(b):                        # (D,) -> (H, 1, dk)
        return b.reshape(H, 1, dk)

    def pack_self(p):
        # Q/K/V packed along a single leading head-group axis; 1/sqrt(dk) folded
        # into the Q weights/bias so the kernel never scales scores.
        w = jnp.concatenate([head_major(p["wq"]) * scale, head_major(p["wk"]),
                             head_major(p["wv"])], axis=0)       # (3H, D, dk)
        b = jnp.concatenate([head_bias(p["bq"]) * scale, head_bias(p["bk"]),
                             head_bias(p["bv"])], axis=0)        # (3H, 1, dk)
        return w, b

    def pack_kv(p):
        w = jnp.concatenate([head_major(p["wk"]), head_major(p["wv"])], axis=0)
        b = jnp.concatenate([head_bias(p["bk"]), head_bias(p["bv"])], axis=0)
        return w, b

    enc = params["enc_layers"]
    dec = params["dec_layers"]
    enc_qkv = [pack_self(l["self_attn"]) for l in enc]
    dec_sa = [pack_self(l["self_attn"]) for l in dec]
    dec_kv = [pack_kv(l["cross_attn"]) for l in dec]

    return dict(
        pe_src=params["pe"][:src_len],
        pe_tgt=params["pe"][:tgt_len],
        tgt_mask=generate_square_subsequent_mask(tgt_len),
        enc_emb_w=params["enc_emb_w"],
        enc_emb_b=params["enc_emb_b"].reshape(1, D),
        dec_emb_w=params["dec_emb_w"],
        dec_emb_b=params["dec_emb_b"].reshape(1, D),
        enc_wqkv=jnp.stack([w for w, _ in enc_qkv]),
        enc_bqkv=jnp.stack([b for _, b in enc_qkv]),
        enc_wo=jnp.stack([l["self_attn"]["wo"].reshape(H, dk, D) for l in enc]),
        enc_bo=jnp.stack([l["self_attn"]["bo"].reshape(1, D) for l in enc]),
        enc_w1=jnp.stack([l["ff"]["w1"] for l in enc]),
        enc_b1=jnp.stack([l["ff"]["b1"].reshape(1, -1) for l in enc]),
        enc_w2=jnp.stack([l["ff"]["w2"] for l in enc]),
        enc_b2=jnp.stack([l["ff"]["b2"].reshape(1, -1) for l in enc]),
        enc_ln=jnp.stack([jnp.stack([l["norm1_g"], l["norm1_b"],
                                     l["norm2_g"], l["norm2_b"]]) for l in enc]),
        dec_sa_wqkv=jnp.stack([w for w, _ in dec_sa]),
        dec_sa_bqkv=jnp.stack([b for _, b in dec_sa]),
        dec_sa_wo=jnp.stack([l["self_attn"]["wo"].reshape(H, dk, D) for l in dec]),
        dec_sa_bo=jnp.stack([l["self_attn"]["bo"].reshape(1, D) for l in dec]),
        dec_ca_wq=jnp.stack([head_major(l["cross_attn"]["wq"]) * scale for l in dec]),
        dec_ca_bq=jnp.stack([head_bias(l["cross_attn"]["bq"]) * scale for l in dec]),
        dec_ca_wkv=jnp.stack([w for w, _ in dec_kv]),
        dec_ca_bkv=jnp.stack([b for _, b in dec_kv]),
        dec_ca_wo=jnp.stack([l["cross_attn"]["wo"].reshape(H, dk, D) for l in dec]),
        dec_ca_bo=jnp.stack([l["cross_attn"]["bo"].reshape(1, D) for l in dec]),
        dec_w1=jnp.stack([l["ff"]["w1"] for l in dec]),
        dec_b1=jnp.stack([l["ff"]["b1"].reshape(1, -1) for l in dec]),
        dec_w2=jnp.stack([l["ff"]["w2"] for l in dec]),
        dec_b2=jnp.stack([l["ff"]["b2"].reshape(1, -1) for l in dec]),
        dec_ln=jnp.stack([jnp.stack([l["norm1_g"], l["norm1_b"], l["norm2_g"],
                                     l["norm2_b"], l["norm3_g"], l["norm3_b"]])
                          for l in dec]),
        out_w_pad=jnp.zeros((D, 128), jnp.float32).at[:, :1].set(params["out_w"]),
        out_b_pad=jnp.zeros((1, 128), jnp.float32).at[:, :1].set(
            params["out_b"].reshape(1, 1)),
    )


# ------------------------------ forward wrapper --------------------------------

_CONST_ARG_NAMES = (
    "pe_src", "pe_tgt", "tgt_mask",
    "enc_emb_w", "enc_emb_b", "dec_emb_w", "dec_emb_b",
    "enc_wqkv", "enc_bqkv", "enc_wo", "enc_bo",
    "enc_w1", "enc_b1", "enc_w2", "enc_b2", "enc_ln",
    "dec_sa_wqkv", "dec_sa_bqkv", "dec_sa_wo", "dec_sa_bo",
    "dec_ca_wq", "dec_ca_bq", "dec_ca_wkv", "dec_ca_bkv",
    "dec_ca_wo", "dec_ca_bo",
    "dec_w1", "dec_b1", "dec_w2", "dec_b2", "dec_ln",
    "out_w_pad", "out_b_pad",
)


def transformer_forward(fp, src, tgt):
    """Single fused pallas_call for the whole encoder-decoder forward.
    grid=(B,) 'parallel': each grid step is a full per-batch forward (plenty of
    work to amortize the ~0.35us step cost on 1-TC chips) and the batch can be
    split across v7x's two TensorCores."""
    B, St = src.shape[0], tgt.shape[1]
    n_pad = fp["out_w_pad"].shape[1]

    def batch_spec(arr):
        s, x = arr.shape[1], arr.shape[2]
        return pl.BlockSpec((None, s, x), lambda b: (b, 0, 0))

    def const_spec(arr):
        nd = arr.ndim
        return pl.BlockSpec(arr.shape, lambda b: (0,) * nd)

    const_args = [fp[name] for name in _CONST_ARG_NAMES]
    out = pl.pallas_call(
        _fused_transformer_kernel,
        out_shape=jax.ShapeDtypeStruct((B, St, n_pad), src.dtype),
        grid=(B,),
        in_specs=[batch_spec(src), batch_spec(tgt)]
                 + [const_spec(a) for a in const_args],
        out_specs=pl.BlockSpec((None, St, n_pad), lambda b: (b, 0, 0)),
        compiler_params=pltpu.CompilerParams(dimension_semantics=("parallel",)),
    )(src, tgt, *const_args)
    # Kernel stores a lane-dense (St, 128) slab; the model output is column 0.
    return out[:, :, :1]


# ------------------------------ parameter init ---------------------------------

def init_params(key, n_features, n_dec_features, d_model, n_heads,
                num_encoder_layers, num_decoder_layers, d_ff, max_len=128):
    keys = iter(jax.random.split(key, 512))

    def lin(i, o):
        k1, k2 = jax.random.split(next(keys))
        bound = 1.0 / math.sqrt(i)
        w = jax.random.uniform(k1, (i, o), jnp.float32, -bound, bound)
        b = jax.random.uniform(k2, (o,), jnp.float32, -bound, bound)
        return w, b

    def mha():
        wq, bq = lin(d_model, d_model)
        wk, bk = lin(d_model, d_model)
        wv, bv = lin(d_model, d_model)
        wo, bo = lin(d_model, d_model)
        return dict(wq=wq, bq=bq, wk=wk, bk=bk, wv=wv, bv=bv, wo=wo, bo=bo)

    def ff_p():
        w1, b1 = lin(d_model, d_ff)
        w2, b2 = lin(d_ff, d_model)
        return dict(w1=w1, b1=b1, w2=w2, b2=b2)

    def ln():
        return jnp.ones((d_model,), jnp.float32), jnp.zeros((d_model,), jnp.float32)

    def enc_layer_p():
        g1, b1 = ln(); g2, b2 = ln()
        return dict(self_attn=mha(), ff=ff_p(),
                    norm1_g=g1, norm1_b=b1, norm2_g=g2, norm2_b=b2)

    def dec_layer_p():
        g1, b1 = ln(); g2, b2 = ln(); g3, b3 = ln()
        return dict(self_attn=mha(), cross_attn=mha(), ff=ff_p(),
                    norm1_g=g1, norm1_b=b1, norm2_g=g2, norm2_b=b2,
                    norm3_g=g3, norm3_b=b3)

    enc_w, enc_b = lin(n_features, d_model)
    dec_w, dec_b = lin(n_dec_features, d_model)
    out_w, out_b = lin(d_model, 1)
    return dict(
        enc_emb_w=enc_w, enc_emb_b=enc_b,
        dec_emb_w=dec_w, dec_emb_b=dec_b,
        pe=positional_encoding_table(max_len, d_model),
        enc_layers=[enc_layer_p() for _ in range(num_encoder_layers)],
        dec_layers=[dec_layer_p() for _ in range(num_decoder_layers)],
        out_w=out_w, out_b=out_b,
    )


# ------------------------------ pure-JAX reference ------------------------------

def _ref_mha(p, q, k, v, mask, n_heads):
    B, Sq, D = q.shape
    Sk = k.shape[1]
    dk = D // n_heads
    Q = (q @ p["wq"] + p["bq"]).reshape(B, Sq, n_heads, dk).transpose(0, 2, 1, 3)
    K = (k @ p["wk"] + p["bk"]).reshape(B, Sk, n_heads, dk).transpose(0, 2, 1, 3)
    V = (v @ p["wv"] + p["bv"]).reshape(B, Sk, n_heads, dk).transpose(0, 2, 1, 3)
    s = jnp.einsum("bhqd,bhkd->bhqk", Q, K) / math.sqrt(dk)
    if mask is not None:
        s = s + mask
    a = jax.nn.softmax(s, axis=-1)
    o = jnp.einsum("bhqk,bhkd->bhqd", a, V).transpose(0, 2, 1, 3).reshape(B, Sq, D)
    return o @ p["wo"] + p["bo"]


def _ref_ln(z, g, b):
    m = jnp.mean(z, -1, keepdims=True)
    v = jnp.mean((z - m) ** 2, -1, keepdims=True)
    return (z - m) * jax.lax.rsqrt(v + 1e-5) * g + b


def _ref_ffn(x, p):
    return jnp.maximum(x @ p["w1"] + p["b1"], 0.0) @ p["w2"] + p["b2"]


def reference_forward(params, src, tgt, *, n_heads):
    B, Ss, _ = src.shape
    _, St, _ = tgt.shape
    mem = src @ params["enc_emb_w"] + params["enc_emb_b"] + params["pe"][None, :Ss]
    for lp in params["enc_layers"]:
        mem = _ref_ln(mem + _ref_mha(lp["self_attn"], mem, mem, mem, None, n_heads),
                      lp["norm1_g"], lp["norm1_b"])
        mem = _ref_ln(mem + _ref_ffn(mem, lp["ff"]), lp["norm2_g"], lp["norm2_b"])
    out = tgt @ params["dec_emb_w"] + params["dec_emb_b"] + params["pe"][None, :St]
    tgt_mask = generate_square_subsequent_mask(St)
    for lp in params["dec_layers"]:
        out = _ref_ln(out + _ref_mha(lp["self_attn"], out, out, out, tgt_mask, n_heads),
                      lp["norm1_g"], lp["norm1_b"])
        out = _ref_ln(out + _ref_mha(lp["cross_attn"], out, mem, mem, None, n_heads),
                      lp["norm2_g"], lp["norm2_b"])
        out = _ref_ln(out + _ref_ffn(out, lp["ff"]), lp["norm3_g"], lp["norm3_b"])
    return out @ params["out_w"] + params["out_b"]


# ----------------------------------- main ---------------------------------------

if __name__ == "__main__":
    n_features, n_dec_features = 4, 4
    d_model, n_heads, d_ff = 32, 4, 64
    num_encoder_layers, num_decoder_layers = 2, 2
    B, Ss, St = 2, 8, 8

    root = jax.random.PRNGKey(0)
    kp, ks, kt = jax.random.split(root, 3)
    params = init_params(kp, n_features, n_dec_features, d_model, n_heads,
                         num_encoder_layers, num_decoder_layers, d_ff)
    src = jax.random.normal(ks, (B, Ss, n_features), jnp.float32)
    tgt = jax.random.normal(kt, (B, St, n_dec_features), jnp.float32)

    # One-time weight re-layout (hoisted out of the per-call path).
    fused_params = prepare_fused_params(params, n_heads, Ss, St)

    fwd = jax.jit(transformer_forward)
    out = jax.block_until_ready(fwd(fused_params, src, tgt))

    ref = reference_forward(params, src, tgt, n_heads=n_heads)
    assert out.shape == (B, St, 1)
    assert jnp.allclose(out, ref, atol=2e-4, rtol=2e-4), "mismatch vs. reference"

    print("KERNEL_OK")
</pallas_src>

<mosaic_0001>
module attributes {stable_mosaic.version = 11 : i64} {
  func.func @_fused_transformer_kernel(%arg0: i32, %arg1: memref<1x8x4xf32, #tpu.memory_space<vmem>>, %arg2: memref<1x8x4xf32, #tpu.memory_space<vmem>>, %arg3: memref<8x32xf32, #tpu.memory_space<vmem>>, %arg4: memref<8x32xf32, #tpu.memory_space<vmem>>, %arg5: memref<8x8xf32, #tpu.memory_space<vmem>>, %arg6: memref<4x32xf32, #tpu.memory_space<vmem>>, %arg7: memref<1x32xf32, #tpu.memory_space<vmem>>, %arg8: memref<4x32xf32, #tpu.memory_space<vmem>>, %arg9: memref<1x32xf32, #tpu.memory_space<vmem>>, %arg10: memref<2x12x32x8xf32, #tpu.memory_space<vmem>>, %arg11: memref<2x12x1x8xf32, #tpu.memory_space<vmem>>, %arg12: memref<2x4x8x32xf32, #tpu.memory_space<vmem>>, %arg13: memref<2x1x32xf32, #tpu.memory_space<vmem>>, %arg14: memref<2x32x64xf32, #tpu.memory_space<vmem>>, %arg15: memref<2x1x64xf32, #tpu.memory_space<vmem>>, %arg16: memref<2x64x32xf32, #tpu.memory_space<vmem>>, %arg17: memref<2x1x32xf32, #tpu.memory_space<vmem>>, %arg18: memref<2x4x32xf32, #tpu.memory_space<vmem>>, %arg19: memref<2x12x32x8xf32, #tpu.memory_space<vmem>>, %arg20: memref<2x12x1x8xf32, #tpu.memory_space<vmem>>, %arg21: memref<2x4x8x32xf32, #tpu.memory_space<vmem>>, %arg22: memref<2x1x32xf32, #tpu.memory_space<vmem>>, %arg23: memref<2x4x32x8xf32, #tpu.memory_space<vmem>>, %arg24: memref<2x4x1x8xf32, #tpu.memory_space<vmem>>, %arg25: memref<2x8x32x8xf32, #tpu.memory_space<vmem>>, %arg26: memref<2x8x1x8xf32, #tpu.memory_space<vmem>>, %arg27: memref<2x4x8x32xf32, #tpu.memory_space<vmem>>, %arg28: memref<2x1x32xf32, #tpu.memory_space<vmem>>, %arg29: memref<2x32x64xf32, #tpu.memory_space<vmem>>, %arg30: memref<2x1x64xf32, #tpu.memory_space<vmem>>, %arg31: memref<2x64x32xf32, #tpu.memory_space<vmem>>, %arg32: memref<2x1x32xf32, #tpu.memory_space<vmem>>, %arg33: memref<2x6x32xf32, #tpu.memory_space<vmem>>, %arg34: memref<32x128xf32, #tpu.memory_space<vmem>>, %arg35: memref<1x128xf32, #tpu.memory_space<vmem>>, %arg36: memref<1x8x128xf32, #tpu.memory_space<vmem>>) attributes {dimension_semantics = [#tpu.dimension_semantics<parallel>], iteration_bounds = array<i64: 2>, scalar_prefetch = 0 : i64, scratch_operands = 0 : i64, tpu.core_type = #tpu.core_type<tc>, window_params = [{transform_indices = @transform_0, window_bounds = array<i64: 1, 8, 4>}, {transform_indices = @transform_1, window_bounds = array<i64: 1, 8, 4>}, {pipeline_mode = #tpu.pipeline_mode<synchronous>, transform_indices = @transform_2, window_bounds = array<i64: 8, 32>}, {pipeline_mode = #tpu.pipeline_mode<synchronous>, transform_indices = @transform_3, window_bounds = array<i64: 8, 32>}, {pipeline_mode = #tpu.pipeline_mode<synchronous>, transform_indices = @transform_4, window_bounds = array<i64: 8, 8>}, {pipeline_mode = #tpu.pipeline_mode<synchronous>, transform_indices = @transform_5, window_bounds = array<i64: 4, 32>}, {pipeline_mode = #tpu.pipeline_mode<synchronous>, transform_indices = @transform_6, window_bounds = array<i64: 1, 32>}, {pipeline_mode = #tpu.pipeline_mode<synchronous>, transform_indices = @transform_7, window_bounds = array<i64: 4, 32>}, {pipeline_mode = #tpu.pipeline_mode<synchronous>, transform_indices = @transform_8, window_bounds = array<i64: 1, 32>}, {pipeline_mode = #tpu.pipeline_mode<synchronous>, transform_indices = @transform_9, window_bounds = array<i64: 2, 12, 32, 8>}, {pipeline_mode = #tpu.pipeline_mode<synchronous>, transform_indices = @transform_10, window_bounds = array<i64: 2, 12, 1, 8>}, {pipeline_mode = #tpu.pipeline_mode<synchronous>, transform_indices = @transform_11, window_bounds = array<i64: 2, 4, 8, 32>}, {pipeline_mode = #tpu.pipeline_mode<synchronous>, transform_indices = @transform_12, window_bounds = array<i64: 2, 1, 32>}, {pipeline_mode = #tpu.pipeline_mode<synchronous>, transform_indices = @transform_13, window_bounds = array<i64: 2, 32, 64>}, {pipeline_mode = #tpu.pipeline_mode<synchronous>, transform_indices = @transform_14, window_bounds = array<i64: 2, 1, 64>}, {pipeline_mode = #tpu.pipeline_mode<synchronous>, transform_indices = @transform_15, window_bounds = array<i64: 2, 64, 32>}, {pipeline_mode = #tpu.pipeline_mode<synchronous>, transform_indices = @transform_16, window_bounds = array<i64: 2, 1, 32>}, {pipeline_mode = #tpu.pipeline_mode<synchronous>, transform_indices = @transform_17, window_bounds = array<i64: 2, 4, 32>}, {pipeline_mode = #tpu.pipeline_mode<synchronous>, transform_indices = @transform_18, window_bounds = array<i64: 2, 12, 32, 8>}, {pipeline_mode = #tpu.pipeline_mode<synchronous>, transform_indices = @transform_19, window_bounds = array<i64: 2, 12, 1, 8>}, {pipeline_mode = #tpu.pipeline_mode<synchronous>, transform_indices = @transform_20, window_bounds = array<i64: 2, 4, 8, 32>}, {pipeline_mode = #tpu.pipeline_mode<synchronous>, transform_indices = @transform_21, window_bounds = array<i64: 2, 1, 32>}, {pipeline_mode = #tpu.pipeline_mode<synchronous>, transform_indices = @transform_22, window_bounds = array<i64: 2, 4, 32, 8>}, {pipeline_mode = #tpu.pipeline_mode<synchronous>, transform_indices = @transform_23, window_bounds = array<i64: 2, 4, 1, 8>}, {pipeline_mode = #tpu.pipeline_mode<synchronous>, transform_indices = @transform_24, window_bounds = array<i64: 2, 8, 32, 8>}, {pipeline_mode = #tpu.pipeline_mode<synchronous>, transform_indices = @transform_25, window_bounds = array<i64: 2, 8, 1, 8>}, {pipeline_mode = #tpu.pipeline_mode<synchronous>, transform_indices = @transform_26, window_bounds = array<i64: 2, 4, 8, 32>}, {pipeline_mode = #tpu.pipeline_mode<synchronous>, transform_indices = @transform_27, window_bounds = array<i64: 2, 1, 32>}, {pipeline_mode = #tpu.pipeline_mode<synchronous>, transform_indices = @transform_28, window_bounds = array<i64: 2, 32, 64>}, {pipeline_mode = #tpu.pipeline_mode<synchronous>, transform_indices = @transform_29, window_bounds = array<i64: 2, 1, 64>}, {pipeline_mode = #tpu.pipeline_mode<synchronous>, transform_indices = @transform_30, window_bounds = array<i64: 2, 64, 32>}, {pipeline_mode = #tpu.pipeline_mode<synchronous>, transform_indices = @transform_31, window_bounds = array<i64: 2, 1, 32>}, {pipeline_mode = #tpu.pipeline_mode<synchronous>, transform_indices = @transform_32, window_bounds = array<i64: 2, 6, 32>}, {pipeline_mode = #tpu.pipeline_mode<synchronous>, transform_indices = @transform_33, window_bounds = array<i64: 32, 128>}, {pipeline_mode = #tpu.pipeline_mode<synchronous>, transform_indices = @transform_34, window_bounds = array<i64: 1, 128>}, {transform_indices = @transform_35, window_bounds = array<i64: 1, 8, 128>}]} {
    %c0 = arith.constant 0 : index
    %c0_0 = arith.constant 0 : index
    %c0_1 = arith.constant 0 : index
    %0 = vector.load %arg1[%c0, %c0_0, %c0_1] : memref<1x8x4xf32, #tpu.memory_space<vmem>>, vector<1x8x4xf32>
    %1 = vector.shape_cast %0 : vector<1x8x4xf32> to vector<8x4xf32>
    %c0_2 = arith.constant 0 : index
    %c0_3 = arith.constant 0 : index
    %2 = vector.load %arg6[%c0_2, %c0_3] : memref<4x32xf32, #tpu.memory_space<vmem>>, vector<4x32xf32>
    %cst = arith.constant dense<0.000000e+00> : vector<8x32xf32>
    %3 = tpu.matmul %1, %2, %cst {dimension_numbers = #tpu.dot_dimension_numbers<[1], [0], [0], [1], [0, 0, 1, 1], [], []>} : vector<8x4xf32>, vector<4x32xf32>, vector<8x32xf32> -> vector<8x32xf32>
    %c0_4 = arith.constant 0 : index
    %c0_5 = arith.constant 0 : index
    %4 = vector.load %arg7[%c0_4, %c0_5] : memref<1x32xf32, #tpu.memory_space<vmem>>, vector<1x32xf32>
    %5 = vector.broadcast %4 : vector<1x32xf32> to vector<8x32xf32>
    %6 = arith.addf %3, %5 : vector<8x32xf32>
    %c0_6 = arith.constant 0 : index
    %c0_7 = arith.constant 0 : index
    %7 = vector.load %arg3[%c0_6, %c0_7] : memref<8x32xf32, #tpu.memory_space<vmem>>, vector<8x32xf32>
    %8 = arith.addf %6, %7 : vector<8x32xf32>
    %c0_8 = arith.constant 0 : index
    %c0_9 = arith.constant 0 : index
    %c0_10 = arith.constant 0 : index
    %9 = vector.load %arg18[%c0_8, %c0_9, %c0_10] : memref<2x4x32xf32, #tpu.memory_space<vmem>>, vector<1x4x32xf32>
    %10 = vector.shape_cast %9 : vector<1x4x32xf32> to vector<4x32xf32>
    %c0_11 = arith.constant 0 : index
    %c0_12 = arith.constant 0 : index
    %c0_13 = arith.constant 0 : index
    %c0_14 = arith.constant 0 : index
    %11 = vector.load %arg10[%c0_11, %c0_12, %c0_13, %c0_14] : memref<2x12x32x8xf32, #tpu.memory_space<vmem>>, vector<1x12x32x8xf32>
    %12 = vector.shape_cast %11 : vector<1x12x32x8xf32> to vector<12x32x8xf32>
    %c0_15 = arith.constant 0 : index
    %c0_16 = arith.constant 0 : index
    %c0_17 = arith.constant 0 : index
    %c0_18 = arith.constant 0 : index
    %13 = vector.load %arg11[%c0_15, %c0_16, %c0_17, %c0_18] : memref<2x12x1x8xf32, #tpu.memory_space<vmem>>, vector<1x12x1x8xf32>
    %14 = vector.shape_cast %13 : vector<1x12x1x8xf32> to vector<12x1x8xf32>
    %15 = vector.shape_cast %8 : vector<8x32xf32> to vector<1x8x32xf32>
    %16 = vector.shape_cast %15 : vector<1x8x32xf32> to vector<1x8x32xf32>
    %17 = vector.broadcast %16 : vector<1x8x32xf32> to vector<12x8x32xf32>
    %cst_19 = arith.constant dense<0.000000e+00> : vector<12x8x8xf32>
    %18 = tpu.matmul %17, %12, %cst_19 {dimension_numbers = #tpu.dot_dimension_numbers<[2], [1], [1], [2], [0, 0, 0, 1, 1, 2], [0], [0]>} : vector<12x8x32xf32>, vector<12x32x8xf32>, vector<12x8x8xf32> -> vector<12x8x8xf32>
    %19 = vector.broadcast %14 : vector<12x1x8xf32> to vector<12x8x8xf32>
    %20 = arith.addf %18, %19 : vector<12x8x8xf32>
    %21 = vector.extract_strided_slice %20 {offsets = [0, 0, 0], sizes = [4, 8, 8], strides = [1, 1, 1]} : vector<12x8x8xf32> to vector<4x8x8xf32>
    %22 = vector.extract_strided_slice %20 {offsets = [4, 0, 0], sizes = [4, 8, 8], strides = [1, 1, 1]} : vector<12x8x8xf32> to vector<4x8x8xf32>
    %23 = vector.extract_strided_slice %20 {offsets = [8, 0, 0], sizes = [4, 8, 8], strides = [1, 1, 1]} : vector<12x8x8xf32> to vector<4x8x8xf32>
    %c0_20 = arith.constant 0 : index
    %c0_21 = arith.constant 0 : index
    %c0_22 = arith.constant 0 : index
    %c0_23 = arith.constant 0 : index
    %24 = vector.load %arg12[%c0_20, %c0_21, %c0_22, %c0_23] : memref<2x4x8x32xf32, #tpu.memory_space<vmem>>, vector<1x4x8x32xf32>
    %25 = vector.shape_cast %24 : vector<1x4x8x32xf32> to vector<4x8x32xf32>
    %c0_24 = arith.constant 0 : index
    %c0_25 = arith.constant 0 : index
    %c0_26 = arith.constant 0 : index
    %26 = vector.load %arg13[%c0_24, %c0_25, %c0_26] : memref<2x1x32xf32, #tpu.memory_space<vmem>>, vector<1x1x32xf32>
    %27 = vector.shape_cast %26 : vector<1x1x32xf32> to vector<1x32xf32>
    %cst_27 = arith.constant dense<0.000000e+00> : vector<4x8x8xf32>
    %28 = tpu.matmul %21, %22, %cst_27 {dimension_numbers = #tpu.dot_dimension_numbers<[2], [2], [1], [1], [0, 0, 0, 1, 1, 1], [0], [0]>} : vector<4x8x8xf32>, vector<4x8x8xf32>, vector<4x8x8xf32> -> vector<4x8x8xf32>
    %cst_28 = arith.constant dense<0xFF800000> : vector<4x8xf32>
    %29 = vector.multi_reduction <maximumf>, %28, %cst_28 [2] : vector<4x8x8xf32> to vector<4x8xf32>
    %30 = vector.shape_cast %29 : vector<4x8xf32> to vector<4x8x1xf32>
    %31 = vector.broadcast %30 : vector<4x8x1xf32> to vector<4x8x8xf32>
    %32 = arith.subf %28, %31 : vector<4x8x8xf32>
    %33 = math.exp %32 : vector<4x8x8xf32>
    %cst_29 = arith.constant dense<0.000000e+00> : vector<4x8xf32>
    %34 = vector.multi_reduction <add>, %33, %cst_29 [2] : vector<4x8x8xf32> to vector<4x8xf32>
    %35 = vector.shape_cast %34 : vector<4x8xf32> to vector<4x8x1xf32>
    %cst_30 = arith.constant 1.000000e-30 : f32
    %36 = vector.broadcast %cst_30 : f32 to vector<4x8x1xf32>
    %37 = arith.maximumf %35, %36 : vector<4x8x1xf32>
    %38 = tpu.reciprocal %37 {approx = true} : vector<4x8x1xf32> -> vector<4x8x1xf32>
    %39 = arith.mulf %35, %38 : vector<4x8x1xf32>
    %cst_31 = arith.constant 2.000000e+00 : f32
    %40 = vector.broadcast %cst_31 : f32 to vector<4x8x1xf32>
    %41 = arith.subf %40, %39 : vector<4x8x1xf32>
    %42 = arith.mulf %38, %41 : vector<4x8x1xf32>
    %43 = vector.broadcast %42 : vector<4x8x1xf32> to vector<4x8x8xf32>
    %44 = arith.mulf %33, %43 : vector<4x8x8xf32>
    %cst_32 = arith.constant dense<0.000000e+00> : vector<4x8x8xf32>
    %45 = tpu.matmul %44, %23, %cst_32 {dimension_numbers = #tpu.dot_dimension_numbers<[2], [1], [1], [2], [0, 0, 0, 1, 1, 2], [0], [0]>} : vector<4x8x8xf32>, vector<4x8x8xf32>, vector<4x8x8xf32> -> vector<4x8x8xf32>
    %cst_33 = arith.constant dense<0.000000e+00> : vector<4x8x32xf32>
    %46 = tpu.matmul %45, %25, %cst_33 {dimension_numbers = #tpu.dot_dimension_numbers<[2], [1], [1], [2], [0, 0, 0, 1, 1, 2], [0], [0]>} : vector<4x8x8xf32>, vector<4x8x32xf32>, vector<4x8x32xf32> -> vector<4x8x32xf32>
    %cst_34 = arith.constant dense<0.000000e+00> : vector<8x32xf32>
    %47 = vector.multi_reduction <add>, %46, %cst_34 [0] : vector<4x8x32xf32> to vector<8x32xf32>
    %48 = vector.broadcast %27 : vector<1x32xf32> to vector<8x32xf32>
    %49 = arith.addf %47, %48 : vector<8x32xf32>
    %50 = arith.addf %8, %49 : vector<8x32xf32>
    %51 = vector.extract_strided_slice %10 {offsets = [0, 0], sizes = [1, 32], strides = [1, 1]} : vector<4x32xf32> to vector<1x32xf32>
    %52 = vector.extract_strided_slice %10 {offsets = [1, 0], sizes = [1, 32], strides = [1, 1]} : vector<4x32xf32> to vector<1x32xf32>
    %cst_35 = arith.constant dense<0.000000e+00> : vector<8xf32>
    %53 = vector.multi_reduction <add>, %50, %cst_35 [1] : vector<8x32xf32> to vector<8xf32>
    %54 = vector.shape_cast %53 : vector<8xf32> to vector<8x1xf32>
    %cst_36 = arith.constant 3.200000e+01 : f32
    %55 = vector.broadcast %cst_36 : f32 to vector<8x1xf32>
    %56 = arith.divf %54, %55 : vector<8x1xf32>
    %57 = vector.broadcast %56 : vector<8x1xf32> to vector<8x32xf32>
    %58 = arith.subf %50, %57 : vector<8x32xf32>
    %59 = arith.mulf %58, %58 : vector<8x32xf32>
    %cst_37 = arith.constant dense<0.000000e+00> : vector<8xf32>
    %60 = vector.multi_reduction <add>, %59, %cst_37 [1] : vector<8x32xf32> to vector<8xf32>
    %61 = vector.shape_cast %60 : vector<8xf32> to vector<8x1xf32>
    %cst_38 = arith.constant 3.200000e+01 : f32
    %62 = vector.broadcast %cst_38 : f32 to vector<8x1xf32>
    %63 = arith.divf %61, %62 : vector<8x1xf32>
    %64 = vector.broadcast %56 : vector<8x1xf32> to vector<8x32xf32>
    %65 = arith.subf %50, %64 : vector<8x32xf32>
    %cst_39 = arith.constant 9.99999974E-6 : f32
    %66 = vector.broadcast %cst_39 : f32 to vector<8x1xf32>
    %67 = arith.addf %63, %66 : vector<8x1xf32>
    %68 = math.rsqrt %67 : vector<8x1xf32>
    %69 = vector.broadcast %68 : vector<8x1xf32> to vector<8x32xf32>
    %70 = arith.mulf %65, %69 : vector<8x32xf32>
    %71 = vector.broadcast %51 : vector<1x32xf32> to vector<8x32xf32>
    %72 = arith.mulf %70, %71 : vector<8x32xf32>
    %73 = vector.broadcast %52 : vector<1x32xf32> to vector<8x32xf32>
    %74 = arith.addf %72, %73 : vector<8x32xf32>
    %c0_40 = arith.constant 0 : index
    %c0_41 = arith.constant 0 : index
    %c0_42 = arith.constant 0 : index
    %75 = vector.load %arg14[%c0_40, %c0_41, %c0_42] : memref<2x32x64xf32, #tpu.memory_space<vmem>>, vector<1x32x64xf32>
    %76 = vector.shape_cast %75 : vector<1x32x64xf32> to vector<32x64xf32>
    %c0_43 = arith.constant 0 : index
    %c0_44 = arith.constant 0 : index
    %c0_45 = arith.constant 0 : index
    %77 = vector.load %arg15[%c0_43, %c0_44, %c0_45] : memref<2x1x64xf32, #tpu.memory_space<vmem>>, vector<1x1x64xf32>
    %78 = vector.shape_cast %77 : vector<1x1x64xf32> to vector<1x64xf32>
    %c0_46 = arith.constant 0 : index
    %c0_47 = arith.constant 0 : index
    %c0_48 = arith.constant 0 : index
    %79 = vector.load %arg16[%c0_46, %c0_47, %c0_48] : memref<2x64x32xf32, #tpu.memory_space<vmem>>, vector<1x64x32xf32>
    %80 = vector.shape_cast %79 : vector<1x64x32xf32> to vector<64x32xf32>
    %c0_49 = arith.constant 0 : index
    %c0_50 = arith.constant 0 : index
    %c0_51 = arith.constant 0 : index
    %81 = vector.load %arg17[%c0_49, %c0_50, %c0_51] : memref<2x1x32xf32, #tpu.memory_space<vmem>>, vector<1x1x32xf32>
    %82 = vector.shape_cast %81 : vector<1x1x32xf32> to vector<1x32xf32>
    %cst_52 = arith.constant dense<0.000000e+00> : vector<8x64xf32>
    %83 = tpu.matmul %74, %76, %cst_52 {dimension_numbers = #tpu.dot_dimension_numbers<[1], [0], [0], [1], [0, 0, 1, 1], [], []>} : vector<8x32xf32>, vector<32x64xf32>, vector<8x64xf32> -> vector<8x64xf32>
    %84 = vector.broadcast %78 : vector<1x64xf32> to vector<8x64xf32>
    %85 = arith.addf %83, %84 : vector<8x64xf32>
    %cst_53 = arith.constant 0.000000e+00 : f32
    %86 = vector.broadcast %cst_53 : f32 to vector<8x64xf32>
    %87 = arith.maximumf %85, %86 : vector<8x64xf32>
    %cst_54 = arith.constant dense<0.000000e+00> : vector<8x32xf32>
    %88 = tpu.matmul %87, %80, %cst_54 {dimension_numbers = #tpu.dot_dimension_numbers<[1], [0], [0], [1], [0, 0, 1, 1], [], []>} : vector<8x64xf32>, vector<64x32xf32>, vector<8x32xf32> -> vector<8x32xf32>
    %89 = vector.broadcast %82 : vector<1x32xf32> to vector<8x32xf32>
    %90 = arith.addf %88, %89 : vector<8x32xf32>
    %91 = arith.addf %74, %90 : vector<8x32xf32>
    %92 = vector.extract_strided_slice %10 {offsets = [2, 0], sizes = [1, 32], strides = [1, 1]} : vector<4x32xf32> to vector<1x32xf32>
    %93 = vector.extract_strided_slice %10 {offsets = [3, 0], sizes = [1, 32], strides = [1, 1]} : vector<4x32xf32> to vector<1x32xf32>
    %cst_55 = arith.constant dense<0.000000e+00> : vector<8xf32>
    %94 = vector.multi_reduction <add>, %91, %cst_55 [1] : vector<8x32xf32> to vector<8xf32>
    %95 = vector.shape_cast %94 : vector<8xf32> to vector<8x1xf32>
    %cst_56 = arith.constant 3.200000e+01 : f32
    %96 = vector.broadcast %cst_56 : f32 to vector<8x1xf32>
    %97 = arith.divf %95, %96 : vector<8x1xf32>
    %98 = vector.broadcast %97 : vector<8x1xf32> to vector<8x32xf32>
    %99 = arith.subf %91, %98 : vector<8x32xf32>
    %100 = arith.mulf %99, %99 : vector<8x32xf32>
    %cst_57 = arith.constant dense<0.000000e+00> : vector<8xf32>
    %101 = vector.multi_reduction <add>, %100, %cst_57 [1] : vector<8x32xf32> to vector<8xf32>
    %102 = vector.shape_cast %101 : vector<8xf32> to vector<8x1xf32>
    %cst_58 = arith.constant 3.200000e+01 : f32
    %103 = vector.broadcast %cst_58 : f32 to vector<8x1xf32>
    %104 = arith.divf %102, %103 : vector<8x1xf32>
    %105 = vector.broadcast %97 : vector<8x1xf32> to vector<8x32xf32>
    %106 = arith.subf %91, %105 : vector<8x32xf32>
    %cst_59 = arith.constant 9.99999974E-6 : f32
    %107 = vector.broadcast %cst_59 : f32 to vector<8x1xf32>
    %108 = arith.addf %104, %107 : vector<8x1xf32>
    %109 = math.rsqrt %108 : vector<8x1xf32>
    %110 = vector.broadcast %109 : vector<8x1xf32> to vector<8x32xf32>
    %111 = arith.mulf %106, %110 : vector<8x32xf32>
    %112 = vector.broadcast %92 : vector<1x32xf32> to vector<8x32xf32>
    %113 = arith.mulf %111, %112 : vector<8x32xf32>
    %114 = vector.broadcast %93 : vector<1x32xf32> to vector<8x32xf32>
    %115 = arith.addf %113, %114 : vector<8x32xf32>
    %c1 = arith.constant 1 : index
    %c0_60 = arith.constant 0 : index
    %c0_61 = arith.constant 0 : index
    %116 = vector.load %arg18[%c1, %c0_60, %c0_61] : memref<2x4x32xf32, #tpu.memory_space<vmem>>, vector<1x4x32xf32>
    %117 = vector.shape_cast %116 : vector<1x4x32xf32> to vector<4x32xf32>
    %c1_62 = arith.constant 1 : index
    %c0_63 = arith.constant 0 : index
    %c0_64 = arith.constant 0 : index
    %c0_65 = arith.constant 0 : index
    %118 = vector.load %arg10[%c1_62, %c0_63, %c0_64, %c0_65] : memref<2x12x32x8xf32, #tpu.memory_space<vmem>>, vector<1x12x32x8xf32>
    %119 = vector.shape_cast %118 : vector<1x12x32x8xf32> to vector<12x32x8xf32>
    %c1_66 = arith.constant 1 : index
    %c0_67 = arith.constant 0 : index
    %c0_68 = arith.constant 0 : index
    %c0_69 = arith.constant 0 : index
    %120 = vector.load %arg11[%c1_66, %c0_67, %c0_68, %c0_69] : memref<2x12x1x8xf32, #tpu.memory_space<vmem>>, vector<1x12x1x8xf32>
    %121 = vector.shape_cast %120 : vector<1x12x1x8xf32> to vector<12x1x8xf32>
    %122 = vector.shape_cast %115 : vector<8x32xf32> to vector<1x8x32xf32>
    %123 = vector.shape_cast %122 : vector<1x8x32xf32> to vector<1x8x32xf32>
    %124 = vector.broadcast %123 : vector<1x8x32xf32> to vector<12x8x32xf32>
    %cst_70 = arith.constant dense<0.000000e+00> : vector<12x8x8xf32>
    %125 = tpu.matmul %124, %119, %cst_70 {dimension_numbers = #tpu.dot_dimension_numbers<[2], [1], [1], [2], [0, 0, 0, 1, 1, 2], [0], [0]>} : vector<12x8x32xf32>, vector<12x32x8xf32>, vector<12x8x8xf32> -> vector<12x8x8xf32>
    %126 = vector.broadcast %121 : vector<12x1x8xf32> to vector<12x8x8xf32>
    %127 = arith.addf %125, %126 : vector<12x8x8xf32>
    %128 = vector.extract_strided_slice %127 {offsets = [0, 0, 0], sizes = [4, 8, 8], strides = [1, 1, 1]} : vector<12x8x8xf32> to vector<4x8x8xf32>
    %129 = vector.extract_strided_slice %127 {offsets = [4, 0, 0], sizes = [4, 8, 8], strides = [1, 1, 1]} : vector<12x8x8xf32> to vector<4x8x8xf32>
    %130 = vector.extract_strided_slice %127 {offsets = [8, 0, 0], sizes = [4, 8, 8], strides = [1, 1, 1]} : vector<12x8x8xf32> to vector<4x8x8xf32>
    %c1_71 = arith.constant 1 : index
    %c0_72 = arith.constant 0 : index
    %c0_73 = arith.constant 0 : index
    %c0_74 = arith.constant 0 : index
    %131 = vector.load %arg12[%c1_71, %c0_72, %c0_73, %c0_74] : memref<2x4x8x32xf32, #tpu.memory_space<vmem>>, vector<1x4x8x32xf32>
    %132 = vector.shape_cast %131 : vector<1x4x8x32xf32> to vector<4x8x32xf32>
    %c1_75 = arith.constant 1 : index
    %c0_76 = arith.constant 0 : index
    %c0_77 = arith.constant 0 : index
    %133 = vector.load %arg13[%c1_75, %c0_76, %c0_77] : memref<2x1x32xf32, #tpu.memory_space<vmem>>, vector<1x1x32xf32>
    %134 = vector.shape_cast %133 : vector<1x1x32xf32> to vector<1x32xf32>
    %cst_78 = arith.constant dense<0.000000e+00> : vector<4x8x8xf32>
    %135 = tpu.matmul %128, %129, %cst_78 {dimension_numbers = #tpu.dot_dimension_numbers<[2], [2], [1], [1], [0, 0, 0, 1, 1, 1], [0], [0]>} : vector<4x8x8xf32>, vector<4x8x8xf32>, vector<4x8x8xf32> -> vector<4x8x8xf32>
    %cst_79 = arith.constant dense<0xFF800000> : vector<4x8xf32>
    %136 = vector.multi_reduction <maximumf>, %135, %cst_79 [2] : vector<4x8x8xf32> to vector<4x8xf32>
    %137 = vector.shape_cast %136 : vector<4x8xf32> to vector<4x8x1xf32>
    %138 = vector.broadcast %137 : vector<4x8x1xf32> to vector<4x8x8xf32>
    %139 = arith.subf %135, %138 : vector<4x8x8xf32>
    %140 = math.exp %139 : vector<4x8x8xf32>
    %cst_80 = arith.constant dense<0.000000e+00> : vector<4x8xf32>
    %141 = vector.multi_reduction <add>, %140, %cst_80 [2] : vector<4x8x8xf32> to vector<4x8xf32>
    %142 = vector.shape_cast %141 : vector<4x8xf32> to vector<4x8x1xf32>
    %cst_81 = arith.constant 1.000000e-30 : f32
    %143 = vector.broadcast %cst_81 : f32 to vector<4x8x1xf32>
    %144 = arith.maximumf %142, %143 : vector<4x8x1xf32>
    %145 = tpu.reciprocal %144 {approx = true} : vector<4x8x1xf32> -> vector<4x8x1xf32>
    %146 = arith.mulf %142, %145 : vector<4x8x1xf32>
    %cst_82 = arith.constant 2.000000e+00 : f32
    %147 = vector.broadcast %cst_82 : f32 to vector<4x8x1xf32>
    %148 = arith.subf %147, %146 : vector<4x8x1xf32>
    %149 = arith.mulf %145, %148 : vector<4x8x1xf32>
    %150 = vector.broadcast %149 : vector<4x8x1xf32> to vector<4x8x8xf32>
    %151 = arith.mulf %140, %150 : vector<4x8x8xf32>
    %cst_83 = arith.constant dense<0.000000e+00> : vector<4x8x8xf32>
    %152 = tpu.matmul %151, %130, %cst_83 {dimension_numbers = #tpu.dot_dimension_numbers<[2], [1], [1], [2], [0, 0, 0, 1, 1, 2], [0], [0]>} : vector<4x8x8xf32>, vector<4x8x8xf32>, vector<4x8x8xf32> -> vector<4x8x8xf32>
    %cst_84 = arith.constant dense<0.000000e+00> : vector<4x8x32xf32>
    %153 = tpu.matmul %152, %132, %cst_84 {dimension_numbers = #tpu.dot_dimension_numbers<[2], [1], [1], [2], [0, 0, 0, 1, 1, 2], [0], [0]>} : vector<4x8x8xf32>, vector<4x8x32xf32>, vector<4x8x32xf32> -> vector<4x8x32xf32>
    %cst_85 = arith.constant dense<0.000000e+00> : vector<8x32xf32>
    %154 = vector.multi_reduction <add>, %153, %cst_85 [0] : vector<4x8x32xf32> to vector<8x32xf32>
    %155 = vector.broadcast %134 : vector<1x32xf32> to vector<8x32xf32>
    %156 = arith.addf %154, %155 : vector<8x32xf32>
    %157 = arith.addf %115, %156 : vector<8x32xf32>
    %158 = vector.extract_strided_slice %117 {offsets = [0, 0], sizes = [1, 32], strides = [1, 1]} : vector<4x32xf32> to vector<1x32xf32>
    %159 = vector.extract_strided_slice %117 {offsets = [1, 0], sizes = [1, 32], strides = [1, 1]} : vector<4x32xf32> to vector<1x32xf32>
    %cst_86 = arith.constant dense<0.000000e+00> : vector<8xf32>
    %160 = vector.multi_reduction <add>, %157, %cst_86 [1] : vector<8x32xf32> to vector<8xf32>
    %161 = vector.shape_cast %160 : vector<8xf32> to vector<8x1xf32>
    %cst_87 = arith.constant 3.200000e+01 : f32
    %162 = vector.broadcast %cst_87 : f32 to vector<8x1xf32>
    %163 = arith.divf %161, %162 : vector<8x1xf32>
    %164 = vector.broadcast %163 : vector<8x1xf32> to vector<8x32xf32>
    %165 = arith.subf %157, %164 : vector<8x32xf32>
    %166 = arith.mulf %165, %165 : vector<8x32xf32>
    %cst_88 = arith.constant dense<0.000000e+00> : vector<8xf32>
    %167 = vector.multi_reduction <add>, %166, %cst_88 [1] : vector<8x32xf32> to vector<8xf32>
    %168 = vector.shape_cast %167 : vector<8xf32> to vector<8x1xf32>
    %cst_89 = arith.constant 3.200000e+01 : f32
    %169 = vector.broadcast %cst_89 : f32 to vector<8x1xf32>
    %170 = arith.divf %168, %169 : vector<8x1xf32>
    %171 = vector.broadcast %163 : vector<8x1xf32> to vector<8x32xf32>
    %172 = arith.subf %157, %171 : vector<8x32xf32>
    %cst_90 = arith.constant 9.99999974E-6 : f32
    %173 = vector.broadcast %cst_90 : f32 to vector<8x1xf32>
    %174 = arith.addf %170, %173 : vector<8x1xf32>
    %175 = math.rsqrt %174 : vector<8x1xf32>
    %176 = vector.broadcast %175 : vector<8x1xf32> to vector<8x32xf32>
    %177 = arith.mulf %172, %176 : vector<8x32xf32>
    %178 = vector.broadcast %158 : vector<1x32xf32> to vector<8x32xf32>
    %179 = arith.mulf %177, %178 : vector<8x32xf32>
    %180 = vector.broadcast %159 : vector<1x32xf32> to vector<8x32xf32>
    %181 = arith.addf %179, %180 : vector<8x32xf32>
    %c1_91 = arith.constant 1 : index
    %c0_92 = arith.constant 0 : index
    %c0_93 = arith.constant 0 : index
    %182 = vector.load %arg14[%c1_91, %c0_92, %c0_93] : memref<2x32x64xf32, #tpu.memory_space<vmem>>, vector<1x32x64xf32>
    %183 = vector.shape_cast %182 : vector<1x32x64xf32> to vector<32x64xf32>
    %c1_94 = arith.constant 1 : index
    %c0_95 = arith.constant 0 : index
    %c0_96 = arith.constant 0 : index
    %184 = vector.load %arg15[%c1_94, %c0_95, %c0_96] : memref<2x1x64xf32, #tpu.memory_space<vmem>>, vector<1x1x64xf32>
    %185 = vector.shape_cast %184 : vector<1x1x64xf32> to vector<1x64xf32>
    %c1_97 = arith.constant 1 : index
    %c0_98 = arith.constant 0 : index
    %c0_99 = arith.constant 0 : index
    %186 = vector.load %arg16[%c1_97, %c0_98, %c0_99] : memref<2x64x32xf32, #tpu.memory_space<vmem>>, vector<1x64x32xf32>
    %187 = vector.shape_cast %186 : vector<1x64x32xf32> to vector<64x32xf32>
    %c1_100 = arith.constant 1 : index
    %c0_101 = arith.constant 0 : index
    %c0_102 = arith.constant 0 : index
    %188 = vector.load %arg17[%c1_100, %c0_101, %c0_102] : memref<2x1x32xf32, #tpu.memory_space<vmem>>, vector<1x1x32xf32>
    %189 = vector.shape_cast %188 : vector<1x1x32xf32> to vector<1x32xf32>
    %cst_103 = arith.constant dense<0.000000e+00> : vector<8x64xf32>
    %190 = tpu.matmul %181, %183, %cst_103 {dimension_numbers = #tpu.dot_dimension_numbers<[1], [0], [0], [1], [0, 0, 1, 1], [], []>} : vector<8x32xf32>, vector<32x64xf32>, vector<8x64xf32> -> vector<8x64xf32>
    %191 = vector.broadcast %185 : vector<1x64xf32> to vector<8x64xf32>
    %192 = arith.addf %190, %191 : vector<8x64xf32>
    %cst_104 = arith.constant 0.000000e+00 : f32
    %193 = vector.broadcast %cst_104 : f32 to vector<8x64xf32>
    %194 = arith.maximumf %192, %193 : vector<8x64xf32>
    %cst_105 = arith.constant dense<0.000000e+00> : vector<8x32xf32>
    %195 = tpu.matmul %194, %187, %cst_105 {dimension_numbers = #tpu.dot_dimension_numbers<[1], [0], [0], [1], [0, 0, 1, 1], [], []>} : vector<8x64xf32>, vector<64x32xf32>, vector<8x32xf32> -> vector<8x32xf32>
    %196 = vector.broadcast %189 : vector<1x32xf32> to vector<8x32xf32>
    %197 = arith.addf %195, %196 : vector<8x32xf32>
    %198 = arith.addf %181, %197 : vector<8x32xf32>
    %199 = vector.extract_strided_slice %117 {offsets = [2, 0], sizes = [1, 32], strides = [1, 1]} : vector<4x32xf32> to vector<1x32xf32>
    %200 = vector.extract_strided_slice %117 {offsets = [3, 0], sizes = [1, 32], strides = [1, 1]} : vector<4x32xf32> to vector<1x32xf32>
    %cst_106 = arith.constant dense<0.000000e+00> : vector<8xf32>
    %201 = vector.multi_reduction <add>, %198, %cst_106 [1] : vector<8x32xf32> to vector<8xf32>
    %202 = vector.shape_cast %201 : vector<8xf32> to vector<8x1xf32>
    %cst_107 = arith.constant 3.200000e+01 : f32
    %203 = vector.broadcast %cst_107 : f32 to vector<8x1xf32>
    %204 = arith.divf %202, %203 : vector<8x1xf32>
    %205 = vector.broadcast %204 : vector<8x1xf32> to vector<8x32xf32>
    %206 = arith.subf %198, %205 : vector<8x32xf32>
    %207 = arith.mulf %206, %206 : vector<8x32xf32>
    %cst_108 = arith.constant dense<0.000000e+00> : vector<8xf32>
    %208 = vector.multi_reduction <add>, %207, %cst_108 [1] : vector<8x32xf32> to vector<8xf32>
    %209 = vector.shape_cast %208 : vector<8xf32> to vector<8x1xf32>
    %cst_109 = arith.constant 3.200000e+01 : f32
    %210 = vector.broadcast %cst_109 : f32 to vector<8x1xf32>
    %211 = arith.divf %209, %210 : vector<8x1xf32>
    %212 = vector.broadcast %204 : vector<8x1xf32> to vector<8x32xf32>
    %213 = arith.subf %198, %212 : vector<8x32xf32>
    %cst_110 = arith.constant 9.99999974E-6 : f32
    %214 = vector.broadcast %cst_110 : f32 to vector<8x1xf32>
    %215 = arith.addf %211, %214 : vector<8x1xf32>
    %216 = math.rsqrt %215 : vector<8x1xf32>
    %217 = vector.broadcast %216 : vector<8x1xf32> to vector<8x32xf32>
    %218 = arith.mulf %213, %217 : vector<8x32xf32>
    %219 = vector.broadcast %199 : vector<1x32xf32> to vector<8x32xf32>
    %220 = arith.mulf %218, %219 : vector<8x32xf32>
    %221 = vector.broadcast %200 : vector<1x32xf32> to vector<8x32xf32>
    %222 = arith.addf %220, %221 : vector<8x32xf32>
    %c0_111 = arith.constant 0 : index
    %c0_112 = arith.constant 0 : index
    %c0_113 = arith.constant 0 : index
    %223 = vector.load %arg2[%c0_111, %c0_112, %c0_113] : memref<1x8x4xf32, #tpu.memory_space<vmem>>, vector<1x8x4xf32>
    %224 = vector.shape_cast %223 : vector<1x8x4xf32> to vector<8x4xf32>
    %c0_114 = arith.constant 0 : index
    %c0_115 = arith.constant 0 : index
    %225 = vector.load %arg8[%c0_114, %c0_115] : memref<4x32xf32, #tpu.memory_space<vmem>>, vector<4x32xf32>
    %cst_116 = arith.constant dense<0.000000e+00> : vector<8x32xf32>
    %226 = tpu.matmul %224, %225, %cst_116 {dimension_numbers = #tpu.dot_dimension_numbers<[1], [0], [0], [1], [0, 0, 1, 1], [], []>} : vector<8x4xf32>, vector<4x32xf32>, vector<8x32xf32> -> vector<8x32xf32>
    %c0_117 = arith.constant 0 : index
    %c0_118 = arith.constant 0 : index
    %227 = vector.load %arg9[%c0_117, %c0_118] : memref<1x32xf32, #tpu.memory_space<vmem>>, vector<1x32xf32>
    %228 = vector.broadcast %227 : vector<1x32xf32> to vector<8x32xf32>
    %229 = arith.addf %226, %228 : vector<8x32xf32>
    %c0_119 = arith.constant 0 : index
    %c0_120 = arith.constant 0 : index
    %230 = vector.load %arg4[%c0_119, %c0_120] : memref<8x32xf32, #tpu.memory_space<vmem>>, vector<8x32xf32>
    %231 = arith.addf %229, %230 : vector<8x32xf32>
    %c0_121 = arith.constant 0 : index
    %c0_122 = arith.constant 0 : index
    %232 = vector.load %arg5[%c0_121, %c0_122] : memref<8x8xf32, #tpu.memory_space<vmem>>, vector<8x8xf32>
    %c0_123 = arith.constant 0 : index
    %c0_124 = arith.constant 0 : index
    %c0_125 = arith.constant 0 : index
    %233 = vector.load %arg33[%c0_123, %c0_124, %c0_125] : memref<2x6x32xf32, #tpu.memory_space<vmem>>, vector<1x6x32xf32>
    %234 = vector.shape_cast %233 : vector<1x6x32xf32> to vector<6x32xf32>
    %c0_126 = arith.constant 0 : index
    %c0_127 = arith.constant 0 : index
    %c0_128 = arith.constant 0 : index
    %c0_129 = arith.constant 0 : index
    %235 = vector.load %arg19[%c0_126, %c0_127, %c0_128, %c0_129] : memref<2x12x32x8xf32, #tpu.memory_space<vmem>>, vector<1x12x32x8xf32>
    %236 = vector.shape_cast %235 : vector<1x12x32x8xf32> to vector<12x32x8xf32>
    %c0_130 = arith.constant 0 : index
    %c0_131 = arith.constant 0 : index
    %c0_132 = arith.constant 0 : index
    %c0_133 = arith.constant 0 : index
    %237 = vector.load %arg20[%c0_130, %c0_131, %c0_132, %c0_133] : memref<2x12x1x8xf32, #tpu.memory_space<vmem>>, vector<1x12x1x8xf32>
    %238 = vector.shape_cast %237 : vector<1x12x1x8xf32> to vector<12x1x8xf32>
    %239 = vector.shape_cast %231 : vector<8x32xf32> to vector<1x8x32xf32>
    %240 = vector.shape_cast %239 : vector<1x8x32xf32> to vector<1x8x32xf32>
    %241 = vector.broadcast %240 : vector<1x8x32xf32> to vector<12x8x32xf32>
    %cst_134 = arith.constant dense<0.000000e+00> : vector<12x8x8xf32>
    %242 = tpu.matmul %241, %236, %cst_134 {dimension_numbers = #tpu.dot_dimension_numbers<[2], [1], [1], [2], [0, 0, 0, 1, 1, 2], [0], [0]>} : vector<12x8x32xf32>, vector<12x32x8xf32>, vector<12x8x8xf32> -> vector<12x8x8xf32>
    %243 = vector.broadcast %238 : vector<12x1x8xf32> to vector<12x8x8xf32>
    %244 = arith.addf %242, %243 : vector<12x8x8xf32>
    %245 = vector.extract_strided_slice %244 {offsets = [0, 0, 0], sizes = [4, 8, 8], strides = [1, 1, 1]} : vector<12x8x8xf32> to vector<4x8x8xf32>
    %246 = vector.extract_strided_slice %244 {offsets = [4, 0, 0], sizes = [4, 8, 8], strides = [1, 1, 1]} : vector<12x8x8xf32> to vector<4x8x8xf32>
    %247 = vector.extract_strided_slice %244 {offsets = [8, 0, 0], sizes = [4, 8, 8], strides = [1, 1, 1]} : vector<12x8x8xf32> to vector<4x8x8xf32>
    %c0_135 = arith.constant 0 : index
    %c0_136 = arith.constant 0 : index
    %c0_137 = arith.constant 0 : index
    %c0_138 = arith.constant 0 : index
    %248 = vector.load %arg21[%c0_135, %c0_136, %c0_137, %c0_138] : memref<2x4x8x32xf32, #tpu.memory_space<vmem>>, vector<1x4x8x32xf32>
    %249 = vector.shape_cast %248 : vector<1x4x8x32xf32> to vector<4x8x32xf32>
    %c0_139 = arith.constant 0 : index
    %c0_140 = arith.constant 0 : index
    %c0_141 = arith.constant 0 : index
    %250 = vector.load %arg22[%c0_139, %c0_140, %c0_141] : memref<2x1x32xf32, #tpu.memory_space<vmem>>, vector<1x1x32xf32>
    %251 = vector.shape_cast %250 : vector<1x1x32xf32> to vector<1x32xf32>
    %cst_142 = arith.constant dense<0.000000e+00> : vector<4x8x8xf32>
    %252 = tpu.matmul %245, %246, %cst_142 {dimension_numbers = #tpu.dot_dimension_numbers<[2], [2], [1], [1], [0, 0, 0, 1, 1, 1], [0], [0]>} : vector<4x8x8xf32>, vector<4x8x8xf32>, vector<4x8x8xf32> -> vector<4x8x8xf32>
    %253 = vector.shape_cast %232 : vector<8x8xf32> to vector<1x8x8xf32>
    %254 = vector.broadcast %253 : vector<1x8x8xf32> to vector<4x8x8xf32>
    %255 = arith.addf %252, %254 : vector<4x8x8xf32>
    %cst_143 = arith.constant dense<0xFF800000> : vector<4x8xf32>
    %256 = vector.multi_reduction <maximumf>, %255, %cst_143 [2] : vector<4x8x8xf32> to vector<4x8xf32>
    %257 = vector.shape_cast %256 : vector<4x8xf32> to vector<4x8x1xf32>
    %258 = vector.broadcast %257 : vector<4x8x1xf32> to vector<4x8x8xf32>
    %259 = arith.subf %255, %258 : vector<4x8x8xf32>
    %260 = math.exp %259 : vector<4x8x8xf32>
    %cst_144 = arith.constant dense<0.000000e+00> : vector<4x8xf32>
    %261 = vector.multi_reduction <add>, %260, %cst_144 [2] : vector<4x8x8xf32> to vector<4x8xf32>
    %262 = vector.shape_cast %261 : vector<4x8xf32> to vector<4x8x1xf32>
    %cst_145 = arith.constant 1.000000e-30 : f32
    %263 = vector.broadcast %cst_145 : f32 to vector<4x8x1xf32>
    %264 = arith.maximumf %262, %263 : vector<4x8x1xf32>
    %265 = tpu.reciprocal %264 {approx = true} : vector<4x8x1xf32> -> vector<4x8x1xf32>
    %266 = arith.mulf %262, %265 : vector<4x8x1xf32>
    %cst_146 = arith.constant 2.000000e+00 : f32
    %267 = vector.broadcast %cst_146 : f32 to vector<4x8x1xf32>
    %268 = arith.subf %267, %266 : vector<4x8x1xf32>
    %269 = arith.mulf %265, %268 : vector<4x8x1xf32>
    %270 = vector.broadcast %269 : vector<4x8x1xf32> to vector<4x8x8xf32>
    %271 = arith.mulf %260, %270 : vector<4x8x8xf32>
    %cst_147 = arith.constant dense<0.000000e+00> : vector<4x8x8xf32>
    %272 = tpu.matmul %271, %247, %cst_147 {dimension_numbers = #tpu.dot_dimension_numbers<[2], [1], [1], [2], [0, 0, 0, 1, 1, 2], [0], [0]>} : vector<4x8x8xf32>, vector<4x8x8xf32>, vector<4x8x8xf32> -> vector<4x8x8xf32>
    %cst_148 = arith.constant dense<0.000000e+00> : vector<4x8x32xf32>
    %273 = tpu.matmul %272, %249, %cst_148 {dimension_numbers = #tpu.dot_dimension_numbers<[2], [1], [1], [2], [0, 0, 0, 1, 1, 2], [0], [0]>} : vector<4x8x8xf32>, vector<4x8x32xf32>, vector<4x8x32xf32> -> vector<4x8x32xf32>
    %cst_149 = arith.constant dense<0.000000e+00> : vector<8x32xf32>
    %274 = vector.multi_reduction <add>, %273, %cst_149 [0] : vector<4x8x32xf32> to vector<8x32xf32>
    %275 = vector.broadcast %251 : vector<1x32xf32> to vector<8x32xf32>
    %276 = arith.addf %274, %275 : vector<8x32xf32>
    %277 = arith.addf %231, %276 : vector<8x32xf32>
    %278 = vector.extract_strided_slice %234 {offsets = [0, 0], sizes = [1, 32], strides = [1, 1]} : vector<6x32xf32> to vector<1x32xf32>
    %279 = vector.extract_strided_slice %234 {offsets = [1, 0], sizes = [1, 32], strides = [1, 1]} : vector<6x32xf32> to vector<1x32xf32>
    %cst_150 = arith.constant dense<0.000000e+00> : vector<8xf32>
    %280 = vector.multi_reduction <add>, %277, %cst_150 [1] : vector<8x32xf32> to vector<8xf32>
    %281 = vector.shape_cast %280 : vector<8xf32> to vector<8x1xf32>
    %cst_151 = arith.constant 3.200000e+01 : f32
    %282 = vector.broadcast %cst_151 : f32 to vector<8x1xf32>
    %283 = arith.divf %281, %282 : vector<8x1xf32>
    %284 = vector.broadcast %283 : vector<8x1xf32> to vector<8x32xf32>
    %285 = arith.subf %277, %284 : vector<8x32xf32>
    %286 = arith.mulf %285, %285 : vector<8x32xf32>
    %cst_152 = arith.constant dense<0.000000e+00> : vector<8xf32>
    %287 = vector.multi_reduction <add>, %286, %cst_152 [1] : vector<8x32xf32> to vector<8xf32>
    %288 = vector.shape_cast %287 : vector<8xf32> to vector<8x1xf32>
    %cst_153 = arith.constant 3.200000e+01 : f32
    %289 = vector.broadcast %cst_153 : f32 to vector<8x1xf32>
    %290 = arith.divf %288, %289 : vector<8x1xf32>
    %291 = vector.broadcast %283 : vector<8x1xf32> to vector<8x32xf32>
    %292 = arith.subf %277, %291 : vector<8x32xf32>
    %cst_154 = arith.constant 9.99999974E-6 : f32
    %293 = vector.broadcast %cst_154 : f32 to vector<8x1xf32>
    %294 = arith.addf %290, %293 : vector<8x1xf32>
    %295 = math.rsqrt %294 : vector<8x1xf32>
    %296 = vector.broadcast %295 : vector<8x1xf32> to vector<8x32xf32>
    %297 = arith.mulf %292, %296 : vector<8x32xf32>
    %298 = vector.broadcast %278 : vector<1x32xf32> to vector<8x32xf32>
    %299 = arith.mulf %297, %298 : vector<8x32xf32>
    %300 = vector.broadcast %279 : vector<1x32xf32> to vector<8x32xf32>
    %301 = arith.addf %299, %300 : vector<8x32xf32>
    %c0_155 = arith.constant 0 : index
    %c0_156 = arith.constant 0 : index
    %c0_157 = arith.constant 0 : index
    %c0_158 = arith.constant 0 : index
    %302 = vector.load %arg23[%c0_155, %c0_156, %c0_157, %c0_158] : memref<2x4x32x8xf32, #tpu.memory_space<vmem>>, vector<1x4x32x8xf32>
    %303 = vector.shape_cast %302 : vector<1x4x32x8xf32> to vector<4x32x8xf32>
    %c0_159 = arith.constant 0 : index
    %c0_160 = arith.constant 0 : index
    %c0_161 = arith.constant 0 : index
    %c0_162 = arith.constant 0 : index
    %304 = vector.load %arg24[%c0_159, %c0_160, %c0_161, %c0_162] : memref<2x4x1x8xf32, #tpu.memory_space<vmem>>, vector<1x4x1x8xf32>
    %305 = vector.shape_cast %304 : vector<1x4x1x8xf32> to vector<4x1x8xf32>
    %306 = vector.shape_cast %301 : vector<8x32xf32> to vector<1x8x32xf32>
    %307 = vector.shape_cast %306 : vector<1x8x32xf32> to vector<1x8x32xf32>
    %308 = vector.broadcast %307 : vector<1x8x32xf32> to vector<4x8x32xf32>
    %cst_163 = arith.constant dense<0.000000e+00> : vector<4x8x8xf32>
    %309 = tpu.matmul %308, %303, %cst_163 {dimension_numbers = #tpu.dot_dimension_numbers<[2], [1], [1], [2], [0, 0, 0, 1, 1, 2], [0], [0]>} : vector<4x8x32xf32>, vector<4x32x8xf32>, vector<4x8x8xf32> -> vector<4x8x8xf32>
    %310 = vector.broadcast %305 : vector<4x1x8xf32> to vector<4x8x8xf32>
    %311 = arith.addf %309, %310 : vector<4x8x8xf32>
    %c0_164 = arith.constant 0 : index
    %c0_165 = arith.constant 0 : index
    %c0_166 = arith.constant 0 : index
    %c0_167 = arith.constant 0 : index
    %312 = vector.load %arg25[%c0_164, %c0_165, %c0_166, %c0_167] : memref<2x8x32x8xf32, #tpu.memory_space<vmem>>, vector<1x8x32x8xf32>
    %313 = vector.shape_cast %312 : vector<1x8x32x8xf32> to vector<8x32x8xf32>
    %c0_168 = arith.constant 0 : index
    %c0_169 = arith.constant 0 : index
    %c0_170 = arith.constant 0 : index
    %c0_171 = arith.constant 0 : index
    %314 = vector.load %arg26[%c0_168, %c0_169, %c0_170, %c0_171] : memref<2x8x1x8xf32, #tpu.memory_space<vmem>>, vector<1x8x1x8xf32>
    %315 = vector.shape_cast %314 : vector<1x8x1x8xf32> to vector<8x1x8xf32>
    %316 = vector.shape_cast %222 : vector<8x32xf32> to vector<1x8x32xf32>
    %317 = vector.shape_cast %316 : vector<1x8x32xf32> to vector<1x8x32xf32>
    %318 = vector.broadcast %317 : vector<1x8x32xf32> to vector<8x8x32xf32>
    %cst_172 = arith.constant dense<0.000000e+00> : vector<8x8x8xf32>
    %319 = tpu.matmul %318, %313, %cst_172 {dimension_numbers = #tpu.dot_dimension_numbers<[2], [1], [1], [2], [0, 0, 0, 1, 1, 2], [0], [0]>} : vector<8x8x32xf32>, vector<8x32x8xf32>, vector<8x8x8xf32> -> vector<8x8x8xf32>
    %320 = vector.broadcast %315 : vector<8x1x8xf32> to vector<8x8x8xf32>
    %321 = arith.addf %319, %320 : vector<8x8x8xf32>
    %322 = vector.extract_strided_slice %321 {offsets = [0, 0, 0], sizes = [4, 8, 8], strides = [1, 1, 1]} : vector<8x8x8xf32> to vector<4x8x8xf32>
    %323 = vector.extract_strided_slice %321 {offsets = [4, 0, 0], sizes = [4, 8, 8], strides = [1, 1, 1]} : vector<8x8x8xf32> to vector<4x8x8xf32>
    %c0_173 = arith.constant 0 : index
    %c0_174 = arith.constant 0 : index
    %c0_175 = arith.constant 0 : index
    %c0_176 = arith.constant 0 : index
    %324 = vector.load %arg27[%c0_173, %c0_174, %c0_175, %c0_176] : memref<2x4x8x32xf32, #tpu.memory_space<vmem>>, vector<1x4x8x32xf32>
    %325 = vector.shape_cast %324 : vector<1x4x8x32xf32> to vector<4x8x32xf32>
    %c0_177 = arith.constant 0 : index
    %c0_178 = arith.constant 0 : index
    %c0_179 = arith.constant 0 : index
    %326 = vector.load %arg28[%c0_177, %c0_178, %c0_179] : memref<2x1x32xf32, #tpu.memory_space<vmem>>, vector<1x1x32xf32>
    %327 = vector.shape_cast %326 : vector<1x1x32xf32> to vector<1x32xf32>
    %cst_180 = arith.constant dense<0.000000e+00> : vector<4x8x8xf32>
    %328 = tpu.matmul %311, %322, %cst_180 {dimension_numbers = #tpu.dot_dimension_numbers<[2], [2], [1], [1], [0, 0, 0, 1, 1, 1], [0], [0]>} : vector<4x8x8xf32>, vector<4x8x8xf32>, vector<4x8x8xf32> -> vector<4x8x8xf32>
    %cst_181 = arith.constant dense<0xFF800000> : vector<4x8xf32>
    %329 = vector.multi_reduction <maximumf>, %328, %cst_181 [2] : vector<4x8x8xf32> to vector<4x8xf32>
    %330 = vector.shape_cast %329 : vector<4x8xf32> to vector<4x8x1xf32>
    %331 = vector.broadcast %330 : vector<4x8x1xf32> to vector<4x8x8xf32>
    %332 = arith.subf %328, %331 : vector<4x8x8xf32>
    %333 = math.exp %332 : vector<4x8x8xf32>
    %cst_182 = arith.constant dense<0.000000e+00> : vector<4x8xf32>
    %334 = vector.multi_reduction <add>, %333, %cst_182 [2] : vector<4x8x8xf32> to vector<4x8xf32>
    %335 = vector.shape_cast %334 : vector<4x8xf32> to vector<4x8x1xf32>
    %cst_183 = arith.constant 1.000000e-30 : f32
    %336 = vector.broadcast %cst_183 : f32 to vector<4x8x1xf32>
    %337 = arith.maximumf %335, %336 : vector<4x8x1xf32>
    %338 = tpu.reciprocal %337 {approx = true} : vector<4x8x1xf32> -> vector<4x8x1xf32>
    %339 = arith.mulf %335, %338 : vector<4x8x1xf32>
    %cst_184 = arith.constant 2.000000e+00 : f32
    %340 = vector.broadcast %cst_184 : f32 to vector<4x8x1xf32>
    %341 = arith.subf %340, %339 : vector<4x8x1xf32>
    %342 = arith.mulf %338, %341 : vector<4x8x1xf32>
    %343 = vector.broadcast %342 : vector<4x8x1xf32> to vector<4x8x8xf32>
    %344 = arith.mulf %333, %343 : vector<4x8x8xf32>
    %cst_185 = arith.constant dense<0.000000e+00> : vector<4x8x8xf32>
    %345 = tpu.matmul %344, %323, %cst_185 {dimension_numbers = #tpu.dot_dimension_numbers<[2], [1], [1], [2], [0, 0, 0, 1, 1, 2], [0], [0]>} : vector<4x8x8xf32>, vector<4x8x8xf32>, vector<4x8x8xf32> -> vector<4x8x8xf32>
    %cst_186 = arith.constant dense<0.000000e+00> : vector<4x8x32xf32>
    %346 = tpu.matmul %345, %325, %cst_186 {dimension_numbers = #tpu.dot_dimension_numbers<[2], [1], [1], [2], [0, 0, 0, 1, 1, 2], [0], [0]>} : vector<4x8x8xf32>, vector<4x8x32xf32>, vector<4x8x32xf32> -> vector<4x8x32xf32>
    %cst_187 = arith.constant dense<0.000000e+00> : vector<8x32xf32>
    %347 = vector.multi_reduction <add>, %346, %cst_187 [0] : vector<4x8x32xf32> to vector<8x32xf32>
    %348 = vector.broadcast %327 : vector<1x32xf32> to vector<8x32xf32>
    %349 = arith.addf %347, %348 : vector<8x32xf32>
    %350 = arith.addf %301, %349 : vector<8x32xf32>
    %351 = vector.extract_strided_slice %234 {offsets = [2, 0], sizes = [1, 32], strides = [1, 1]} : vector<6x32xf32> to vector<1x32xf32>
    %352 = vector.extract_strided_slice %234 {offsets = [3, 0], sizes = [1, 32], strides = [1, 1]} : vector<6x32xf32> to vector<1x32xf32>
    %cst_188 = arith.constant dense<0.000000e+00> : vector<8xf32>
    %353 = vector.multi_reduction <add>, %350, %cst_188 [1] : vector<8x32xf32> to vector<8xf32>
    %354 = vector.shape_cast %353 : vector<8xf32> to vector<8x1xf32>
    %cst_189 = arith.constant 3.200000e+01 : f32
    %355 = vector.broadcast %cst_189 : f32 to vector<8x1xf32>
    %356 = arith.divf %354, %355 : vector<8x1xf32>
    %357 = vector.broadcast %356 : vector<8x1xf32> to vector<8x32xf32>
    %358 = arith.subf %350, %357 : vector<8x32xf32>
    %359 = arith.mulf %358, %358 : vector<8x32xf32>
    %cst_190 = arith.constant dense<0.000000e+00> : vector<8xf32>
    %360 = vector.multi_reduction <add>, %359, %cst_190 [1] : vector<8x32xf32> to vector<8xf32>
    %361 = vector.shape_cast %360 : vector<8xf32> to vector<8x1xf32>
    %cst_191 = arith.constant 3.200000e+01 : f32
    %362 = vector.broadcast %cst_191 : f32 to vector<8x1xf32>
    %363 = arith.divf %361, %362 : vector<8x1xf32>
    %364 = vector.broadcast %356 : vector<8x1xf32> to vector<8x32xf32>
    %365 = arith.subf %350, %364 : vector<8x32xf32>
    %cst_192 = arith.constant 9.99999974E-6 : f32
    %366 = vector.broadcast %cst_192 : f32 to vector<8x1xf32>
    %367 = arith.addf %363, %366 : vector<8x1xf32>
    %368 = math.rsqrt %367 : vector<8x1xf32>
    %369 = vector.broadcast %368 : vector<8x1xf32> to vector<8x32xf32>
    %370 = arith.mulf %365, %369 : vector<8x32xf32>
    %371 = vector.broadcast %351 : vector<1x32xf32> to vector<8x32xf32>
    %372 = arith.mulf %370, %371 : vector<8x32xf32>
    %373 = vector.broadcast %352 : vector<1x32xf32> to vector<8x32xf32>
    %374 = arith.addf %372, %373 : vector<8x32xf32>
    %c0_193 = arith.constant 0 : index
    %c0_194 = arith.constant 0 : index
    %c0_195 = arith.constant 0 : index
    %375 = vector.load %arg29[%c0_193, %c0_194, %c0_195] : memref<2x32x64xf32, #tpu.memory_space<vmem>>, vector<1x32x64xf32>
    %376 = vector.shape_cast %375 : vector<1x32x64xf32> to vector<32x64xf32>
    %c0_196 = arith.constant 0 : index
    %c0_197 = arith.constant 0 : index
    %c0_198 = arith.constant 0 : index
    %377 = vector.load %arg30[%c0_196, %c0_197, %c0_198] : memref<2x1x64xf32, #tpu.memory_space<vmem>>, vector<1x1x64xf32>
    %378 = vector.shape_cast %377 : vector<1x1x64xf32> to vector<1x64xf32>
    %c0_199 = arith.constant 0 : index
    %c0_200 = arith.constant 0 : index
    %c0_201 = arith.constant 0 : index
    %379 = vector.load %arg31[%c0_199, %c0_200, %c0_201] : memref<2x64x32xf32, #tpu.memory_space<vmem>>, vector<1x64x32xf32>
    %380 = vector.shape_cast %379 : vector<1x64x32xf32> to vector<64x32xf32>
    %c0_202 = arith.constant 0 : index
    %c0_203 = arith.constant 0 : index
    %c0_204 = arith.constant 0 : index
    %381 = vector.load %arg32[%c0_202, %c0_203, %c0_204] : memref<2x1x32xf32, #tpu.memory_space<vmem>>, vector<1x1x32xf32>
    %382 = vector.shape_cast %381 : vector<1x1x32xf32> to vector<1x32xf32>
    %cst_205 = arith.constant dense<0.000000e+00> : vector<8x64xf32>
    %383 = tpu.matmul %374, %376, %cst_205 {dimension_numbers = #tpu.dot_dimension_numbers<[1], [0], [0], [1], [0, 0, 1, 1], [], []>} : vector<8x32xf32>, vector<32x64xf32>, vector<8x64xf32> -> vector<8x64xf32>
    %384 = vector.broadcast %378 : vector<1x64xf32> to vector<8x64xf32>
    %385 = arith.addf %383, %384 : vector<8x64xf32>
    %cst_206 = arith.constant 0.000000e+00 : f32
    %386 = vector.broadcast %cst_206 : f32 to vector<8x64xf32>
    %387 = arith.maximumf %385, %386 : vector<8x64xf32>
    %cst_207 = arith.constant dense<0.000000e+00> : vector<8x32xf32>
    %388 = tpu.matmul %387, %380, %cst_207 {dimension_numbers = #tpu.dot_dimension_numbers<[1], [0], [0], [1], [0, 0, 1, 1], [], []>} : vector<8x64xf32>, vector<64x32xf32>, vector<8x32xf32> -> vector<8x32xf32>
    %389 = vector.broadcast %382 : vector<1x32xf32> to vector<8x32xf32>
    %390 = arith.addf %388, %389 : vector<8x32xf32>
    %391 = arith.addf %374, %390 : vector<8x32xf32>
    %392 = vector.extract_strided_slice %234 {offsets = [4, 0], sizes = [1, 32], strides = [1, 1]} : vector<6x32xf32> to vector<1x32xf32>
    %393 = vector.extract_strided_slice %234 {offsets = [5, 0], sizes = [1, 32], strides = [1, 1]} : vector<6x32xf32> to vector<1x32xf32>
    %cst_208 = arith.constant dense<0.000000e+00> : vector<8xf32>
    %394 = vector.multi_reduction <add>, %391, %cst_208 [1] : vector<8x32xf32> to vector<8xf32>
    %395 = vector.shape_cast %394 : vector<8xf32> to vector<8x1xf32>
    %cst_209 = arith.constant 3.200000e+01 : f32
    %396 = vector.broadcast %cst_209 : f32 to vector<8x1xf32>
    %397 = arith.divf %395, %396 : vector<8x1xf32>
    %398 = vector.broadcast %397 : vector<8x1xf32> to vector<8x32xf32>
    %399 = arith.subf %391, %398 : vector<8x32xf32>
    %400 = arith.mulf %399, %399 : vector<8x32xf32>
    %cst_210 = arith.constant dense<0.000000e+00> : vector<8xf32>
    %401 = vector.multi_reduction <add>, %400, %cst_210 [1] : vector<8x32xf32> to vector<8xf32>
    %402 = vector.shape_cast %401 : vector<8xf32> to vector<8x1xf32>
    %cst_211 = arith.constant 3.200000e+01 : f32
    %403 = vector.broadcast %cst_211 : f32 to vector<8x1xf32>
    %404 = arith.divf %402, %403 : vector<8x1xf32>
    %405 = vector.broadcast %397 : vector<8x1xf32> to vector<8x32xf32>
    %406 = arith.subf %391, %405 : vector<8x32xf32>
    %cst_212 = arith.constant 9.99999974E-6 : f32
    %407 = vector.broadcast %cst_212 : f32 to vector<8x1xf32>
    %408 = arith.addf %404, %407 : vector<8x1xf32>
    %409 = math.rsqrt %408 : vector<8x1xf32>
    %410 = vector.broadcast %409 : vector<8x1xf32> to vector<8x32xf32>
    %411 = arith.mulf %406, %410 : vector<8x32xf32>
    %412 = vector.broadcast %392 : vector<1x32xf32> to vector<8x32xf32>
    %413 = arith.mulf %411, %412 : vector<8x32xf32>
    %414 = vector.broadcast %393 : vector<1x32xf32> to vector<8x32xf32>
    %415 = arith.addf %413, %414 : vector<8x32xf32>
    %c1_213 = arith.constant 1 : index
    %c0_214 = arith.constant 0 : index
    %c0_215 = arith.constant 0 : index
    %416 = vector.load %arg33[%c1_213, %c0_214, %c0_215] : memref<2x6x32xf32, #tpu.memory_space<vmem>>, vector<1x6x32xf32>
    %417 = vector.shape_cast %416 : vector<1x6x32xf32> to vector<6x32xf32>
    %c1_216 = arith.constant 1 : index
    %c0_217 = arith.constant 0 : index
    %c0_218 = arith.constant 0 : index
    %c0_219 = arith.constant 0 : index
    %418 = vector.load %arg19[%c1_216, %c0_217, %c0_218, %c0_219] : memref<2x12x32x8xf32, #tpu.memory_space<vmem>>, vector<1x12x32x8xf32>
    %419 = vector.shape_cast %418 : vector<1x12x32x8xf32> to vector<12x32x8xf32>
    %c1_220 = arith.constant 1 : index
    %c0_221 = arith.constant 0 : index
    %c0_222 = arith.constant 0 : index
    %c0_223 = arith.constant 0 : index
    %420 = vector.load %arg20[%c1_220, %c0_221, %c0_222, %c0_223] : memref<2x12x1x8xf32, #tpu.memory_space<vmem>>, vector<1x12x1x8xf32>
    %421 = vector.shape_cast %420 : vector<1x12x1x8xf32> to vector<12x1x8xf32>
    %422 = vector.shape_cast %415 : vector<8x32xf32> to vector<1x8x32xf32>
    %423 = vector.shape_cast %422 : vector<1x8x32xf32> to vector<1x8x32xf32>
    %424 = vector.broadcast %423 : vector<1x8x32xf32> to vector<12x8x32xf32>
    %cst_224 = arith.constant dense<0.000000e+00> : vector<12x8x8xf32>
    %425 = tpu.matmul %424, %419, %cst_224 {dimension_numbers = #tpu.dot_dimension_numbers<[2], [1], [1], [2], [0, 0, 0, 1, 1, 2], [0], [0]>} : vector<12x8x32xf32>, vector<12x32x8xf32>, vector<12x8x8xf32> -> vector<12x8x8xf32>
    %426 = vector.broadcast %421 : vector<12x1x8xf32> to vector<12x8x8xf32>
    %427 = arith.addf %425, %426 : vector<12x8x8xf32>
    %428 = vector.extract_strided_slice %427 {offsets = [0, 0, 0], sizes = [4, 8, 8], strides = [1, 1, 1]} : vector<12x8x8xf32> to vector<4x8x8xf32>
    %429 = vector.extract_strided_slice %427 {offsets = [4, 0, 0], sizes = [4, 8, 8], strides = [1, 1, 1]} : vector<12x8x8xf32> to vector<4x8x8xf32>
    %430 = vector.extract_strided_slice %427 {offsets = [8, 0, 0], sizes = [4, 8, 8], strides = [1, 1, 1]} : vector<12x8x8xf32> to vector<4x8x8xf32>
    %c1_225 = arith.constant 1 : index
    %c0_226 = arith.constant 0 : index
    %c0_227 = arith.constant 0 : index
    %c0_228 = arith.constant 0 : index
    %431 = vector.load %arg21[%c1_225, %c0_226, %c0_227, %c0_228] : memref<2x4x8x32xf32, #tpu.memory_space<vmem>>, vector<1x4x8x32xf32>
    %432 = vector.shape_cast %431 : vector<1x4x8x32xf32> to vector<4x8x32xf32>
    %c1_229 = arith.constant 1 : index
    %c0_230 = arith.constant 0 : index
    %c0_231 = arith.constant 0 : index
    %433 = vector.load %arg22[%c1_229, %c0_230, %c0_231] : memref<2x1x32xf32, #tpu.memory_space<vmem>>, vector<1x1x32xf32>
    %434 = vector.shape_cast %433 : vector<1x1x32xf32> to vector<1x32xf32>
    %cst_232 = arith.constant dense<0.000000e+00> : vector<4x8x8xf32>
    %435 = tpu.matmul %428, %429, %cst_232 {dimension_numbers = #tpu.dot_dimension_numbers<[2], [2], [1], [1], [0, 0, 0, 1, 1, 1], [0], [0]>} : vector<4x8x8xf32>, vector<4x8x8xf32>, vector<4x8x8xf32> -> vector<4x8x8xf32>
    %436 = vector.shape_cast %232 : vector<8x8xf32> to vector<1x8x8xf32>
    %437 = vector.broadcast %436 : vector<1x8x8xf32> to vector<4x8x8xf32>
    %438 = arith.addf %435, %437 : vector<4x8x8xf32>
    %cst_233 = arith.constant dense<0xFF800000> : vector<4x8xf32>
    %439 = vector.multi_reduction <maximumf>, %438, %cst_233 [2] : vector<4x8x8xf32> to vector<4x8xf32>
    %440 = vector.shape_cast %439 : vector<4x8xf32> to vector<4x8x1xf32>
    %441 = vector.broadcast %440 : vector<4x8x1xf32> to vector<4x8x8xf32>
    %442 = arith.subf %438, %441 : vector<4x8x8xf32>
    %443 = math.exp %442 : vector<4x8x8xf32>
    %cst_234 = arith.constant dense<0.000000e+00> : vector<4x8xf32>
    %444 = vector.multi_reduction <add>, %443, %cst_234 [2] : vector<4x8x8xf32> to vector<4x8xf32>
    %445 = vector.shape_cast %444 : vector<4x8xf32> to vector<4x8x1xf32>
    %cst_235 = arith.constant 1.000000e-30 : f32
    %446 = vector.broadcast %cst_235 : f32 to vector<4x8x1xf32>
    %447 = arith.maximumf %445, %446 : vector<4x8x1xf32>
    %448 = tpu.reciprocal %447 {approx = true} : vector<4x8x1xf32> -> vector<4x8x1xf32>
    %449 = arith.mulf %445, %448 : vector<4x8x1xf32>
    %cst_236 = arith.constant 2.000000e+00 : f32
    %450 = vector.broadcast %cst_236 : f32 to vector<4x8x1xf32>
    %451 = arith.subf %450, %449 : vector<4x8x1xf32>
    %452 = arith.mulf %448, %451 : vector<4x8x1xf32>
    %453 = vector.broadcast %452 : vector<4x8x1xf32> to vector<4x8x8xf32>
    %454 = arith.mulf %443, %453 : vector<4x8x8xf32>
    %cst_237 = arith.constant dense<0.000000e+00> : vector<4x8x8xf32>
    %455 = tpu.matmul %454, %430, %cst_237 {dimension_numbers = #tpu.dot_dimension_numbers<[2], [1], [1], [2], [0, 0, 0, 1, 1, 2], [0], [0]>} : vector<4x8x8xf32>, vector<4x8x8xf32>, vector<4x8x8xf32> -> vector<4x8x8xf32>
    %cst_238 = arith.constant dense<0.000000e+00> : vector<4x8x32xf32>
    %456 = tpu.matmul %455, %432, %cst_238 {dimension_numbers = #tpu.dot_dimension_numbers<[2], [1], [1], [2], [0, 0, 0, 1, 1, 2], [0], [0]>} : vector<4x8x8xf32>, vector<4x8x32xf32>, vector<4x8x32xf32> -> vector<4x8x32xf32>
    %cst_239 = arith.constant dense<0.000000e+00> : vector<8x32xf32>
    %457 = vector.multi_reduction <add>, %456, %cst_239 [0] : vector<4x8x32xf32> to vector<8x32xf32>
    %458 = vector.broadcast %434 : vector<1x32xf32> to vector<8x32xf32>
    %459 = arith.addf %457, %458 : vector<8x32xf32>
    %460 = arith.addf %415, %459 : vector<8x32xf32>
    %461 = vector.extract_strided_slice %417 {offsets = [0, 0], sizes = [1, 32], strides = [1, 1]} : vector<6x32xf32> to vector<1x32xf32>
    %462 = vector.extract_strided_slice %417 {offsets = [1, 0], sizes = [1, 32], strides = [1, 1]} : vector<6x32xf32> to vector<1x32xf32>
    %cst_240 = arith.constant dense<0.000000e+00> : vector<8xf32>
    %463 = vector.multi_reduction <add>, %460, %cst_240 [1] : vector<8x32xf32> to vector<8xf32>
    %464 = vector.shape_cast %463 : vector<8xf32> to vector<8x1xf32>
    %cst_241 = arith.constant 3.200000e+01 : f32
    %465 = vector.broadcast %cst_241 : f32 to vector<8x1xf32>
    %466 = arith.divf %464, %465 : vector<8x1xf32>
    %467 = vector.broadcast %466 : vector<8x1xf32> to vector<8x32xf32>
    %468 = arith.subf %460, %467 : vector<8x32xf32>
    %469 = arith.mulf %468, %468 : vector<8x32xf32>
    %cst_242 = arith.constant dense<0.000000e+00> : vector<8xf32>
    %470 = vector.multi_reduction <add>, %469, %cst_242 [1] : vector<8x32xf32> to vector<8xf32>
    %471 = vector.shape_cast %470 : vector<8xf32> to vector<8x1xf32>
    %cst_243 = arith.constant 3.200000e+01 : f32
    %472 = vector.broadcast %cst_243 : f32 to vector<8x1xf32>
    %473 = arith.divf %471, %472 : vector<8x1xf32>
    %474 = vector.broadcast %466 : vector<8x1xf32> to vector<8x32xf32>
    %475 = arith.subf %460, %474 : vector<8x32xf32>
    %cst_244 = arith.constant 9.99999974E-6 : f32
    %476 = vector.broadcast %cst_244 : f32 to vector<8x1xf32>
    %477 = arith.addf %473, %476 : vector<8x1xf32>
    %478 = math.rsqrt %477 : vector<8x1xf32>
    %479 = vector.broadcast %478 : vector<8x1xf32> to vector<8x32xf32>
    %480 = arith.mulf %475, %479 : vector<8x32xf32>
    %481 = vector.broadcast %461 : vector<1x32xf32> to vector<8x32xf32>
    %482 = arith.mulf %480, %481 : vector<8x32xf32>
    %483 = vector.broadcast %462 : vector<1x32xf32> to vector<8x32xf32>
    %484 = arith.addf %482, %483 : vector<8x32xf32>
    %c1_245 = arith.constant 1 : index
    %c0_246 = arith.constant 0 : index
    %c0_247 = arith.constant 0 : index
    %c0_248 = arith.constant 0 : index
    %485 = vector.load %arg23[%c1_245, %c0_246, %c0_247, %c0_248] : memref<2x4x32x8xf32, #tpu.memory_space<vmem>>, vector<1x4x32x8xf32>
    %486 = vector.shape_cast %485 : vector<1x4x32x8xf32> to vector<4x32x8xf32>
    %c1_249 = arith.constant 1 : index
    %c0_250 = arith.constant 0 : index
    %c0_251 = arith.constant 0 : index
    %c0_252 = arith.constant 0 : index
    %487 = vector.load %arg24[%c1_249, %c0_250, %c0_251, %c0_252] : memref<2x4x1x8xf32, #tpu.memory_space<vmem>>, vector<1x4x1x8xf32>
    %488 = vector.shape_cast %487 : vector<1x4x1x8xf32> to vector<4x1x8xf32>
    %489 = vector.shape_cast %484 : vector<8x32xf32> to vector<1x8x32xf32>
    %490 = vector.shape_cast %489 : vector<1x8x32xf32> to vector<1x8x32xf32>
    %491 = vector.broadcast %490 : vector<1x8x32xf32> to vector<4x8x32xf32>
    %cst_253 = arith.constant dense<0.000000e+00> : vector<4x8x8xf32>
    %492 = tpu.matmul %491, %486, %cst_253 {dimension_numbers = #tpu.dot_dimension_numbers<[2], [1], [1], [2], [0, 0, 0, 1, 1, 2], [0], [0]>} : vector<4x8x32xf32>, vector<4x32x8xf32>, vector<4x8x8xf32> -> vector<4x8x8xf32>
    %493 = vector.broadcast %488 : vector<4x1x8xf32> to vector<4x8x8xf32>
    %494 = arith.addf %492, %493 : vector<4x8x8xf32>
    %c1_254 = arith.constant 1 : index
    %c0_255 = arith.constant 0 : index
    %c0_256 = arith.constant 0 : index
    %c0_257 = arith.constant 0 : index
    %495 = vector.load %arg25[%c1_254, %c0_255, %c0_256, %c0_257] : memref<2x8x32x8xf32, #tpu.memory_space<vmem>>, vector<1x8x32x8xf32>
    %496 = vector.shape_cast %495 : vector<1x8x32x8xf32> to vector<8x32x8xf32>
    %c1_258 = arith.constant 1 : index
    %c0_259 = arith.constant 0 : index
    %c0_260 = arith.constant 0 : index
    %c0_261 = arith.constant 0 : index
    %497 = vector.load %arg26[%c1_258, %c0_259, %c0_260, %c0_261] : memref<2x8x1x8xf32, #tpu.memory_space<vmem>>, vector<1x8x1x8xf32>
    %498 = vector.shape_cast %497 : vector<1x8x1x8xf32> to vector<8x1x8xf32>
    %499 = vector.shape_cast %222 : vector<8x32xf32> to vector<1x8x32xf32>
    %500 = vector.shape_cast %499 : vector<1x8x32xf32> to vector<1x8x32xf32>
    %501 = vector.broadcast %500 : vector<1x8x32xf32> to vector<8x8x32xf32>
    %cst_262 = arith.constant dense<0.000000e+00> : vector<8x8x8xf32>
    %502 = tpu.matmul %501, %496, %cst_262 {dimension_numbers = #tpu.dot_dimension_numbers<[2], [1], [1], [2], [0, 0, 0, 1, 1, 2], [0], [0]>} : vector<8x8x32xf32>, vector<8x32x8xf32>, vector<8x8x8xf32> -> vector<8x8x8xf32>
    %503 = vector.broadcast %498 : vector<8x1x8xf32> to vector<8x8x8xf32>
    %504 = arith.addf %502, %503 : vector<8x8x8xf32>
    %505 = vector.extract_strided_slice %504 {offsets = [0, 0, 0], sizes = [4, 8, 8], strides = [1, 1, 1]} : vector<8x8x8xf32> to vector<4x8x8xf32>
    %506 = vector.extract_strided_slice %504 {offsets = [4, 0, 0], sizes = [4, 8, 8], strides = [1, 1, 1]} : vector<8x8x8xf32> to vector<4x8x8xf32>
    %c1_263 = arith.constant 1 : index
    %c0_264 = arith.constant 0 : index
    %c0_265 = arith.constant 0 : index
    %c0_266 = arith.constant 0 : index
    %507 = vector.load %arg27[%c1_263, %c0_264, %c0_265, %c0_266] : memref<2x4x8x32xf32, #tpu.memory_space<vmem>>, vector<1x4x8x32xf32>
    %508 = vector.shape_cast %507 : vector<1x4x8x32xf32> to vector<4x8x32xf32>
    %c1_267 = arith.constant 1 : index
    %c0_268 = arith.constant 0 : index
    %c0_269 = arith.constant 0 : index
    %509 = vector.load %arg28[%c1_267, %c0_268, %c0_269] : memref<2x1x32xf32, #tpu.memory_space<vmem>>, vector<1x1x32xf32>
    %510 = vector.shape_cast %509 : vector<1x1x32xf32> to vector<1x32xf32>
    %cst_270 = arith.constant dense<0.000000e+00> : vector<4x8x8xf32>
    %511 = tpu.matmul %494, %505, %cst_270 {dimension_numbers = #tpu.dot_dimension_numbers<[2], [2], [1], [1], [0, 0, 0, 1, 1, 1], [0], [0]>} : vector<4x8x8xf32>, vector<4x8x8xf32>, vector<4x8x8xf32> -> vector<4x8x8xf32>
    %cst_271 = arith.constant dense<0xFF800000> : vector<4x8xf32>
    %512 = vector.multi_reduction <maximumf>, %511, %cst_271 [2] : vector<4x8x8xf32> to vector<4x8xf32>
    %513 = vector.shape_cast %512 : vector<4x8xf32> to vector<4x8x1xf32>
    %514 = vector.broadcast %513 : vector<4x8x1xf32> to vector<4x8x8xf32>
    %515 = arith.subf %511, %514 : vector<4x8x8xf32>
    %516 = math.exp %515 : vector<4x8x8xf32>
    %cst_272 = arith.constant dense<0.000000e+00> : vector<4x8xf32>
    %517 = vector.multi_reduction <add>, %516, %cst_272 [2] : vector<4x8x8xf32> to vector<4x8xf32>
    %518 = vector.shape_cast %517 : vector<4x8xf32> to vector<4x8x1xf32>
    %cst_273 = arith.constant 1.000000e-30 : f32
    %519 = vector.broadcast %cst_273 : f32 to vector<4x8x1xf32>
    %520 = arith.maximumf %518, %519 : vector<4x8x1xf32>
    %521 = tpu.reciprocal %520 {approx = true} : vector<4x8x1xf32> -> vector<4x8x1xf32>
    %522 = arith.mulf %518, %521 : vector<4x8x1xf32>
    %cst_274 = arith.constant 2.000000e+00 : f32
    %523 = vector.broadcast %cst_274 : f32 to vector<4x8x1xf32>
    %524 = arith.subf %523, %522 : vector<4x8x1xf32>
    %525 = arith.mulf %521, %524 : vector<4x8x1xf32>
    %526 = vector.broadcast %525 : vector<4x8x1xf32> to vector<4x8x8xf32>
    %527 = arith.mulf %516, %526 : vector<4x8x8xf32>
    %cst_275 = arith.constant dense<0.000000e+00> : vector<4x8x8xf32>
    %528 = tpu.matmul %527, %506, %cst_275 {dimension_numbers = #tpu.dot_dimension_numbers<[2], [1], [1], [2], [0, 0, 0, 1, 1, 2], [0], [0]>} : vector<4x8x8xf32>, vector<4x8x8xf32>, vector<4x8x8xf32> -> vector<4x8x8xf32>
    %cst_276 = arith.constant dense<0.000000e+00> : vector<4x8x32xf32>
    %529 = tpu.matmul %528, %508, %cst_276 {dimension_numbers = #tpu.dot_dimension_numbers<[2], [1], [1], [2], [0, 0, 0, 1, 1, 2], [0], [0]>} : vector<4x8x8xf32>, vector<4x8x32xf32>, vector<4x8x32xf32> -> vector<4x8x32xf32>
    %cst_277 = arith.constant dense<0.000000e+00> : vector<8x32xf32>
    %530 = vector.multi_reduction <add>, %529, %cst_277 [0] : vector<4x8x32xf32> to vector<8x32xf32>
    %531 = vector.broadcast %510 : vector<1x32xf32> to vector<8x32xf32>
    %532 = arith.addf %530, %531 : vector<8x32xf32>
    %533 = arith.addf %484, %532 : vector<8x32xf32>
    %534 = vector.extract_strided_slice %417 {offsets = [2, 0], sizes = [1, 32], strides = [1, 1]} : vector<6x32xf32> to vector<1x32xf32>
    %535 = vector.extract_strided_slice %417 {offsets = [3, 0], sizes = [1, 32], strides = [1, 1]} : vector<6x32xf32> to vector<1x32xf32>
    %cst_278 = arith.constant dense<0.000000e+00> : vector<8xf32>
    %536 = vector.multi_reduction <add>, %533, %cst_278 [1] : vector<8x32xf32> to vector<8xf32>
    %537 = vector.shape_cast %536 : vector<8xf32> to vector<8x1xf32>
    %cst_279 = arith.constant 3.200000e+01 : f32
    %538 = vector.broadcast %cst_279 : f32 to vector<8x1xf32>
    %539 = arith.divf %537, %538 : vector<8x1xf32>
    %540 = vector.broadcast %539 : vector<8x1xf32> to vector<8x32xf32>
    %541 = arith.subf %533, %540 : vector<8x32xf32>
    %542 = arith.mulf %541, %541 : vector<8x32xf32>
    %cst_280 = arith.constant dense<0.000000e+00> : vector<8xf32>
    %543 = vector.multi_reduction <add>, %542, %cst_280 [1] : vector<8x32xf32> to vector<8xf32>
    %544 = vector.shape_cast %543 : vector<8xf32> to vector<8x1xf32>
    %cst_281 = arith.constant 3.200000e+01 : f32
    %545 = vector.broadcast %cst_281 : f32 to vector<8x1xf32>
    %546 = arith.divf %544, %545 : vector<8x1xf32>
    %547 = vector.broadcast %539 : vector<8x1xf32> to vector<8x32xf32>
    %548 = arith.subf %533, %547 : vector<8x32xf32>
    %cst_282 = arith.constant 9.99999974E-6 : f32
    %549 = vector.broadcast %cst_282 : f32 to vector<8x1xf32>
    %550 = arith.addf %546, %549 : vector<8x1xf32>
    %551 = math.rsqrt %550 : vector<8x1xf32>
    %552 = vector.broadcast %551 : vector<8x1xf32> to vector<8x32xf32>
    %553 = arith.mulf %548, %552 : vector<8x32xf32>
    %554 = vector.broadcast %534 : vector<1x32xf32> to vector<8x32xf32>
    %555 = arith.mulf %553, %554 : vector<8x32xf32>
    %556 = vector.broadcast %535 : vector<1x32xf32> to vector<8x32xf32>
    %557 = arith.addf %555, %556 : vector<8x32xf32>
    %c1_283 = arith.constant 1 : index
    %c0_284 = arith.constant 0 : index
    %c0_285 = arith.constant 0 : index
    %558 = vector.load %arg29[%c1_283, %c0_284, %c0_285] : memref<2x32x64xf32, #tpu.memory_space<vmem>>, vector<1x32x64xf32>
    %559 = vector.shape_cast %558 : vector<1x32x64xf32> to vector<32x64xf32>
    %c1_286 = arith.constant 1 : index
    %c0_287 = arith.constant 0 : index
    %c0_288 = arith.constant 0 : index
    %560 = vector.load %arg30[%c1_286, %c0_287, %c0_288] : memref<2x1x64xf32, #tpu.memory_space<vmem>>, vector<1x1x64xf32>
    %561 = vector.shape_cast %560 : vector<1x1x64xf32> to vector<1x64xf32>
    %c1_289 = arith.constant 1 : index
    %c0_290 = arith.constant 0 : index
    %c0_291 = arith.constant 0 : index
    %562 = vector.load %arg31[%c1_289, %c0_290, %c0_291] : memref<2x64x32xf32, #tpu.memory_space<vmem>>, vector<1x64x32xf32>
    %563 = vector.shape_cast %562 : vector<1x64x32xf32> to vector<64x32xf32>
    %c1_292 = arith.constant 1 : index
    %c0_293 = arith.constant 0 : index
    %c0_294 = arith.constant 0 : index
    %564 = vector.load %arg32[%c1_292, %c0_293, %c0_294] : memref<2x1x32xf32, #tpu.memory_space<vmem>>, vector<1x1x32xf32>
    %565 = vector.shape_cast %564 : vector<1x1x32xf32> to vector<1x32xf32>
    %cst_295 = arith.constant dense<0.000000e+00> : vector<8x64xf32>
    %566 = tpu.matmul %557, %559, %cst_295 {dimension_numbers = #tpu.dot_dimension_numbers<[1], [0], [0], [1], [0, 0, 1, 1], [], []>} : vector<8x32xf32>, vector<32x64xf32>, vector<8x64xf32> -> vector<8x64xf32>
    %567 = vector.broadcast %561 : vector<1x64xf32> to vector<8x64xf32>
    %568 = arith.addf %566, %567 : vector<8x64xf32>
    %cst_296 = arith.constant 0.000000e+00 : f32
    %569 = vector.broadcast %cst_296 : f32 to vector<8x64xf32>
    %570 = arith.maximumf %568, %569 : vector<8x64xf32>
    %cst_297 = arith.constant dense<0.000000e+00> : vector<8x32xf32>
    %571 = tpu.matmul %570, %563, %cst_297 {dimension_numbers = #tpu.dot_dimension_numbers<[1], [0], [0], [1], [0, 0, 1, 1], [], []>} : vector<8x64xf32>, vector<64x32xf32>, vector<8x32xf32> -> vector<8x32xf32>
    %572 = vector.broadcast %565 : vector<1x32xf32> to vector<8x32xf32>
    %573 = arith.addf %571, %572 : vector<8x32xf32>
    %574 = arith.addf %557, %573 : vector<8x32xf32>
    %575 = vector.extract_strided_slice %417 {offsets = [4, 0], sizes = [1, 32], strides = [1, 1]} : vector<6x32xf32> to vector<1x32xf32>
    %576 = vector.extract_strided_slice %417 {offsets = [5, 0], sizes = [1, 32], strides = [1, 1]} : vector<6x32xf32> to vector<1x32xf32>
    %cst_298 = arith.constant dense<0.000000e+00> : vector<8xf32>
    %577 = vector.multi_reduction <add>, %574, %cst_298 [1] : vector<8x32xf32> to vector<8xf32>
    %578 = vector.shape_cast %577 : vector<8xf32> to vector<8x1xf32>
    %cst_299 = arith.constant 3.200000e+01 : f32
    %579 = vector.broadcast %cst_299 : f32 to vector<8x1xf32>
    %580 = arith.divf %578, %579 : vector<8x1xf32>
    %581 = vector.broadcast %580 : vector<8x1xf32> to vector<8x32xf32>
    %582 = arith.subf %574, %581 : vector<8x32xf32>
    %583 = arith.mulf %582, %582 : vector<8x32xf32>
    %cst_300 = arith.constant dense<0.000000e+00> : vector<8xf32>
    %584 = vector.multi_reduction <add>, %583, %cst_300 [1] : vector<8x32xf32> to vector<8xf32>
    %585 = vector.shape_cast %584 : vector<8xf32> to vector<8x1xf32>
    %cst_301 = arith.constant 3.200000e+01 : f32
    %586 = vector.broadcast %cst_301 : f32 to vector<8x1xf32>
    %587 = arith.divf %585, %586 : vector<8x1xf32>
    %588 = vector.broadcast %580 : vector<8x1xf32> to vector<8x32xf32>
    %589 = arith.subf %574, %588 : vector<8x32xf32>
    %cst_302 = arith.constant 9.99999974E-6 : f32
    %590 = vector.broadcast %cst_302 : f32 to vector<8x1xf32>
    %591 = arith.addf %587, %590 : vector<8x1xf32>
    %592 = math.rsqrt %591 : vector<8x1xf32>
    %593 = vector.broadcast %592 : vector<8x1xf32> to vector<8x32xf32>
    %594 = arith.mulf %589, %593 : vector<8x32xf32>
    %595 = vector.broadcast %575 : vector<1x32xf32> to vector<8x32xf32>
    %596 = arith.mulf %594, %595 : vector<8x32xf32>
    %597 = vector.broadcast %576 : vector<1x32xf32> to vector<8x32xf32>
    %598 = arith.addf %596, %597 : vector<8x32xf32>
    %c0_303 = arith.constant 0 : index
    %c0_304 = arith.constant 0 : index
    %599 = vector.load %arg34[%c0_303, %c0_304] : memref<32x128xf32, #tpu.memory_space<vmem>>, vector<32x128xf32>
    %cst_305 = arith.constant dense<0.000000e+00> : vector<8x128xf32>
    %600 = tpu.matmul %598, %599, %cst_305 {dimension_numbers = #tpu.dot_dimension_numbers<[1], [0], [0], [1], [0, 0, 1, 1], [], []>} : vector<8x32xf32>, vector<32x128xf32>, vector<8x128xf32> -> vector<8x128xf32>
    %c0_306 = arith.constant 0 : index
    %c0_307 = arith.constant 0 : index
    %601 = vector.load %arg35[%c0_306, %c0_307] : memref<1x128xf32, #tpu.memory_space<vmem>>, vector<1x128xf32>
    %602 = vector.broadcast %601 : vector<1x128xf32> to vector<8x128xf32>
    %603 = arith.addf %600, %602 : vector<8x128xf32>
    %c0_308 = arith.constant 0 : index
    %c0_309 = arith.constant 0 : index
    %c0_310 = arith.constant 0 : index
    %604 = vector.load %arg36[%c0_308, %c0_309, %c0_310] : memref<1x8x128xf32, #tpu.memory_space<vmem>>, vector<1x8x128xf32>
    %605 = vector.shape_cast %604 : vector<1x8x128xf32> to vector<8x128xf32>
    %606 = vector.shape_cast %603 : vector<8x128xf32> to vector<1x8x128xf32>
    tpu.vector_store %arg36[%c0_308, %c0_309, %c0_310], %606 {strides = array<i32>} : memref<1x8x128xf32, #tpu.memory_space<vmem>>, vector<1x8x128xf32>,
    return
  }
  func.func @transform_0(%arg0: i32) -> (i32, i32, i32) {
    %c0_i32 = arith.constant 0 : i32
    %c0_i32_0 = arith.constant 0 : i32
    %c0_i32_1 = arith.constant 0 : i32
    return %arg0, %c0_i32, %c0_i32_0 : i32, i32, i32
  }
  func.func @transform_1(%arg0: i32) -> (i32, i32, i32) {
    %c0_i32 = arith.constant 0 : i32
    %c0_i32_0 = arith.constant 0 : i32
    %c0_i32_1 = arith.constant 0 : i32
    return %arg0, %c0_i32, %c0_i32_0 : i32, i32, i32
  }
  func.func @transform_2(%arg0: i32) -> (i32, i32) {
    %c0_i32 = arith.constant 0 : i32
    %c0_i32_0 = arith.constant 0 : i32
    %c0_i32_1 = arith.constant 0 : i32
    return %c0_i32, %c0_i32_0 : i32, i32
  }
  func.func @transform_3(%arg0: i32) -> (i32, i32) {
    %c0_i32 = arith.constant 0 : i32
    %c0_i32_0 = arith.constant 0 : i32
    %c0_i32_1 = arith.constant 0 : i32
    return %c0_i32, %c0_i32_0 : i32, i32
  }
  func.func @transform_4(%arg0: i32) -> (i32, i32) {
    %c0_i32 = arith.constant 0 : i32
    %c0_i32_0 = arith.constant 0 : i32
    %c0_i32_1 = arith.constant 0 : i32
    return %c0_i32, %c0_i32_0 : i32, i32
  }
  func.func @transform_5(%arg0: i32) -> (i32, i32) {
    %c0_i32 = arith.constant 0 : i32
    %c0_i32_0 = arith.constant 0 : i32
    %c0_i32_1 = arith.constant 0 : i32
    return %c0_i32, %c0_i32_0 : i32, i32
  }
  func.func @transform_6(%arg0: i32) -> (i32, i32) {
    %c0_i32 = arith.constant 0 : i32
    %c0_i32_0 = arith.constant 0 : i32
    %c0_i32_1 = arith.constant 0 : i32
    return %c0_i32, %c0_i32_0 : i32, i32
  }
  func.func @transform_7(%arg0: i32) -> (i32, i32) {
    %c0_i32 = arith.constant 0 : i32
    %c0_i32_0 = arith.constant 0 : i32
    %c0_i32_1 = arith.constant 0 : i32
    return %c0_i32, %c0_i32_0 : i32, i32
  }
  func.func @transform_8(%arg0: i32) -> (i32, i32) {
    %c0_i32 = arith.constant 0 : i32
    %c0_i32_0 = arith.constant 0 : i32
    %c0_i32_1 = arith.constant 0 : i32
    return %c0_i32, %c0_i32_0 : i32, i32
  }
  func.func @transform_9(%arg0: i32) -> (i32, i32, i32, i32) {
    %c0_i32 = arith.constant 0 : i32
    %c0_i32_0 = arith.constant 0 : i32
    %c0_i32_1 = arith.constant 0 : i32
    %c0_i32_2 = arith.constant 0 : i32
    %c0_i32_3 = arith.constant 0 : i32
    return %c0_i32, %c0_i32_0, %c0_i32_1, %c0_i32_2 : i32, i32, i32, i32
  }
  func.func @transform_10(%arg0: i32) -> (i32, i32, i32, i32) {
    %c0_i32 = arith.constant 0 : i32
    %c0_i32_0 = arith.constant 0 : i32
    %c0_i32_1 = arith.constant 0 : i32
    %c0_i32_2 = arith.constant 0 : i32
    %c0_i32_3 = arith.constant 0 : i32
    return %c0_i32, %c0_i32_0, %c0_i32_1, %c0_i32_2 : i32, i32, i32, i32
  }
  func.func @transform_11(%arg0: i32) -> (i32, i32, i32, i32) {
    %c0_i32 = arith.constant 0 : i32
    %c0_i32_0 = arith.constant 0 : i32
    %c0_i32_1 = arith.constant 0 : i32
    %c0_i32_2 = arith.constant 0 : i32
    %c0_i32_3 = arith.constant 0 : i32
    return %c0_i32, %c0_i32_0, %c0_i32_1, %c0_i32_2 : i32, i32, i32, i32
  }
  func.func @transform_12(%arg0: i32) -> (i32, i32, i32) {
    %c0_i32 = arith.constant 0 : i32
    %c0_i32_0 = arith.constant 0 : i32
    %c0_i32_1 = arith.constant 0 : i32
    %c0_i32_2 = arith.constant 0 : i32
    return %c0_i32, %c0_i32_0, %c0_i32_1 : i32, i32, i32
  }
  func.func @transform_13(%arg0: i32) -> (i32, i32, i32) {
    %c0_i32 = arith.constant 0 : i32
    %c0_i32_0 = arith.constant 0 : i32
    %c0_i32_1 = arith.constant 0 : i32
    %c0_i32_2 = arith.constant 0 : i32
    return %c0_i32, %c0_i32_0, %c0_i32_1 : i32, i32, i32
  }
  func.func @transform_14(%arg0: i32) -> (i32, i32, i32) {
    %c0_i32 = arith.constant 0 : i32
    %c0_i32_0 = arith.constant 0 : i32
    %c0_i32_1 = arith.constant 0 : i32
    %c0_i32_2 = arith.constant 0 : i32
    return %c0_i32, %c0_i32_0, %c0_i32_1 : i32, i32, i32
  }
  func.func @transform_15(%arg0: i32) -> (i32, i32, i32) {
    %c0_i32 = arith.constant 0 : i32
    %c0_i32_0 = arith.constant 0 : i32
    %c0_i32_1 = arith.constant 0 : i32
    %c0_i32_2 = arith.constant 0 : i32
    return %c0_i32, %c0_i32_0, %c0_i32_1 : i32, i32, i32
  }
  func.func @transform_16(%arg0: i32) -> (i32, i32, i32) {
    %c0_i32 = arith.constant 0 : i32
    %c0_i32_0 = arith.constant 0 : i32
    %c0_i32_1 = arith.constant 0 : i32
    %c0_i32_2 = arith.constant 0 : i32
    return %c0_i32, %c0_i32_0, %c0_i32_1 : i32, i32, i32
  }
  func.func @transform_17(%arg0: i32) -> (i32, i32, i32) {
    %c0_i32 = arith.constant 0 : i32
    %c0_i32_0 = arith.constant 0 : i32
    %c0_i32_1 = arith.constant 0 : i32
    %c0_i32_2 = arith.constant 0 : i32
    return %c0_i32, %c0_i32_0, %c0_i32_1 : i32, i32, i32
  }
  func.func @transform_18(%arg0: i32) -> (i32, i32, i32, i32) {
    %c0_i32 = arith.constant 0 : i32
    %c0_i32_0 = arith.constant 0 : i32
    %c0_i32_1 = arith.constant 0 : i32
    %c0_i32_2 = arith.constant 0 : i32
    %c0_i32_3 = arith.constant 0 : i32
    return %c0_i32, %c0_i32_0, %c0_i32_1, %c0_i32_2 : i32, i32, i32, i32
  }
  func.func @transform_19(%arg0: i32) -> (i32, i32, i32, i32) {
    %c0_i32 = arith.constant 0 : i32
    %c0_i32_0 = arith.constant 0 : i32
    %c0_i32_1 = arith.constant 0 : i32
    %c0_i32_2 = arith.constant 0 : i32
    %c0_i32_3 = arith.constant 0 : i32
    return %c0_i32, %c0_i32_0, %c0_i32_1, %c0_i32_2 : i32, i32, i32, i32
  }
  func.func @transform_20(%arg0: i32) -> (i32, i32, i32, i32) {
    %c0_i32 = arith.constant 0 : i32
    %c0_i32_0 = arith.constant 0 : i32
    %c0_i32_1 = arith.constant 0 : i32
    %c0_i32_2 = arith.constant 0 : i32
    %c0_i32_3 = arith.constant 0 : i32
    return %c0_i32, %c0_i32_0, %c0_i32_1, %c0_i32_2 : i32, i32, i32, i32
  }
  func.func @transform_21(%arg0: i32) -> (i32, i32, i32) {
    %c0_i32 = arith.constant 0 : i32
    %c0_i32_0 = arith.constant 0 : i32
    %c0_i32_1 = arith.constant 0 : i32
    %c0_i32_2 = arith.constant 0 : i32
    return %c0_i32, %c0_i32_0, %c0_i32_1 : i32, i32, i32
  }
  func.func @transform_22(%arg0: i32) -> (i32, i32, i32, i32) {
    %c0_i32 = arith.constant 0 : i32
    %c0_i32_0 = arith.constant 0 : i32
    %c0_i32_1 = arith.constant 0 : i32
    %c0_i32_2 = arith.constant 0 : i32
    %c0_i32_3 = arith.constant 0 : i32
    return %c0_i32, %c0_i32_0, %c0_i32_1, %c0_i32_2 : i32, i32, i32, i32
  }
  func.func @transform_23(%arg0: i32) -> (i32, i32, i32, i32) {
    %c0_i32 = arith.constant 0 : i32
    %c0_i32_0 = arith.constant 0 : i32
    %c0_i32_1 = arith.constant 0 : i32
    %c0_i32_2 = arith.constant 0 : i32
    %c0_i32_3 = arith.constant 0 : i32
    return %c0_i32, %c0_i32_0, %c0_i32_1, %c0_i32_2 : i32, i32, i32, i32
  }
  func.func @transform_24(%arg0: i32) -> (i32, i32, i32, i32) {
    %c0_i32 = arith.constant 0 : i32
    %c0_i32_0 = arith.constant 0 : i32
    %c0_i32_1 = arith.constant 0 : i32
    %c0_i32_2 = arith.constant 0 : i32
    %c0_i32_3 = arith.constant 0 : i32
    return %c0_i32, %c0_i32_0, %c0_i32_1, %c0_i32_2 : i32, i32, i32, i32
  }
  func.func @transform_25(%arg0: i32) -> (i32, i32, i32, i32) {
    %c0_i32 = arith.constant 0 : i32
    %c0_i32_0 = arith.constant 0 : i32
    %c0_i32_1 = arith.constant 0 : i32
    %c0_i32_2 = arith.constant 0 : i32
    %c0_i32_3 = arith.constant 0 : i32
    return %c0_i32, %c0_i32_0, %c0_i32_1, %c0_i32_2 : i32, i32, i32, i32
  }
  func.func @transform_26(%arg0: i32) -> (i32, i32, i32, i32) {
    %c0_i32 = arith.constant 0 : i32
    %c0_i32_0 = arith.constant 0 : i32
    %c0_i32_1 = arith.constant 0 : i32
    %c0_i32_2 = arith.constant 0 : i32
    %c0_i32_3 = arith.constant 0 : i32
    return %c0_i32, %c0_i32_0, %c0_i32_1, %c0_i32_2 : i32, i32, i32, i32
  }
  func.func @transform_27(%arg0: i32) -> (i32, i32, i32) {
    %c0_i32 = arith.constant 0 : i32
    %c0_i32_0 = arith.constant 0 : i32
    %c0_i32_1 = arith.constant 0 : i32
    %c0_i32_2 = arith.constant 0 : i32
    return %c0_i32, %c0_i32_0, %c0_i32_1 : i32, i32, i32
  }
  func.func @transform_28(%arg0: i32) -> (i32, i32, i32) {
    %c0_i32 = arith.constant 0 : i32
    %c0_i32_0 = arith.constant 0 : i32
    %c0_i32_1 = arith.constant 0 : i32
    %c0_i32_2 = arith.constant 0 : i32
    return %c0_i32, %c0_i32_0, %c0_i32_1 : i32, i32, i32
  }
  func.func @transform_29(%arg0: i32) -> (i32, i32, i32) {
    %c0_i32 = arith.constant 0 : i32
    %c0_i32_0 = arith.constant 0 : i32
    %c0_i32_1 = arith.constant 0 : i32
    %c0_i32_2 = arith.constant 0 : i32
    return %c0_i32, %c0_i32_0, %c0_i32_1 : i32, i32, i32
  }
  func.func @transform_30(%arg0: i32) -> (i32, i32, i32) {
    %c0_i32 = arith.constant 0 : i32
    %c0_i32_0 = arith.constant 0 : i32
    %c0_i32_1 = arith.constant 0 : i32
    %c0_i32_2 = arith.constant 0 : i32
    return %c0_i32, %c0_i32_0, %c0_i32_1 : i32, i32, i32
  }
  func.func @transform_31(%arg0: i32) -> (i32, i32, i32) {
    %c0_i32 = arith.constant 0 : i32
    %c0_i32_0 = arith.constant 0 : i32
    %c0_i32_1 = arith.constant 0 : i32
    %c0_i32_2 = arith.constant 0 : i32
    return %c0_i32, %c0_i32_0, %c0_i32_1 : i32, i32, i32
  }
  func.func @transform_32(%arg0: i32) -> (i32, i32, i32) {
    %c0_i32 = arith.constant 0 : i32
    %c0_i32_0 = arith.constant 0 : i32
    %c0_i32_1 = arith.constant 0 : i32
    %c0_i32_2 = arith.constant 0 : i32
    return %c0_i32, %c0_i32_0, %c0_i32_1 : i32, i32, i32
  }
  func.func @transform_33(%arg0: i32) -> (i32, i32) {
    %c0_i32 = arith.constant 0 : i32
    %c0_i32_0 = arith.constant 0 : i32
    %c0_i32_1 = arith.constant 0 : i32
    return %c0_i32, %c0_i32_0 : i32, i32
  }
  func.func @transform_34(%arg0: i32) -> (i32, i32) {
    %c0_i32 = arith.constant 0 : i32
    %c0_i32_0 = arith.constant 0 : i32
    %c0_i32_1 = arith.constant 0 : i32
    return %c0_i32, %c0_i32_0 : i32, i32
  }
  func.func @transform_35(%arg0: i32) -> (i32, i32, i32) {
    %c0_i32 = arith.constant 0 : i32
    %c0_i32_0 = arith.constant 0 : i32
    %c0_i32_1 = arith.constant 0 : i32
    return %arg0, %c0_i32, %c0_i32_0 : i32, i32, i32
  }
}

</mosaic_0001>

<llo_original>
// kernel: transformer_forward.1
$region0: #{transformer_forward.1}
  #allocation0 [shape = 'u32[]', space=smem, size = 0x4, offset = 0x4, fixed_abs, tag = 'smem constant byte address 0x4 - core index']
  #allocation1 [shape = 'u32[72,128]{1,0:T(1,128)}', space=vmem, size = 0x9000, scoped, tag = 'internal scratch']
  %s0 = inlined_call_operand.smem [shape: u32[36], index: -1, kind: input, shape index: {}]
  %s1 = sld [smem:[%s0]]
  %s2 = scalar_lea.smem %s0, 1
  %s3 = sld [smem:[%s2]]
  %s4 = scalar_lea.smem %s0, 2
  %s5 = sld [smem:[%s4]]
  %s6 = scalar_lea.smem %s0, 3
  %s7 = sld [smem:[%s6]]
  %s8 = scalar_lea.smem %s0, 4
  %s9 = sld [smem:[%s8]]
  %s10 = scalar_lea.smem %s0, 5
  %s11 = sld [smem:[%s10]]
  %s12 = scalar_lea.smem %s0, 6
  %s13 = sld [smem:[%s12]]
  %s14 = scalar_lea.smem %s0, 7
  %s15 = sld [smem:[%s14]]
  %s16 = scalar_lea.smem %s0, 8
  %s17 = sld [smem:[%s16]]
  %s18 = scalar_lea.smem %s0, 9
  %s19 = sld [smem:[%s18]]
  %s20 = scalar_lea.smem %s0, 10
  %s21 = sld [smem:[%s20]]
  %s22 = scalar_lea.smem %s0, 11
  %s23 = sld [smem:[%s22]]
  %s24 = scalar_lea.smem %s0, 12
  %s25 = sld [smem:[%s24]]
  %s26 = scalar_lea.smem %s0, 13
  %s27 = sld [smem:[%s26]]
  %s28 = scalar_lea.smem %s0, 14
  %s29 = sld [smem:[%s28]]
  %s30 = scalar_lea.smem %s0, 15
  %s31 = sld [smem:[%s30]]
  %s32 = scalar_lea.smem %s0, 16
  %s33 = sld [smem:[%s32]]
  %s34 = scalar_lea.smem %s0, 17
  %s35 = sld [smem:[%s34]]
  %s36 = scalar_lea.smem %s0, 18
  %s37 = sld [smem:[%s36]]
  %s38 = scalar_lea.smem %s0, 19
  %s39 = sld [smem:[%s38]]
  %s40 = scalar_lea.smem %s0, 20
  %s41 = sld [smem:[%s40]]
  %s42 = scalar_lea.smem %s0, 21
  %s43 = sld [smem:[%s42]]
  %s44 = scalar_lea.smem %s0, 22
  %s45 = sld [smem:[%s44]]
  %s46 = scalar_lea.smem %s0, 23
  %s47 = sld [smem:[%s46]]
  %s48 = scalar_lea.smem %s0, 24
  %s49 = sld [smem:[%s48]]
  %s50 = scalar_lea.smem %s0, 25
  %s51 = sld [smem:[%s50]]
  %s52 = scalar_lea.smem %s0, 26
  %s53 = sld [smem:[%s52]]
  %s54 = scalar_lea.smem %s0, 27
  %s55 = sld [smem:[%s54]]
  %s56 = scalar_lea.smem %s0, 28
  %s57 = sld [smem:[%s56]]
  %s58 = scalar_lea.smem %s0, 29
  %s59 = sld [smem:[%s58]]
  %s60 = scalar_lea.smem %s0, 30
  %s61 = sld [smem:[%s60]]
  %s62 = scalar_lea.smem %s0, 31
  %s63 = sld [smem:[%s62]]
  %s64 = scalar_lea.smem %s0, 32
  %s65 = sld [smem:[%s64]]
  %s66 = scalar_lea.smem %s0, 33
  %s67 = sld [smem:[%s66]]
  %s68 = scalar_lea.smem %s0, 34
  %s69 = sld [smem:[%s68]]
  %s70 = scalar_lea.smem %s0, 35
  %s71 = sld [smem:[%s70]]
  %s72 = sld [smem:[#allocation0]]
  $region173: #{transformer_forward.1} parent=0
    _
  %s74 = ssub.s32 1, %s72
  %s75 = scalar_select 0, %s74, %s72
  loop: start=0, step=1, limit=4
  $region2: #{transformer_forward.1} parent=0 // loop_pre_header
    _
  $region3: #{transformer_forward.1} parent=0 // loop_header
    %s77 = sphi 0, %s81
    %p78 = scmp.ge.s32.totalorder %s77, 4
    %s87 = sphi 0, %s89
    %s90 = sphi 0, %s87
    %s91 = sphi 0, %s90
    %s107 = sphi 0, %s91
    %s113 = sphi 0, %s115
    %s116 = sphi 0, %s113
    %s117 = sphi 0, %s116
    %s133 = sphi 0, %s117
    %s137 = sphi 0, %s137
    %s139 = sphi 0, %s137
    %s140 = sphi 0, %s139
    %s154 = sphi 0, %s140
    %s158 = sphi 0, %s158
    %s160 = sphi 0, %s158
    %s161 = sphi 0, %s160
    %s175 = sphi 0, %s161
    %s179 = sphi 0, %s179
    %s181 = sphi 0, %s179
    %s182 = sphi 0, %s181
    %s196 = sphi 0, %s182
    %s200 = sphi 0, %s200
    %s202 = sphi 0, %s200
    %s203 = sphi 0, %s202
    %s217 = sphi 0, %s203
    %s221 = sphi 0, %s221
    %s223 = sphi 0, %s221
    %s224 = sphi 0, %s223
    %s238 = sphi 0, %s224
    %s242 = sphi 0, %s242
    %s244 = sphi 0, %s242
    %s245 = sphi 0, %s244
    %s259 = sphi 0, %s245
    %s263 = sphi 0, %s263
    %s265 = sphi 0, %s263
    %s266 = sphi 0, %s265
    %s280 = sphi 0, %s266
    %s284 = sphi 0, %s284
    %s286 = sphi 0, %s284
    %s287 = sphi 0, %s286
    %s301 = sphi 0, %s287
    %s305 = sphi 0, %s305
    %s307 = sphi 0, %s305
    %s308 = sphi 0, %s307
    %s322 = sphi 0, %s308
    %s326 = sphi 0, %s326
    %s328 = sphi 0, %s326
    %s329 = sphi 0, %s328
    %s343 = sphi 0, %s329
    %s347 = sphi 0, %s347
    %s349 = sphi 0, %s347
    %s350 = sphi 0, %s349
    %s364 = sphi 0, %s350
    %s368 = sphi 0, %s368
    %s370 = sphi 0, %s368
    %s371 = sphi 0, %s370
    %s385 = sphi 0, %s371
    %s389 = sphi 0, %s389
    %s391 = sphi 0, %s389
    %s392 = sphi 0, %s391
    %s406 = sphi 0, %s392
    %s410 = sphi 0, %s410
    %s412 = sphi 0, %s410
    %s413 = sphi 0, %s412
    %s427 = sphi 0, %s413
    %s431 = sphi 0, %s431
    %s433 = sphi 0, %s431
    %s434 = sphi 0, %s433
    %s448 = sphi 0, %s434
    %s452 = sphi 0, %s452
    %s454 = sphi 0, %s452
    %s455 = sphi 0, %s454
    %s469 = sphi 0, %s455
    %s473 = sphi 0, %s473
    %s475 = sphi 0, %s473
    %s476 = sphi 0, %s475
    %s490 = sphi 0, %s476
    %s494 = sphi 0, %s494
    %s496 = sphi 0, %s494
    %s497 = sphi 0, %s496
    %s511 = sphi 0, %s497
    %s515 = sphi 0, %s515
    %s517 = sphi 0, %s515
    %s518 = sphi 0, %s517
    %s532 = sphi 0, %s518
    %s536 = sphi 0, %s536
    %s538 = sphi 0, %s536
    %s539 = sphi 0, %s538
    %s553 = sphi 0, %s539
    %s557 = sphi 0, %s557
    %s559 = sphi 0, %s557
    %s560 = sphi 0, %s559
    %s574 = sphi 0, %s560
    %s578 = sphi 0, %s578
    %s580 = sphi 0, %s578
    %s581 = sphi 0, %s580
    %s595 = sphi 0, %s581
    %s599 = sphi 0, %s599
    %s601 = sphi 0, %s599
    %s602 = sphi 0, %s601
    %s616 = sphi 0, %s602
    %s620 = sphi 0, %s620
    %s622 = sphi 0, %s620
    %s623 = sphi 0, %s622
    %s637 = sphi 0, %s623
    %s641 = sphi 0, %s641
    %s643 = sphi 0, %s641
    %s644 = sphi 0, %s643
    %s658 = sphi 0, %s644
    %s662 = sphi 0, %s662
    %s664 = sphi 0, %s662
    %s665 = sphi 0, %s664
    %s679 = sphi 0, %s665
    %s683 = sphi 0, %s683
    %s685 = sphi 0, %s683
    %s686 = sphi 0, %s685
    %s700 = sphi 0, %s686
    %s704 = sphi 0, %s704
    %s706 = sphi 0, %s704
    %s707 = sphi 0, %s706
    %s721 = sphi 0, %s707
    %s725 = sphi 0, %s725
    %s727 = sphi 0, %s725
    %s728 = sphi 0, %s727
    %s742 = sphi 0, %s728
    %s746 = sphi 0, %s746
    %s748 = sphi 0, %s746
    %s749 = sphi 0, %s748
    %s763 = sphi 0, %s749
    %s767 = sphi 0, %s767
    %s769 = sphi 0, %s767
    %s770 = sphi 0, %s769
    %s784 = sphi 0, %s770
    %s788 = sphi 0, %s788
    %s790 = sphi 0, %s788
    %s791 = sphi 0, %s790
    %s805 = sphi 0, %s791
    %s809 = sphi 0, %s809
    %s811 = sphi 0, %s809
    %s812 = sphi 0, %s811
    %s826 = sphi 0, %s812
    %s832 = sphi 0, %s834
    %s835 = sphi 0, %s832
    %s836 = sphi 0, %s835
    %s852 = sphi 0, %s836
  $region4: #{transformer_forward.1} parent=0 // loop_header_branch
    %80 = sbr.rel (%p78) target = $region8
  $region5: #{transformer_forward.1} parent=0 // loop_body
    %s82 = ssub.s32 %s77, 1
    %s83 = ssub.s32 %s77, 2
    %s84 = sadd.s32 %s77, 1
    %s85 = ssub.s32 %s77, %s84
    %p86 = scmp.eq.s32.totalorder %s85, 0
    %s88 = sadd.s32 %s87, 1
    %s89 = scalar_select %p86, %s87, %s88
    %p92 = pneg %p86
    %p93 = scmp.eq.s32.totalorder %s77, 1
    %p94 = por %p92, %p93
    %p95 = scmp.ne.s32.totalorder %s87, %s90
    %p96 = scmp.eq.s32.totalorder %s77, 0
    %p97 = por %p95, %p96
    %p98 = scmp.ne.s32.totalorder %s87, %s90
    %p99 = scmp.eq.s32.totalorder %s82, 1
    %p100 = por %p98, %p99
    %p101 = scmp.ne.s32.totalorder %s90, %s91
    %p102 = scmp.eq.s32.totalorder %s82, 0
    %p103 = por %p101, %p102
    %p104 = scmp.ne.s32.totalorder %s90, %s91
    %p105 = scmp.eq.s32.totalorder %s83, 1
    %p106 = por %p104, %p105
    %p108 = scmp.ne.s32.totalorder %s91, %s107
    %p109 = scmp.eq.s32.totalorder %s83, 0
    %p110 = por %p108, %p109
    %s111 = ssub.s32 %s77, %s84
    %p112 = scmp.eq.s32.totalorder %s111, 0
    %s114 = sadd.s32 %s113, 1
    %s115 = scalar_select %p112, %s113, %s114
    %p118 = pneg %p112
    %p119 = scmp.eq.s32.totalorder %s77, 1
    %p120 = por %p118, %p119
    %p121 = scmp.ne.s32.totalorder %s113, %s116
    %p122 = scmp.eq.s32.totalorder %s77, 0
    %p123 = por %p121, %p122
    %p124 = scmp.ne.s32.totalorder %s113, %s116
    %p125 = scmp.eq.s32.totalorder %s82, 1
    %p126 = por %p124, %p125
    %p127 = scmp.ne.s32.totalorder %s116, %s117
    %p128 = scmp.eq.s32.totalorder %s82, 0
    %p129 = por %p127, %p128
    %p130 = scmp.ne.s32.totalorder %s116, %s117
    %p131 = scmp.eq.s32.totalorder %s83, 1
    %p132 = por %p130, %p131
    %p134 = scmp.ne.s32.totalorder %s117, %s133
    %p135 = scmp.eq.s32.totalorder %s83, 0
    %p136 = por %p134, %p135
    %s138 = sadd.s32 %s137, 1
    %p141 = scmp.eq.s32.totalorder %s77, 1
    %p142 = scmp.ne.s32.totalorder %s137, %s139
    %p143 = scmp.eq.s32.totalorder %s77, 0
    %p144 = por %p142, %p143
    %p145 = scmp.ne.s32.totalorder %s137, %s139
    %p146 = scmp.eq.s32.totalorder %s82, 1
    %p147 = por %p145, %p146
    %p148 = scmp.ne.s32.totalorder %s139, %s140
    %p149 = scmp.eq.s32.totalorder %s82, 0
    %p150 = por %p148, %p149
    %p151 = scmp.ne.s32.totalorder %s139, %s140
    %p152 = scmp.eq.s32.totalorder %s83, 1
    %p153 = por %p151, %p152
    %p155 = scmp.ne.s32.totalorder %s140, %s154
    %p156 = scmp.eq.s32.totalorder %s83, 0
    %p157 = por %p155, %p156
    %s159 = sadd.s32 %s158, 1
    %p162 = scmp.eq.s32.totalorder %s77, 1
    %p163 = scmp.ne.s32.totalorder %s158, %s160
    %p164 = scmp.eq.s32.totalorder %s77, 0
    %p165 = por %p163, %p164
    %p166 = scmp.ne.s32.totalorder %s158, %s160
    %p167 = scmp.eq.s32.totalorder %s82, 1
    %p168 = por %p166, %p167
    %p169 = scmp.ne.s32.totalorder %s160, %s161
    %p170 = scmp.eq.s32.totalorder %s82, 0
    %p171 = por %p169, %p170
    %p172 = scmp.ne.s32.totalorder %s160, %s161
    %p173 = scmp.eq.s32.totalorder %s83, 1
    %p174 = por %p172, %p173
    %p176 = scmp.ne.s32.totalorder %s161, %s175
    %p177 = scmp.eq.s32.totalorder %s83, 0
    %p178 = por %p176, %p177
    %s180 = sadd.s32 %s179, 1
    %p183 = scmp.eq.s32.totalorder %s77, 1
    %p184 = scmp.ne.s32.totalorder %s179, %s181
    %p185 = scmp.eq.s32.totalorder %s77, 0
    %p186 = por %p184, %p185
    %p187 = scmp.ne.s32.totalorder %s179, %s181
    %p188 = scmp.eq.s32.totalorder %s82, 1
    %p189 = por %p187, %p188
    %p190 = scmp.ne.s32.totalorder %s181, %s182
    %p191 = scmp.eq.s32.totalorder %s82, 0
    %p192 = por %p190, %p191
    %p193 = scmp.ne.s32.totalorder %s181, %s182
    %p194 = scmp.eq.s32.totalorder %s83, 1
    %p195 = por %p193, %p194
    %p197 = scmp.ne.s32.totalorder %s182, %s196
    %p198 = scmp.eq.s32.totalorder %s83, 0
    %p199 = por %p197, %p198
    %s201 = sadd.s32 %s200, 1
    %p204 = scmp.eq.s32.totalorder %s77, 1
    %p205 = scmp.ne.s32.totalorder %s200, %s202
    %p206 = scmp.eq.s32.totalorder %s77, 0
    %p207 = por %p205, %p206
    %p208 = scmp.ne.s32.totalorder %s200, %s202
    %p209 = scmp.eq.s32.totalorder %s82, 1
    %p210 = por %p208, %p209
    %p211 = scmp.ne.s32.totalorder %s202, %s203
    %p212 = scmp.eq.s32.totalorder %s82, 0
    %p213 = por %p211, %p212
    %p214 = scmp.ne.s32.totalorder %s202, %s203
    %p215 = scmp.eq.s32.totalorder %s83, 1
    %p216 = por %p214, %p215
    %p218 = scmp.ne.s32.totalorder %s203, %s217
    %p219 = scmp.eq.s32.totalorder %s83, 0
    %p220 = por %p218, %p219
    %s222 = sadd.s32 %s221, 1
    %p225 = scmp.eq.s32.totalorder %s77, 1
    %p226 = scmp.ne.s32.totalorder %s221, %s223
    %p227 = scmp.eq.s32.totalorder %s77, 0
    %p228 = por %p226, %p227
    %p229 = scmp.ne.s32.totalorder %s221, %s223
    %p230 = scmp.eq.s32.totalorder %s82, 1
    %p231 = por %p229, %p230
    %p232 = scmp.ne.s32.totalorder %s223, %s224
    %p233 = scmp.eq.s32.totalorder %s82, 0
    %p234 = por %p232, %p233
    %p235 = scmp.ne.s32.totalorder %s223, %s224
    %p236 = scmp.eq.s32.totalorder %s83, 1
    %p237 = por %p235, %p236
    %p239 = scmp.ne.s32.totalorder %s224, %s238
    %p240 = scmp.eq.s32.totalorder %s83, 0
    %p241 = por %p239, %p240
    %s243 = sadd.s32 %s242, 1
    %p246 = scmp.eq.s32.totalorder %s77, 1
    %p247 = scmp.ne.s32.totalorder %s242, %s244
    %p248 = scmp.eq.s32.totalorder %s77, 0
    %p249 = por %p247, %p248
    %p250 = scmp.ne.s32.totalorder %s242, %s244
    %p251 = scmp.eq.s32.totalorder %s82, 1
    %p252 = por %p250, %p251
    %p253 = scmp.ne.s32.totalorder %s244, %s245
    %p254 = scmp.eq.s32.totalorder %s82, 0
    %p255 = por %p253, %p254
    %p256 = scmp.ne.s32.totalorder %s244, %s245
    %p257 = scmp.eq.s32.totalorder %s83, 1
    %p258 = por %p256, %p257
    %p260 = scmp.ne.s32.totalorder %s245, %s259
    %p261 = scmp.eq.s32.totalorder %s83, 0
    %p262 = por %p260, %p261
    %s264 = sadd.s32 %s263, 1
    %p267 = scmp.eq.s32.totalorder %s77, 1
    %p268 = scmp.ne.s32.totalorder %s263, %s265
    %p269 = scmp.eq.s32.totalorder %s77, 0
    %p270 = por %p268, %p269
    %p271 = scmp.ne.s32.totalorder %s263, %s265
    %p272 = scmp.eq.s32.totalorder %s82, 1
    %p273 = por %p271, %p272
    %p274 = scmp.ne.s32.totalorder %s265, %s266
    %p275 = scmp.eq.s32.totalorder %s82, 0
    %p276 = por %p274, %p275
    %p277 = scmp.ne.s32.totalorder %s265, %s266
    %p278 = scmp.eq.s32.totalorder %s83, 1
    %p279 = por %p277, %p278
    %p281 = scmp.ne.s32.totalorder %s266, %s280
    %p282 = scmp.eq.s32.totalorder %s83, 0
    %p283 = por %p281, %p282
    %s285 = sadd.s32 %s284, 1
    %p288 = scmp.eq.s32.totalorder %s77, 1
    %p289 = scmp.ne.s32.totalorder %s284, %s286
    %p290 = scmp.eq.s32.totalorder %s77, 0
    %p291 = por %p289, %p290
    %p292 = scmp.ne.s32.totalorder %s284, %s286
    %p293 = scmp.eq.s32.totalorder %s82, 1
    %p294 = por %p292, %p293
    %p295 = scmp.ne.s32.totalorder %s286, %s287
    %p296 = scmp.eq.s32.totalorder %s82, 0
    %p297 = por %p295, %p296
    %p298 = scmp.ne.s32.totalorder %s286, %s287
    %p299 = scmp.eq.s32.totalorder %s83, 1
    %p300 = por %p298, %p299
    %p302 = scmp.ne.s32.totalorder %s287, %s301
    %p303 = scmp.eq.s32.totalorder %s83, 0
    %p304 = por %p302, %p303
    %s306 = sadd.s32 %s305, 1
    %p309 = scmp.eq.s32.totalorder %s77, 1
    %p310 = scmp.ne.s32.totalorder %s305, %s307
    %p311 = scmp.eq.s32.totalorder %s77, 0
    %p312 = por %p310, %p311
    %p313 = scmp.ne.s32.totalorder %s305, %s307
    %p314 = scmp.eq.s32.totalorder %s82, 1
    %p315 = por %p313, %p314
    %p316 = scmp.ne.s32.totalorder %s307, %s308
    %p317 = scmp.eq.s32.totalorder %s82, 0
    %p318 = por %p316, %p317
    %p319 = scmp.ne.s32.totalorder %s307, %s308
    %p320 = scmp.eq.s32.totalorder %s83, 1
    %p321 = por %p319, %p320
    %p323 = scmp.ne.s32.totalorder %s308, %s322
    %p324 = scmp.eq.s32.totalorder %s83, 0
    %p325 = por %p323, %p324
    %s327 = sadd.s32 %s326, 1
    %p330 = scmp.eq.s32.totalorder %s77, 1
    %p331 = scmp.ne.s32.totalorder %s326, %s328
    %p332 = scmp.eq.s32.totalorder %s77, 0
    %p333 = por %p331, %p332
    %p334 = scmp.ne.s32.totalorder %s326, %s328
    %p335 = scmp.eq.s32.totalorder %s82, 1
    %p336 = por %p334, %p335
    %p337 = scmp.ne.s32.totalorder %s328, %s329
    %p338 = scmp.eq.s32.totalorder %s82, 0
    %p339 = por %p337, %p338
    %p340 = scmp.ne.s32.totalorder %s328, %s329
    %p341 = scmp.eq.s32.totalorder %s83, 1
    %p342 = por %p340, %p341
    %p344 = scmp.ne.s32.totalorder %s329, %s343
    %p345 = scmp.eq.s32.totalorder %s83, 0
    %p346 = por %p344, %p345
    %s348 = sadd.s32 %s347, 1
    %p351 = scmp.eq.s32.totalorder %s77, 1
    %p352 = scmp.ne.s32.totalorder %s347, %s349
    %p353 = scmp.eq.s32.totalorder %s77, 0
    %p354 = por %p352, %p353
    %p355 = scmp.ne.s32.totalorder %s347, %s349
    %p356 = scmp.eq.s32.totalorder %s82, 1
    %p357 = por %p355, %p356
    %p358 = scmp.ne.s32.totalorder %s349, %s350
    %p359 = scmp.eq.s32.totalorder %s82, 0
    %p360 = por %p358, %p359
    %p361 = scmp.ne.s32.totalorder %s349, %s350
    %p362 = scmp.eq.s32.totalorder %s83, 1
    %p363 = por %p361, %p362
    %p365 = scmp.ne.s32.totalorder %s350, %s364
    %p366 = scmp.eq.s32.totalorder %s83, 0
    %p367 = por %p365, %p366
    %s369 = sadd.s32 %s368, 1
    %p372 = scmp.eq.s32.totalorder %s77, 1
    %p373 = scmp.ne.s32.totalorder %s368, %s370
    %p374 = scmp.eq.s32.totalorder %s77, 0
    %p375 = por %p373, %p374
    %p376 = scmp.ne.s32.totalorder %s368, %s370
    %p377 = scmp.eq.s32.totalorder %s82, 1
    %p378 = por %p376, %p377
    %p379 = scmp.ne.s32.totalorder %s370, %s371
    %p380 = scmp.eq.s32.totalorder %s82, 0
    %p381 = por %p379, %p380
    %p382 = scmp.ne.s32.totalorder %s370, %s371
    %p383 = scmp.eq.s32.totalorder %s83, 1
    %p384 = por %p382, %p383
    %p386 = scmp.ne.s32.totalorder %s371, %s385
    %p387 = scmp.eq.s32.totalorder %s83, 0
    %p388 = por %p386, %p387
    %s390 = sadd.s32 %s389, 1
    %p393 = scmp.eq.s32.totalorder %s77, 1
    %p394 = scmp.ne.s32.totalorder %s389, %s391
    %p395 = scmp.eq.s32.totalorder %s77, 0
    %p396 = por %p394, %p395
    %p397 = scmp.ne.s32.totalorder %s389, %s391
    %p398 = scmp.eq.s32.totalorder %s82, 1
    %p399 = por %p397, %p398
    %p400 = scmp.ne.s32.totalorder %s391, %s392
    %p401 = scmp.eq.s32.totalorder %s82, 0
    %p402 = por %p400, %p401
    %p403 = scmp.ne.s32.totalorder %s391, %s392
    %p404 = scmp.eq.s32.totalorder %s83, 1
    %p405 = por %p403, %p404
    %p407 = scmp.ne.s32.totalorder %s392, %s406
    %p408 = scmp.eq.s32.totalorder %s83, 0
    %p409 = por %p407, %p408
    %s411 = sadd.s32 %s410, 1
    %p414 = scmp.eq.s32.totalorder %s77, 1
    %p415 = scmp.ne.s32.totalorder %s410, %s412
    %p416 = scmp.eq.s32.totalorder %s77, 0
    %p417 = por %p415, %p416
    %p418 = scmp.ne.s32.totalorder %s410, %s412
    %p419 = scmp.eq.s32.totalorder %s82, 1
    %p420 = por %p418, %p419
    %p421 = scmp.ne.s32.totalorder %s412, %s413
    %p422 = scmp.eq.s32.totalorder %s82, 0
    %p423 = por %p421, %p422
    %p424 = scmp.ne.s32.totalorder %s412, %s413
    %p425 = scmp.eq.s32.totalorder %s83, 1
    %p426 = por %p424, %p425
    %p428 = scmp.ne.s32.totalorder %s413, %s427
    %p429 = scmp.eq.s32.totalorder %s83, 0
    %p430 = por %p428, %p429
    %s432 = sadd.s32 %s431, 1
    %p435 = scmp.eq.s32.totalorder %s77, 1
    %p436 = scmp.ne.s32.totalorder %s431, %s433
    %p437 = scmp.eq.s32.totalorder %s77, 0
    %p438 = por %p436, %p437
    %p439 = scmp.ne.s32.totalorder %s431, %s433
    %p440 = scmp.eq.s32.totalorder %s82, 1
    %p441 = por %p439, %p440
    %p442 = scmp.ne.s32.totalorder %s433, %s434
    %p443 = scmp.eq.s32.totalorder %s82, 0
    %p444 = por %p442, %p443
    %p445 = scmp.ne.s32.totalorder %s433, %s434
    %p446 = scmp.eq.s32.totalorder %s83, 1
    %p447 = por %p445, %p446
    %p449 = scmp.ne.s32.totalorder %s434, %s448
    %p450 = scmp.eq.s32.totalorder %s83, 0
    %p451 = por %p449, %p450
    %s453 = sadd.s32 %s452, 1
    %p456 = scmp.eq.s32.totalorder %s77, 1
    %p457 = scmp.ne.s32.totalorder %s452, %s454
    %p458 = scmp.eq.s32.totalorder %s77, 0
    %p459 = por %p457, %p458
    %p460 = scmp.ne.s32.totalorder %s452, %s454
    %p461 = scmp.eq.s32.totalorder %s82, 1
    %p462 = por %p460, %p461
    %p463 = scmp.ne.s32.totalorder %s454, %s455
    %p464 = scmp.eq.s32.totalorder %s82, 0
    %p465 = por %p463, %p464
    %p466 = scmp.ne.s32.totalorder %s454, %s455
    %p467 = scmp.eq.s32.totalorder %s83, 1
    %p468 = por %p466, %p467
    %p470 = scmp.ne.s32.totalorder %s455, %s469
    %p471 = scmp.eq.s32.totalorder %s83, 0
    %p472 = por %p470, %p471
    %s474 = sadd.s32 %s473, 1
    %p477 = scmp.eq.s32.totalorder %s77, 1
    %p478 = scmp.ne.s32.totalorder %s473, %s475
    %p479 = scmp.eq.s32.totalorder %s77, 0
    %p480 = por %p478, %p479
    %p481 = scmp.ne.s32.totalorder %s473, %s475
    %p482 = scmp.eq.s32.totalorder %s82, 1
    %p483 = por %p481, %p482
    %p484 = scmp.ne.s32.totalorder %s475, %s476
    %p485 = scmp.eq.s32.totalorder %s82, 0
    %p486 = por %p484, %p485
    %p487 = scmp.ne.s32.totalorder %s475, %s476
    %p488 = scmp.eq.s32.totalorder %s83, 1
    %p489 = por %p487, %p488
    %p491 = scmp.ne.s32.totalorder %s476, %s490
    %p492 = scmp.eq.s32.totalorder %s83, 0
    %p493 = por %p491, %p492
    %s495 = sadd.s32 %s494, 1
    %p498 = scmp.eq.s32.totalorder %s77, 1
    %p499 = scmp.ne.s32.totalorder %s494, %s496
    %p500 = scmp.eq.s32.totalorder %s77, 0
    %p501 = por %p499, %p500
    %p502 = scmp.ne.s32.totalorder %s494, %s496
    %p503 = scmp.eq.s32.totalorder %s82, 1
    %p504 = por %p502, %p503
    %p505 = scmp.ne.s32.totalorder %s496, %s497
    %p506 = scmp.eq.s32.totalorder %s82, 0
    %p507 = por %p505, %p506
    %p508 = scmp.ne.s32.totalorder %s496, %s497
    %p509 = scmp.eq.s32.totalorder %s83, 1
    %p510 = por %p508, %p509
    %p512 = scmp.ne.s32.totalorder %s497, %s511
    %p513 = scmp.eq.s32.totalorder %s83, 0
    %p514 = por %p512, %p513
    %s516 = sadd.s32 %s515, 1
    %p519 = scmp.eq.s32.totalorder %s77, 1
    %p520 = scmp.ne.s32.totalorder %s515, %s517
    %p521 = scmp.eq.s32.totalorder %s77, 0
    %p522 = por %p520, %p521
    %p523 = scmp.ne.s32.totalorder %s515, %s517
    %p524 = scmp.eq.s32.totalorder %s82, 1
    %p525 = por %p523, %p524
    %p526 = scmp.ne.s32.totalorder %s517, %s518
    %p527 = scmp.eq.s32.totalorder %s82, 0
    %p528 = por %p526, %p527
    %p529 = scmp.ne.s32.totalorder %s517, %s518
    %p530 = scmp.eq.s32.totalorder %s83, 1
    %p531 = por %p529, %p530
    %p533 = scmp.ne.s32.totalorder %s518, %s532
    %p534 = scmp.eq.s32.totalorder %s83, 0
    %p535 = por %p533, %p534
    %s537 = sadd.s32 %s536, 1
    %p540 = scmp.eq.s32.totalorder %s77, 1
    %p541 = scmp.ne.s32.totalorder %s536, %s538
    %p542 = scmp.eq.s32.totalorder %s77, 0
    %p543 = por %p541, %p542
    %p544 = scmp.ne.s32.totalorder %s536, %s538
    %p545 = scmp.eq.s32.totalorder %s82, 1
    %p546 = por %p544, %p545
    %p547 = scmp.ne.s32.totalorder %s538, %s539
    %p548 = scmp.eq.s32.totalorder %s82, 0
    %p549 = por %p547, %p548
    %p550 = scmp.ne.s32.totalorder %s538, %s539
    %p551 = scmp.eq.s32.totalorder %s83, 1
    %p552 = por %p550, %p551
    %p554 = scmp.ne.s32.totalorder %s539, %s553
    %p555 = scmp.eq.s32.totalorder %s83, 0
    %p556 = por %p554, %p555
    %s558 = sadd.s32 %s557, 1
    %p561 = scmp.eq.s32.totalorder %s77, 1
    %p562 = scmp.ne.s32.totalorder %s557, %s559
    %p563 = scmp.eq.s32.totalorder %s77, 0
    %p564 = por %p562, %p563
    %p565 = scmp.ne.s32.totalorder %s557, %s559
    %p566 = scmp.eq.s32.totalorder %s82, 1
    %p567 = por %p565, %p566
    %p568 = scmp.ne.s32.totalorder %s559, %s560
    %p569 = scmp.eq.s32.totalorder %s82, 0
    %p570 = por %p568, %p569
    %p571 = scmp.ne.s32.totalorder %s559, %s560
    %p572 = scmp.eq.s32.totalorder %s83, 1
    %p573 = por %p571, %p572
    %p575 = scmp.ne.s32.totalorder %s560, %s574
    %p576 = scmp.eq.s32.totalorder %s83, 0
    %p577 = por %p575, %p576
    %s579 = sadd.s32 %s578, 1
    %p582 = scmp.eq.s32.totalorder %s77, 1
    %p583 = scmp.ne.s32.totalorder %s578, %s580
    %p584 = scmp.eq.s32.totalorder %s77, 0
    %p585 = por %p583, %p584
    %p586 = scmp.ne.s32.totalorder %s578, %s580
    %p587 = scmp.eq.s32.totalorder %s82, 1
    %p588 = por %p586, %p587
    %p589 = scmp.ne.s32.totalorder %s580, %s581
    %p590 = scmp.eq.s32.totalorder %s82, 0
    %p591 = por %p589, %p590
    %p592 = scmp.ne.s32.totalorder %s580, %s581
    %p593 = scmp.eq.s32.totalorder %s83, 1
    %p594 = por %p592, %p593
    %p596 = scmp.ne.s32.totalorder %s581, %s595
    %p597 = scmp.eq.s32.totalorder %s83, 0
    %p598 = por %p596, %p597
    %s600 = sadd.s32 %s599, 1
    %p603 = scmp.eq.s32.totalorder %s77, 1
    %p604 = scmp.ne.s32.totalorder %s599, %s601
    %p605 = scmp.eq.s32.totalorder %s77, 0
    %p606 = por %p604, %p605
    %p607 = scmp.ne.s32.totalorder %s599, %s601
    %p608 = scmp.eq.s32.totalorder %s82, 1
    %p609 = por %p607, %p608
    %p610 = scmp.ne.s32.totalorder %s601, %s602
    %p611 = scmp.eq.s32.totalorder %s82, 0
    %p612 = por %p610, %p611
    %p613 = scmp.ne.s32.totalorder %s601, %s602
    %p614 = scmp.eq.s32.totalorder %s83, 1
    %p615 = por %p613, %p614
    %p617 = scmp.ne.s32.totalorder %s602, %s616
    %p618 = scmp.eq.s32.totalorder %s83, 0
    %p619 = por %p617, %p618
    %s621 = sadd.s32 %s620, 1
    %p624 = scmp.eq.s32.totalorder %s77, 1
    %p625 = scmp.ne.s32.totalorder %s620, %s622
    %p626 = scmp.eq.s32.totalorder %s77, 0
    %p627 = por %p625, %p626
    %p628 = scmp.ne.s32.totalorder %s620, %s622
    %p629 = scmp.eq.s32.totalorder %s82, 1
    %p630 = por %p628, %p629
    %p631 = scmp.ne.s32.totalorder %s622, %s623
    %p632 = scmp.eq.s32.totalorder %s82, 0
    %p633 = por %p631, %p632
    %p634 = scmp.ne.s32.totalorder %s622, %s623
    %p635 = scmp.eq.s32.totalorder %s83, 1
    %p636 = por %p634, %p635
    %p638 = scmp.ne.s32.totalorder %s623, %s637
    %p639 = scmp.eq.s32.totalorder %s83, 0
    %p640 = por %p638, %p639
    %s642 = sadd.s32 %s641, 1
    %p645 = scmp.eq.s32.totalorder %s77, 1
    %p646 = scmp.ne.s32.totalorder %s641, %s643
    %p647 = scmp.eq.s32.totalorder %s77, 0
    %p648 = por %p646, %p647
    %p649 = scmp.ne.s32.totalorder %s641, %s643
    %p650 = scmp.eq.s32.totalorder %s82, 1
    %p651 = por %p649, %p650
    %p652 = scmp.ne.s32.totalorder %s643, %s644
    %p653 = scmp.eq.s32.totalorder %s82, 0
    %p654 = por %p652, %p653
    %p655 = scmp.ne.s32.totalorder %s643, %s644
    %p656 = scmp.eq.s32.totalorder %s83, 1
    %p657 = por %p655, %p656
    %p659 = scmp.ne.s32.totalorder %s644, %s658
    %p660 = scmp.eq.s32.totalorder %s83, 0
    %p661 = por %p659, %p660
    %s663 = sadd.s32 %s662, 1
    %p666 = scmp.eq.s32.totalorder %s77, 1
    %p667 = scmp.ne.s32.totalorder %s662, %s664
    %p668 = scmp.eq.s32.totalorder %s77, 0
    %p669 = por %p667, %p668
    %p670 = scmp.ne.s32.totalorder %s662, %s664
    %p671 = scmp.eq.s32.totalorder %s82, 1
    %p672 = por %p670, %p671
    %p673 = scmp.ne.s32.totalorder %s664, %s665
    %p674 = scmp.eq.s32.totalorder %s82, 0
    %p675 = por %p673, %p674
    %p676 = scmp.ne.s32.totalorder %s664, %s665
    %p677 = scmp.eq.s32.totalorder %s83, 1
    %p678 = por %p676, %p677
    %p680 = scmp.ne.s32.totalorder %s665, %s679
    %p681 = scmp.eq.s32.totalorder %s83, 0
    %p682 = por %p680, %p681
    %s684 = sadd.s32 %s683, 1
    %p687 = scmp.eq.s32.totalorder %s77, 1
    %p688 = scmp.ne.s32.totalorder %s683, %s685
    %p689 = scmp.eq.s32.totalorder %s77, 0
    %p690 = por %p688, %p689
    %p691 = scmp.ne.s32.totalorder %s683, %s685
    %p692 = scmp.eq.s32.totalorder %s82, 1
    %p693 = por %p691, %p692
    %p694 = scmp.ne.s32.totalorder %s685, %s686
    %p695 = scmp.eq.s32.totalorder %s82, 0
    %p696 = por %p694, %p695
    %p697 = scmp.ne.s32.totalorder %s685, %s686
    %p698 = scmp.eq.s32.totalorder %s83, 1
    %p699 = por %p697, %p698
    %p701 = scmp.ne.s32.totalorder %s686, %s700
    %p702 = scmp.eq.s32.totalorder %s83, 0
    %p703 = por %p701, %p702
    %s705 = sadd.s32 %s704, 1
    %p708 = scmp.eq.s32.totalorder %s77, 1
    %p709 = scmp.ne.s32.totalorder %s704, %s706
    %p710 = scmp.eq.s32.totalorder %s77, 0
    %p711 = por %p709, %p710
    %p712 = scmp.ne.s32.totalorder %s704, %s706
    %p713 = scmp.eq.s32.totalorder %s82, 1
    %p714 = por %p712, %p713
    %p715 = scmp.ne.s32.totalorder %s706, %s707
    %p716 = scmp.eq.s32.totalorder %s82, 0
    %p717 = por %p715, %p716
    %p718 = scmp.ne.s32.totalorder %s706, %s707
    %p719 = scmp.eq.s32.totalorder %s83, 1
    %p720 = por %p718, %p719
    %p722 = scmp.ne.s32.totalorder %s707, %s721
    %p723 = scmp.eq.s32.totalorder %s83, 0
    %p724 = por %p722, %p723
    %s726 = sadd.s32 %s725, 1
    %p729 = scmp.eq.s32.totalorder %s77, 1
    %p730 = scmp.ne.s32.totalorder %s725, %s727
    %p731 = scmp.eq.s32.totalorder %s77, 0
    %p732 = por %p730, %p731
    %p733 = scmp.ne.s32.totalorder %s725, %s727
    %p734 = scmp.eq.s32.totalorder %s82, 1
    %p735 = por %p733, %p734
    %p736 = scmp.ne.s32.totalorder %s727, %s728
    %p737 = scmp.eq.s32.totalorder %s82, 0
    %p738 = por %p736, %p737
    %p739 = scmp.ne.s32.totalorder %s727, %s728
    %p740 = scmp.eq.s32.totalorder %s83, 1
    %p741 = por %p739, %p740
    %p743 = scmp.ne.s32.totalorder %s728, %s742
    %p744 = scmp.eq.s32.totalorder %s83, 0
    %p745 = por %p743, %p744
    %s747 = sadd.s32 %s746, 1
    %p750 = scmp.eq.s32.totalorder %s77, 1
    %p751 = scmp.ne.s32.totalorder %s746, %s748
    %p752 = scmp.eq.s32.totalorder %s77, 0
    %p753 = por %p751, %p752
    %p754 = scmp.ne.s32.totalorder %s746, %s748
    %p755 = scmp.eq.s32.totalorder %s82, 1
    %p756 = por %p754, %p755
    %p757 = scmp.ne.s32.totalorder %s748, %s749
    %p758 = scmp.eq.s32.totalorder %s82, 0
    %p759 = por %p757, %p758
    %p760 = scmp.ne.s32.totalorder %s748, %s749
    %p761 = scmp.eq.s32.totalorder %s83, 1
    %p762 = por %p760, %p761
    %p764 = scmp.ne.s32.totalorder %s749, %s763
    %p765 = scmp.eq.s32.totalorder %s83, 0
    %p766 = por %p764, %p765
    %s768 = sadd.s32 %s767, 1
    %p771 = scmp.eq.s32.totalorder %s77, 1
    %p772 = scmp.ne.s32.totalorder %s767, %s769
    %p773 = scmp.eq.s32.totalorder %s77, 0
    %p774 = por %p772, %p773
    %p775 = scmp.ne.s32.totalorder %s767, %s769
    %p776 = scmp.eq.s32.totalorder %s82, 1
    %p777 = por %p775, %p776
    %p778 = scmp.ne.s32.totalorder %s769, %s770
    %p779 = scmp.eq.s32.totalorder %s82, 0
    %p780 = por %p778, %p779
    %p781 = scmp.ne.s32.totalorder %s769, %s770
    %p782 = scmp.eq.s32.totalorder %s83, 1
    %p783 = por %p781, %p782
    %p785 = scmp.ne.s32.totalorder %s770, %s784
    %p786 = scmp.eq.s32.totalorder %s83, 0
    %p787 = por %p785, %p786
    %s789 = sadd.s32 %s788, 1
    %p792 = scmp.eq.s32.totalorder %s77, 1
    %p793 = scmp.ne.s32.totalorder %s788, %s790
    %p794 = scmp.eq.s32.totalorder %s77, 0
    %p795 = por %p793, %p794
    %p796 = scmp.ne.s32.totalorder %s788, %s790
    %p797 = scmp.eq.s32.totalorder %s82, 1
    %p798 = por %p796, %p797
    %p799 = scmp.ne.s32.totalorder %s790, %s791
    %p800 = scmp.eq.s32.totalorder %s82, 0
    %p801 = por %p799, %p800
    %p802 = scmp.ne.s32.totalorder %s790, %s791
    %p803 = scmp.eq.s32.totalorder %s83, 1
    %p804 = por %p802, %p803
    %p806 = scmp.ne.s32.totalorder %s791, %s805
    %p807 = scmp.eq.s32.totalorder %s83, 0
    %p808 = por %p806, %p807
    %s810 = sadd.s32 %s809, 1
    %p813 = scmp.eq.s32.totalorder %s77, 1
    %p814 = scmp.ne.s32.totalorder %s809, %s811
    %p815 = scmp.eq.s32.totalorder %s77, 0
    %p816 = por %p814, %p815
    %p817 = scmp.ne.s32.totalorder %s809, %s811
    %p818 = scmp.eq.s32.totalorder %s82, 1
    %p819 = por %p817, %p818
    %p820 = scmp.ne.s32.totalorder %s811, %s812
    %p821 = scmp.eq.s32.totalorder %s82, 0
    %p822 = por %p820, %p821
    %p823 = scmp.ne.s32.totalorder %s811, %s812
    %p824 = scmp.eq.s32.totalorder %s83, 1
    %p825 = por %p823, %p824
    %p827 = scmp.ne.s32.totalorder %s812, %s826
    %p828 = scmp.eq.s32.totalorder %s83, 0
    %p829 = por %p827, %p828
    %s830 = ssub.s32 %s77, %s84
    %p831 = scmp.eq.s32.totalorder %s830, 0
    %s833 = sadd.s32 %s832, 1
    %s834 = scalar_select %p831, %s832, %s833
    %p837 = pneg %p831
    %p838 = scmp.eq.s32.totalorder %s77, 1
    %p839 = por %p837, %p838
    %p840 = scmp.ne.s32.totalorder %s832, %s835
    %p841 = scmp.eq.s32.totalorder %s77, 0
    %p842 = por %p840, %p841
    %p843 = scmp.ne.s32.totalorder %s832, %s835
    %p844 = scmp.eq.s32.totalorder %s82, 1
    %p845 = por %p843, %p844
    %p846 = scmp.ne.s32.totalorder %s835, %s836
    %p847 = scmp.eq.s32.totalorder %s82, 0
    %p848 = por %p846, %p847
    %p849 = scmp.ne.s32.totalorder %s835, %s836
    %p850 = scmp.eq.s32.totalorder %s83, 1
    %p851 = por %p849, %p850
    %p853 = scmp.ne.s32.totalorder %s836, %s852
    %p854 = scmp.eq.s32.totalorder %s83, 0
    %p855 = por %p853, %p854
    %p856 = scmp.le.s32.totalorder 1, %s77
    %p857 = scmp.lt.s32.totalorder %s77, 3
    %p858 = pnand %p856, %p857
    %p859 = pneg %p858
    // Predicated region
    $region9: #{transformer_forward.1} parent=5 // pred_check
      _
    $region10: #{transformer_forward.1} parent=5 // pred_check_branch
      %861 = sbr.rel (%p858) target = $region12
    $region11: #{transformer_forward.1} parent=5 // pred_region
      %s862 = ssub.s32 %s77, 1
      // Predicated region
      $region13: #{transformer_forward.1} parent=11 // pred_check
        %p863 = pneg %p150
      $region14: #{transformer_forward.1} parent=11 // pred_check_branch
        %865 = sbr.rel (%p863) target = $region16
      $region15: #{transformer_forward.1} parent=11 // pred_region
        _
      $region16: #{transformer_forward.1} parent=11 // pred_fallthru
        _
      // Predicated region
      $region17: #{transformer_forward.1} parent=11 // pred_check
        %p866 = pneg %p171
      $region18: #{transformer_forward.1} parent=11 // pred_check_branch
        %868 = sbr.rel (%p866) target = $region20
      $region19: #{transformer_forward.1} parent=11 // pred_region
        _
      $region20: #{transformer_forward.1} parent=11 // pred_fallthru
        _
      // Predicated region
      $region21: #{transformer_forward.1} parent=11 // pred_check
        %p869 = pneg %p192
      $region22: #{transformer_forward.1} parent=11 // pred_check_branch
        %871 = sbr.rel (%p869) target = $region24
      $region23: #{transformer_forward.1} parent=11 // pred_region
        _
      $region24: #{transformer_forward.1} parent=11 // pred_fallthru
        _
      // Predicated region
      $region25: #{transformer_forward.1} parent=11 // pred_check
        %p872 = pneg %p213
      $region26: #{transformer_forward.1} parent=11 // pred_check_branch
        %874 = sbr.rel (%p872) target = $region28
      $region27: #{transformer_forward.1} parent=11 // pred_region
        _
      $region28: #{transformer_forward.1} parent=11 // pred_fallthru
        _
      // Predicated region
      $region29: #{transformer_forward.1} parent=11 // pred_check
        %p875 = pneg %p234
      $region30: #{transformer_forward.1} parent=11 // pred_check_branch
        %877 = sbr.rel (%p875) target = $region32
      $region31: #{transformer_forward.1} parent=11 // pred_region
        _
      $region32: #{transformer_forward.1} parent=11 // pred_fallthru
        _
      // Predicated region
      $region33: #{transformer_forward.1} parent=11 // pred_check
        %p878 = pneg %p255
      $region34: #{transformer_forward.1} parent=11 // pred_check_branch
        %880 = sbr.rel (%p878) target = $region36
      $region35: #{transformer_forward.1} parent=11 // pred_region
        _
      $region36: #{transformer_forward.1} parent=11 // pred_fallthru
        _
      // Predicated region
      $region37: #{transformer_forward.1} parent=11 // pred_check
        %p881 = pneg %p276
      $region38: #{transformer_forward.1} parent=11 // pred_check_branch
        %883 = sbr.rel (%p881) target = $region40
      $region39: #{transformer_forward.1} parent=11 // pred_region
        _
      $region40: #{transformer_forward.1} parent=11 // pred_fallthru
        _
      // Predicated region
      $region41: #{transformer_forward.1} parent=11 // pred_check
        %p884 = pneg %p297
      $region42: #{transformer_forward.1} parent=11 // pred_check_branch
        %886 = sbr.rel (%p884) target = $region44
      $region43: #{transformer_forward.1} parent=11 // pred_region
        _
      $region44: #{transformer_forward.1} parent=11 // pred_fallthru
        _
      // Predicated region
      $region45: #{transformer_forward.1} parent=11 // pred_check
        %p887 = pneg %p318
      $region46: #{transformer_forward.1} parent=11 // pred_check_branch
        %889 = sbr.rel (%p887) target = $region48
      $region47: #{transformer_forward.1} parent=11 // pred_region
        _
      $region48: #{transformer_forward.1} parent=11 // pred_fallthru
        _
      // Predicated region
      $region49: #{transformer_forward.1} parent=11 // pred_check
        %p890 = pneg %p339
      $region50: #{transformer_forward.1} parent=11 // pred_check_branch
        %892 = sbr.rel (%p890) target = $region52
      $region51: #{transformer_forward.1} parent=11 // pred_region
        _
      $region52: #{transformer_forward.1} parent=11 // pred_fallthru
        _
      // Predicated region
      $region53: #{transformer_forward.1} parent=11 // pred_check
        %p893 = pneg %p360
      $region54: #{transformer_forward.1} parent=11 // pred_check_branch
        %895 = sbr.rel (%p893) target = $region56
      $region55: #{transformer_forward.1} parent=11 // pred_region
        _
      $region56: #{transformer_forward.1} parent=11 // pred_fallthru
        _
      // Predicated region
      $region57: #{transformer_forward.1} parent=11 // pred_check
        %p896 = pneg %p381
      $region58: #{transformer_forward.1} parent=11 // pred_check_branch
        %898 = sbr.rel (%p896) target = $region60
      $region59: #{transformer_forward.1} parent=11 // pred_region
        _
      $region60: #{transformer_forward.1} parent=11 // pred_fallthru
        _
      // Predicated region
      $region61: #{transformer_forward.1} parent=11 // pred_check
        %p899 = pneg %p402
      $region62: #{transformer_forward.1} parent=11 // pred_check_branch
        %901 = sbr.rel (%p899) target = $region64
      $region63: #{transformer_forward.1} parent=11 // pred_region
        _
      $region64: #{transformer_forward.1} parent=11 // pred_fallthru
        _
      // Predicated region
      $region65: #{transformer_forward.1} parent=11 // pred_check
        %p902 = pneg %p423
      $region66: #{transformer_forward.1} parent=11 // pred_check_branch
        %904 = sbr.rel (%p902) target = $region68
      $region67: #{transformer_forward.1} parent=11 // pred_region
        _
      $region68: #{transformer_forward.1} parent=11 // pred_fallthru
        _
      // Predicated region
      $region69: #{transformer_forward.1} parent=11 // pred_check
        %p905 = pneg %p444
      $region70: #{transformer_forward.1} parent=11 // pred_check_branch
        %907 = sbr.rel (%p905) target = $region72
      $region71: #{transformer_forward.1} parent=11 // pred_region
        _
      $region72: #{transformer_forward.1} parent=11 // pred_fallthru
        _
      // Predicated region
      $region73: #{transformer_forward.1} parent=11 // pred_check
        %p908 = pneg %p465
      $region74: #{transformer_forward.1} parent=11 // pred_check_branch
        %910 = sbr.rel (%p908) target = $region76
      $region75: #{transformer_forward.1} parent=11 // pred_region
        _
      $region76: #{transformer_forward.1} parent=11 // pred_fallthru
        _
      // Predicated region
      $region77: #{transformer_forward.1} parent=11 // pred_check
        %p911 = pneg %p486
      $region78: #{transformer_forward.1} parent=11 // pred_check_branch
        %913 = sbr.rel (%p911) target = $region80
      $region79: #{transformer_forward.1} parent=11 // pred_region
        _
      $region80: #{transformer_forward.1} parent=11 // pred_fallthru
        _
      // Predicated region
      $region81: #{transformer_forward.1} parent=11 // pred_check
        %p914 = pneg %p507
      $region82: #{transformer_forward.1} parent=11 // pred_check_branch
        %916 = sbr.rel (%p914) target = $region84
      $region83: #{transformer_forward.1} parent=11 // pred_region
        _
      $region84: #{transformer_forward.1} parent=11 // pred_fallthru
        _
      // Predicated region
      $region85: #{transformer_forward.1} parent=11 // pred_check
        %p917 = pneg %p528
      $region86: #{transformer_forward.1} parent=11 // pred_check_branch
        %919 = sbr.rel (%p917) target = $region88
      $region87: #{transformer_forward.1} parent=11 // pred_region
        _
      $region88: #{transformer_forward.1} parent=11 // pred_fallthru
        _
      // Predicated region
      $region89: #{transformer_forward.1} parent=11 // pred_check
        %p920 = pneg %p549
      $region90: #{transformer_forward.1} parent=11 // pred_check_branch
        %922 = sbr.rel (%p920) target = $region92
      $region91: #{transformer_forward.1} parent=11 // pred_region
        _
      $region92: #{transformer_forward.1} parent=11 // pred_fallthru
        _
      // Predicated region
      $region93: #{transformer_forward.1} parent=11 // pred_check
        %p923 = pneg %p570
      $region94: #{transformer_forward.1} parent=11 // pred_check_branch
        %925 = sbr.rel (%p923) target = $region96
      $region95: #{transformer_forward.1} parent=11 // pred_region
        _
      $region96: #{transformer_forward.1} parent=11 // pred_fallthru
        _
      // Predicated region
      $region97: #{transformer_forward.1} parent=11 // pred_check
        %p926 = pneg %p591
      $region98: #{transformer_forward.1} parent=11 // pred_check_branch
        %928 = sbr.rel (%p926) target = $region100
      $region99: #{transformer_forward.1} parent=11 // pred_region
        _
      $region100: #{transformer_forward.1} parent=11 // pred_fallthru
        _
      // Predicated region
      $region101: #{transformer_forward.1} parent=11 // pred_check
        %p929 = pneg %p612
      $region102: #{transformer_forward.1} parent=11 // pred_check_branch
        %931 = sbr.rel (%p929) target = $region104
      $region103: #{transformer_forward.1} parent=11 // pred_region
        _
      $region104: #{transformer_forward.1} parent=11 // pred_fallthru
        _
      // Predicated region
      $region105: #{transformer_forward.1} parent=11 // pred_check
        %p932 = pneg %p633
      $region106: #{transformer_forward.1} parent=11 // pred_check_branch
        %934 = sbr.rel (%p932) target = $region108
      $region107: #{transformer_forward.1} parent=11 // pred_region
        _
      $region108: #{transformer_forward.1} parent=11 // pred_fallthru
        _
      // Predicated region
      $region109: #{transformer_forward.1} parent=11 // pred_check
        %p935 = pneg %p654
      $region110: #{transformer_forward.1} parent=11 // pred_check_branch
        %937 = sbr.rel (%p935) target = $region112
      $region111: #{transformer_forward.1} parent=11 // pred_region
        _
      $region112: #{transformer_forward.1} parent=11 // pred_fallthru
        _
      // Predicated region
      $region113: #{transformer_forward.1} parent=11 // pred_check
        %p938 = pneg %p675
      $region114: #{transformer_forward.1} parent=11 // pred_check_branch
        %940 = sbr.rel (%p938) target = $region116
      $region115: #{transformer_forward.1} parent=11 // pred_region
        _
      $region116: #{transformer_forward.1} parent=11 // pred_fallthru
        _
      // Predicated region
      $region117: #{transformer_forward.1} parent=11 // pred_check
        %p941 = pneg %p696
      $region118: #{transformer_forward.1} parent=11 // pred_check_branch
        %943 = sbr.rel (%p941) target = $region120
      $region119: #{transformer_forward.1} parent=11 // pred_region
        _
      $region120: #{transformer_forward.1} parent=11 // pred_fallthru
        _
      // Predicated region
      $region121: #{transformer_forward.1} parent=11 // pred_check
        %p944 = pneg %p717
      $region122: #{transformer_forward.1} parent=11 // pred_check_branch
        %946 = sbr.rel (%p944) target = $region124
      $region123: #{transformer_forward.1} parent=11 // pred_region
        _
      $region124: #{transformer_forward.1} parent=11 // pred_fallthru
        _
      // Predicated region
      $region125: #{transformer_forward.1} parent=11 // pred_check
        %p947 = pneg %p738
      $region126: #{transformer_forward.1} parent=11 // pred_check_branch
        %949 = sbr.rel (%p947) target = $region128
      $region127: #{transformer_forward.1} parent=11 // pred_region
        _
      $region128: #{transformer_forward.1} parent=11 // pred_fallthru
        _
      // Predicated region
      $region129: #{transformer_forward.1} parent=11 // pred_check
        %p950 = pneg %p759
      $region130: #{transformer_forward.1} parent=11 // pred_check_branch
        %952 = sbr.rel (%p950) target = $region132
      $region131: #{transformer_forward.1} parent=11 // pred_region
        _
      $region132: #{transformer_forward.1} parent=11 // pred_fallthru
        _
      // Predicated region
      $region133: #{transformer_forward.1} parent=11 // pred_check
        %p953 = pneg %p780
      $region134: #{transformer_forward.1} parent=11 // pred_check_branch
        %955 = sbr.rel (%p953) target = $region136
      $region135: #{transformer_forward.1} parent=11 // pred_region
        _
      $region136: #{transformer_forward.1} parent=11 // pred_fallthru
        _
      // Predicated region
      $region137: #{transformer_forward.1} parent=11 // pred_check
        %p956 = pneg %p801
      $region138: #{transformer_forward.1} parent=11 // pred_check_branch
        %958 = sbr.rel (%p956) target = $region140
      $region139: #{transformer_forward.1} parent=11 // pred_region
        _
      $region140: #{transformer_forward.1} parent=11 // pred_fallthru
        _
      // Predicated region
      $region141: #{transformer_forward.1} parent=11 // pred_check
        %p959 = pneg %p822
      $region142: #{transformer_forward.1} parent=11 // pred_check_branch
        %961 = sbr.rel (%p959) target = $region144
      $region143: #{transformer_forward.1} parent=11 // pred_region
        _
      $region144: #{transformer_forward.1} parent=11 // pred_fallthru
        _
    $region12: #{transformer_forward.1} parent=5 // pred_fallthru
      _
    %p962 = scmp.lt.s32.totalorder %s77, 2
    // Predicated region
    $region145: #{transformer_forward.1} parent=5 // pred_check
      %p963 = pneg %p962
    $region146: #{transformer_forward.1} parent=5 // pred_check_branch
      %965 = sbr.rel (%p963) target = $region148
    $region147: #{transformer_forward.1} parent=5 // pred_region
      // Predicated region
      $region149: #{transformer_forward.1} parent=147 // pred_check
        %p966 = pneg %p97
      $region150: #{transformer_forward.1} parent=147 // pred_check_branch
        %968 = sbr.rel (%p966) target = $region152
      $region151: #{transformer_forward.1} parent=147 // pred_region
        %p969 = scmp.lt.s32.totalorder %s77, 1
        %s970 = scalar_select %p969, %s77, 1
        %s971 = smul.addr %s970, 8
        %s972 = scalar_lea.vmem %s1, %s971
      $region152: #{transformer_forward.1} parent=147 // pred_fallthru
        _
      // Predicated region
      $region153: #{transformer_forward.1} parent=147 // pred_check
        %p973 = pneg %p123
      $region154: #{transformer_forward.1} parent=147 // pred_check_branch
        %975 = sbr.rel (%p973) target = $region156
      $region155: #{transformer_forward.1} parent=147 // pred_region
        %p976 = scmp.lt.s32.totalorder %s77, 1
        %s977 = scalar_select %p976, %s77, 1
        %s978 = smul.addr %s977, 8
        %s979 = scalar_lea.vmem %s3, %s978
      $region156: #{transformer_forward.1} parent=147 // pred_fallthru
        _
    $region148: #{transformer_forward.1} parent=5 // pred_fallthru
      _
    %p980 = scmp.le.s32.totalorder 1, %s77
    %p981 = scmp.lt.s32.totalorder %s77, 3
    %p982 = pnand %p980, %p981
    %p983 = pneg %p982
    // Predicated region
    $region157: #{transformer_forward.1} parent=5 // pred_check
      _
    $region158: #{transformer_forward.1} parent=5 // pred_check_branch
      %985 = sbr.rel (%p982) target = $region160
    $region159: #{transformer_forward.1} parent=5 // pred_region
      %s986 = ssub.s32 %s77, 1
      %p987 = scmp.lt.s32.totalorder %s82, 1
      %s988 = scalar_select %p987, %s82, 1
      %s989 = smul.addr %s988, 8
      %s990 = scalar_lea.vmem %s1, %s989
      %p991 = pneg %p103
      %p992 = pneg %p100
      %p993 = scmp.lt.s32.totalorder %s82, 1
      %s994 = scalar_select %p993, %s82, 1
      %s995 = smul.addr %s994, 8
      %s996 = scalar_lea.vmem %s3, %s995
      %p997 = pneg %p129
      %p998 = pneg %p126
      %p999 = pneg %p150
      %p1000 = pneg %p147
      %p1001 = pneg %p171
      %p1002 = pneg %p168
      %p1003 = pneg %p192
      %p1004 = pneg %p189
      %p1005 = pneg %p213
      %p1006 = pneg %p210
      %p1007 = pneg %p234
      %p1008 = pneg %p231
      %p1009 = pneg %p255
      %p1010 = pneg %p252
      %p1011 = pneg %p276
      %p1012 = pneg %p273
      %p1013 = pneg %p297
      %p1014 = pneg %p294
      %p1015 = pneg %p318
      %p1016 = pneg %p315
      %p1017 = pneg %p339
      %p1018 = pneg %p336
      %p1019 = pneg %p360
      %p1020 = pneg %p357
      %p1021 = pneg %p381
      %p1022 = pneg %p378
      %p1023 = pneg %p402
      %p1024 = pneg %p399
      %p1025 = pneg %p423
      %p1026 = pneg %p420
      %p1027 = pneg %p444
      %p1028 = pneg %p441
      %p1029 = pneg %p465
      %p1030 = pneg %p462
      %p1031 = pneg %p486
      %p1032 = pneg %p483
      %p1033 = pneg %p507
      %p1034 = pneg %p504
      %p1035 = pneg %p528
      %p1036 = pneg %p525
      %p1037 = pneg %p549
      %p1038 = pneg %p546
      %p1039 = pneg %p570
      %p1040 = pneg %p567
      %p1041 = pneg %p591
      %p1042 = pneg %p588
      %p1043 = pneg %p612
      %p1044 = pneg %p609
      %p1045 = pneg %p633
      %p1046 = pneg %p630
      %p1047 = pneg %p654
      %p1048 = pneg %p651
      %p1049 = pneg %p675
      %p1050 = pneg %p672
      %p1051 = pneg %p696
      %p1052 = pneg %p693
      %p1053 = pneg %p717
      %p1054 = pneg %p714
      %p1055 = pneg %p738
      %p1056 = pneg %p735
      %p1057 = pneg %p759
      %p1058 = pneg %p756
      %p1059 = pneg %p780
      %p1060 = pneg %p777
      %p1061 = pneg %p801
      %p1062 = pneg %p798
      %p1063 = pneg %p822
      %p1064 = pneg %p819
      %p1065 = pneg %p848
      %p1066 = pneg %p845
      %p1067 = scmp.lt.s32.totalorder %s82, 1
      %s1068 = scalar_select %p1067, %s82, 1
      %s1069 = smul.addr %s1068, 8
      %s1070 = scalar_lea.vmem %s71, %s1069
      %p1071 = scmp.lt.s32.totalorder %s82, 1
      %s1072 = scalar_select %p1071, %s82, 1
      %s1073 = smul.addr %s1072, 8
      %s1074 = scalar_lea.vmem %s1, %s1073
      %p1075 = scmp.lt.s32.totalorder %s82, 1
      %s1076 = scalar_select %p1075, %s82, 1
      %s1077 = smul.addr %s1076, 8
      %s1078 = scalar_lea.vmem %s3, %s1077
      %p1079 = scmp.lt.s32.totalorder %s82, 1
      %s1080 = scalar_select %p1079, %s82, 1
      %s1081 = smul.addr %s1080, 8
      %s1082 = scalar_lea.vmem %s71, %s1081
      %v1083 = vld [vmem:[%s1074] sm:$0xff]
      %v1084 = vld [vmem:[%s11] sm:$0xf]
      %v1085 = vld [vmem:[%s13] sm:$0x1]
      %v1087 = vperm.slane %v1085, 0
      %vm1089 = vcmask 31744
      %v1091 = vsel %vm1089, %v1083, 0
      %vm1093 = vcmask 1043456
      %v1095 = vsel %vm1093, %v1084, 0
      %1097 = vmatpush.msra.mxu0 0.0
      %1098 = vmatpush.msra.mxu0 0.0
      %1099 = vmatpush.msra.mxu0 0.0
      %1100 = vmatpush.msra.mxu0 0.0
      %1101 = vmatpush.msra.mxu0 0.0
      %1102 = vmatpush.msra.mxu0 0.0
      %1103 = vmatpush.msra.mxu0 0.0
      %1104 = vmatpush.msra.mxu0 0.0
      %1105 = vmatpush.msra.mxu0 0.0
      %1106 = vmatpush.msra.mxu0 0.0
      %1107 = vmatpush.msra.mxu0 0.0
      %1108 = vmatpush.msra.mxu0 0.0
      %1109 = vmatpush.msra.mxu0 0.0
      %1110 = vmatpush.msra.mxu0 0.0
      %1111 = vmatpush.msra.mxu0 0.0
      %1112 = vmatpush.msra.mxu0 %v1095
      %1113 = vmatmul.f32.gmra.mxu0 %v1091
      %v1114 = vpop.f32.mrf.mxu0
      %v1115 = vadd.f32 %v1087, %v1114
      %1116 = vdwg.mxu0
      %v1117 = vld [vmem:[%s5] sm:$0xff]
      %v1118 = vadd.f32 %v1115, %v1117
      %v1119 = vld [vmem:[%s35] sm:$0xf]
      %v1120 = vld [vmem:[%s19] sm:$0xff]
      %v1121 = vld [vmem:[%s19 + $0x8] sm:$0xff]
      %v1122 = vld [vmem:[%s19 + $0x10] sm:$0xff]
      %v1123 = vld [vmem:[%s19 + $0x18] sm:$0xff]
      %v1124 = vld [vmem:[%s19 + $0x20] sm:$0xff]
      %v1125 = vld [vmem:[%s19 + $0x28] sm:$0xff]
      %v1126 = vld [vmem:[%s19 + $0x30] sm:$0xff]
      %v1127 = vld [vmem:[%s19 + $0x38] sm:$0xff]
      %v1128 = vld [vmem:[%s19 + $0x40] sm:$0xff]
      %v1129 = vld [vmem:[%s19 + $0x48] sm:$0xff]
      %v1130 = vld [vmem:[%s19 + $0x50] sm:$0xff]
      %v1131 = vld [vmem:[%s19 + $0x58] sm:$0xff]
      %v1132 = vld [vmem:[%s19 + $0x60] sm:$0xff]
      %v1133 = vld [vmem:[%s19 + $0x68] sm:$0xff]
      %v1134 = vld [vmem:[%s19 + $0x70] sm:$0xff]
      %v1135 = vld [vmem:[%s19 + $0x78] sm:$0xff]
      %v1136 = vld [vmem:[%s19 + $0x80] sm:$0xff]
      %v1137 = vld [vmem:[%s19 + $0x88] sm:$0xff]
      %v1138 = vld [vmem:[%s19 + $0x90] sm:$0xff]
      %v1139 = vld [vmem:[%s19 + $0x98] sm:$0xff]
      %v1140 = vld [vmem:[%s19 + $0xa0] sm:$0xff]
      %v1141 = vld [vmem:[%s19 + $0xa8] sm:$0xff]
      %v1142 = vld [vmem:[%s19 + $0xb0] sm:$0xff]
      %v1143 = vld [vmem:[%s19 + $0xb8] sm:$0xff]
      %v1144 = vld [vmem:[%s19 + $0xc0] sm:$0xff]
      %v1145 = vld [vmem:[%s19 + $0xc8] sm:$0xff]
      %v1146 = vld [vmem:[%s19 + $0xd0] sm:$0xff]
      %v1147 = vld [vmem:[%s19 + $0xd8] sm:$0xff]
      %v1148 = vld [vmem:[%s19 + $0xe0] sm:$0xff]
      %v1149 = vld [vmem:[%s19 + $0xe8] sm:$0xff]
      %v1150 = vld [vmem:[%s19 + $0xf0] sm:$0xff]
      %v1151 = vld [vmem:[%s19 + $0xf8] sm:$0xff]
      %v1152 = vld [vmem:[%s19 + $0x100] sm:$0xff]
      %v1153 = vld [vmem:[%s19 + $0x108] sm:$0xff]
      %v1154 = vld [vmem:[%s19 + $0x110] sm:$0xff]
      %v1155 = vld [vmem:[%s19 + $0x118] sm:$0xff]
      %v1156 = vld [vmem:[%s19 + $0x120] sm:$0xff]
      %v1157 = vld [vmem:[%s19 + $0x128] sm:$0xff]
      %v1158 = vld [vmem:[%s19 + $0x130] sm:$0xff]
      %v1159 = vld [vmem:[%s19 + $0x138] sm:$0xff]
      %v1160 = vld [vmem:[%s19 + $0x140] sm:$0xff]
      %v1161 = vld [vmem:[%s19 + $0x148] sm:$0xff]
      %v1162 = vld [vmem:[%s19 + $0x150] sm:$0xff]
      %v1163 = vld [vmem:[%s19 + $0x158] sm:$0xff]
      %v1164 = vld [vmem:[%s19 + $0x160] sm:$0xff]
      %v1165 = vld [vmem:[%s19 + $0x168] sm:$0xff]
      %v1166 = vld [vmem:[%s19 + $0x170] sm:$0xff]
      %v1167 = vld [vmem:[%s19 + $0x178] sm:$0xff]
      %v1168 = vld [vmem:[%s21] sm:$0x1]
      %v1169 = vld [vmem:[%s21 + $0x1] sm:$0x1]
      %v1170 = vld [vmem:[%s21 + $0x2] sm:$0x1]
      %v1171 = vld [vmem:[%s21 + $0x3] sm:$0x1]
      %v1172 = vld [vmem:[%s21 + $0x4] sm:$0x1]
      %v1173 = vld [vmem:[%s21 + $0x5] sm:$0x1]
      %v1174 = vld [vmem:[%s21 + $0x6] sm:$0x1]
      %v1175 = vld [vmem:[%s21 + $0x7] sm:$0x1]
      %v1176 = vld [vmem:[%s21 + $0x8] sm:$0x1]
      %v1177 = vld [vmem:[%s21 + $0x9] sm:$0x1]
      %v1178 = vld [vmem:[%s21 + $0xa] sm:$0x1]
      %v1179 = vld [vmem:[%s21 + $0xb] sm:$0x1]
      %v1192 = vperm.slane %v1168, 0
      %v1193 = vperm.slane %v1169, 0
      %v1194 = vperm.slane %v1170, 0
      %v1195 = vperm.slane %v1171, 0
      %v1196 = vperm.slane %v1172, 0
      %v1197 = vperm.slane %v1173, 0
      %v1198 = vperm.slane %v1174, 0
      %v1199 = vperm.slane %v1175, 0
      %v1200 = vperm.slane %v1176, 0
      %v1201 = vperm.slane %v1177, 0
      %v1202 = vperm.slane %v1178, 0
      %v1203 = vperm.slane %v1179, 0
      %vm1216 = vcmask 261120
      %v1218 = vsel %vm1216, %v1118, 0
      %1220 = vmatpush.msra.mxu0 0.0
      %1221 = vmatpush.msra.mxu0 0.0
      %1222 = vmatpush.msra.mxu0 0.0
      %1223 = vmatpush.msra.mxu0 0.0
      %1224 = vmatpush.msra.mxu0 0.0
      %1225 = vmatpush.msra.mxu0 0.0
      %1226 = vmatpush.msra.mxu0 0.0
      %1227 = vmatpush.msra.mxu0 0.0
      %1228 = vmatpush.msra.mxu0 0.0
      %1229 = vmatpush.msra.mxu0 0.0
      %1230 = vmatpush.msra.mxu0 0.0
      %1231 = vmatpush.msra.mxu0 0.0
      %1232 = vmatpush.msra.mxu0 %v1123
      %1233 = vmatpush.msra.mxu0 %v1122
      %1234 = vmatpush.msra.mxu0 %v1121
      %1235 = vmatpush.msra.mxu0 %v1120
      %1236 = vmatmul.f32.gmra.mxu0 %v1218
      %v1237 = vpop.f32.mrf.mxu0
      %v1238 = vadd.f32 %v1192, %v1237
      %1239 = vdwg.mxu0
      %1240 = vmatpush.msra.mxu0 0.0
      %1241 = vmatpush.msra.mxu0 0.0
      %1242 = vmatpush.msra.mxu0 0.0
      %1243 = vmatpush.msra.mxu0 0.0
      %1244 = vmatpush.msra.mxu0 0.0
      %1245 = vmatpush.msra.mxu0 0.0
      %1246 = vmatpush.msra.mxu0 0.0
      %1247 = vmatpush.msra.mxu0 0.0
      %1248 = vmatpush.msra.mxu0 0.0
      %1249 = vmatpush.msra.mxu0 0.0
      %1250 = vmatpush.msra.mxu0 0.0
      %1251 = vmatpush.msra.mxu0 0.0
      %1252 = vmatpush.msra.mxu0 %v1127
      %1253 = vmatpush.msra.mxu0 %v1126
      %1254 = vmatpush.msra.mxu0 %v1125
      %1255 = vmatpush.msra.mxu0 %v1124
      %1256 = vmatmul.f32.gmra.mxu0 %v1218
      %v1257 = vpop.f32.mrf.mxu0
      %v1258 = vadd.f32 %v1193, %v1257
      %1259 = vdwg.mxu0
      %1260 = vmatpush.msra.mxu0 0.0
      %1261 = vmatpush.msra.mxu0 0.0
      %1262 = vmatpush.msra.mxu0 0.0
      %1263 = vmatpush.msra.mxu0 0.0
      %1264 = vmatpush.msra.mxu0 0.0
      %1265 = vmatpush.msra.mxu0 0.0
      %1266 = vmatpush.msra.mxu0 0.0
      %1267 = vmatpush.msra.mxu0 0.0
      %1268 = vmatpush.msra.mxu0 0.0
      %1269 = vmatpush.msra.mxu0 0.0
      %1270 = vmatpush.msra.mxu0 0.0
      %1271 = vmatpush.msra.mxu0 0.0
      %1272 = vmatpush.msra.mxu0 %v1131
      %1273 = vmatpush.msra.mxu0 %v1130
      %1274 = vmatpush.msra.mxu0 %v1129
      %1275 = vmatpush.msra.mxu0 %v1128
      %1276 = vmatmul.f32.gmra.mxu0 %v1218
      %v1277 = vpop.f32.mrf.mxu0
      %v1278 = vadd.f32 %v1194, %v1277
      %1279 = vdwg.mxu0
      %1280 = vmatpush.msra.mxu0 0.0
      %1281 = vmatpush.msra.mxu0 0.0
      %1282 = vmatpush.msra.mxu0 0.0
      %1283 = vmatpush.msra.mxu0 0.0
      %1284 = vmatpush.msra.mxu0 0.0
      %1285 = vmatpush.msra.mxu0 0.0
      %1286 = vmatpush.msra.mxu0 0.0
      %1287 = vmatpush.msra.mxu0 0.0
      %1288 = vmatpush.msra.mxu0 0.0
      %1289 = vmatpush.msra.mxu0 0.0
      %1290 = vmatpush.msra.mxu0 0.0
      %1291 = vmatpush.msra.mxu0 0.0
      %1292 = vmatpush.msra.mxu0 %v1135
      %1293 = vmatpush.msra.mxu0 %v1134
      %1294 = vmatpush.msra.mxu0 %v1133
      %1295 = vmatpush.msra.mxu0 %v1132
      %1296 = vmatmul.f32.gmra.mxu0 %v1218
      %v1297 = vpop.f32.mrf.mxu0
      %v1298 = vadd.f32 %v1195, %v1297
      %1299 = vdwg.mxu0
      %1300 = vmatpush.msra.mxu0 0.0
      %1301 = vmatpush.msra.mxu0 0.0
      %1302 = vmatpush.msra.mxu0 0.0
      %1303 = vmatpush.msra.mxu0 0.0
      %1304 = vmatpush.msra.mxu0 0.0
      %1305 = vmatpush.msra.mxu0 0.0
      %1306 = vmatpush.msra.mxu0 0.0
      %1307 = vmatpush.msra.mxu0 0.0
      %1308 = vmatpush.msra.mxu0 0.0
      %1309 = vmatpush.msra.mxu0 0.0
      %1310 = vmatpush.msra.mxu0 0.0
      %1311 = vmatpush.msra.mxu0 0.0
      %1312 = vmatpush.msra.mxu0 %v1139
      %1313 = vmatpush.msra.mxu0 %v1138
      %1314 = vmatpush.msra.mxu0 %v1137
      %1315 = vmatpush.msra.mxu0 %v1136
      %1316 = vmatmul.f32.gmra.mxu0 %v1218
      %v1317 = vpop.f32.mrf.mxu0
      %v1318 = vadd.f32 %v1196, %v1317
      %1319 = vdwg.mxu0
      %1320 = vmatpush.msra.mxu0 0.0
      %1321 = vmatpush.msra.mxu0 0.0
      %1322 = vmatpush.msra.mxu0 0.0
      %1323 = vmatpush.msra.mxu0 0.0
      %1324 = vmatpush.msra.mxu0 0.0
      %1325 = vmatpush.msra.mxu0 0.0
      %1326 = vmatpush.msra.mxu0 0.0
      %1327 = vmatpush.msra.mxu0 0.0
      %1328 = vmatpush.msra.mxu0 0.0
      %1329 = vmatpush.msra.mxu0 0.0
      %1330 = vmatpush.msra.mxu0 0.0
      %1331 = vmatpush.msra.mxu0 0.0
      %1332 = vmatpush.msra.mxu0 %v1143
      %1333 = vmatpush.msra.mxu0 %v1142
      %1334 = vmatpush.msra.mxu0 %v1141
      %1335 = vmatpush.msra.mxu0 %v1140
      %1336 = vmatmul.f32.gmra.mxu0 %v1218
      %v1337 = vpop.f32.mrf.mxu0
      %v1338 = vadd.f32 %v1197, %v1337
      %1339 = vdwg.mxu0
      %1340 = vmatpush.msra.mxu0 0.0
      %1341 = vmatpush.msra.mxu0 0.0
      %1342 = vmatpush.msra.mxu0 0.0
      %1343 = vmatpush.msra.mxu0 0.0
      %1344 = vmatpush.msra.mxu0 0.0
      %1345 = vmatpush.msra.mxu0 0.0
      %1346 = vmatpush.msra.mxu0 0.0
      %1347 = vmatpush.msra.mxu0 0.0
      %1348 = vmatpush.msra.mxu0 0.0
      %1349 = vmatpush.msra.mxu0 0.0
      %1350 = vmatpush.msra.mxu0 0.0
      %1351 = vmatpush.msra.mxu0 0.0
      %1352 = vmatpush.msra.mxu0 %v1147
      %1353 = vmatpush.msra.mxu0 %v1146
      %1354 = vmatpush.msra.mxu0 %v1145
      %1355 = vmatpush.msra.mxu0 %v1144
      %1356 = vmatmul.f32.gmra.mxu0 %v1218
      %v1357 = vpop.f32.mrf.mxu0
      %v1358 = vadd.f32 %v1198, %v1357
      %1359 = vdwg.mxu0
      %1360 = vmatpush.msra.mxu0 0.0
      %1361 = vmatpush.msra.mxu0 0.0
      %1362 = vmatpush.msra.mxu0 0.0
      %1363 = vmatpush.msra.mxu0 0.0
      %1364 = vmatpush.msra.mxu0 0.0
      %1365 = vmatpush.msra.mxu0 0.0
      %1366 = vmatpush.msra.mxu0 0.0
      %1367 = vmatpush.msra.mxu0 0.0
      %1368 = vmatpush.msra.mxu0 0.0
      %1369 = vmatpush.msra.mxu0 0.0
      %1370 = vmatpush.msra.mxu0 0.0
      %1371 = vmatpush.msra.mxu0 0.0
      %1372 = vmatpush.msra.mxu0 %v1151
      %1373 = vmatpush.msra.mxu0 %v1150
      %1374 = vmatpush.msra.mxu0 %v1149
      %1375 = vmatpush.msra.mxu0 %v1148
      %1376 = vmatmul.f32.gmra.mxu0 %v1218
      %v1377 = vpop.f32.mrf.mxu0
      %v1378 = vadd.f32 %v1199, %v1377
      %1379 = vdwg.mxu0
      %1380 = vmatpush.msra.mxu0 0.0
      %1381 = vmatpush.msra.mxu0 0.0
      %1382 = vmatpush.msra.mxu0 0.0
      %1383 = vmatpush.msra.mxu0 0.0
      %1384 = vmatpush.msra.mxu0 0.0
      %1385 = vmatpush.msra.mxu0 0.0
      %1386 = vmatpush.msra.mxu0 0.0
      %1387 = vmatpush.msra.mxu0 0.0
      %1388 = vmatpush.msra.mxu0 0.0
      %1389 = vmatpush.msra.mxu0 0.0
      %1390 = vmatpush.msra.mxu0 0.0
      %1391 = vmatpush.msra.mxu0 0.0
      %1392 = vmatpush.msra.mxu0 %v1155
      %1393 = vmatpush.msra.mxu0 %v1154
      %1394 = vmatpush.msra.mxu0 %v1153
      %1395 = vmatpush.msra.mxu0 %v1152
      %1396 = vmatmul.f32.gmra.mxu0 %v1218
      %v1397 = vpop.f32.mrf.mxu0
      %v1398 = vadd.f32 %v1200, %v1397
      %1399 = vdwg.mxu0
      %1400 = vmatpush.msra.mxu0 0.0
      %1401 = vmatpush.msra.mxu0 0.0
      %1402 = vmatpush.msra.mxu0 0.0
      %1403 = vmatpush.msra.mxu0 0.0
      %1404 = vmatpush.msra.mxu0 0.0
      %1405 = vmatpush.msra.mxu0 0.0
      %1406 = vmatpush.msra.mxu0 0.0
      %1407 = vmatpush.msra.mxu0 0.0
      %1408 = vmatpush.msra.mxu0 0.0
      %1409 = vmatpush.msra.mxu0 0.0
      %1410 = vmatpush.msra.mxu0 0.0
      %1411 = vmatpush.msra.mxu0 0.0
      %1412 = vmatpush.msra.mxu0 %v1159
      %1413 = vmatpush.msra.mxu0 %v1158
      %1414 = vmatpush.msra.mxu0 %v1157
      %1415 = vmatpush.msra.mxu0 %v1156
      %1416 = vmatmul.f32.gmra.mxu0 %v1218
      %v1417 = vpop.f32.mrf.mxu0
      %v1418 = vadd.f32 %v1201, %v1417
      %1419 = vdwg.mxu0
      %1420 = vmatpush.msra.mxu0 0.0
      %1421 = vmatpush.msra.mxu0 0.0
      %1422 = vmatpush.msra.mxu0 0.0
      %1423 = vmatpush.msra.mxu0 0.0
      %1424 = vmatpush.msra.mxu0 0.0
      %1425 = vmatpush.msra.mxu0 0.0
      %1426 = vmatpush.msra.mxu0 0.0
      %1427 = vmatpush.msra.mxu0 0.0
      %1428 = vmatpush.msra.mxu0 0.0
      %1429 = vmatpush.msra.mxu0 0.0
      %1430 = vmatpush.msra.mxu0 0.0
      %1431 = vmatpush.msra.mxu0 0.0
      %1432 = vmatpush.msra.mxu0 %v1163
      %1433 = vmatpush.msra.mxu0 %v1162
      %1434 = vmatpush.msra.mxu0 %v1161
      %1435 = vmatpush.msra.mxu0 %v1160
      %1436 = vmatmul.f32.gmra.mxu0 %v1218
      %v1437 = vpop.f32.mrf.mxu0
      %v1438 = vadd.f32 %v1202, %v1437
      %1439 = vdwg.mxu0
      %1440 = vmatpush.msra.mxu0 0.0
      %1441 = vmatpush.msra.mxu0 0.0
      %1442 = vmatpush.msra.mxu0 0.0
      %1443 = vmatpush.msra.mxu0 0.0
      %1444 = vmatpush.msra.mxu0 0.0
      %1445 = vmatpush.msra.mxu0 0.0
      %1446 = vmatpush.msra.mxu0 0.0
      %1447 = vmatpush.msra.mxu0 0.0
      %1448 = vmatpush.msra.mxu0 0.0
      %1449 = vmatpush.msra.mxu0 0.0
      %1450 = vmatpush.msra.mxu0 0.0
      %1451 = vmatpush.msra.mxu0 0.0
      %1452 = vmatpush.msra.mxu0 %v1167
      %1453 = vmatpush.msra.mxu0 %v1166
      %1454 = vmatpush.msra.mxu0 %v1165
      %1455 = vmatpush.msra.mxu0 %v1164
      %1456 = vmatmul.f32.gmra.mxu0 %v1218
      %v1457 = vpop.f32.mrf.mxu0
      %v1458 = vadd.f32 %v1203, %v1457
      %1459 = vdwg.mxu0
      %v1460 = vld [vmem:[%s23] sm:$0xff]
      %v1461 = vld [vmem:[%s23 + $0x8] sm:$0xff]
      %v1462 = vld [vmem:[%s23 + $0x10] sm:$0xff]
      %v1463 = vld [vmem:[%s23 + $0x18] sm:$0xff]
      %v1464 = vld [vmem:[%s25] sm:$0x1]
      %vm1465 = vcmask 64512
      %v1467 = vsel %vm1465, %v1238, 0
      %v1470 = vsel %vm1465, %v1318, 0
      %1472 = vmatpush.xpose.msra.mxu0 0.0
      %1473 = vmatpush.xpose.msra.mxu0 0.0
      %1474 = vmatpush.xpose.msra.mxu0 0.0
      %1475 = vmatpush.xpose.msra.mxu0 0.0
      %1476 = vmatpush.xpose.msra.mxu0 0.0
      %1477 = vmatpush.xpose.msra.mxu0 0.0
      %1478 = vmatpush.xpose.msra.mxu0 0.0
      %1479 = vmatpush.xpose.msra.mxu0 0.0
      %1480 = vmatpush.xpose.msra.mxu0 0.0
      %1481 = vmatpush.xpose.msra.mxu0 0.0
      %1482 = vmatpush.xpose.msra.mxu0 0.0
      %1483 = vmatpush.xpose.msra.mxu0 0.0
      %1484 = vmatpush.xpose.msra.mxu0 0.0
      %1485 = vmatpush.xpose.msra.mxu0 0.0
      %1486 = vmatpush.xpose.msra.mxu0 0.0
      %1487 = vmatpush.xpose.msra.mxu0 %v1470
      %1488 = vmatmul.f32.gmra.mxu0 %v1467
      %v1489 = vpop.f32.mrf.mxu0
      %v1490 = vadd.f32 0.0, %v1489
      %1491 = vdwg.mxu0
      %v1493 = vsel %vm1465, %v1258, 0
      %v1496 = vsel %vm1465, %v1338, 0
      %1498 = vmatpush.xpose.msra.mxu0 0.0
      %1499 = vmatpush.xpose.msra.mxu0 0.0
      %1500 = vmatpush.xpose.msra.mxu0 0.0
      %1501 = vmatpush.xpose.msra.mxu0 0.0
      %1502 = vmatpush.xpose.msra.mxu0 0.0
      %1503 = vmatpush.xpose.msra.mxu0 0.0
      %1504 = vmatpush.xpose.msra.mxu0 0.0
      %1505 = vmatpush.xpose.msra.mxu0 0.0
      %1506 = vmatpush.xpose.msra.mxu0 0.0
      %1507 = vmatpush.xpose.msra.mxu0 0.0
      %1508 = vmatpush.xpose.msra.mxu0 0.0
      %1509 = vmatpush.xpose.msra.mxu0 0.0
      %1510 = vmatpush.xpose.msra.mxu0 0.0
      %1511 = vmatpush.xpose.msra.mxu0 0.0
      %1512 = vmatpush.xpose.msra.mxu0 0.0
      %1513 = vmatpush.xpose.msra.mxu0 %v1496
      %1514 = vmatmul.f32.gmra.mxu0 %v1493
      %v1515 = vpop.f32.mrf.mxu0
      %v1516 = vadd.f32 0.0, %v1515
      %1517 = vdwg.mxu0
      %v1519 = vsel %vm1465, %v1278, 0
      %v1522 = vsel %vm1465, %v1358, 0
      %1524 = vmatpush.xpose.msra.mxu0 0.0
      %1525 = vmatpush.xpose.msra.mxu0 0.0
      %1526 = vmatpush.xpose.msra.mxu0 0.0
      %1527 = vmatpush.xpose.msra.mxu0 0.0
      %1528 = vmatpush.xpose.msra.mxu0 0.0
      %1529 = vmatpush.xpose.msra.mxu0 0.0
      %1530 = vmatpush.xpose.msra.mxu0 0.0
      %1531 = vmatpush.xpose.msra.mxu0 0.0
      %1532 = vmatpush.xpose.msra.mxu0 0.0
      %1533 = vmatpush.xpose.msra.mxu0 0.0
      %1534 = vmatpush.xpose.msra.mxu0 0.0
      %1535 = vmatpush.xpose.msra.mxu0 0.0
      %1536 = vmatpush.xpose.msra.mxu0 0.0
      %1537 = vmatpush.xpose.msra.mxu0 0.0
      %1538 = vmatpush.xpose.msra.mxu0 0.0
      %1539 = vmatpush.xpose.msra.mxu0 %v1522
      %1540 = vmatmul.f32.gmra.mxu0 %v1519
      %v1541 = vpop.f32.mrf.mxu0
      %v1542 = vadd.f32 0.0, %v1541
      %1543 = vdwg.mxu0
      %v1545 = vsel %vm1465, %v1298, 0
      %v1548 = vsel %vm1465, %v1378, 0
      %1550 = vmatpush.xpose.msra.mxu0 0.0
      %1551 = vmatpush.xpose.msra.mxu0 0.0
      %1552 = vmatpush.xpose.msra.mxu0 0.0
      %1553 = vmatpush.xpose.msra.mxu0 0.0
      %1554 = vmatpush.xpose.msra.mxu0 0.0
      %1555 = vmatpush.xpose.msra.mxu0 0.0
      %1556 = vmatpush.xpose.msra.mxu0 0.0
      %1557 = vmatpush.xpose.msra.mxu0 0.0
      %1558 = vmatpush.xpose.msra.mxu0 0.0
      %1559 = vmatpush.xpose.msra.mxu0 0.0
      %1560 = vmatpush.xpose.msra.mxu0 0.0
      %1561 = vmatpush.xpose.msra.mxu0 0.0
      %1562 = vmatpush.xpose.msra.mxu0 0.0
      %1563 = vmatpush.xpose.msra.mxu0 0.0
      %1564 = vmatpush.xpose.msra.mxu0 0.0
      %1565 = vmatpush.xpose.msra.mxu0 %v1548
      %1566 = vmatmul.f32.gmra.mxu0 %v1545
      %v1567 = vpop.f32.mrf.mxu0
      %v1568 = vadd.f32 0.0, %v1567
      %1569 = vdwg.mxu0
      %v1570 = vsel %vm1465, %v1490, -inf
      %1571 = vmax.xlane.f32.xlu0 %v1570
      %v1572 = vpop.xlane.xlu0 %1571
      %v1573 = vsel %vm1465, %v1516, -inf
      %1574 = vmax.xlane.f32.xlu0 %v1573
      %v1575 = vpop.xlane.xlu0 %1574
      %v1576 = vsel %vm1465, %v1542, -inf
      %1577 = vmax.xlane.f32.xlu0 %v1576
      %v1578 = vpop.xlane.xlu0 %1577
      %v1579 = vsel %vm1465, %v1568, -inf
      %1580 = vmax.xlane.f32.xlu0 %v1579
      %v1581 = vpop.xlane.xlu0 %1580
      %v1582 = vsub.f32 %v1490, %v1572
      %v1583 = vsub.f32 %v1516, %v1575
      %v1584 = vsub.f32 %v1542, %v1578
      %v1585 = vsub.f32 %v1568, %v1581
      %v1586 = vmul.f32 %v1582, 1.442695
      %v1587 = vpow.pop %v1586
      %v1588 = vmul.f32 %v1583, 1.442695
      %v1589 = vpow.pop %v1588
      %v1590 = vmul.f32 %v1584, 1.442695
      %v1591 = vpow.pop %v1590
      %v1592 = vmul.f32 %v1585, 1.442695
      %v1593 = vpow.pop %v1592
      %v1594 = vsel %vm1465, %v1587, 0.0
      %1595 = vadd.xlane.f32.xlu0 %v1594
      %v1596 = vpop.xlane.xlu0 %1595
      %v1597 = vsel %vm1465, %v1589, 0.0
      %1598 = vadd.xlane.f32.xlu0 %v1597
      %v1599 = vpop.xlane.xlu0 %1598
      %v1600 = vsel %vm1465, %v1591, 0.0
      %1601 = vadd.xlane.f32.xlu0 %v1600
      %v1602 = vpop.xlane.xlu0 %1601
      %v1603 = vsel %vm1465, %v1593, 0.0
      %1604 = vadd.xlane.f32.xlu0 %v1603
      %v1605 = vpop.xlane.xlu0 %1604
      %v1606 = vmax.f32 %v1596, 1e-30
      %v1607 = vmax.f32 %v1599, 1e-30
      %v1608 = vmax.f32 %v1602, 1e-30
      %v1609 = vmax.f32 %v1605, 1e-30
      %v1610 = vrcp.pop %v1606
      %v1611 = vrcp.pop %v1607
      %v1612 = vrcp.pop %v1608
      %v1613 = vrcp.pop %v1609
      %v1614 = vmul.f32 %v1596, %v1610
      %v1615 = vmul.f32 %v1599, %v1611
      %v1616 = vmul.f32 %v1602, %v1612
      %v1617 = vmul.f32 %v1605, %v1613
      %v1618 = vsub.f32 2.0, %v1614
      %v1619 = vsub.f32 2.0, %v1615
      %v1620 = vsub.f32 2.0, %v1616
      %v1621 = vsub.f32 2.0, %v1617
      %v1622 = vmul.f32 %v1610, %v1618
      %v1623 = vmul.f32 %v1611, %v1619
      %v1624 = vmul.f32 %v1612, %v1620
      %v1625 = vmul.f32 %v1613, %v1621
      %v1626 = vmul.f32 %v1587, %v1622
      %v1627 = vmul.f32 %v1589, %v1623
      %v1628 = vmul.f32 %v1591, %v1624
      %v1629 = vmul.f32 %v1593, %v1625
      %v1631 = vsel %vm1465, %v1626, 0
      %1633 = vmatpush.msra.mxu0 0.0
      %1634 = vmatpush.msra.mxu0 0.0
      %1635 = vmatpush.msra.mxu0 0.0
      %1636 = vmatpush.msra.mxu0 0.0
      %1637 = vmatpush.msra.mxu0 0.0
      %1638 = vmatpush.msra.mxu0 0.0
      %1639 = vmatpush.msra.mxu0 0.0
      %1640 = vmatpush.msra.mxu0 0.0
      %1641 = vmatpush.msra.mxu0 0.0
      %1642 = vmatpush.msra.mxu0 0.0
      %1643 = vmatpush.msra.mxu0 0.0
      %1644 = vmatpush.msra.mxu0 0.0
      %1645 = vmatpush.msra.mxu0 0.0
      %1646 = vmatpush.msra.mxu0 0.0
      %1647 = vmatpush.msra.mxu0 0.0
      %1648 = vmatpush.msra.mxu0 %v1398
      %1649 = vmatmul.f32.gmra.mxu0 %v1631
      %v1650 = vpop.f32.mrf.mxu0
      %v1651 = vadd.f32 0.0, %v1650
      %1652 = vdwg.mxu0
      %v1654 = vsel %vm1465, %v1627, 0
      %1656 = vmatpush.msra.mxu0 0.0
      %1657 = vmatpush.msra.mxu0 0.0
      %1658 = vmatpush.msra.mxu0 0.0
      %1659 = vmatpush.msra.mxu0 0.0
      %1660 = vmatpush.msra.mxu0 0.0
      %1661 = vmatpush.msra.mxu0 0.0
      %1662 = vmatpush.msra.mxu0 0.0
      %1663 = vmatpush.msra.mxu0 0.0
      %1664 = vmatpush.msra.mxu0 0.0
      %1665 = vmatpush.msra.mxu0 0.0
      %1666 = vmatpush.msra.mxu0 0.0
      %1667 = vmatpush.msra.mxu0 0.0
      %1668 = vmatpush.msra.mxu0 0.0
      %1669 = vmatpush.msra.mxu0 0.0
      %1670 = vmatpush.msra.mxu0 0.0
      %1671 = vmatpush.msra.mxu0 %v1418
      %1672 = vmatmul.f32.gmra.mxu0 %v1654
      %v1673 = vpop.f32.mrf.mxu0
      %v1674 = vadd.f32 0.0, %v1673
      %1675 = vdwg.mxu0
      %v1677 = vsel %vm1465, %v1628, 0
      %1679 = vmatpush.msra.mxu0 0.0
      %1680 = vmatpush.msra.mxu0 0.0
      %1681 = vmatpush.msra.mxu0 0.0
      %1682 = vmatpush.msra.mxu0 0.0
      %1683 = vmatpush.msra.mxu0 0.0
      %1684 = vmatpush.msra.mxu0 0.0
      %1685 = vmatpush.msra.mxu0 0.0
      %1686 = vmatpush.msra.mxu0 0.0
      %1687 = vmatpush.msra.mxu0 0.0
      %1688 = vmatpush.msra.mxu0 0.0
      %1689 = vmatpush.msra.mxu0 0.0
      %1690 = vmatpush.msra.mxu0 0.0
      %1691 = vmatpush.msra.mxu0 0.0
      %1692 = vmatpush.msra.mxu0 0.0
      %1693 = vmatpush.msra.mxu0 0.0
      %1694 = vmatpush.msra.mxu0 %v1438
      %1695 = vmatmul.f32.gmra.mxu0 %v1677
      %v1696 = vpop.f32.mrf.mxu0
      %v1697 = vadd.f32 0.0, %v1696
      %1698 = vdwg.mxu0
      %v1700 = vsel %vm1465, %v1629, 0
      %1702 = vmatpush.msra.mxu0 0.0
      %1703 = vmatpush.msra.mxu0 0.0
      %1704 = vmatpush.msra.mxu0 0.0
      %1705 = vmatpush.msra.mxu0 0.0
      %1706 = vmatpush.msra.mxu0 0.0
      %1707 = vmatpush.msra.mxu0 0.0
      %1708 = vmatpush.msra.mxu0 0.0
      %1709 = vmatpush.msra.mxu0 0.0
      %1710 = vmatpush.msra.mxu0 0.0
      %1711 = vmatpush.msra.mxu0 0.0
      %1712 = vmatpush.msra.mxu0 0.0
      %1713 = vmatpush.msra.mxu0 0.0
      %1714 = vmatpush.msra.mxu0 0.0
      %1715 = vmatpush.msra.mxu0 0.0
      %1716 = vmatpush.msra.mxu0 0.0
      %1717 = vmatpush.msra.mxu0 %v1458
      %1718 = vmatmul.f32.gmra.mxu0 %v1700
      %v1719 = vpop.f32.mrf.mxu0
      %v1720 = vadd.f32 0.0, %v1719
      %1721 = vdwg.mxu0
      %v1723 = vsel %vm1465, %v1651, 0
      %1725 = vmatpush.msra.mxu0 0.0
      %1726 = vmatpush.msra.mxu0 0.0
      %1727 = vmatpush.msra.mxu0 0.0
      %1728 = vmatpush.msra.mxu0 0.0
      %1729 = vmatpush.msra.mxu0 0.0
      %1730 = vmatpush.msra.mxu0 0.0
      %1731 = vmatpush.msra.mxu0 0.0
      %1732 = vmatpush.msra.mxu0 0.0
      %1733 = vmatpush.msra.mxu0 0.0
      %1734 = vmatpush.msra.mxu0 0.0
      %1735 = vmatpush.msra.mxu0 0.0
      %1736 = vmatpush.msra.mxu0 0.0
      %1737 = vmatpush.msra.mxu0 0.0
      %1738 = vmatpush.msra.mxu0 0.0
      %1739 = vmatpush.msra.mxu0 0.0
      %1740 = vmatpush.msra.mxu0 %v1460
      %1741 = vmatmul.f32.gmra.mxu0 %v1723
      %v1742 = vpop.f32.mrf.mxu0
      %v1743 = vadd.f32 0.0, %v1742
      %1744 = vdwg.mxu0
      %v1746 = vsel %vm1465, %v1674, 0
      %1748 = vmatpush.msra.mxu0 0.0
      %1749 = vmatpush.msra.mxu0 0.0
      %1750 = vmatpush.msra.mxu0 0.0
      %1751 = vmatpush.msra.mxu0 0.0
      %1752 = vmatpush.msra.mxu0 0.0
      %1753 = vmatpush.msra.mxu0 0.0
      %1754 = vmatpush.msra.mxu0 0.0
      %1755 = vmatpush.msra.mxu0 0.0
      %1756 = vmatpush.msra.mxu0 0.0
      %1757 = vmatpush.msra.mxu0 0.0
      %1758 = vmatpush.msra.mxu0 0.0
      %1759 = vmatpush.msra.mxu0 0.0
      %1760 = vmatpush.msra.mxu0 0.0
      %1761 = vmatpush.msra.mxu0 0.0
      %1762 = vmatpush.msra.mxu0 0.0
      %1763 = vmatpush.msra.mxu0 %v1461
      %1764 = vmatmul.f32.gmra.mxu0 %v1746
      %v1765 = vpop.f32.mrf.mxu0
      %v1766 = vadd.f32 0.0, %v1765
      %1767 = vdwg.mxu0
      %v1769 = vsel %vm1465, %v1697, 0
      %1771 = vmatpush.msra.mxu0 0.0
      %1772 = vmatpush.msra.mxu0 0.0
      %1773 = vmatpush.msra.mxu0 0.0
      %1774 = vmatpush.msra.mxu0 0.0
      %1775 = vmatpush.msra.mxu0 0.0
      %1776 = vmatpush.msra.mxu0 0.0
      %1777 = vmatpush.msra.mxu0 0.0
      %1778 = vmatpush.msra.mxu0 0.0
      %1779 = vmatpush.msra.mxu0 0.0
      %1780 = vmatpush.msra.mxu0 0.0
      %1781 = vmatpush.msra.mxu0 0.0
      %1782 = vmatpush.msra.mxu0 0.0
      %1783 = vmatpush.msra.mxu0 0.0
      %1784 = vmatpush.msra.mxu0 0.0
      %1785 = vmatpush.msra.mxu0 0.0
      %1786 = vmatpush.msra.mxu0 %v1462
      %1787 = vmatmul.f32.gmra.mxu0 %v1769
      %v1788 = vpop.f32.mrf.mxu0
      %v1789 = vadd.f32 0.0, %v1788
      %1790 = vdwg.mxu0
      %v1792 = vsel %vm1465, %v1720, 0
      %1794 = vmatpush.msra.mxu0 0.0
      %1795 = vmatpush.msra.mxu0 0.0
      %1796 = vmatpush.msra.mxu0 0.0
      %1797 = vmatpush.msra.mxu0 0.0
      %1798 = vmatpush.msra.mxu0 0.0
      %1799 = vmatpush.msra.mxu0 0.0
      %1800 = vmatpush.msra.mxu0 0.0
      %1801 = vmatpush.msra.mxu0 0.0
      %1802 = vmatpush.msra.mxu0 0.0
      %1803 = vmatpush.msra.mxu0 0.0
      %1804 = vmatpush.msra.mxu0 0.0
      %1805 = vmatpush.msra.mxu0 0.0
      %1806 = vmatpush.msra.mxu0 0.0
      %1807 = vmatpush.msra.mxu0 0.0
      %1808 = vmatpush.msra.mxu0 0.0
      %1809 = vmatpush.msra.mxu0 %v1463
      %1810 = vmatmul.f32.gmra.mxu0 %v1792
      %v1811 = vpop.f32.mrf.mxu0
      %v1812 = vadd.f32 0.0, %v1811
      %1813 = vdwg.mxu0
      %v1814 = vsel %vm1216, %v1743, 0.0
      %v1815 = vsel %vm1216, %v1766, 0.0
      %v1816 = vadd.f32 %v1814, %v1815
      %v1817 = vsel %vm1216, %v1789, 0.0
      %v1818 = vadd.f32 %v1816, %v1817
      %v1819 = vsel %vm1216, %v1812, 0.0
      %v1820 = vadd.f32 %v1818, %v1819
      %v1822 = vperm.slane %v1464, 0
      %v1824 = vadd.f32 %v1820, %v1822
      %v1825 = vadd.f32 %v1118, %v1824
      %v1826 = vsel %vm1216, %v1825, 0.0
      %1827 = vadd.xlane.f32.xlu0 %v1826
      %v1828 = vpop.xlane.xlu0 %1827
      %v1829 = vrcp.pop 32.0
      %v1830 = vmul.f32 32.0, %v1829
      %v1831 = vsub.f32 1.0, %v1830
      %v1832 = vmul.f32 %v1829, %v1831
      %v1833 = vadd.f32 %v1829, %v1832
      %vm1834 = vweird.f32 %v1829
      %v1835 = vsel %vm1834, %v1829, %v1833
      %v1836 = vmul.f32 %v1828, %v1835
      %v1837 = vsub.f32 %v1825, %v1836
      %v1838 = vmul.f32 %v1837, %v1837
      %v1839 = vsel %vm1216, %v1838, 0.0
      %1840 = vadd.xlane.f32.xlu0 %v1839
      %v1841 = vpop.xlane.xlu0 %1840
      %v1842 = vmul.f32 %v1841, %v1835
      %v1843 = vadd.f32 %v1842, 1e-05
      %v1844 = vrsqrt.pop %v1843
      %v1845 = vmul.f32 %v1844, %v1843
      %v1846 = vmul.f32 %v1845, %v1844
      %v1847 = vmul.f32 0.5, %v1846
      %v1848 = vsub.f32 1.5, %v1847
      %v1849 = vmul.f32 %v1844, %v1848
      %vm1850 = vweird.f32 %v1843
      %vm1851 = vweird.f32 %v1844
      %vm1852 = vmor %vm1850, %vm1851
      %v1853 = vsel %vm1852, %v1844, %v1849
      %v1854 = vmul.f32 %v1837, %v1853
      %v1855 = vperm.slane %v1119, 0
      %v1856 = vmul.f32 %v1854, %v1855
      %v1857 = vperm.slane %v1119, 1
      %v1858 = vadd.f32 %v1856, %v1857
      %v1859 = vld [vmem:[%s27] sm:$0xff]
      %v1860 = vld [vmem:[%s27 + $0x8] sm:$0xff]
      %v1861 = vld [vmem:[%s27 + $0x10] sm:$0xff]
      %v1862 = vld [vmem:[%s27 + $0x18] sm:$0xff]
      %v1863 = vld [vmem:[%s29] sm:$0x1]
      %v1864 = vld [vmem:[%s31] sm:$0xff]
      %v1865 = vld [vmem:[%s31 + $0x8] sm:$0xff]
      %v1866 = vld [vmem:[%s31 + $0x10] sm:$0xff]
      %v1867 = vld [vmem:[%s31 + $0x18] sm:$0xff]
      %v1868 = vld [vmem:[%s31 + $0x20] sm:$0xff]
      %v1869 = vld [vmem:[%s31 + $0x28] sm:$0xff]
      %v1870 = vld [vmem:[%s31 + $0x30] sm:$0xff]
      %v1871 = vld [vmem:[%s31 + $0x38] sm:$0xff]
      %v1872 = vld [vmem:[%s33] sm:$0x1]
      %v1874 = vperm.slane %v1863, 0
      %v1877 = vsel %vm1216, %v1858, 0
      %1879 = vmatpush.msra.mxu0 0.0
      %1880 = vmatpush.msra.mxu0 0.0
      %1881 = vmatpush.msra.mxu0 0.0
      %1882 = vmatpush.msra.mxu0 0.0
      %1883 = vmatpush.msra.mxu0 0.0
      %1884 = vmatpush.msra.mxu0 0.0
      %1885 = vmatpush.msra.mxu0 0.0
      %1886 = vmatpush.msra.mxu0 0.0
      %1887 = vmatpush.msra.mxu0 0.0
      %1888 = vmatpush.msra.mxu0 0.0
      %1889 = vmatpush.msra.mxu0 0.0
      %1890 = vmatpush.msra.mxu0 0.0
      %1891 = vmatpush.msra.mxu0 %v1862
      %1892 = vmatpush.msra.mxu0 %v1861
      %1893 = vmatpush.msra.mxu0 %v1860
      %1894 = vmatpush.msra.mxu0 %v1859
      %1895 = vmatmul.f32.gmra.mxu0 %v1877
      %v1896 = vpop.f32.mrf.mxu0
      %v1897 = vadd.f32 %v1874, %v1896
      %1898 = vdwg.mxu0
      %v1899 = vmax.f32 %v1897, 0.0
      %v1901 = vperm.slane %v1872, 0
      %vm1903 = vcmask 523264
      %v1905 = vsel %vm1903, %v1899, 0
      %1907 = vmatpush.msra.mxu0 0.0
      %1908 = vmatpush.msra.mxu0 0.0
      %1909 = vmatpush.msra.mxu0 0.0
      %1910 = vmatpush.msra.mxu0 0.0
      %1911 = vmatpush.msra.mxu0 0.0
      %1912 = vmatpush.msra.mxu0 0.0
      %1913 = vmatpush.msra.mxu0 0.0
      %1914 = vmatpush.msra.mxu0 0.0
      %1915 = vmatpush.msra.mxu0 %v1871
      %1916 = vmatpush.msra.mxu0 %v1870
      %1917 = vmatpush.msra.mxu0 %v1869
      %1918 = vmatpush.msra.mxu0 %v1868
      %1919 = vmatpush.msra.mxu0 %v1867
      %1920 = vmatpush.msra.mxu0 %v1866
      %1921 = vmatpush.msra.mxu0 %v1865
      %1922 = vmatpush.msra.mxu0 %v1864
      %1923 = vmatmul.f32.gmra.mxu0 %v1905
      %v1924 = vpop.f32.mrf.mxu0
      %v1925 = vadd.f32 %v1901, %v1924
      %1926 = vdwg.mxu0
      %v1927 = vadd.f32 %v1858, %v1925
      %v1928 = vsel %vm1216, %v1927, 0.0
      %1929 = vadd.xlane.f32.xlu0 %v1928
      %v1930 = vpop.xlane.xlu0 %1929
      %v1931 = vmul.f32 %v1930, %v1835
      %v1932 = vsub.f32 %v1927, %v1931
      %v1933 = vmul.f32 %v1932, %v1932
      %v1934 = vsel %vm1216, %v1933, 0.0
      %1935 = vadd.xlane.f32.xlu0 %v1934
      %v1936 = vpop.xlane.xlu0 %1935
      %v1937 = vmul.f32 %v1936, %v1835
      %v1938 = vadd.f32 %v1937, 1e-05
      %v1939 = vrsqrt.pop %v1938
      %v1940 = vmul.f32 %v1939, %v1938
      %v1941 = vmul.f32 %v1940, %v1939
      %v1942 = vmul.f32 0.5, %v1941
      %v1943 = vsub.f32 1.5, %v1942
      %v1944 = vmul.f32 %v1939, %v1943
      %vm1945 = vweird.f32 %v1938
      %vm1946 = vweird.f32 %v1939
      %vm1947 = vmor %vm1945, %vm1946
      %v1948 = vsel %vm1947, %v1939, %v1944
      %v1949 = vmul.f32 %v1932, %v1948
      %v1950 = vperm.slane %v1119, 2
      %v1951 = vmul.f32 %v1949, %v1950
      %v1952 = vperm.slane %v1119, 3
      %v1953 = vadd.f32 %v1951, %v1952
      %s1954 = scalar_lea.vmem %s35, 4
      %v1955 = vld [vmem:[%s1954] sm:$0xf]
      %s1956 = scalar_lea.vmem %s19, 384
      %v1957 = vld [vmem:[%s1956] sm:$0xff]
      %v1958 = vld [vmem:[%s1956 + $0x8] sm:$0xff]
      %v1959 = vld [vmem:[%s1956 + $0x10] sm:$0xff]
      %v1960 = vld [vmem:[%s1956 + $0x18] sm:$0xff]
      %v1961 = vld [vmem:[%s1956 + $0x20] sm:$0xff]
      %v1962 = vld [vmem:[%s1956 + $0x28] sm:$0xff]
      %v1963 = vld [vmem:[%s1956 + $0x30] sm:$0xff]
      %v1964 = vld [vmem:[%s1956 + $0x38] sm:$0xff]
      %v1965 = vld [vmem:[%s1956 + $0x40] sm:$0xff]
      %v1966 = vld [vmem:[%s1956 + $0x48] sm:$0xff]
      %v1967 = vld [vmem:[%s1956 + $0x50] sm:$0xff]
      %v1968 = vld [vmem:[%s1956 + $0x58] sm:$0xff]
      %v1969 = vld [vmem:[%s1956 + $0x60] sm:$0xff]
      %v1970 = vld [vmem:[%s1956 + $0x68] sm:$0xff]
      %v1971 = vld [vmem:[%s1956 + $0x70] sm:$0xff]
      %v1972 = vld [vmem:[%s1956 + $0x78] sm:$0xff]
      %v1973 = vld [vmem:[%s1956 + $0x80] sm:$0xff]
      %v1974 = vld [vmem:[%s1956 + $0x88] sm:$0xff]
      %v1975 = vld [vmem:[%s1956 + $0x90] sm:$0xff]
      %v1976 = vld [vmem:[%s1956 + $0x98] sm:$0xff]
      %v1977 = vld [vmem:[%s1956 + $0xa0] sm:$0xff]
      %v1978 = vld [vmem:[%s1956 + $0xa8] sm:$0xff]
      %v1979 = vld [vmem:[%s1956 + $0xb0] sm:$0xff]
      %v1980 = vld [vmem:[%s1956 + $0xb8] sm:$0xff]
      %v1981 = vld [vmem:[%s1956 + $0xc0] sm:$0xff]
      %v1982 = vld [vmem:[%s1956 + $0xc8] sm:$0xff]
      %v1983 = vld [vmem:[%s1956 + $0xd0] sm:$0xff]
      %v1984 = vld [vmem:[%s1956 + $0xd8] sm:$0xff]
      %v1985 = vld [vmem:[%s1956 + $0xe0] sm:$0xff]
      %v1986 = vld [vmem:[%s1956 + $0xe8] sm:$0xff]
      %v1987 = vld [vmem:[%s1956 + $0xf0] sm:$0xff]
      %v1988 = vld [vmem:[%s1956 + $0xf8] sm:$0xff]
      %v1989 = vld [vmem:[%s1956 + $0x100] sm:$0xff]
      %v1990 = vld [vmem:[%s1956 + $0x108] sm:$0xff]
      %v1991 = vld [vmem:[%s1956 + $0x110] sm:$0xff]
      %v1992 = vld [vmem:[%s1956 + $0x118] sm:$0xff]
      %v1993 = vld [vmem:[%s1956 + $0x120] sm:$0xff]
      %v1994 = vld [vmem:[%s1956 + $0x128] sm:$0xff]
      %v1995 = vld [vmem:[%s1956 + $0x130] sm:$0xff]
      %v1996 = vld [vmem:[%s1956 + $0x138] sm:$0xff]
      %v1997 = vld [vmem:[%s1956 + $0x140] sm:$0xff]
      %v1998 = vld [vmem:[%s1956 + $0x148] sm:$0xff]
      %v1999 = vld [vmem:[%s1956 + $0x150] sm:$0xff]
      %v2000 = vld [vmem:[%s1956 + $0x158] sm:$0xff]
      %v2001 = vld [vmem:[%s1956 + $0x160] sm:$0xff]
      %v2002 = vld [vmem:[%s1956 + $0x168] sm:$0xff]
      %v2003 = vld [vmem:[%s1956 + $0x170] sm:$0xff]
      %v2004 = vld [vmem:[%s1956 + $0x178] sm:$0xff]
      %s2005 = scalar_lea.vmem %s21, 12
      %v2006 = vld [vmem:[%s2005] sm:$0x1]
      %v2007 = vld [vmem:[%s2005 + $0x1] sm:$0x1]
      %v2008 = vld [vmem:[%s2005 + $0x2] sm:$0x1]
      %v2009 = vld [vmem:[%s2005 + $0x3] sm:$0x1]
      %v2010 = vld [vmem:[%s2005 + $0x4] sm:$0x1]
      %v2011 = vld [vmem:[%s2005 + $0x5] sm:$0x1]
      %v2012 = vld [vmem:[%s2005 + $0x6] sm:$0x1]
      %v2013 = vld [vmem:[%s2005 + $0x7] sm:$0x1]
      %v2014 = vld [vmem:[%s2005 + $0x8] sm:$0x1]
      %v2015 = vld [vmem:[%s2005 + $0x9] sm:$0x1]
      %v2016 = vld [vmem:[%s2005 + $0xa] sm:$0x1]
      %v2017 = vld [vmem:[%s2005 + $0xb] sm:$0x1]
      %v2030 = vperm.slane %v2006, 0
      %v2031 = vperm.slane %v2007, 0
      %v2032 = vperm.slane %v2008, 0
      %v2033 = vperm.slane %v2009, 0
      %v2034 = vperm.slane %v2010, 0
      %v2035 = vperm.slane %v2011, 0
      %v2036 = vperm.slane %v2012, 0
      %v2037 = vperm.slane %v2013, 0
      %v2038 = vperm.slane %v2014, 0
      %v2039 = vperm.slane %v2015, 0
      %v2040 = vperm.slane %v2016, 0
      %v2041 = vperm.slane %v2017, 0
      %v2055 = vsel %vm1216, %v1953, 0
      %2057 = vmatpush.msra.mxu0 0.0
      %2058 = vmatpush.msra.mxu0 0.0
      %2059 = vmatpush.msra.mxu0 0.0
      %2060 = vmatpush.msra.mxu0 0.0
      %2061 = vmatpush.msra.mxu0 0.0
      %2062 = vmatpush.msra.mxu0 0.0
      %2063 = vmatpush.msra.mxu0 0.0
      %2064 = vmatpush.msra.mxu0 0.0
      %2065 = vmatpush.msra.mxu0 0.0
      %2066 = vmatpush.msra.mxu0 0.0
      %2067 = vmatpush.msra.mxu0 0.0
      %2068 = vmatpush.msra.mxu0 0.0
      %2069 = vmatpush.msra.mxu0 %v1960
      %2070 = vmatpush.msra.mxu0 %v1959
      %2071 = vmatpush.msra.mxu0 %v1958
      %2072 = vmatpush.msra.mxu0 %v1957
      %2073 = vmatmul.f32.gmra.mxu0 %v2055
      %v2074 = vpop.f32.mrf.mxu0
      %v2075 = vadd.f32 %v2030, %v2074
      %2076 = vdwg.mxu0
      %2077 = vmatpush.msra.mxu0 0.0
      %2078 = vmatpush.msra.mxu0 0.0
      %2079 = vmatpush.msra.mxu0 0.0
      %2080 = vmatpush.msra.mxu0 0.0
      %2081 = vmatpush.msra.mxu0 0.0
      %2082 = vmatpush.msra.mxu0 0.0
      %2083 = vmatpush.msra.mxu0 0.0
      %2084 = vmatpush.msra.mxu0 0.0
      %2085 = vmatpush.msra.mxu0 0.0
      %2086 = vmatpush.msra.mxu0 0.0
      %2087 = vmatpush.msra.mxu0 0.0
      %2088 = vmatpush.msra.mxu0 0.0
      %2089 = vmatpush.msra.mxu0 %v1964
      %2090 = vmatpush.msra.mxu0 %v1963
      %2091 = vmatpush.msra.mxu0 %v1962
      %2092 = vmatpush.msra.mxu0 %v1961
      %2093 = vmatmul.f32.gmra.mxu0 %v2055
      %v2094 = vpop.f32.mrf.mxu0
      %v2095 = vadd.f32 %v2031, %v2094
      %2096 = vdwg.mxu0
      %2097 = vmatpush.msra.mxu0 0.0
      %2098 = vmatpush.msra.mxu0 0.0
      %2099 = vmatpush.msra.mxu0 0.0
      %2100 = vmatpush.msra.mxu0 0.0
      %2101 = vmatpush.msra.mxu0 0.0
      %2102 = vmatpush.msra.mxu0 0.0
      %2103 = vmatpush.msra.mxu0 0.0
      %2104 = vmatpush.msra.mxu0 0.0
      %2105 = vmatpush.msra.mxu0 0.0
      %2106 = vmatpush.msra.mxu0 0.0
      %2107 = vmatpush.msra.mxu0 0.0
      %2108 = vmatpush.msra.mxu0 0.0
      %2109 = vmatpush.msra.mxu0 %v1968
      %2110 = vmatpush.msra.mxu0 %v1967
      %2111 = vmatpush.msra.mxu0 %v1966
      %2112 = vmatpush.msra.mxu0 %v1965
      %2113 = vmatmul.f32.gmra.mxu0 %v2055
      %v2114 = vpop.f32.mrf.mxu0
      %v2115 = vadd.f32 %v2032, %v2114
      %2116 = vdwg.mxu0
      %2117 = vmatpush.msra.mxu0 0.0
      %2118 = vmatpush.msra.mxu0 0.0
      %2119 = vmatpush.msra.mxu0 0.0
      %2120 = vmatpush.msra.mxu0 0.0
      %2121 = vmatpush.msra.mxu0 0.0
      %2122 = vmatpush.msra.mxu0 0.0
      %2123 = vmatpush.msra.mxu0 0.0
      %2124 = vmatpush.msra.mxu0 0.0
      %2125 = vmatpush.msra.mxu0 0.0
      %2126 = vmatpush.msra.mxu0 0.0
      %2127 = vmatpush.msra.mxu0 0.0
      %2128 = vmatpush.msra.mxu0 0.0
      %2129 = vmatpush.msra.mxu0 %v1972
      %2130 = vmatpush.msra.mxu0 %v1971
      %2131 = vmatpush.msra.mxu0 %v1970
      %2132 = vmatpush.msra.mxu0 %v1969
      %2133 = vmatmul.f32.gmra.mxu0 %v2055
      %v2134 = vpop.f32.mrf.mxu0
      %v2135 = vadd.f32 %v2033, %v2134
      %2136 = vdwg.mxu0
      %2137 = vmatpush.msra.mxu0 0.0
      %2138 = vmatpush.msra.mxu0 0.0
      %2139 = vmatpush.msra.mxu0 0.0
      %2140 = vmatpush.msra.mxu0 0.0
      %2141 = vmatpush.msra.mxu0 0.0
      %2142 = vmatpush.msra.mxu0 0.0
      %2143 = vmatpush.msra.mxu0 0.0
      %2144 = vmatpush.msra.mxu0 0.0
      %2145 = vmatpush.msra.mxu0 0.0
      %2146 = vmatpush.msra.mxu0 0.0
      %2147 = vmatpush.msra.mxu0 0.0
      %2148 = vmatpush.msra.mxu0 0.0
      %2149 = vmatpush.msra.mxu0 %v1976
      %2150 = vmatpush.msra.mxu0 %v1975
      %2151 = vmatpush.msra.mxu0 %v1974
      %2152 = vmatpush.msra.mxu0 %v1973
      %2153 = vmatmul.f32.gmra.mxu0 %v2055
      %v2154 = vpop.f32.mrf.mxu0
      %v2155 = vadd.f32 %v2034, %v2154
      %2156 = vdwg.mxu0
      %2157 = vmatpush.msra.mxu0 0.0
      %2158 = vmatpush.msra.mxu0 0.0
      %2159 = vmatpush.msra.mxu0 0.0
      %2160 = vmatpush.msra.mxu0 0.0
      %2161 = vmatpush.msra.mxu0 0.0
      %2162 = vmatpush.msra.mxu0 0.0
      %2163 = vmatpush.msra.mxu0 0.0
      %2164 = vmatpush.msra.mxu0 0.0
      %2165 = vmatpush.msra.mxu0 0.0
      %2166 = vmatpush.msra.mxu0 0.0
      %2167 = vmatpush.msra.mxu0 0.0
      %2168 = vmatpush.msra.mxu0 0.0
      %2169 = vmatpush.msra.mxu0 %v1980
      %2170 = vmatpush.msra.mxu0 %v1979
      %2171 = vmatpush.msra.mxu0 %v1978
      %2172 = vmatpush.msra.mxu0 %v1977
      %2173 = vmatmul.f32.gmra.mxu0 %v2055
      %v2174 = vpop.f32.mrf.mxu0
      %v2175 = vadd.f32 %v2035, %v2174
      %2176 = vdwg.mxu0
      %2177 = vmatpush.msra.mxu0 0.0
      %2178 = vmatpush.msra.mxu0 0.0
      %2179 = vmatpush.msra.mxu0 0.0
      %2180 = vmatpush.msra.mxu0 0.0
      %2181 = vmatpush.msra.mxu0 0.0
      %2182 = vmatpush.msra.mxu0 0.0
      %2183 = vmatpush.msra.mxu0 0.0
      %2184 = vmatpush.msra.mxu0 0.0
      %2185 = vmatpush.msra.mxu0 0.0
      %2186 = vmatpush.msra.mxu0 0.0
      %2187 = vmatpush.msra.mxu0 0.0
      %2188 = vmatpush.msra.mxu0 0.0
      %2189 = vmatpush.msra.mxu0 %v1984
      %2190 = vmatpush.msra.mxu0 %v1983
      %2191 = vmatpush.msra.mxu0 %v1982
      %2192 = vmatpush.msra.mxu0 %v1981
      %2193 = vmatmul.f32.gmra.mxu0 %v2055
      %v2194 = vpop.f32.mrf.mxu0
      %v2195 = vadd.f32 %v2036, %v2194
      %2196 = vdwg.mxu0
      %2197 = vmatpush.msra.mxu0 0.0
      %2198 = vmatpush.msra.mxu0 0.0
      %2199 = vmatpush.msra.mxu0 0.0
      %2200 = vmatpush.msra.mxu0 0.0
      %2201 = vmatpush.msra.mxu0 0.0
      %2202 = vmatpush.msra.mxu0 0.0
      %2203 = vmatpush.msra.mxu0 0.0
      %2204 = vmatpush.msra.mxu0 0.0
      %2205 = vmatpush.msra.mxu0 0.0
      %2206 = vmatpush.msra.mxu0 0.0
      %2207 = vmatpush.msra.mxu0 0.0
      %2208 = vmatpush.msra.mxu0 0.0
      %2209 = vmatpush.msra.mxu0 %v1988
      %2210 = vmatpush.msra.mxu0 %v1987
      %2211 = vmatpush.msra.mxu0 %v1986
      %2212 = vmatpush.msra.mxu0 %v1985
      %2213 = vmatmul.f32.gmra.mxu0 %v2055
      %v2214 = vpop.f32.mrf.mxu0
      %v2215 = vadd.f32 %v2037, %v2214
      %2216 = vdwg.mxu0
      %2217 = vmatpush.msra.mxu0 0.0
      %2218 = vmatpush.msra.mxu0 0.0
      %2219 = vmatpush.msra.mxu0 0.0
      %2220 = vmatpush.msra.mxu0 0.0
      %2221 = vmatpush.msra.mxu0 0.0
      %2222 = vmatpush.msra.mxu0 0.0
      %2223 = vmatpush.msra.mxu0 0.0
      %2224 = vmatpush.msra.mxu0 0.0
      %2225 = vmatpush.msra.mxu0 0.0
      %2226 = vmatpush.msra.mxu0 0.0
      %2227 = vmatpush.msra.mxu0 0.0
      %2228 = vmatpush.msra.mxu0 0.0
      %2229 = vmatpush.msra.mxu0 %v1992
      %2230 = vmatpush.msra.mxu0 %v1991
      %2231 = vmatpush.msra.mxu0 %v1990
      %2232 = vmatpush.msra.mxu0 %v1989
      %2233 = vmatmul.f32.gmra.mxu0 %v2055
      %v2234 = vpop.f32.mrf.mxu0
      %v2235 = vadd.f32 %v2038, %v2234
      %2236 = vdwg.mxu0
      %2237 = vmatpush.msra.mxu0 0.0
      %2238 = vmatpush.msra.mxu0 0.0
      %2239 = vmatpush.msra.mxu0 0.0
      %2240 = vmatpush.msra.mxu0 0.0
      %2241 = vmatpush.msra.mxu0 0.0
      %2242 = vmatpush.msra.mxu0 0.0
      %2243 = vmatpush.msra.mxu0 0.0
      %2244 = vmatpush.msra.mxu0 0.0
      %2245 = vmatpush.msra.mxu0 0.0
      %2246 = vmatpush.msra.mxu0 0.0
      %2247 = vmatpush.msra.mxu0 0.0
      %2248 = vmatpush.msra.mxu0 0.0
      %2249 = vmatpush.msra.mxu0 %v1996
      %2250 = vmatpush.msra.mxu0 %v1995
      %2251 = vmatpush.msra.mxu0 %v1994
      %2252 = vmatpush.msra.mxu0 %v1993
      %2253 = vmatmul.f32.gmra.mxu0 %v2055
      %v2254 = vpop.f32.mrf.mxu0
      %v2255 = vadd.f32 %v2039, %v2254
      %2256 = vdwg.mxu0
      %2257 = vmatpush.msra.mxu0 0.0
      %2258 = vmatpush.msra.mxu0 0.0
      %2259 = vmatpush.msra.mxu0 0.0
      %2260 = vmatpush.msra.mxu0 0.0
      %2261 = vmatpush.msra.mxu0 0.0
      %2262 = vmatpush.msra.mxu0 0.0
      %2263 = vmatpush.msra.mxu0 0.0
      %2264 = vmatpush.msra.mxu0 0.0
      %2265 = vmatpush.msra.mxu0 0.0
      %2266 = vmatpush.msra.mxu0 0.0
      %2267 = vmatpush.msra.mxu0 0.0
      %2268 = vmatpush.msra.mxu0 0.0
      %2269 = vmatpush.msra.mxu0 %v2000
      %2270 = vmatpush.msra.mxu0 %v1999
      %2271 = vmatpush.msra.mxu0 %v1998
      %2272 = vmatpush.msra.mxu0 %v1997
      %2273 = vmatmul.f32.gmra.mxu0 %v2055
      %v2274 = vpop.f32.mrf.mxu0
      %v2275 = vadd.f32 %v2040, %v2274
      %2276 = vdwg.mxu0
      %2277 = vmatpush.msra.mxu0 0.0
      %2278 = vmatpush.msra.mxu0 0.0
      %2279 = vmatpush.msra.mxu0 0.0
      %2280 = vmatpush.msra.mxu0 0.0
      %2281 = vmatpush.msra.mxu0 0.0
      %2282 = vmatpush.msra.mxu0 0.0
      %2283 = vmatpush.msra.mxu0 0.0
      %2284 = vmatpush.msra.mxu0 0.0
      %2285 = vmatpush.msra.mxu0 0.0
      %2286 = vmatpush.msra.mxu0 0.0
      %2287 = vmatpush.msra.mxu0 0.0
      %2288 = vmatpush.msra.mxu0 0.0
      %2289 = vmatpush.msra.mxu0 %v2004
      %2290 = vmatpush.msra.mxu0 %v2003
      %2291 = vmatpush.msra.mxu0 %v2002
      %2292 = vmatpush.msra.mxu0 %v2001
      %2293 = vmatmul.f32.gmra.mxu0 %v2055
      %v2294 = vpop.f32.mrf.mxu0
      %v2295 = vadd.f32 %v2041, %v2294
      %2296 = vdwg.mxu0
      %s2297 = scalar_lea.vmem %s23, 32
      %v2298 = vld [vmem:[%s2297] sm:$0xff]
      %v2299 = vld [vmem:[%s2297 + $0x8] sm:$0xff]
      %v2300 = vld [vmem:[%s2297 + $0x10] sm:$0xff]
      %v2301 = vld [vmem:[%s2297 + $0x18] sm:$0xff]
      %s2302 = scalar_lea.vmem %s25, 1
      %v2303 = vld [vmem:[%s2302] sm:$0x1]
      %v2305 = vsel %vm1465, %v2075, 0
      %v2308 = vsel %vm1465, %v2155, 0
      %2310 = vmatpush.xpose.msra.mxu0 0.0
      %2311 = vmatpush.xpose.msra.mxu0 0.0
      %2312 = vmatpush.xpose.msra.mxu0 0.0
      %2313 = vmatpush.xpose.msra.mxu0 0.0
      %2314 = vmatpush.xpose.msra.mxu0 0.0
      %2315 = vmatpush.xpose.msra.mxu0 0.0
      %2316 = vmatpush.xpose.msra.mxu0 0.0
      %2317 = vmatpush.xpose.msra.mxu0 0.0
      %2318 = vmatpush.xpose.msra.mxu0 0.0
      %2319 = vmatpush.xpose.msra.mxu0 0.0
      %2320 = vmatpush.xpose.msra.mxu0 0.0
      %2321 = vmatpush.xpose.msra.mxu0 0.0
      %2322 = vmatpush.xpose.msra.mxu0 0.0
      %2323 = vmatpush.xpose.msra.mxu0 0.0
      %2324 = vmatpush.xpose.msra.mxu0 0.0
      %2325 = vmatpush.xpose.msra.mxu0 %v2308
      %2326 = vmatmul.f32.gmra.mxu0 %v2305
      %v2327 = vpop.f32.mrf.mxu0
      %v2328 = vadd.f32 0.0, %v2327
      %2329 = vdwg.mxu0
      %v2331 = vsel %vm1465, %v2095, 0
      %v2334 = vsel %vm1465, %v2175, 0
      %2336 = vmatpush.xpose.msra.mxu0 0.0
      %2337 = vmatpush.xpose.msra.mxu0 0.0
      %2338 = vmatpush.xpose.msra.mxu0 0.0
      %2339 = vmatpush.xpose.msra.mxu0 0.0
      %2340 = vmatpush.xpose.msra.mxu0 0.0
      %2341 = vmatpush.xpose.msra.mxu0 0.0
      %2342 = vmatpush.xpose.msra.mxu0 0.0
      %2343 = vmatpush.xpose.msra.mxu0 0.0
      %2344 = vmatpush.xpose.msra.mxu0 0.0
      %2345 = vmatpush.xpose.msra.mxu0 0.0
      %2346 = vmatpush.xpose.msra.mxu0 0.0
      %2347 = vmatpush.xpose.msra.mxu0 0.0
      %2348 = vmatpush.xpose.msra.mxu0 0.0
      %2349 = vmatpush.xpose.msra.mxu0 0.0
      %2350 = vmatpush.xpose.msra.mxu0 0.0
      %2351 = vmatpush.xpose.msra.mxu0 %v2334
      %2352 = vmatmul.f32.gmra.mxu0 %v2331
      %v2353 = vpop.f32.mrf.mxu0
      %v2354 = vadd.f32 0.0, %v2353
      %2355 = vdwg.mxu0
      %v2357 = vsel %vm1465, %v2115, 0
      %v2360 = vsel %vm1465, %v2195, 0
      %2362 = vmatpush.xpose.msra.mxu0 0.0
      %2363 = vmatpush.xpose.msra.mxu0 0.0
      %2364 = vmatpush.xpose.msra.mxu0 0.0
      %2365 = vmatpush.xpose.msra.mxu0 0.0
      %2366 = vmatpush.xpose.msra.mxu0 0.0
      %2367 = vmatpush.xpose.msra.mxu0 0.0
      %2368 = vmatpush.xpose.msra.mxu0 0.0
      %2369 = vmatpush.xpose.msra.mxu0 0.0
      %2370 = vmatpush.xpose.msra.mxu0 0.0
      %2371 = vmatpush.xpose.msra.mxu0 0.0
      %2372 = vmatpush.xpose.msra.mxu0 0.0
      %2373 = vmatpush.xpose.msra.mxu0 0.0
      %2374 = vmatpush.xpose.msra.mxu0 0.0
      %2375 = vmatpush.xpose.msra.mxu0 0.0
      %2376 = vmatpush.xpose.msra.mxu0 0.0
      %2377 = vmatpush.xpose.msra.mxu0 %v2360
      %2378 = vmatmul.f32.gmra.mxu0 %v2357
      %v2379 = vpop.f32.mrf.mxu0
      %v2380 = vadd.f32 0.0, %v2379
      %2381 = vdwg.mxu0
      %v2383 = vsel %vm1465, %v2135, 0
      %v2386 = vsel %vm1465, %v2215, 0
      %2388 = vmatpush.xpose.msra.mxu0 0.0
      %2389 = vmatpush.xpose.msra.mxu0 0.0
      %2390 = vmatpush.xpose.msra.mxu0 0.0
      %2391 = vmatpush.xpose.msra.mxu0 0.0
      %2392 = vmatpush.xpose.msra.mxu0 0.0
      %2393 = vmatpush.xpose.msra.mxu0 0.0
      %2394 = vmatpush.xpose.msra.mxu0 0.0
      %2395 = vmatpush.xpose.msra.mxu0 0.0
      %2396 = vmatpush.xpose.msra.mxu0 0.0
      %2397 = vmatpush.xpose.msra.mxu0 0.0
      %2398 = vmatpush.xpose.msra.mxu0 0.0
      %2399 = vmatpush.xpose.msra.mxu0 0.0
      %2400 = vmatpush.xpose.msra.mxu0 0.0
      %2401 = vmatpush.xpose.msra.mxu0 0.0
      %2402 = vmatpush.xpose.msra.mxu0 0.0
      %2403 = vmatpush.xpose.msra.mxu0 %v2386
      %2404 = vmatmul.f32.gmra.mxu0 %v2383
      %v2405 = vpop.f32.mrf.mxu0
      %v2406 = vadd.f32 0.0, %v2405
      %2407 = vdwg.mxu0
      %v2408 = vsel %vm1465, %v2328, -inf
      %2409 = vmax.xlane.f32.xlu0 %v2408
      %v2410 = vpop.xlane.xlu0 %2409
      %v2411 = vsel %vm1465, %v2354, -inf
      %2412 = vmax.xlane.f32.xlu0 %v2411
      %v2413 = vpop.xlane.xlu0 %2412
      %v2414 = vsel %vm1465, %v2380, -inf
      %2415 = vmax.xlane.f32.xlu0 %v2414
      %v2416 = vpop.xlane.xlu0 %2415
      %v2417 = vsel %vm1465, %v2406, -inf
      %2418 = vmax.xlane.f32.xlu0 %v2417
      %v2419 = vpop.xlane.xlu0 %2418
      %v2420 = vsub.f32 %v2328, %v2410
      %v2421 = vsub.f32 %v2354, %v2413
      %v2422 = vsub.f32 %v2380, %v2416
      %v2423 = vsub.f32 %v2406, %v2419
      %v2424 = vmul.f32 %v2420, 1.442695
      %v2425 = vpow.pop %v2424
      %v2426 = vmul.f32 %v2421, 1.442695
      %v2427 = vpow.pop %v2426
      %v2428 = vmul.f32 %v2422, 1.442695
      %v2429 = vpow.pop %v2428
      %v2430 = vmul.f32 %v2423, 1.442695
      %v2431 = vpow.pop %v2430
      %v2432 = vsel %vm1465, %v2425, 0.0
      %2433 = vadd.xlane.f32.xlu0 %v2432
      %v2434 = vpop.xlane.xlu0 %2433
      %v2435 = vsel %vm1465, %v2427, 0.0
      %2436 = vadd.xlane.f32.xlu0 %v2435
      %v2437 = vpop.xlane.xlu0 %2436
      %v2438 = vsel %vm1465, %v2429, 0.0
      %2439 = vadd.xlane.f32.xlu0 %v2438
      %v2440 = vpop.xlane.xlu0 %2439
      %v2441 = vsel %vm1465, %v2431, 0.0
      %2442 = vadd.xlane.f32.xlu0 %v2441
      %v2443 = vpop.xlane.xlu0 %2442
      %v2444 = vmax.f32 %v2434, 1e-30
      %v2445 = vmax.f32 %v2437, 1e-30
      %v2446 = vmax.f32 %v2440, 1e-30
      %v2447 = vmax.f32 %v2443, 1e-30
      %v2448 = vrcp.pop %v2444
      %v2449 = vrcp.pop %v2445
      %v2450 = vrcp.pop %v2446
      %v2451 = vrcp.pop %v2447
      %v2452 = vmul.f32 %v2434, %v2448
      %v2453 = vmul.f32 %v2437, %v2449
      %v2454 = vmul.f32 %v2440, %v2450
      %v2455 = vmul.f32 %v2443, %v2451
      %v2456 = vsub.f32 2.0, %v2452
      %v2457 = vsub.f32 2.0, %v2453
      %v2458 = vsub.f32 2.0, %v2454
      %v2459 = vsub.f32 2.0, %v2455
      %v2460 = vmul.f32 %v2448, %v2456
      %v2461 = vmul.f32 %v2449, %v2457
      %v2462 = vmul.f32 %v2450, %v2458
      %v2463 = vmul.f32 %v2451, %v2459
      %v2464 = vmul.f32 %v2425, %v2460
      %v2465 = vmul.f32 %v2427, %v2461
      %v2466 = vmul.f32 %v2429, %v2462
      %v2467 = vmul.f32 %v2431, %v2463
      %v2469 = vsel %vm1465, %v2464, 0
      %2471 = vmatpush.msra.mxu0 0.0
      %2472 = vmatpush.msra.mxu0 0.0
      %2473 = vmatpush.msra.mxu0 0.0
      %2474 = vmatpush.msra.mxu0 0.0
      %2475 = vmatpush.msra.mxu0 0.0
      %2476 = vmatpush.msra.mxu0 0.0
      %2477 = vmatpush.msra.mxu0 0.0
      %2478 = vmatpush.msra.mxu0 0.0
      %2479 = vmatpush.msra.mxu0 0.0
      %2480 = vmatpush.msra.mxu0 0.0
      %2481 = vmatpush.msra.mxu0 0.0
      %2482 = vmatpush.msra.mxu0 0.0
      %2483 = vmatpush.msra.mxu0 0.0
      %2484 = vmatpush.msra.mxu0 0.0
      %2485 = vmatpush.msra.mxu0 0.0
      %2486 = vmatpush.msra.mxu0 %v2235
      %2487 = vmatmul.f32.gmra.mxu0 %v2469
      %v2488 = vpop.f32.mrf.mxu0
      %v2489 = vadd.f32 0.0, %v2488
      %2490 = vdwg.mxu0
      %v2492 = vsel %vm1465, %v2465, 0
      %2494 = vmatpush.msra.mxu0 0.0
      %2495 = vmatpush.msra.mxu0 0.0
      %2496 = vmatpush.msra.mxu0 0.0
      %2497 = vmatpush.msra.mxu0 0.0
      %2498 = vmatpush.msra.mxu0 0.0
      %2499 = vmatpush.msra.mxu0 0.0
      %2500 = vmatpush.msra.mxu0 0.0
      %2501 = vmatpush.msra.mxu0 0.0
      %2502 = vmatpush.msra.mxu0 0.0
      %2503 = vmatpush.msra.mxu0 0.0
      %2504 = vmatpush.msra.mxu0 0.0
      %2505 = vmatpush.msra.mxu0 0.0
      %2506 = vmatpush.msra.mxu0 0.0
      %2507 = vmatpush.msra.mxu0 0.0
      %2508 = vmatpush.msra.mxu0 0.0
      %2509 = vmatpush.msra.mxu0 %v2255
      %2510 = vmatmul.f32.gmra.mxu0 %v2492
      %v2511 = vpop.f32.mrf.mxu0
      %v2512 = vadd.f32 0.0, %v2511
      %2513 = vdwg.mxu0
      %v2515 = vsel %vm1465, %v2466, 0
      %2517 = vmatpush.msra.mxu0 0.0
      %2518 = vmatpush.msra.mxu0 0.0
      %2519 = vmatpush.msra.mxu0 0.0
      %2520 = vmatpush.msra.mxu0 0.0
      %2521 = vmatpush.msra.mxu0 0.0
      %2522 = vmatpush.msra.mxu0 0.0
      %2523 = vmatpush.msra.mxu0 0.0
      %2524 = vmatpush.msra.mxu0 0.0
      %2525 = vmatpush.msra.mxu0 0.0
      %2526 = vmatpush.msra.mxu0 0.0
      %2527 = vmatpush.msra.mxu0 0.0
      %2528 = vmatpush.msra.mxu0 0.0
      %2529 = vmatpush.msra.mxu0 0.0
      %2530 = vmatpush.msra.mxu0 0.0
      %2531 = vmatpush.msra.mxu0 0.0
      %2532 = vmatpush.msra.mxu0 %v2275
      %2533 = vmatmul.f32.gmra.mxu0 %v2515
      %v2534 = vpop.f32.mrf.mxu0
      %v2535 = vadd.f32 0.0, %v2534
      %2536 = vdwg.mxu0
      %v2538 = vsel %vm1465, %v2467, 0
      %2540 = vmatpush.msra.mxu0 0.0
      %2541 = vmatpush.msra.mxu0 0.0
      %2542 = vmatpush.msra.mxu0 0.0
      %2543 = vmatpush.msra.mxu0 0.0
      %2544 = vmatpush.msra.mxu0 0.0
      %2545 = vmatpush.msra.mxu0 0.0
      %2546 = vmatpush.msra.mxu0 0.0
      %2547 = vmatpush.msra.mxu0 0.0
      %2548 = vmatpush.msra.mxu0 0.0
      %2549 = vmatpush.msra.mxu0 0.0
      %2550 = vmatpush.msra.mxu0 0.0
      %2551 = vmatpush.msra.mxu0 0.0
      %2552 = vmatpush.msra.mxu0 0.0
      %2553 = vmatpush.msra.mxu0 0.0
      %2554 = vmatpush.msra.mxu0 0.0
      %2555 = vmatpush.msra.mxu0 %v2295
      %2556 = vmatmul.f32.gmra.mxu0 %v2538
      %v2557 = vpop.f32.mrf.mxu0
      %v2558 = vadd.f32 0.0, %v2557
      %2559 = vdwg.mxu0
      %v2561 = vsel %vm1465, %v2489, 0
      %2563 = vmatpush.msra.mxu0 0.0
      %2564 = vmatpush.msra.mxu0 0.0
      %2565 = vmatpush.msra.mxu0 0.0
      %2566 = vmatpush.msra.mxu0 0.0
      %2567 = vmatpush.msra.mxu0 0.0
      %2568 = vmatpush.msra.mxu0 0.0
      %2569 = vmatpush.msra.mxu0 0.0
      %2570 = vmatpush.msra.mxu0 0.0
      %2571 = vmatpush.msra.mxu0 0.0
      %2572 = vmatpush.msra.mxu0 0.0
      %2573 = vmatpush.msra.mxu0 0.0
      %2574 = vmatpush.msra.mxu0 0.0
      %2575 = vmatpush.msra.mxu0 0.0
      %2576 = vmatpush.msra.mxu0 0.0
      %2577 = vmatpush.msra.mxu0 0.0
      %2578 = vmatpush.msra.mxu0 %v2298
      %2579 = vmatmul.f32.gmra.mxu0 %v2561
      %v2580 = vpop.f32.mrf.mxu0
      %v2581 = vadd.f32 0.0, %v2580
      %2582 = vdwg.mxu0
      %v2584 = vsel %vm1465, %v2512, 0
      %2586 = vmatpush.msra.mxu0 0.0
      %2587 = vmatpush.msra.mxu0 0.0
      %2588 = vmatpush.msra.mxu0 0.0
      %2589 = vmatpush.msra.mxu0 0.0
      %2590 = vmatpush.msra.mxu0 0.0
      %2591 = vmatpush.msra.mxu0 0.0
      %2592 = vmatpush.msra.mxu0 0.0
      %2593 = vmatpush.msra.mxu0 0.0
      %2594 = vmatpush.msra.mxu0 0.0
      %2595 = vmatpush.msra.mxu0 0.0
      %2596 = vmatpush.msra.mxu0 0.0
      %2597 = vmatpush.msra.mxu0 0.0
      %2598 = vmatpush.msra.mxu0 0.0
      %2599 = vmatpush.msra.mxu0 0.0
      %2600 = vmatpush.msra.mxu0 0.0
      %2601 = vmatpush.msra.mxu0 %v2299
      %2602 = vmatmul.f32.gmra.mxu0 %v2584
      %v2603 = vpop.f32.mrf.mxu0
      %v2604 = vadd.f32 0.0, %v2603
      %2605 = vdwg.mxu0
      %v2607 = vsel %vm1465, %v2535, 0
      %2609 = vmatpush.msra.mxu0 0.0
      %2610 = vmatpush.msra.mxu0 0.0
      %2611 = vmatpush.msra.mxu0 0.0
      %2612 = vmatpush.msra.mxu0 0.0
      %2613 = vmatpush.msra.mxu0 0.0
      %2614 = vmatpush.msra.mxu0 0.0
      %2615 = vmatpush.msra.mxu0 0.0
      %2616 = vmatpush.msra.mxu0 0.0
      %2617 = vmatpush.msra.mxu0 0.0
      %2618 = vmatpush.msra.mxu0 0.0
      %2619 = vmatpush.msra.mxu0 0.0
      %2620 = vmatpush.msra.mxu0 0.0
      %2621 = vmatpush.msra.mxu0 0.0
      %2622 = vmatpush.msra.mxu0 0.0
      %2623 = vmatpush.msra.mxu0 0.0
      %2624 = vmatpush.msra.mxu0 %v2300
      %2625 = vmatmul.f32.gmra.mxu0 %v2607
      %v2626 = vpop.f32.mrf.mxu0
      %v2627 = vadd.f32 0.0, %v2626
      %2628 = vdwg.mxu0
      %v2630 = vsel %vm1465, %v2558, 0
      %2632 = vmatpush.msra.mxu0 0.0
      %2633 = vmatpush.msra.mxu0 0.0
      %2634 = vmatpush.msra.mxu0 0.0
      %2635 = vmatpush.msra.mxu0 0.0
      %2636 = vmatpush.msra.mxu0 0.0
      %2637 = vmatpush.msra.mxu0 0.0
      %2638 = vmatpush.msra.mxu0 0.0
      %2639 = vmatpush.msra.mxu0 0.0
      %2640 = vmatpush.msra.mxu0 0.0
      %2641 = vmatpush.msra.mxu0 0.0
      %2642 = vmatpush.msra.mxu0 0.0
      %2643 = vmatpush.msra.mxu0 0.0
      %2644 = vmatpush.msra.mxu0 0.0
      %2645 = vmatpush.msra.mxu0 0.0
      %2646 = vmatpush.msra.mxu0 0.0
      %2647 = vmatpush.msra.mxu0 %v2301
      %2648 = vmatmul.f32.gmra.mxu0 %v2630
      %v2649 = vpop.f32.mrf.mxu0
      %v2650 = vadd.f32 0.0, %v2649
      %2651 = vdwg.mxu0
      %v2652 = vsel %vm1216, %v2581, 0.0
      %v2653 = vsel %vm1216, %v2604, 0.0
      %v2654 = vadd.f32 %v2652, %v2653
      %v2655 = vsel %vm1216, %v2627, 0.0
      %v2656 = vadd.f32 %v2654, %v2655
      %v2657 = vsel %vm1216, %v2650, 0.0
      %v2658 = vadd.f32 %v2656, %v2657
      %v2660 = vperm.slane %v2303, 0
      %v2662 = vadd.f32 %v2658, %v2660
      %v2663 = vadd.f32 %v1953, %v2662
      %v2664 = vsel %vm1216, %v2663, 0.0
      %2665 = vadd.xlane.f32.xlu0 %v2664
      %v2666 = vpop.xlane.xlu0 %2665
      %v2667 = vmul.f32 %v2666, %v1835
      %v2668 = vsub.f32 %v2663, %v2667
      %v2669 = vmul.f32 %v2668, %v2668
      %v2670 = vsel %vm1216, %v2669, 0.0
      %2671 = vadd.xlane.f32.xlu0 %v2670
      %v2672 = vpop.xlane.xlu0 %2671
      %v2673 = vmul.f32 %v2672, %v1835
      %v2674 = vadd.f32 %v2673, 1e-05
      %v2675 = vrsqrt.pop %v2674
      %v2676 = vmul.f32 %v2675, %v2674
      %v2677 = vmul.f32 %v2676, %v2675
      %v2678 = vmul.f32 0.5, %v2677
      %v2679 = vsub.f32 1.5, %v2678
      %v2680 = vmul.f32 %v2675, %v2679
      %vm2681 = vweird.f32 %v2674
      %vm2682 = vweird.f32 %v2675
      %vm2683 = vmor %vm2681, %vm2682
      %v2684 = vsel %vm2683, %v2675, %v2680
      %v2685 = vmul.f32 %v2668, %v2684
      %v2686 = vperm.slane %v1955, 0
      %v2687 = vmul.f32 %v2685, %v2686
      %v2688 = vperm.slane %v1955, 1
      %v2689 = vadd.f32 %v2687, %v2688
      %s2690 = scalar_lea.vmem %s27, 32
      %v2691 = vld [vmem:[%s2690] sm:$0xff]
      %v2692 = vld [vmem:[%s2690 + $0x8] sm:$0xff]
      %v2693 = vld [vmem:[%s2690 + $0x10] sm:$0xff]
      %v2694 = vld [vmem:[%s2690 + $0x18] sm:$0xff]
      %s2695 = scalar_lea.vmem %s29, 1
      %v2696 = vld [vmem:[%s2695] sm:$0x1]
      %s2697 = scalar_lea.vmem %s31, 64
      %v2698 = vld [vmem:[%s2697] sm:$0xff]
      %v2699 = vld [vmem:[%s2697 + $0x8] sm:$0xff]
      %v2700 = vld [vmem:[%s2697 + $0x10] sm:$0xff]
      %v2701 = vld [vmem:[%s2697 + $0x18] sm:$0xff]
      %v2702 = vld [vmem:[%s2697 + $0x20] sm:$0xff]
      %v2703 = vld [vmem:[%s2697 + $0x28] sm:$0xff]
      %v2704 = vld [vmem:[%s2697 + $0x30] sm:$0xff]
      %v2705 = vld [vmem:[%s2697 + $0x38] sm:$0xff]
      %s2706 = scalar_lea.vmem %s33, 1
      %v2707 = vld [vmem:[%s2706] sm:$0x1]
      %v2709 = vperm.slane %v2696, 0
      %v2712 = vsel %vm1216, %v2689, 0
      %2714 = vmatpush.msra.mxu0 0.0
      %2715 = vmatpush.msra.mxu0 0.0
      %2716 = vmatpush.msra.mxu0 0.0
      %2717 = vmatpush.msra.mxu0 0.0
      %2718 = vmatpush.msra.mxu0 0.0
      %2719 = vmatpush.msra.mxu0 0.0
      %2720 = vmatpush.msra.mxu0 0.0
      %2721 = vmatpush.msra.mxu0 0.0
      %2722 = vmatpush.msra.mxu0 0.0
      %2723 = vmatpush.msra.mxu0 0.0
      %2724 = vmatpush.msra.mxu0 0.0
      %2725 = vmatpush.msra.mxu0 0.0
      %2726 = vmatpush.msra.mxu0 %v2694
      %2727 = vmatpush.msra.mxu0 %v2693
      %2728 = vmatpush.msra.mxu0 %v2692
      %2729 = vmatpush.msra.mxu0 %v2691
      %2730 = vmatmul.f32.gmra.mxu0 %v2712
      %v2731 = vpop.f32.mrf.mxu0
      %v2732 = vadd.f32 %v2709, %v2731
      %2733 = vdwg.mxu0
      %v2734 = vmax.f32 %v2732, 0.0
      %v2736 = vperm.slane %v2707, 0
      %v2739 = vsel %vm1903, %v2734, 0
      %2741 = vmatpush.msra.mxu0 0.0
      %2742 = vmatpush.msra.mxu0 0.0
      %2743 = vmatpush.msra.mxu0 0.0
      %2744 = vmatpush.msra.mxu0 0.0
      %2745 = vmatpush.msra.mxu0 0.0
      %2746 = vmatpush.msra.mxu0 0.0
      %2747 = vmatpush.msra.mxu0 0.0
      %2748 = vmatpush.msra.mxu0 0.0
      %2749 = vmatpush.msra.mxu0 %v2705
      %2750 = vmatpush.msra.mxu0 %v2704
      %2751 = vmatpush.msra.mxu0 %v2703
      %2752 = vmatpush.msra.mxu0 %v2702
      %2753 = vmatpush.msra.mxu0 %v2701
      %2754 = vmatpush.msra.mxu0 %v2700
      %2755 = vmatpush.msra.mxu0 %v2699
      %2756 = vmatpush.msra.mxu0 %v2698
      %2757 = vmatmul.f32.gmra.mxu0 %v2739
      %v2758 = vpop.f32.mrf.mxu0
      %v2759 = vadd.f32 %v2736, %v2758
      %2760 = vdwg.mxu0
      %v2761 = vadd.f32 %v2689, %v2759
      %v2762 = vsel %vm1216, %v2761, 0.0
      %2763 = vadd.xlane.f32.xlu0 %v2762
      %v2764 = vpop.xlane.xlu0 %2763
      %v2765 = vmul.f32 %v2764, %v1835
      %v2766 = vsub.f32 %v2761, %v2765
      %v2767 = vmul.f32 %v2766, %v2766
      %v2768 = vsel %vm1216, %v2767, 0.0
      %2769 = vadd.xlane.f32.xlu0 %v2768
      %v2770 = vpop.xlane.xlu0 %2769
      %v2771 = vmul.f32 %v2770, %v1835
      %v2772 = vadd.f32 %v2771, 1e-05
      %v2773 = vrsqrt.pop %v2772
      %v2774 = vmul.f32 %v2773, %v2772
      %v2775 = vmul.f32 %v2774, %v2773
      %v2776 = vmul.f32 0.5, %v2775
      %v2777 = vsub.f32 1.5, %v2776
      %v2778 = vmul.f32 %v2773, %v2777
      %vm2779 = vweird.f32 %v2772
      %vm2780 = vweird.f32 %v2773
      %vm2781 = vmor %vm2779, %vm2780
      %v2782 = vsel %vm2781, %v2773, %v2778
      %v2783 = vmul.f32 %v2766, %v2782
      %v2784 = vperm.slane %v1955, 2
      %v2785 = vmul.f32 %v2783, %v2784
      %v2786 = vperm.slane %v1955, 3
      %v2787 = vadd.f32 %v2785, %v2786
      %v2788 = vld [vmem:[%s1078] sm:$0xff]
      %v2789 = vld [vmem:[%s15] sm:$0xf]
      %v2790 = vld [vmem:[%s17] sm:$0x1]
      %v2792 = vperm.slane %v2790, 0
      %v2795 = vsel %vm1089, %v2788, 0
      %v2798 = vsel %vm1093, %v2789, 0
      %2800 = vmatpush.msra.mxu0 0.0
      %2801 = vmatpush.msra.mxu0 0.0
      %2802 = vmatpush.msra.mxu0 0.0
      %2803 = vmatpush.msra.mxu0 0.0
      %2804 = vmatpush.msra.mxu0 0.0
      %2805 = vmatpush.msra.mxu0 0.0
      %2806 = vmatpush.msra.mxu0 0.0
      %2807 = vmatpush.msra.mxu0 0.0
      %2808 = vmatpush.msra.mxu0 0.0
      %2809 = vmatpush.msra.mxu0 0.0
      %2810 = vmatpush.msra.mxu0 0.0
      %2811 = vmatpush.msra.mxu0 0.0
      %2812 = vmatpush.msra.mxu0 0.0
      %2813 = vmatpush.msra.mxu0 0.0
      %2814 = vmatpush.msra.mxu0 0.0
      %2815 = vmatpush.msra.mxu0 %v2798
      %2816 = vmatmul.f32.gmra.mxu0 %v2795
      %v2817 = vpop.f32.mrf.mxu0
      %v2818 = vadd.f32 %v2792, %v2817
      %2819 = vdwg.mxu0
      %v2820 = vld [vmem:[%s7] sm:$0xff]
      %v2821 = vadd.f32 %v2818, %v2820
      %v2822 = vld [vmem:[%s9] sm:$0xff]
      %v2823 = vld [vmem:[%s65] sm:$0x3f]
      %v2824 = vld [vmem:[%s37] sm:$0xff]
      %v2825 = vld [vmem:[%s37 + $0x8] sm:$0xff]
      %v2826 = vld [vmem:[%s37 + $0x10] sm:$0xff]
      %v2827 = vld [vmem:[%s37 + $0x18] sm:$0xff]
      %v2828 = vld [vmem:[%s37 + $0x20] sm:$0xff]
      %v2829 = vld [vmem:[%s37 + $0x28] sm:$0xff]
      %v2830 = vld [vmem:[%s37 + $0x30] sm:$0xff]
      %v2831 = vld [vmem:[%s37 + $0x38] sm:$0xff]
      %v2832 = vld [vmem:[%s37 + $0x40] sm:$0xff]
      %v2833 = vld [vmem:[%s37 + $0x48] sm:$0xff]
      %v2834 = vld [vmem:[%s37 + $0x50] sm:$0xff]
      %v2835 = vld [vmem:[%s37 + $0x58] sm:$0xff]
      %v2836 = vld [vmem:[%s37 + $0x60] sm:$0xff]
      %v2837 = vld [vmem:[%s37 + $0x68] sm:$0xff]
      %v2838 = vld [vmem:[%s37 + $0x70] sm:$0xff]
      %v2839 = vld [vmem:[%s37 + $0x78] sm:$0xff]
      %v2840 = vld [vmem:[%s37 + $0x80] sm:$0xff]
      %v2841 = vld [vmem:[%s37 + $0x88] sm:$0xff]
      %v2842 = vld [vmem:[%s37 + $0x90] sm:$0xff]
      %v2843 = vld [vmem:[%s37 + $0x98] sm:$0xff]
      %v2844 = vld [vmem:[%s37 + $0xa0] sm:$0xff]
      %v2845 = vld [vmem:[%s37 + $0xa8] sm:$0xff]
      %v2846 = vld [vmem:[%s37 + $0xb0] sm:$0xff]
      %v2847 = vld [vmem:[%s37 + $0xb8] sm:$0xff]
      %v2848 = vld [vmem:[%s37 + $0xc0] sm:$0xff]
      %v2849 = vld [vmem:[%s37 + $0xc8] sm:$0xff]
      %v2850 = vld [vmem:[%s37 + $0xd0] sm:$0xff]
      %v2851 = vld [vmem:[%s37 + $0xd8] sm:$0xff]
      %v2852 = vld [vmem:[%s37 + $0xe0] sm:$0xff]
      %v2853 = vld [vmem:[%s37 + $0xe8] sm:$0xff]
      %v2854 = vld [vmem:[%s37 + $0xf0] sm:$0xff]
      %v2855 = vld [vmem:[%s37 + $0xf8] sm:$0xff]
      %v2856 = vld [vmem:[%s37 + $0x100] sm:$0xff]
      %v2857 = vld [vmem:[%s37 + $0x108] sm:$0xff]
      %v2858 = vld [vmem:[%s37 + $0x110] sm:$0xff]
      %v2859 = vld [vmem:[%s37 + $0x118] sm:$0xff]
      %v2860 = vld [vmem:[%s37 + $0x120] sm:$0xff]
      %v2861 = vld [vmem:[%s37 + $0x128] sm:$0xff]
      %v2862 = vld [vmem:[%s37 + $0x130] sm:$0xff]
      %v2863 = vld [vmem:[%s37 + $0x138] sm:$0xff]
      %v2864 = vld [vmem:[%s37 + $0x140] sm:$0xff]
      %v2865 = vld [vmem:[%s37 + $0x148] sm:$0xff]
      %v2866 = vld [vmem:[%s37 + $0x150] sm:$0xff]
      %v2867 = vld [vmem:[%s37 + $0x158] sm:$0xff]
      %v2868 = vld [vmem:[%s37 + $0x160] sm:$0xff]
      %v2869 = vld [vmem:[%s37 + $0x168] sm:$0xff]
      %v2870 = vld [vmem:[%s37 + $0x170] sm:$0xff]
      %v2871 = vld [vmem:[%s37 + $0x178] sm:$0xff]
      %v2872 = vld [vmem:[%s39] sm:$0x1]
      %v2873 = vld [vmem:[%s39 + $0x1] sm:$0x1]
      %v2874 = vld [vmem:[%s39 + $0x2] sm:$0x1]
      %v2875 = vld [vmem:[%s39 + $0x3] sm:$0x1]
      %v2876 = vld [vmem:[%s39 + $0x4] sm:$0x1]
      %v2877 = vld [vmem:[%s39 + $0x5] sm:$0x1]
      %v2878 = vld [vmem:[%s39 + $0x6] sm:$0x1]
      %v2879 = vld [vmem:[%s39 + $0x7] sm:$0x1]
      %v2880 = vld [vmem:[%s39 + $0x8] sm:$0x1]
      %v2881 = vld [vmem:[%s39 + $0x9] sm:$0x1]
      %v2882 = vld [vmem:[%s39 + $0xa] sm:$0x1]
      %v2883 = vld [vmem:[%s39 + $0xb] sm:$0x1]
      %v2896 = vperm.slane %v2872, 0
      %v2897 = vperm.slane %v2873, 0
      %v2898 = vperm.slane %v2874, 0
      %v2899 = vperm.slane %v2875, 0
      %v2900 = vperm.slane %v2876, 0
      %v2901 = vperm.slane %v2877, 0
      %v2902 = vperm.slane %v2878, 0
      %v2903 = vperm.slane %v2879, 0
      %v2904 = vperm.slane %v2880, 0
      %v2905 = vperm.slane %v2881, 0
      %v2906 = vperm.slane %v2882, 0
      %v2907 = vperm.slane %v2883, 0
      %v2921 = vsel %vm1216, %v2821, 0
      %2923 = vmatpush.msra.mxu0 0.0
      %2924 = vmatpush.msra.mxu0 0.0
      %2925 = vmatpush.msra.mxu0 0.0
      %2926 = vmatpush.msra.mxu0 0.0
      %2927 = vmatpush.msra.mxu0 0.0
      %2928 = vmatpush.msra.mxu0 0.0
      %2929 = vmatpush.msra.mxu0 0.0
      %2930 = vmatpush.msra.mxu0 0.0
      %2931 = vmatpush.msra.mxu0 0.0
      %2932 = vmatpush.msra.mxu0 0.0
      %2933 = vmatpush.msra.mxu0 0.0
      %2934 = vmatpush.msra.mxu0 0.0
      %2935 = vmatpush.msra.mxu0 %v2827
      %2936 = vmatpush.msra.mxu0 %v2826
      %2937 = vmatpush.msra.mxu0 %v2825
      %2938 = vmatpush.msra.mxu0 %v2824
      %2939 = vmatmul.f32.gmra.mxu0 %v2921
      %v2940 = vpop.f32.mrf.mxu0
      %v2941 = vadd.f32 %v2896, %v2940
      %2942 = vdwg.mxu0
      %2943 = vmatpush.msra.mxu0 0.0
      %2944 = vmatpush.msra.mxu0 0.0
      %2945 = vmatpush.msra.mxu0 0.0
      %2946 = vmatpush.msra.mxu0 0.0
      %2947 = vmatpush.msra.mxu0 0.0
      %2948 = vmatpush.msra.mxu0 0.0
      %2949 = vmatpush.msra.mxu0 0.0
      %2950 = vmatpush.msra.mxu0 0.0
      %2951 = vmatpush.msra.mxu0 0.0
      %2952 = vmatpush.msra.mxu0 0.0
      %2953 = vmatpush.msra.mxu0 0.0
      %2954 = vmatpush.msra.mxu0 0.0
      %2955 = vmatpush.msra.mxu0 %v2831
      %2956 = vmatpush.msra.mxu0 %v2830
      %2957 = vmatpush.msra.mxu0 %v2829
      %2958 = vmatpush.msra.mxu0 %v2828
      %2959 = vmatmul.f32.gmra.mxu0 %v2921
      %v2960 = vpop.f32.mrf.mxu0
      %v2961 = vadd.f32 %v2897, %v2960
      %2962 = vdwg.mxu0
      %2963 = vmatpush.msra.mxu0 0.0
      %2964 = vmatpush.msra.mxu0 0.0
      %2965 = vmatpush.msra.mxu0 0.0
      %2966 = vmatpush.msra.mxu0 0.0
      %2967 = vmatpush.msra.mxu0 0.0
      %2968 = vmatpush.msra.mxu0 0.0
      %2969 = vmatpush.msra.mxu0 0.0
      %2970 = vmatpush.msra.mxu0 0.0
      %2971 = vmatpush.msra.mxu0 0.0
      %2972 = vmatpush.msra.mxu0 0.0
      %2973 = vmatpush.msra.mxu0 0.0
      %2974 = vmatpush.msra.mxu0 0.0
      %2975 = vmatpush.msra.mxu0 %v2835
      %2976 = vmatpush.msra.mxu0 %v2834
      %2977 = vmatpush.msra.mxu0 %v2833
      %2978 = vmatpush.msra.mxu0 %v2832
      %2979 = vmatmul.f32.gmra.mxu0 %v2921
      %v2980 = vpop.f32.mrf.mxu0
      %v2981 = vadd.f32 %v2898, %v2980
      %2982 = vdwg.mxu0
      %2983 = vmatpush.msra.mxu0 0.0
      %2984 = vmatpush.msra.mxu0 0.0
      %2985 = vmatpush.msra.mxu0 0.0
      %2986 = vmatpush.msra.mxu0 0.0
      %2987 = vmatpush.msra.mxu0 0.0
      %2988 = vmatpush.msra.mxu0 0.0
      %2989 = vmatpush.msra.mxu0 0.0
      %2990 = vmatpush.msra.mxu0 0.0
      %2991 = vmatpush.msra.mxu0 0.0
      %2992 = vmatpush.msra.mxu0 0.0
      %2993 = vmatpush.msra.mxu0 0.0
      %2994 = vmatpush.msra.mxu0 0.0
      %2995 = vmatpush.msra.mxu0 %v2839
      %2996 = vmatpush.msra.mxu0 %v2838
      %2997 = vmatpush.msra.mxu0 %v2837
      %2998 = vmatpush.msra.mxu0 %v2836
      %2999 = vmatmul.f32.gmra.mxu0 %v2921
      %v3000 = vpop.f32.mrf.mxu0
      %v3001 = vadd.f32 %v2899, %v3000
      %3002 = vdwg.mxu0
      %3003 = vmatpush.msra.mxu0 0.0
      %3004 = vmatpush.msra.mxu0 0.0
      %3005 = vmatpush.msra.mxu0 0.0
      %3006 = vmatpush.msra.mxu0 0.0
      %3007 = vmatpush.msra.mxu0 0.0
      %3008 = vmatpush.msra.mxu0 0.0
      %3009 = vmatpush.msra.mxu0 0.0
      %3010 = vmatpush.msra.mxu0 0.0
      %3011 = vmatpush.msra.mxu0 0.0
      %3012 = vmatpush.msra.mxu0 0.0
      %3013 = vmatpush.msra.mxu0 0.0
      %3014 = vmatpush.msra.mxu0 0.0
      %3015 = vmatpush.msra.mxu0 %v2843
      %3016 = vmatpush.msra.mxu0 %v2842
      %3017 = vmatpush.msra.mxu0 %v2841
      %3018 = vmatpush.msra.mxu0 %v2840
      %3019 = vmatmul.f32.gmra.mxu0 %v2921
      %v3020 = vpop.f32.mrf.mxu0
      %v3021 = vadd.f32 %v2900, %v3020
      %3022 = vdwg.mxu0
      %3023 = vmatpush.msra.mxu0 0.0
      %3024 = vmatpush.msra.mxu0 0.0
      %3025 = vmatpush.msra.mxu0 0.0
      %3026 = vmatpush.msra.mxu0 0.0
      %3027 = vmatpush.msra.mxu0 0.0
      %3028 = vmatpush.msra.mxu0 0.0
      %3029 = vmatpush.msra.mxu0 0.0
      %3030 = vmatpush.msra.mxu0 0.0
      %3031 = vmatpush.msra.mxu0 0.0
      %3032 = vmatpush.msra.mxu0 0.0
      %3033 = vmatpush.msra.mxu0 0.0
      %3034 = vmatpush.msra.mxu0 0.0
      %3035 = vmatpush.msra.mxu0 %v2847
      %3036 = vmatpush.msra.mxu0 %v2846
      %3037 = vmatpush.msra.mxu0 %v2845
      %3038 = vmatpush.msra.mxu0 %v2844
      %3039 = vmatmul.f32.gmra.mxu0 %v2921
      %v3040 = vpop.f32.mrf.mxu0
      %v3041 = vadd.f32 %v2901, %v3040
      %3042 = vdwg.mxu0
      %3043 = vmatpush.msra.mxu0 0.0
      %3044 = vmatpush.msra.mxu0 0.0
      %3045 = vmatpush.msra.mxu0 0.0
      %3046 = vmatpush.msra.mxu0 0.0
      %3047 = vmatpush.msra.mxu0 0.0
      %3048 = vmatpush.msra.mxu0 0.0
      %3049 = vmatpush.msra.mxu0 0.0
      %3050 = vmatpush.msra.mxu0 0.0
      %3051 = vmatpush.msra.mxu0 0.0
      %3052 = vmatpush.msra.mxu0 0.0
      %3053 = vmatpush.msra.mxu0 0.0
      %3054 = vmatpush.msra.mxu0 0.0
      %3055 = vmatpush.msra.mxu0 %v2851
      %3056 = vmatpush.msra.mxu0 %v2850
      %3057 = vmatpush.msra.mxu0 %v2849
      %3058 = vmatpush.msra.mxu0 %v2848
      %3059 = vmatmul.f32.gmra.mxu0 %v2921
      %v3060 = vpop.f32.mrf.mxu0
      %v3061 = vadd.f32 %v2902, %v3060
      %3062 = vdwg.mxu0
      %3063 = vmatpush.msra.mxu0 0.0
      %3064 = vmatpush.msra.mxu0 0.0
      %3065 = vmatpush.msra.mxu0 0.0
      %3066 = vmatpush.msra.mxu0 0.0
      %3067 = vmatpush.msra.mxu0 0.0
      %3068 = vmatpush.msra.mxu0 0.0
      %3069 = vmatpush.msra.mxu0 0.0
      %3070 = vmatpush.msra.mxu0 0.0
      %3071 = vmatpush.msra.mxu0 0.0
      %3072 = vmatpush.msra.mxu0 0.0
      %3073 = vmatpush.msra.mxu0 0.0
      %3074 = vmatpush.msra.mxu0 0.0
      %3075 = vmatpush.msra.mxu0 %v2855
      %3076 = vmatpush.msra.mxu0 %v2854
      %3077 = vmatpush.msra.mxu0 %v2853
      %3078 = vmatpush.msra.mxu0 %v2852
      %3079 = vmatmul.f32.gmra.mxu0 %v2921
      %v3080 = vpop.f32.mrf.mxu0
      %v3081 = vadd.f32 %v2903, %v3080
      %3082 = vdwg.mxu0
      %3083 = vmatpush.msra.mxu0 0.0
      %3084 = vmatpush.msra.mxu0 0.0
      %3085 = vmatpush.msra.mxu0 0.0
      %3086 = vmatpush.msra.mxu0 0.0
      %3087 = vmatpush.msra.mxu0 0.0
      %3088 = vmatpush.msra.mxu0 0.0
      %3089 = vmatpush.msra.mxu0 0.0
      %3090 = vmatpush.msra.mxu0 0.0
      %3091 = vmatpush.msra.mxu0 0.0
      %3092 = vmatpush.msra.mxu0 0.0
      %3093 = vmatpush.msra.mxu0 0.0
      %3094 = vmatpush.msra.mxu0 0.0
      %3095 = vmatpush.msra.mxu0 %v2859
      %3096 = vmatpush.msra.mxu0 %v2858
      %3097 = vmatpush.msra.mxu0 %v2857
      %3098 = vmatpush.msra.mxu0 %v2856
      %3099 = vmatmul.f32.gmra.mxu0 %v2921
      %v3100 = vpop.f32.mrf.mxu0
      %v3101 = vadd.f32 %v2904, %v3100
      %3102 = vdwg.mxu0
      %3103 = vmatpush.msra.mxu0 0.0
      %3104 = vmatpush.msra.mxu0 0.0
      %3105 = vmatpush.msra.mxu0 0.0
      %3106 = vmatpush.msra.mxu0 0.0
      %3107 = vmatpush.msra.mxu0 0.0
      %3108 = vmatpush.msra.mxu0 0.0
      %3109 = vmatpush.msra.mxu0 0.0
      %3110 = vmatpush.msra.mxu0 0.0
      %3111 = vmatpush.msra.mxu0 0.0
      %3112 = vmatpush.msra.mxu0 0.0
      %3113 = vmatpush.msra.mxu0 0.0
      %3114 = vmatpush.msra.mxu0 0.0
      %3115 = vmatpush.msra.mxu0 %v2863
      %3116 = vmatpush.msra.mxu0 %v2862
      %3117 = vmatpush.msra.mxu0 %v2861
      %3118 = vmatpush.msra.mxu0 %v2860
      %3119 = vmatmul.f32.gmra.mxu0 %v2921
      %v3120 = vpop.f32.mrf.mxu0
      %v3121 = vadd.f32 %v2905, %v3120
      %3122 = vdwg.mxu0
      %3123 = vmatpush.msra.mxu0 0.0
      %3124 = vmatpush.msra.mxu0 0.0
      %3125 = vmatpush.msra.mxu0 0.0
      %3126 = vmatpush.msra.mxu0 0.0
      %3127 = vmatpush.msra.mxu0 0.0
      %3128 = vmatpush.msra.mxu0 0.0
      %3129 = vmatpush.msra.mxu0 0.0
      %3130 = vmatpush.msra.mxu0 0.0
      %3131 = vmatpush.msra.mxu0 0.0
      %3132 = vmatpush.msra.mxu0 0.0
      %3133 = vmatpush.msra.mxu0 0.0
      %3134 = vmatpush.msra.mxu0 0.0
      %3135 = vmatpush.msra.mxu0 %v2867
      %3136 = vmatpush.msra.mxu0 %v2866
      %3137 = vmatpush.msra.mxu0 %v2865
      %3138 = vmatpush.msra.mxu0 %v2864
      %3139 = vmatmul.f32.gmra.mxu0 %v2921
      %v3140 = vpop.f32.mrf.mxu0
      %v3141 = vadd.f32 %v2906, %v3140
      %3142 = vdwg.mxu0
      %3143 = vmatpush.msra.mxu0 0.0
      %3144 = vmatpush.msra.mxu0 0.0
      %3145 = vmatpush.msra.mxu0 0.0
      %3146 = vmatpush.msra.mxu0 0.0
      %3147 = vmatpush.msra.mxu0 0.0
      %3148 = vmatpush.msra.mxu0 0.0
      %3149 = vmatpush.msra.mxu0 0.0
      %3150 = vmatpush.msra.mxu0 0.0
      %3151 = vmatpush.msra.mxu0 0.0
      %3152 = vmatpush.msra.mxu0 0.0
      %3153 = vmatpush.msra.mxu0 0.0
      %3154 = vmatpush.msra.mxu0 0.0
      %3155 = vmatpush.msra.mxu0 %v2871
      %3156 = vmatpush.msra.mxu0 %v2870
      %3157 = vmatpush.msra.mxu0 %v2869
      %3158 = vmatpush.msra.mxu0 %v2868
      %3159 = vmatmul.f32.gmra.mxu0 %v2921
      %v3160 = vpop.f32.mrf.mxu0
      %v3161 = vadd.f32 %v2907, %v3160
      %3162 = vdwg.mxu0
      %v3163 = vld [vmem:[%s41] sm:$0xff]
      %v3164 = vld [vmem:[%s41 + $0x8] sm:$0xff]
      %v3165 = vld [vmem:[%s41 + $0x10] sm:$0xff]
      %v3166 = vld [vmem:[%s41 + $0x18] sm:$0xff]
      %v3167 = vld [vmem:[%s43] sm:$0x1]
      %v3169 = vsel %vm1465, %v2941, 0
      %v3172 = vsel %vm1465, %v3021, 0
      %3174 = vmatpush.xpose.msra.mxu0 0.0
      %3175 = vmatpush.xpose.msra.mxu0 0.0
      %3176 = vmatpush.xpose.msra.mxu0 0.0
      %3177 = vmatpush.xpose.msra.mxu0 0.0
      %3178 = vmatpush.xpose.msra.mxu0 0.0
      %3179 = vmatpush.xpose.msra.mxu0 0.0
      %3180 = vmatpush.xpose.msra.mxu0 0.0
      %3181 = vmatpush.xpose.msra.mxu0 0.0
      %3182 = vmatpush.xpose.msra.mxu0 0.0
      %3183 = vmatpush.xpose.msra.mxu0 0.0
      %3184 = vmatpush.xpose.msra.mxu0 0.0
      %3185 = vmatpush.xpose.msra.mxu0 0.0
      %3186 = vmatpush.xpose.msra.mxu0 0.0
      %3187 = vmatpush.xpose.msra.mxu0 0.0
      %3188 = vmatpush.xpose.msra.mxu0 0.0
      %3189 = vmatpush.xpose.msra.mxu0 %v3172
      %3190 = vmatmul.f32.gmra.mxu0 %v3169
      %v3191 = vpop.f32.mrf.mxu0
      %v3192 = vadd.f32 %v2822, %v3191
      %3193 = vdwg.mxu0
      %v3195 = vsel %vm1465, %v2961, 0
      %v3198 = vsel %vm1465, %v3041, 0
      %3200 = vmatpush.xpose.msra.mxu0 0.0
      %3201 = vmatpush.xpose.msra.mxu0 0.0
      %3202 = vmatpush.xpose.msra.mxu0 0.0
      %3203 = vmatpush.xpose.msra.mxu0 0.0
      %3204 = vmatpush.xpose.msra.mxu0 0.0
      %3205 = vmatpush.xpose.msra.mxu0 0.0
      %3206 = vmatpush.xpose.msra.mxu0 0.0
      %3207 = vmatpush.xpose.msra.mxu0 0.0
      %3208 = vmatpush.xpose.msra.mxu0 0.0
      %3209 = vmatpush.xpose.msra.mxu0 0.0
      %3210 = vmatpush.xpose.msra.mxu0 0.0
      %3211 = vmatpush.xpose.msra.mxu0 0.0
      %3212 = vmatpush.xpose.msra.mxu0 0.0
      %3213 = vmatpush.xpose.msra.mxu0 0.0
      %3214 = vmatpush.xpose.msra.mxu0 0.0
      %3215 = vmatpush.xpose.msra.mxu0 %v3198
      %3216 = vmatmul.f32.gmra.mxu0 %v3195
      %v3217 = vpop.f32.mrf.mxu0
      %v3218 = vadd.f32 %v2822, %v3217
      %3219 = vdwg.mxu0
      %v3221 = vsel %vm1465, %v2981, 0
      %v3224 = vsel %vm1465, %v3061, 0
      %3226 = vmatpush.xpose.msra.mxu0 0.0
      %3227 = vmatpush.xpose.msra.mxu0 0.0
      %3228 = vmatpush.xpose.msra.mxu0 0.0
      %3229 = vmatpush.xpose.msra.mxu0 0.0
      %3230 = vmatpush.xpose.msra.mxu0 0.0
      %3231 = vmatpush.xpose.msra.mxu0 0.0
      %3232 = vmatpush.xpose.msra.mxu0 0.0
      %3233 = vmatpush.xpose.msra.mxu0 0.0
      %3234 = vmatpush.xpose.msra.mxu0 0.0
      %3235 = vmatpush.xpose.msra.mxu0 0.0
      %3236 = vmatpush.xpose.msra.mxu0 0.0
      %3237 = vmatpush.xpose.msra.mxu0 0.0
      %3238 = vmatpush.xpose.msra.mxu0 0.0
      %3239 = vmatpush.xpose.msra.mxu0 0.0
      %3240 = vmatpush.xpose.msra.mxu0 0.0
      %3241 = vmatpush.xpose.msra.mxu0 %v3224
      %3242 = vmatmul.f32.gmra.mxu0 %v3221
      %v3243 = vpop.f32.mrf.mxu0
      %v3244 = vadd.f32 %v2822, %v3243
      %3245 = vdwg.mxu0
      %v3247 = vsel %vm1465, %v3001, 0
      %v3250 = vsel %vm1465, %v3081, 0
      %3252 = vmatpush.xpose.msra.mxu0 0.0
      %3253 = vmatpush.xpose.msra.mxu0 0.0
      %3254 = vmatpush.xpose.msra.mxu0 0.0
      %3255 = vmatpush.xpose.msra.mxu0 0.0
      %3256 = vmatpush.xpose.msra.mxu0 0.0
      %3257 = vmatpush.xpose.msra.mxu0 0.0
      %3258 = vmatpush.xpose.msra.mxu0 0.0
      %3259 = vmatpush.xpose.msra.mxu0 0.0
      %3260 = vmatpush.xpose.msra.mxu0 0.0
      %3261 = vmatpush.xpose.msra.mxu0 0.0
      %3262 = vmatpush.xpose.msra.mxu0 0.0
      %3263 = vmatpush.xpose.msra.mxu0 0.0
      %3264 = vmatpush.xpose.msra.mxu0 0.0
      %3265 = vmatpush.xpose.msra.mxu0 0.0
      %3266 = vmatpush.xpose.msra.mxu0 0.0
      %3267 = vmatpush.xpose.msra.mxu0 %v3250
      %3268 = vmatmul.f32.gmra.mxu0 %v3247
      %v3269 = vpop.f32.mrf.mxu0
      %v3270 = vadd.f32 %v2822, %v3269
      %3271 = vdwg.mxu0
      %v3272 = vsel %vm1465, %v3192, -inf
      %3273 = vmax.xlane.f32.xlu0 %v3272
      %v3274 = vpop.xlane.xlu0 %3273
      %v3275 = vsel %vm1465, %v3218, -inf
      %3276 = vmax.xlane.f32.xlu0 %v3275
      %v3277 = vpop.xlane.xlu0 %3276
      %v3278 = vsel %vm1465, %v3244, -inf
      %3279 = vmax.xlane.f32.xlu0 %v3278
      %v3280 = vpop.xlane.xlu0 %3279
      %v3281 = vsel %vm1465, %v3270, -inf
      %3282 = vmax.xlane.f32.xlu0 %v3281
      %v3283 = vpop.xlane.xlu0 %3282
      %v3284 = vsub.f32 %v3192, %v3274
      %v3285 = vsub.f32 %v3218, %v3277
      %v3286 = vsub.f32 %v3244, %v3280
      %v3287 = vsub.f32 %v3270, %v3283
      %v3288 = vmul.f32 %v3284, 1.442695
      %v3289 = vpow.pop %v3288
      %v3290 = vmul.f32 %v3285, 1.442695
      %v3291 = vpow.pop %v3290
      %v3292 = vmul.f32 %v3286, 1.442695
      %v3293 = vpow.pop %v3292
      %v3294 = vmul.f32 %v3287, 1.442695
      %v3295 = vpow.pop %v3294
      %v3296 = vsel %vm1465, %v3289, 0.0
      %3297 = vadd.xlane.f32.xlu0 %v3296
      %v3298 = vpop.xlane.xlu0 %3297
      %v3299 = vsel %vm1465, %v3291, 0.0
      %3300 = vadd.xlane.f32.xlu0 %v3299
      %v3301 = vpop.xlane.xlu0 %3300
      %v3302 = vsel %vm1465, %v3293, 0.0
      %3303 = vadd.xlane.f32.xlu0 %v3302
      %v3304 = vpop.xlane.xlu0 %3303
      %v3305 = vsel %vm1465, %v3295, 0.0
      %3306 = vadd.xlane.f32.xlu0 %v3305
      %v3307 = vpop.xlane.xlu0 %3306
      %v3308 = vmax.f32 %v3298, 1e-30
      %v3309 = vmax.f32 %v3301, 1e-30
      %v3310 = vmax.f32 %v3304, 1e-30
      %v3311 = vmax.f32 %v3307, 1e-30
      %v3312 = vrcp.pop %v3308
      %v3313 = vrcp.pop %v3309
      %v3314 = vrcp.pop %v3310
      %v3315 = vrcp.pop %v3311
      %v3316 = vmul.f32 %v3298, %v3312
      %v3317 = vmul.f32 %v3301, %v3313
      %v3318 = vmul.f32 %v3304, %v3314
      %v3319 = vmul.f32 %v3307, %v3315
      %v3320 = vsub.f32 2.0, %v3316
      %v3321 = vsub.f32 2.0, %v3317
      %v3322 = vsub.f32 2.0, %v3318
      %v3323 = vsub.f32 2.0, %v3319
      %v3324 = vmul.f32 %v3312, %v3320
      %v3325 = vmul.f32 %v3313, %v3321
      %v3326 = vmul.f32 %v3314, %v3322
      %v3327 = vmul.f32 %v3315, %v3323
      %v3328 = vmul.f32 %v3289, %v3324
      %v3329 = vmul.f32 %v3291, %v3325
      %v3330 = vmul.f32 %v3293, %v3326
      %v3331 = vmul.f32 %v3295, %v3327
      %v3333 = vsel %vm1465, %v3328, 0
      %3335 = vmatpush.msra.mxu0 0.0
      %3336 = vmatpush.msra.mxu0 0.0
      %3337 = vmatpush.msra.mxu0 0.0
      %3338 = vmatpush.msra.mxu0 0.0
      %3339 = vmatpush.msra.mxu0 0.0
      %3340 = vmatpush.msra.mxu0 0.0
      %3341 = vmatpush.msra.mxu0 0.0
      %3342 = vmatpush.msra.mxu0 0.0
      %3343 = vmatpush.msra.mxu0 0.0
      %3344 = vmatpush.msra.mxu0 0.0
      %3345 = vmatpush.msra.mxu0 0.0
      %3346 = vmatpush.msra.mxu0 0.0
      %3347 = vmatpush.msra.mxu0 0.0
      %3348 = vmatpush.msra.mxu0 0.0
      %3349 = vmatpush.msra.mxu0 0.0
      %3350 = vmatpush.msra.mxu0 %v3101
      %3351 = vmatmul.f32.gmra.mxu0 %v3333
      %v3352 = vpop.f32.mrf.mxu0
      %v3353 = vadd.f32 0.0, %v3352
      %3354 = vdwg.mxu0
      %v3356 = vsel %vm1465, %v3329, 0
      %3358 = vmatpush.msra.mxu0 0.0
      %3359 = vmatpush.msra.mxu0 0.0
      %3360 = vmatpush.msra.mxu0 0.0
      %3361 = vmatpush.msra.mxu0 0.0
      %3362 = vmatpush.msra.mxu0 0.0
      %3363 = vmatpush.msra.mxu0 0.0
      %3364 = vmatpush.msra.mxu0 0.0
      %3365 = vmatpush.msra.mxu0 0.0
      %3366 = vmatpush.msra.mxu0 0.0
      %3367 = vmatpush.msra.mxu0 0.0
      %3368 = vmatpush.msra.mxu0 0.0
      %3369 = vmatpush.msra.mxu0 0.0
      %3370 = vmatpush.msra.mxu0 0.0
      %3371 = vmatpush.msra.mxu0 0.0
      %3372 = vmatpush.msra.mxu0 0.0
      %3373 = vmatpush.msra.mxu0 %v3121
      %3374 = vmatmul.f32.gmra.mxu0 %v3356
      %v3375 = vpop.f32.mrf.mxu0
      %v3376 = vadd.f32 0.0, %v3375
      %3377 = vdwg.mxu0
      %v3379 = vsel %vm1465, %v3330, 0
      %3381 = vmatpush.msra.mxu0 0.0
      %3382 = vmatpush.msra.mxu0 0.0
      %3383 = vmatpush.msra.mxu0 0.0
      %3384 = vmatpush.msra.mxu0 0.0
      %3385 = vmatpush.msra.mxu0 0.0
      %3386 = vmatpush.msra.mxu0 0.0
      %3387 = vmatpush.msra.mxu0 0.0
      %3388 = vmatpush.msra.mxu0 0.0
      %3389 = vmatpush.msra.mxu0 0.0
      %3390 = vmatpush.msra.mxu0 0.0
      %3391 = vmatpush.msra.mxu0 0.0
      %3392 = vmatpush.msra.mxu0 0.0
      %3393 = vmatpush.msra.mxu0 0.0
      %3394 = vmatpush.msra.mxu0 0.0
      %3395 = vmatpush.msra.mxu0 0.0
      %3396 = vmatpush.msra.mxu0 %v3141
      %3397 = vmatmul.f32.gmra.mxu0 %v3379
      %v3398 = vpop.f32.mrf.mxu0
      %v3399 = vadd.f32 0.0, %v3398
      %3400 = vdwg.mxu0
      %v3402 = vsel %vm1465, %v3331, 0
      %3404 = vmatpush.msra.mxu0 0.0
      %3405 = vmatpush.msra.mxu0 0.0
      %3406 = vmatpush.msra.mxu0 0.0
      %3407 = vmatpush.msra.mxu0 0.0
      %3408 = vmatpush.msra.mxu0 0.0
      %3409 = vmatpush.msra.mxu0 0.0
      %3410 = vmatpush.msra.mxu0 0.0
      %3411 = vmatpush.msra.mxu0 0.0
      %3412 = vmatpush.msra.mxu0 0.0
      %3413 = vmatpush.msra.mxu0 0.0
      %3414 = vmatpush.msra.mxu0 0.0
      %3415 = vmatpush.msra.mxu0 0.0
      %3416 = vmatpush.msra.mxu0 0.0
      %3417 = vmatpush.msra.mxu0 0.0
      %3418 = vmatpush.msra.mxu0 0.0
      %3419 = vmatpush.msra.mxu0 %v3161
      %3420 = vmatmul.f32.gmra.mxu0 %v3402
      %v3421 = vpop.f32.mrf.mxu0
      %v3422 = vadd.f32 0.0, %v3421
      %3423 = vdwg.mxu0
      %v3425 = vsel %vm1465, %v3353, 0
      %3427 = vmatpush.msra.mxu0 0.0
      %3428 = vmatpush.msra.mxu0 0.0
      %3429 = vmatpush.msra.mxu0 0.0
      %3430 = vmatpush.msra.mxu0 0.0
      %3431 = vmatpush.msra.mxu0 0.0
      %3432 = vmatpush.msra.mxu0 0.0
      %3433 = vmatpush.msra.mxu0 0.0
      %3434 = vmatpush.msra.mxu0 0.0
      %3435 = vmatpush.msra.mxu0 0.0
      %3436 = vmatpush.msra.mxu0 0.0
      %3437 = vmatpush.msra.mxu0 0.0
      %3438 = vmatpush.msra.mxu0 0.0
      %3439 = vmatpush.msra.mxu0 0.0
      %3440 = vmatpush.msra.mxu0 0.0
      %3441 = vmatpush.msra.mxu0 0.0
      %3442 = vmatpush.msra.mxu0 %v3163
      %3443 = vmatmul.f32.gmra.mxu0 %v3425
      %v3444 = vpop.f32.mrf.mxu0
      %v3445 = vadd.f32 0.0, %v3444
      %3446 = vdwg.mxu0
      %v3448 = vsel %vm1465, %v3376, 0
      %3450 = vmatpush.msra.mxu0 0.0
      %3451 = vmatpush.msra.mxu0 0.0
      %3452 = vmatpush.msra.mxu0 0.0
      %3453 = vmatpush.msra.mxu0 0.0
      %3454 = vmatpush.msra.mxu0 0.0
      %3455 = vmatpush.msra.mxu0 0.0
      %3456 = vmatpush.msra.mxu0 0.0
      %3457 = vmatpush.msra.mxu0 0.0
      %3458 = vmatpush.msra.mxu0 0.0
      %3459 = vmatpush.msra.mxu0 0.0
      %3460 = vmatpush.msra.mxu0 0.0
      %3461 = vmatpush.msra.mxu0 0.0
      %3462 = vmatpush.msra.mxu0 0.0
      %3463 = vmatpush.msra.mxu0 0.0
      %3464 = vmatpush.msra.mxu0 0.0
      %3465 = vmatpush.msra.mxu0 %v3164
      %3466 = vmatmul.f32.gmra.mxu0 %v3448
      %v3467 = vpop.f32.mrf.mxu0
      %v3468 = vadd.f32 0.0, %v3467
      %3469 = vdwg.mxu0
      %v3471 = vsel %vm1465, %v3399, 0
      %3473 = vmatpush.msra.mxu0 0.0
      %3474 = vmatpush.msra.mxu0 0.0
      %3475 = vmatpush.msra.mxu0 0.0
      %3476 = vmatpush.msra.mxu0 0.0
      %3477 = vmatpush.msra.mxu0 0.0
      %3478 = vmatpush.msra.mxu0 0.0
      %3479 = vmatpush.msra.mxu0 0.0
      %3480 = vmatpush.msra.mxu0 0.0
      %3481 = vmatpush.msra.mxu0 0.0
      %3482 = vmatpush.msra.mxu0 0.0
      %3483 = vmatpush.msra.mxu0 0.0
      %3484 = vmatpush.msra.mxu0 0.0
      %3485 = vmatpush.msra.mxu0 0.0
      %3486 = vmatpush.msra.mxu0 0.0
      %3487 = vmatpush.msra.mxu0 0.0
      %3488 = vmatpush.msra.mxu0 %v3165
      %3489 = vmatmul.f32.gmra.mxu0 %v3471
      %v3490 = vpop.f32.mrf.mxu0
      %v3491 = vadd.f32 0.0, %v3490
      %3492 = vdwg.mxu0
      %v3494 = vsel %vm1465, %v3422, 0
      %3496 = vmatpush.msra.mxu0 0.0
      %3497 = vmatpush.msra.mxu0 0.0
      %3498 = vmatpush.msra.mxu0 0.0
      %3499 = vmatpush.msra.mxu0 0.0
      %3500 = vmatpush.msra.mxu0 0.0
      %3501 = vmatpush.msra.mxu0 0.0
      %3502 = vmatpush.msra.mxu0 0.0
      %3503 = vmatpush.msra.mxu0 0.0
      %3504 = vmatpush.msra.mxu0 0.0
      %3505 = vmatpush.msra.mxu0 0.0
      %3506 = vmatpush.msra.mxu0 0.0
      %3507 = vmatpush.msra.mxu0 0.0
      %3508 = vmatpush.msra.mxu0 0.0
      %3509 = vmatpush.msra.mxu0 0.0
      %3510 = vmatpush.msra.mxu0 0.0
      %3511 = vmatpush.msra.mxu0 %v3166
      %3512 = vmatmul.f32.gmra.mxu0 %v3494
      %v3513 = vpop.f32.mrf.mxu0
      %v3514 = vadd.f32 0.0, %v3513
      %3515 = vdwg.mxu0
      %v3516 = vsel %vm1216, %v3445, 0.0
      %v3517 = vsel %vm1216, %v3468, 0.0
      %v3518 = vadd.f32 %v3516, %v3517
      %v3519 = vsel %vm1216, %v3491, 0.0
      %v3520 = vadd.f32 %v3518, %v3519
      %v3521 = vsel %vm1216, %v3514, 0.0
      %v3522 = vadd.f32 %v3520, %v3521
      %v3524 = vperm.slane %v3167, 0
      %v3526 = vadd.f32 %v3522, %v3524
      %v3527 = vadd.f32 %v2821, %v3526
      %v3528 = vsel %vm1216, %v3527, 0.0
      %3529 = vadd.xlane.f32.xlu0 %v3528
      %v3530 = vpop.xlane.xlu0 %3529
      %v3531 = vmul.f32 %v3530, %v1835
      %v3532 = vsub.f32 %v3527, %v3531
      %v3533 = vmul.f32 %v3532, %v3532
      %v3534 = vsel %vm1216, %v3533, 0.0
      %3535 = vadd.xlane.f32.xlu0 %v3534
      %v3536 = vpop.xlane.xlu0 %3535
      %v3537 = vmul.f32 %v3536, %v1835
      %v3538 = vadd.f32 %v3537, 1e-05
      %v3539 = vrsqrt.pop %v3538
      %v3540 = vmul.f32 %v3539, %v3538
      %v3541 = vmul.f32 %v3540, %v3539
      %v3542 = vmul.f32 0.5, %v3541
      %v3543 = vsub.f32 1.5, %v3542
      %v3544 = vmul.f32 %v3539, %v3543
      %vm3545 = vweird.f32 %v3538
      %vm3546 = vweird.f32 %v3539
      %vm3547 = vmor %vm3545, %vm3546
      %v3548 = vsel %vm3547, %v3539, %v3544
      %v3549 = vmul.f32 %v3532, %v3548
      %v3550 = vperm.slane %v2823, 0
      %v3551 = vmul.f32 %v3549, %v3550
      %v3552 = vperm.slane %v2823, 1
      %v3553 = vadd.f32 %v3551, %v3552
      %v3554 = vld [vmem:[%s45] sm:$0xff]
      %v3555 = vld [vmem:[%s45 + $0x8] sm:$0xff]
      %v3556 = vld [vmem:[%s45 + $0x10] sm:$0xff]
      %v3557 = vld [vmem:[%s45 + $0x18] sm:$0xff]
      %v3558 = vld [vmem:[%s45 + $0x20] sm:$0xff]
      %v3559 = vld [vmem:[%s45 + $0x28] sm:$0xff]
      %v3560 = vld [vmem:[%s45 + $0x30] sm:$0xff]
      %v3561 = vld [vmem:[%s45 + $0x38] sm:$0xff]
      %v3562 = vld [vmem:[%s45 + $0x40] sm:$0xff]
      %v3563 = vld [vmem:[%s45 + $0x48] sm:$0xff]
      %v3564 = vld [vmem:[%s45 + $0x50] sm:$0xff]
      %v3565 = vld [vmem:[%s45 + $0x58] sm:$0xff]
      %v3566 = vld [vmem:[%s45 + $0x60] sm:$0xff]
      %v3567 = vld [vmem:[%s45 + $0x68] sm:$0xff]
      %v3568 = vld [vmem:[%s45 + $0x70] sm:$0xff]
      %v3569 = vld [vmem:[%s45 + $0x78] sm:$0xff]
      %v3570 = vld [vmem:[%s47] sm:$0x1]
      %v3571 = vld [vmem:[%s47 + $0x1] sm:$0x1]
      %v3572 = vld [vmem:[%s47 + $0x2] sm:$0x1]
      %v3573 = vld [vmem:[%s47 + $0x3] sm:$0x1]
      %v3578 = vperm.slane %v3570, 0
      %v3579 = vperm.slane %v3571, 0
      %v3580 = vperm.slane %v3572, 0
      %v3581 = vperm.slane %v3573, 0
      %v3587 = vsel %vm1216, %v3553, 0
      %3589 = vmatpush.msra.mxu0 0.0
      %3590 = vmatpush.msra.mxu0 0.0
      %3591 = vmatpush.msra.mxu0 0.0
      %3592 = vmatpush.msra.mxu0 0.0
      %3593 = vmatpush.msra.mxu0 0.0
      %3594 = vmatpush.msra.mxu0 0.0
      %3595 = vmatpush.msra.mxu0 0.0
      %3596 = vmatpush.msra.mxu0 0.0
      %3597 = vmatpush.msra.mxu0 0.0
      %3598 = vmatpush.msra.mxu0 0.0
      %3599 = vmatpush.msra.mxu0 0.0
      %3600 = vmatpush.msra.mxu0 0.0
      %3601 = vmatpush.msra.mxu0 %v3557
      %3602 = vmatpush.msra.mxu0 %v3556
      %3603 = vmatpush.msra.mxu0 %v3555
      %3604 = vmatpush.msra.mxu0 %v3554
      %3605 = vmatmul.f32.gmra.mxu0 %v3587
      %v3606 = vpop.f32.mrf.mxu0
      %v3607 = vadd.f32 %v3578, %v3606
      %3608 = vdwg.mxu0
      %3609 = vmatpush.msra.mxu0 0.0
      %3610 = vmatpush.msra.mxu0 0.0
      %3611 = vmatpush.msra.mxu0 0.0
      %3612 = vmatpush.msra.mxu0 0.0
      %3613 = vmatpush.msra.mxu0 0.0
      %3614 = vmatpush.msra.mxu0 0.0
      %3615 = vmatpush.msra.mxu0 0.0
      %3616 = vmatpush.msra.mxu0 0.0
      %3617 = vmatpush.msra.mxu0 0.0
      %3618 = vmatpush.msra.mxu0 0.0
      %3619 = vmatpush.msra.mxu0 0.0
      %3620 = vmatpush.msra.mxu0 0.0
      %3621 = vmatpush.msra.mxu0 %v3561
      %3622 = vmatpush.msra.mxu0 %v3560
      %3623 = vmatpush.msra.mxu0 %v3559
      %3624 = vmatpush.msra.mxu0 %v3558
      %3625 = vmatmul.f32.gmra.mxu0 %v3587
      %v3626 = vpop.f32.mrf.mxu0
      %v3627 = vadd.f32 %v3579, %v3626
      %3628 = vdwg.mxu0
      %3629 = vmatpush.msra.mxu0 0.0
      %3630 = vmatpush.msra.mxu0 0.0
      %3631 = vmatpush.msra.mxu0 0.0
      %3632 = vmatpush.msra.mxu0 0.0
      %3633 = vmatpush.msra.mxu0 0.0
      %3634 = vmatpush.msra.mxu0 0.0
      %3635 = vmatpush.msra.mxu0 0.0
      %3636 = vmatpush.msra.mxu0 0.0
      %3637 = vmatpush.msra.mxu0 0.0
      %3638 = vmatpush.msra.mxu0 0.0
      %3639 = vmatpush.msra.mxu0 0.0
      %3640 = vmatpush.msra.mxu0 0.0
      %3641 = vmatpush.msra.mxu0 %v3565
      %3642 = vmatpush.msra.mxu0 %v3564
      %3643 = vmatpush.msra.mxu0 %v3563
      %3644 = vmatpush.msra.mxu0 %v3562
      %3645 = vmatmul.f32.gmra.mxu0 %v3587
      %v3646 = vpop.f32.mrf.mxu0
      %v3647 = vadd.f32 %v3580, %v3646
      %3648 = vdwg.mxu0
      %3649 = vmatpush.msra.mxu0 0.0
      %3650 = vmatpush.msra.mxu0 0.0
      %3651 = vmatpush.msra.mxu0 0.0
      %3652 = vmatpush.msra.mxu0 0.0
      %3653 = vmatpush.msra.mxu0 0.0
      %3654 = vmatpush.msra.mxu0 0.0
      %3655 = vmatpush.msra.mxu0 0.0
      %3656 = vmatpush.msra.mxu0 0.0
      %3657 = vmatpush.msra.mxu0 0.0
      %3658 = vmatpush.msra.mxu0 0.0
      %3659 = vmatpush.msra.mxu0 0.0
      %3660 = vmatpush.msra.mxu0 0.0
      %3661 = vmatpush.msra.mxu0 %v3569
      %3662 = vmatpush.msra.mxu0 %v3568
      %3663 = vmatpush.msra.mxu0 %v3567
      %3664 = vmatpush.msra.mxu0 %v3566
      %3665 = vmatmul.f32.gmra.mxu0 %v3587
      %v3666 = vpop.f32.mrf.mxu0
      %v3667 = vadd.f32 %v3581, %v3666
      %3668 = vdwg.mxu0
      %v3669 = vld [vmem:[%s49] sm:$0xff]
      %v3670 = vld [vmem:[%s49 + $0x8] sm:$0xff]
      %v3671 = vld [vmem:[%s49 + $0x10] sm:$0xff]
      %v3672 = vld [vmem:[%s49 + $0x18] sm:$0xff]
      %v3673 = vld [vmem:[%s49 + $0x20] sm:$0xff]
      %v3674 = vld [vmem:[%s49 + $0x28] sm:$0xff]
      %v3675 = vld [vmem:[%s49 + $0x30] sm:$0xff]
      %v3676 = vld [vmem:[%s49 + $0x38] sm:$0xff]
      %v3677 = vld [vmem:[%s49 + $0x40] sm:$0xff]
      %v3678 = vld [vmem:[%s49 + $0x48] sm:$0xff]
      %v3679 = vld [vmem:[%s49 + $0x50] sm:$0xff]
      %v3680 = vld [vmem:[%s49 + $0x58] sm:$0xff]
      %v3681 = vld [vmem:[%s49 + $0x60] sm:$0xff]
      %v3682 = vld [vmem:[%s49 + $0x68] sm:$0xff]
      %v3683 = vld [vmem:[%s49 + $0x70] sm:$0xff]
      %v3684 = vld [vmem:[%s49 + $0x78] sm:$0xff]
      %v3685 = vld [vmem:[%s49 + $0x80] sm:$0xff]
      %v3686 = vld [vmem:[%s49 + $0x88] sm:$0xff]
      %v3687 = vld [vmem:[%s49 + $0x90] sm:$0xff]
      %v3688 = vld [vmem:[%s49 + $0x98] sm:$0xff]
      %v3689 = vld [vmem:[%s49 + $0xa0] sm:$0xff]
      %v3690 = vld [vmem:[%s49 + $0xa8] sm:$0xff]
      %v3691 = vld [vmem:[%s49 + $0xb0] sm:$0xff]
      %v3692 = vld [vmem:[%s49 + $0xb8] sm:$0xff]
      %v3693 = vld [vmem:[%s49 + $0xc0] sm:$0xff]
      %v3694 = vld [vmem:[%s49 + $0xc8] sm:$0xff]
      %v3695 = vld [vmem:[%s49 + $0xd0] sm:$0xff]
      %v3696 = vld [vmem:[%s49 + $0xd8] sm:$0xff]
      %v3697 = vld [vmem:[%s49 + $0xe0] sm:$0xff]
      %v3698 = vld [vmem:[%s49 + $0xe8] sm:$0xff]
      %v3699 = vld [vmem:[%s49 + $0xf0] sm:$0xff]
      %v3700 = vld [vmem:[%s49 + $0xf8] sm:$0xff]
      %v3701 = vld [vmem:[%s51] sm:$0x1]
      %v3702 = vld [vmem:[%s51 + $0x1] sm:$0x1]
      %v3703 = vld [vmem:[%s51 + $0x2] sm:$0x1]
      %v3704 = vld [vmem:[%s51 + $0x3] sm:$0x1]
      %v3705 = vld [vmem:[%s51 + $0x4] sm:$0x1]
      %v3706 = vld [vmem:[%s51 + $0x5] sm:$0x1]
      %v3707 = vld [vmem:[%s51 + $0x6] sm:$0x1]
      %v3708 = vld [vmem:[%s51 + $0x7] sm:$0x1]
      %v3717 = vperm.slane %v3701, 0
      %v3718 = vperm.slane %v3702, 0
      %v3719 = vperm.slane %v3703, 0
      %v3720 = vperm.slane %v3704, 0
      %v3721 = vperm.slane %v3705, 0
      %v3722 = vperm.slane %v3706, 0
      %v3723 = vperm.slane %v3707, 0
      %v3724 = vperm.slane %v3708, 0
      %v3734 = vsel %vm1216, %v2787, 0
      %3736 = vmatpush.msra.mxu0 0.0
      %3737 = vmatpush.msra.mxu0 0.0
      %3738 = vmatpush.msra.mxu0 0.0
      %3739 = vmatpush.msra.mxu0 0.0
      %3740 = vmatpush.msra.mxu0 0.0
      %3741 = vmatpush.msra.mxu0 0.0
      %3742 = vmatpush.msra.mxu0 0.0
      %3743 = vmatpush.msra.mxu0 0.0
      %3744 = vmatpush.msra.mxu0 0.0
      %3745 = vmatpush.msra.mxu0 0.0
      %3746 = vmatpush.msra.mxu0 0.0
      %3747 = vmatpush.msra.mxu0 0.0
      %3748 = vmatpush.msra.mxu0 %v3672
      %3749 = vmatpush.msra.mxu0 %v3671
      %3750 = vmatpush.msra.mxu0 %v3670
      %3751 = vmatpush.msra.mxu0 %v3669
      %3752 = vmatmul.f32.gmra.mxu0 %v3734
      %v3753 = vpop.f32.mrf.mxu0
      %v3754 = vadd.f32 %v3717, %v3753
      %3755 = vdwg.mxu0
      %3756 = vmatpush.msra.mxu0 0.0
      %3757 = vmatpush.msra.mxu0 0.0
      %3758 = vmatpush.msra.mxu0 0.0
      %3759 = vmatpush.msra.mxu0 0.0
      %3760 = vmatpush.msra.mxu0 0.0
      %3761 = vmatpush.msra.mxu0 0.0
      %3762 = vmatpush.msra.mxu0 0.0
      %3763 = vmatpush.msra.mxu0 0.0
      %3764 = vmatpush.msra.mxu0 0.0
      %3765 = vmatpush.msra.mxu0 0.0
      %3766 = vmatpush.msra.mxu0 0.0
      %3767 = vmatpush.msra.mxu0 0.0
      %3768 = vmatpush.msra.mxu0 %v3676
      %3769 = vmatpush.msra.mxu0 %v3675
      %3770 = vmatpush.msra.mxu0 %v3674
      %3771 = vmatpush.msra.mxu0 %v3673
      %3772 = vmatmul.f32.gmra.mxu0 %v3734
      %v3773 = vpop.f32.mrf.mxu0
      %v3774 = vadd.f32 %v3718, %v3773
      %3775 = vdwg.mxu0
      %3776 = vmatpush.msra.mxu0 0.0
      %3777 = vmatpush.msra.mxu0 0.0
      %3778 = vmatpush.msra.mxu0 0.0
      %3779 = vmatpush.msra.mxu0 0.0
      %3780 = vmatpush.msra.mxu0 0.0
      %3781 = vmatpush.msra.mxu0 0.0
      %3782 = vmatpush.msra.mxu0 0.0
      %3783 = vmatpush.msra.mxu0 0.0
      %3784 = vmatpush.msra.mxu0 0.0
      %3785 = vmatpush.msra.mxu0 0.0
      %3786 = vmatpush.msra.mxu0 0.0
      %3787 = vmatpush.msra.mxu0 0.0
      %3788 = vmatpush.msra.mxu0 %v3680
      %3789 = vmatpush.msra.mxu0 %v3679
      %3790 = vmatpush.msra.mxu0 %v3678
      %3791 = vmatpush.msra.mxu0 %v3677
      %3792 = vmatmul.f32.gmra.mxu0 %v3734
      %v3793 = vpop.f32.mrf.mxu0
      %v3794 = vadd.f32 %v3719, %v3793
      %3795 = vdwg.mxu0
      %3796 = vmatpush.msra.mxu0 0.0
      %3797 = vmatpush.msra.mxu0 0.0
      %3798 = vmatpush.msra.mxu0 0.0
      %3799 = vmatpush.msra.mxu0 0.0
      %3800 = vmatpush.msra.mxu0 0.0
      %3801 = vmatpush.msra.mxu0 0.0
      %3802 = vmatpush.msra.mxu0 0.0
      %3803 = vmatpush.msra.mxu0 0.0
      %3804 = vmatpush.msra.mxu0 0.0
      %3805 = vmatpush.msra.mxu0 0.0
      %3806 = vmatpush.msra.mxu0 0.0
      %3807 = vmatpush.msra.mxu0 0.0
      %3808 = vmatpush.msra.mxu0 %v3684
      %3809 = vmatpush.msra.mxu0 %v3683
      %3810 = vmatpush.msra.mxu0 %v3682
      %3811 = vmatpush.msra.mxu0 %v3681
      %3812 = vmatmul.f32.gmra.mxu0 %v3734
      %v3813 = vpop.f32.mrf.mxu0
      %v3814 = vadd.f32 %v3720, %v3813
      %3815 = vdwg.mxu0
      %3816 = vmatpush.msra.mxu0 0.0
      %3817 = vmatpush.msra.mxu0 0.0
      %3818 = vmatpush.msra.mxu0 0.0
      %3819 = vmatpush.msra.mxu0 0.0
      %3820 = vmatpush.msra.mxu0 0.0
      %3821 = vmatpush.msra.mxu0 0.0
      %3822 = vmatpush.msra.mxu0 0.0
      %3823 = vmatpush.msra.mxu0 0.0
      %3824 = vmatpush.msra.mxu0 0.0
      %3825 = vmatpush.msra.mxu0 0.0
      %3826 = vmatpush.msra.mxu0 0.0
      %3827 = vmatpush.msra.mxu0 0.0
      %3828 = vmatpush.msra.mxu0 %v3688
      %3829 = vmatpush.msra.mxu0 %v3687
      %3830 = vmatpush.msra.mxu0 %v3686
      %3831 = vmatpush.msra.mxu0 %v3685
      %3832 = vmatmul.f32.gmra.mxu0 %v3734
      %v3833 = vpop.f32.mrf.mxu0
      %v3834 = vadd.f32 %v3721, %v3833
      %3835 = vdwg.mxu0
      %3836 = vmatpush.msra.mxu0 0.0
      %3837 = vmatpush.msra.mxu0 0.0
      %3838 = vmatpush.msra.mxu0 0.0
      %3839 = vmatpush.msra.mxu0 0.0
      %3840 = vmatpush.msra.mxu0 0.0
      %3841 = vmatpush.msra.mxu0 0.0
      %3842 = vmatpush.msra.mxu0 0.0
      %3843 = vmatpush.msra.mxu0 0.0
      %3844 = vmatpush.msra.mxu0 0.0
      %3845 = vmatpush.msra.mxu0 0.0
      %3846 = vmatpush.msra.mxu0 0.0
      %3847 = vmatpush.msra.mxu0 0.0
      %3848 = vmatpush.msra.mxu0 %v3692
      %3849 = vmatpush.msra.mxu0 %v3691
      %3850 = vmatpush.msra.mxu0 %v3690
      %3851 = vmatpush.msra.mxu0 %v3689
      %3852 = vmatmul.f32.gmra.mxu0 %v3734
      %v3853 = vpop.f32.mrf.mxu0
      %v3854 = vadd.f32 %v3722, %v3853
      %3855 = vdwg.mxu0
      %3856 = vmatpush.msra.mxu0 0.0
      %3857 = vmatpush.msra.mxu0 0.0
      %3858 = vmatpush.msra.mxu0 0.0
      %3859 = vmatpush.msra.mxu0 0.0
      %3860 = vmatpush.msra.mxu0 0.0
      %3861 = vmatpush.msra.mxu0 0.0
      %3862 = vmatpush.msra.mxu0 0.0
      %3863 = vmatpush.msra.mxu0 0.0
      %3864 = vmatpush.msra.mxu0 0.0
      %3865 = vmatpush.msra.mxu0 0.0
      %3866 = vmatpush.msra.mxu0 0.0
      %3867 = vmatpush.msra.mxu0 0.0
      %3868 = vmatpush.msra.mxu0 %v3696
      %3869 = vmatpush.msra.mxu0 %v3695
      %3870 = vmatpush.msra.mxu0 %v3694
      %3871 = vmatpush.msra.mxu0 %v3693
      %3872 = vmatmul.f32.gmra.mxu0 %v3734
      %v3873 = vpop.f32.mrf.mxu0
      %v3874 = vadd.f32 %v3723, %v3873
      %3875 = vdwg.mxu0
      %3876 = vmatpush.msra.mxu0 0.0
      %3877 = vmatpush.msra.mxu0 0.0
      %3878 = vmatpush.msra.mxu0 0.0
      %3879 = vmatpush.msra.mxu0 0.0
      %3880 = vmatpush.msra.mxu0 0.0
      %3881 = vmatpush.msra.mxu0 0.0
      %3882 = vmatpush.msra.mxu0 0.0
      %3883 = vmatpush.msra.mxu0 0.0
      %3884 = vmatpush.msra.mxu0 0.0
      %3885 = vmatpush.msra.mxu0 0.0
      %3886 = vmatpush.msra.mxu0 0.0
      %3887 = vmatpush.msra.mxu0 0.0
      %3888 = vmatpush.msra.mxu0 %v3700
      %3889 = vmatpush.msra.mxu0 %v3699
      %3890 = vmatpush.msra.mxu0 %v3698
      %3891 = vmatpush.msra.mxu0 %v3697
      %3892 = vmatmul.f32.gmra.mxu0 %v3734
      %v3893 = vpop.f32.mrf.mxu0
      %v3894 = vadd.f32 %v3724, %v3893
      %3895 = vdwg.mxu0
      %v3896 = vld [vmem:[%s53] sm:$0xff]
      %v3897 = vld [vmem:[%s53 + $0x8] sm:$0xff]
      %v3898 = vld [vmem:[%s53 + $0x10] sm:$0xff]
      %v3899 = vld [vmem:[%s53 + $0x18] sm:$0xff]
      %v3900 = vld [vmem:[%s55] sm:$0x1]
      %v3902 = vsel %vm1465, %v3607, 0
      %v3905 = vsel %vm1465, %v3754, 0
      %3907 = vmatpush.xpose.msra.mxu0 0.0
      %3908 = vmatpush.xpose.msra.mxu0 0.0
      %3909 = vmatpush.xpose.msra.mxu0 0.0
      %3910 = vmatpush.xpose.msra.mxu0 0.0
      %3911 = vmatpush.xpose.msra.mxu0 0.0
      %3912 = vmatpush.xpose.msra.mxu0 0.0
      %3913 = vmatpush.xpose.msra.mxu0 0.0
      %3914 = vmatpush.xpose.msra.mxu0 0.0
      %3915 = vmatpush.xpose.msra.mxu0 0.0
      %3916 = vmatpush.xpose.msra.mxu0 0.0
      %3917 = vmatpush.xpose.msra.mxu0 0.0
      %3918 = vmatpush.xpose.msra.mxu0 0.0
      %3919 = vmatpush.xpose.msra.mxu0 0.0
      %3920 = vmatpush.xpose.msra.mxu0 0.0
      %3921 = vmatpush.xpose.msra.mxu0 0.0
      %3922 = vmatpush.xpose.msra.mxu0 %v3905
      %3923 = vmatmul.f32.gmra.mxu0 %v3902
      %v3924 = vpop.f32.mrf.mxu0
      %v3925 = vadd.f32 0.0, %v3924
      %3926 = vdwg.mxu0
      %v3928 = vsel %vm1465, %v3627, 0
      %v3931 = vsel %vm1465, %v3774, 0
      %3933 = vmatpush.xpose.msra.mxu0 0.0
      %3934 = vmatpush.xpose.msra.mxu0 0.0
      %3935 = vmatpush.xpose.msra.mxu0 0.0
      %3936 = vmatpush.xpose.msra.mxu0 0.0
      %3937 = vmatpush.xpose.msra.mxu0 0.0
      %3938 = vmatpush.xpose.msra.mxu0 0.0
      %3939 = vmatpush.xpose.msra.mxu0 0.0
      %3940 = vmatpush.xpose.msra.mxu0 0.0
      %3941 = vmatpush.xpose.msra.mxu0 0.0
      %3942 = vmatpush.xpose.msra.mxu0 0.0
      %3943 = vmatpush.xpose.msra.mxu0 0.0
      %3944 = vmatpush.xpose.msra.mxu0 0.0
      %3945 = vmatpush.xpose.msra.mxu0 0.0
      %3946 = vmatpush.xpose.msra.mxu0 0.0
      %3947 = vmatpush.xpose.msra.mxu0 0.0
      %3948 = vmatpush.xpose.msra.mxu0 %v3931
      %3949 = vmatmul.f32.gmra.mxu0 %v3928
      %v3950 = vpop.f32.mrf.mxu0
      %v3951 = vadd.f32 0.0, %v3950
      %3952 = vdwg.mxu0
      %v3954 = vsel %vm1465, %v3647, 0
      %v3957 = vsel %vm1465, %v3794, 0
      %3959 = vmatpush.xpose.msra.mxu0 0.0
      %3960 = vmatpush.xpose.msra.mxu0 0.0
      %3961 = vmatpush.xpose.msra.mxu0 0.0
      %3962 = vmatpush.xpose.msra.mxu0 0.0
      %3963 = vmatpush.xpose.msra.mxu0 0.0
      %3964 = vmatpush.xpose.msra.mxu0 0.0
      %3965 = vmatpush.xpose.msra.mxu0 0.0
      %3966 = vmatpush.xpose.msra.mxu0 0.0
      %3967 = vmatpush.xpose.msra.mxu0 0.0
      %3968 = vmatpush.xpose.msra.mxu0 0.0
      %3969 = vmatpush.xpose.msra.mxu0 0.0
      %3970 = vmatpush.xpose.msra.mxu0 0.0
      %3971 = vmatpush.xpose.msra.mxu0 0.0
      %3972 = vmatpush.xpose.msra.mxu0 0.0
      %3973 = vmatpush.xpose.msra.mxu0 0.0
      %3974 = vmatpush.xpose.msra.mxu0 %v3957
      %3975 = vmatmul.f32.gmra.mxu0 %v3954
      %v3976 = vpop.f32.mrf.mxu0
      %v3977 = vadd.f32 0.0, %v3976
      %3978 = vdwg.mxu0
      %v3980 = vsel %vm1465, %v3667, 0
      %v3983 = vsel %vm1465, %v3814, 0
      %3985 = vmatpush.xpose.msra.mxu0 0.0
      %3986 = vmatpush.xpose.msra.mxu0 0.0
      %3987 = vmatpush.xpose.msra.mxu0 0.0
      %3988 = vmatpush.xpose.msra.mxu0 0.0
      %3989 = vmatpush.xpose.msra.mxu0 0.0
      %3990 = vmatpush.xpose.msra.mxu0 0.0
      %3991 = vmatpush.xpose.msra.mxu0 0.0
      %3992 = vmatpush.xpose.msra.mxu0 0.0
      %3993 = vmatpush.xpose.msra.mxu0 0.0
      %3994 = vmatpush.xpose.msra.mxu0 0.0
      %3995 = vmatpush.xpose.msra.mxu0 0.0
      %3996 = vmatpush.xpose.msra.mxu0 0.0
      %3997 = vmatpush.xpose.msra.mxu0 0.0
      %3998 = vmatpush.xpose.msra.mxu0 0.0
      %3999 = vmatpush.xpose.msra.mxu0 0.0
      %4000 = vmatpush.xpose.msra.mxu0 %v3983
      %4001 = vmatmul.f32.gmra.mxu0 %v3980
      %v4002 = vpop.f32.mrf.mxu0
      %v4003 = vadd.f32 0.0, %v4002
      %4004 = vdwg.mxu0
      %v4005 = vsel %vm1465, %v3925, -inf
      %4006 = vmax.xlane.f32.xlu0 %v4005
      %v4007 = vpop.xlane.xlu0 %4006
      %v4008 = vsel %vm1465, %v3951, -inf
      %4009 = vmax.xlane.f32.xlu0 %v4008
      %v4010 = vpop.xlane.xlu0 %4009
      %v4011 = vsel %vm1465, %v3977, -inf
      %4012 = vmax.xlane.f32.xlu0 %v4011
      %v4013 = vpop.xlane.xlu0 %4012
      %v4014 = vsel %vm1465, %v4003, -inf
      %4015 = vmax.xlane.f32.xlu0 %v4014
      %v4016 = vpop.xlane.xlu0 %4015
      %v4017 = vsub.f32 %v3925, %v4007
      %v4018 = vsub.f32 %v3951, %v4010
      %v4019 = vsub.f32 %v3977, %v4013
      %v4020 = vsub.f32 %v4003, %v4016
      %v4021 = vmul.f32 %v4017, 1.442695
      %v4022 = vpow.pop %v4021
      %v4023 = vmul.f32 %v4018, 1.442695
      %v4024 = vpow.pop %v4023
      %v4025 = vmul.f32 %v4019, 1.442695
      %v4026 = vpow.pop %v4025
      %v4027 = vmul.f32 %v4020, 1.442695
      %v4028 = vpow.pop %v4027
      %v4029 = vsel %vm1465, %v4022, 0.0
      %4030 = vadd.xlane.f32.xlu0 %v4029
      %v4031 = vpop.xlane.xlu0 %4030
      %v4032 = vsel %vm1465, %v4024, 0.0
      %4033 = vadd.xlane.f32.xlu0 %v4032
      %v4034 = vpop.xlane.xlu0 %4033
      %v4035 = vsel %vm1465, %v4026, 0.0
      %4036 = vadd.xlane.f32.xlu0 %v4035
      %v4037 = vpop.xlane.xlu0 %4036
      %v4038 = vsel %vm1465, %v4028, 0.0
      %4039 = vadd.xlane.f32.xlu0 %v4038
      %v4040 = vpop.xlane.xlu0 %4039
      %v4041 = vmax.f32 %v4031, 1e-30
      %v4042 = vmax.f32 %v4034, 1e-30
      %v4043 = vmax.f32 %v4037, 1e-30
      %v4044 = vmax.f32 %v4040, 1e-30
      %v4045 = vrcp.pop %v4041
      %v4046 = vrcp.pop %v4042
      %v4047 = vrcp.pop %v4043
      %v4048 = vrcp.pop %v4044
      %v4049 = vmul.f32 %v4031, %v4045
      %v4050 = vmul.f32 %v4034, %v4046
      %v4051 = vmul.f32 %v4037, %v4047
      %v4052 = vmul.f32 %v4040, %v4048
      %v4053 = vsub.f32 2.0, %v4049
      %v4054 = vsub.f32 2.0, %v4050
      %v4055 = vsub.f32 2.0, %v4051
      %v4056 = vsub.f32 2.0, %v4052
      %v4057 = vmul.f32 %v4045, %v4053
      %v4058 = vmul.f32 %v4046, %v4054
      %v4059 = vmul.f32 %v4047, %v4055
      %v4060 = vmul.f32 %v4048, %v4056
      %v4061 = vmul.f32 %v4022, %v4057
      %v4062 = vmul.f32 %v4024, %v4058
      %v4063 = vmul.f32 %v4026, %v4059
      %v4064 = vmul.f32 %v4028, %v4060
      %v4066 = vsel %vm1465, %v4061, 0
      %4068 = vmatpush.msra.mxu0 0.0
      %4069 = vmatpush.msra.mxu0 0.0
      %4070 = vmatpush.msra.mxu0 0.0
      %4071 = vmatpush.msra.mxu0 0.0
      %4072 = vmatpush.msra.mxu0 0.0
      %4073 = vmatpush.msra.mxu0 0.0
      %4074 = vmatpush.msra.mxu0 0.0
      %4075 = vmatpush.msra.mxu0 0.0
      %4076 = vmatpush.msra.mxu0 0.0
      %4077 = vmatpush.msra.mxu0 0.0
      %4078 = vmatpush.msra.mxu0 0.0
      %4079 = vmatpush.msra.mxu0 0.0
      %4080 = vmatpush.msra.mxu0 0.0
      %4081 = vmatpush.msra.mxu0 0.0
      %4082 = vmatpush.msra.mxu0 0.0
      %4083 = vmatpush.msra.mxu0 %v3834
      %4084 = vmatmul.f32.gmra.mxu0 %v4066
      %v4085 = vpop.f32.mrf.mxu0
      %v4086 = vadd.f32 0.0, %v4085
      %4087 = vdwg.mxu0
      %v4089 = vsel %vm1465, %v4062, 0
      %4091 = vmatpush.msra.mxu0 0.0
      %4092 = vmatpush.msra.mxu0 0.0
      %4093 = vmatpush.msra.mxu0 0.0
      %4094 = vmatpush.msra.mxu0 0.0
      %4095 = vmatpush.msra.mxu0 0.0
      %4096 = vmatpush.msra.mxu0 0.0
      %4097 = vmatpush.msra.mxu0 0.0
      %4098 = vmatpush.msra.mxu0 0.0
      %4099 = vmatpush.msra.mxu0 0.0
      %4100 = vmatpush.msra.mxu0 0.0
      %4101 = vmatpush.msra.mxu0 0.0
      %4102 = vmatpush.msra.mxu0 0.0
      %4103 = vmatpush.msra.mxu0 0.0
      %4104 = vmatpush.msra.mxu0 0.0
      %4105 = vmatpush.msra.mxu0 0.0
      %4106 = vmatpush.msra.mxu0 %v3854
      %4107 = vmatmul.f32.gmra.mxu0 %v4089
      %v4108 = vpop.f32.mrf.mxu0
      %v4109 = vadd.f32 0.0, %v4108
      %4110 = vdwg.mxu0
      %v4112 = vsel %vm1465, %v4063, 0
      %4114 = vmatpush.msra.mxu0 0.0
      %4115 = vmatpush.msra.mxu0 0.0
      %4116 = vmatpush.msra.mxu0 0.0
      %4117 = vmatpush.msra.mxu0 0.0
      %4118 = vmatpush.msra.mxu0 0.0
      %4119 = vmatpush.msra.mxu0 0.0
      %4120 = vmatpush.msra.mxu0 0.0
      %4121 = vmatpush.msra.mxu0 0.0
      %4122 = vmatpush.msra.mxu0 0.0
      %4123 = vmatpush.msra.mxu0 0.0
      %4124 = vmatpush.msra.mxu0 0.0
      %4125 = vmatpush.msra.mxu0 0.0
      %4126 = vmatpush.msra.mxu0 0.0
      %4127 = vmatpush.msra.mxu0 0.0
      %4128 = vmatpush.msra.mxu0 0.0
      %4129 = vmatpush.msra.mxu0 %v3874
      %4130 = vmatmul.f32.gmra.mxu0 %v4112
      %v4131 = vpop.f32.mrf.mxu0
      %v4132 = vadd.f32 0.0, %v4131
      %4133 = vdwg.mxu0
      %v4135 = vsel %vm1465, %v4064, 0
      %4137 = vmatpush.msra.mxu0 0.0
      %4138 = vmatpush.msra.mxu0 0.0
      %4139 = vmatpush.msra.mxu0 0.0
      %4140 = vmatpush.msra.mxu0 0.0
      %4141 = vmatpush.msra.mxu0 0.0
      %4142 = vmatpush.msra.mxu0 0.0
      %4143 = vmatpush.msra.mxu0 0.0
      %4144 = vmatpush.msra.mxu0 0.0
      %4145 = vmatpush.msra.mxu0 0.0
      %4146 = vmatpush.msra.mxu0 0.0
      %4147 = vmatpush.msra.mxu0 0.0
      %4148 = vmatpush.msra.mxu0 0.0
      %4149 = vmatpush.msra.mxu0 0.0
      %4150 = vmatpush.msra.mxu0 0.0
      %4151 = vmatpush.msra.mxu0 0.0
      %4152 = vmatpush.msra.mxu0 %v3894
      %4153 = vmatmul.f32.gmra.mxu0 %v4135
      %v4154 = vpop.f32.mrf.mxu0
      %v4155 = vadd.f32 0.0, %v4154
      %4156 = vdwg.mxu0
      %v4158 = vsel %vm1465, %v4086, 0
      %4160 = vmatpush.msra.mxu0 0.0
      %4161 = vmatpush.msra.mxu0 0.0
      %4162 = vmatpush.msra.mxu0 0.0
      %4163 = vmatpush.msra.mxu0 0.0
      %4164 = vmatpush.msra.mxu0 0.0
      %4165 = vmatpush.msra.mxu0 0.0
      %4166 = vmatpush.msra.mxu0 0.0
      %4167 = vmatpush.msra.mxu0 0.0
      %4168 = vmatpush.msra.mxu0 0.0
      %4169 = vmatpush.msra.mxu0 0.0
      %4170 = vmatpush.msra.mxu0 0.0
      %4171 = vmatpush.msra.mxu0 0.0
      %4172 = vmatpush.msra.mxu0 0.0
      %4173 = vmatpush.msra.mxu0 0.0
      %4174 = vmatpush.msra.mxu0 0.0
      %4175 = vmatpush.msra.mxu0 %v3896
      %4176 = vmatmul.f32.gmra.mxu0 %v4158
      %v4177 = vpop.f32.mrf.mxu0
      %v4178 = vadd.f32 0.0, %v4177
      %4179 = vdwg.mxu0
      %v4181 = vsel %vm1465, %v4109, 0
      %4183 = vmatpush.msra.mxu0 0.0
      %4184 = vmatpush.msra.mxu0 0.0
      %4185 = vmatpush.msra.mxu0 0.0
      %4186 = vmatpush.msra.mxu0 0.0
      %4187 = vmatpush.msra.mxu0 0.0
      %4188 = vmatpush.msra.mxu0 0.0
      %4189 = vmatpush.msra.mxu0 0.0
      %4190 = vmatpush.msra.mxu0 0.0
      %4191 = vmatpush.msra.mxu0 0.0
      %4192 = vmatpush.msra.mxu0 0.0
      %4193 = vmatpush.msra.mxu0 0.0
      %4194 = vmatpush.msra.mxu0 0.0
      %4195 = vmatpush.msra.mxu0 0.0
      %4196 = vmatpush.msra.mxu0 0.0
      %4197 = vmatpush.msra.mxu0 0.0
      %4198 = vmatpush.msra.mxu0 %v3897
      %4199 = vmatmul.f32.gmra.mxu0 %v4181
      %v4200 = vpop.f32.mrf.mxu0
      %v4201 = vadd.f32 0.0, %v4200
      %4202 = vdwg.mxu0
      %v4204 = vsel %vm1465, %v4132, 0
      %4206 = vmatpush.msra.mxu0 0.0
      %4207 = vmatpush.msra.mxu0 0.0
      %4208 = vmatpush.msra.mxu0 0.0
      %4209 = vmatpush.msra.mxu0 0.0
      %4210 = vmatpush.msra.mxu0 0.0
      %4211 = vmatpush.msra.mxu0 0.0
      %4212 = vmatpush.msra.mxu0 0.0
      %4213 = vmatpush.msra.mxu0 0.0
      %4214 = vmatpush.msra.mxu0 0.0
      %4215 = vmatpush.msra.mxu0 0.0
      %4216 = vmatpush.msra.mxu0 0.0
      %4217 = vmatpush.msra.mxu0 0.0
      %4218 = vmatpush.msra.mxu0 0.0
      %4219 = vmatpush.msra.mxu0 0.0
      %4220 = vmatpush.msra.mxu0 0.0
      %4221 = vmatpush.msra.mxu0 %v3898
      %4222 = vmatmul.f32.gmra.mxu0 %v4204
      %v4223 = vpop.f32.mrf.mxu0
      %v4224 = vadd.f32 0.0, %v4223
      %4225 = vdwg.mxu0
      %v4227 = vsel %vm1465, %v4155, 0
      %4229 = vmatpush.msra.mxu0 0.0
      %4230 = vmatpush.msra.mxu0 0.0
      %4231 = vmatpush.msra.mxu0 0.0
      %4232 = vmatpush.msra.mxu0 0.0
      %4233 = vmatpush.msra.mxu0 0.0
      %4234 = vmatpush.msra.mxu0 0.0
      %4235 = vmatpush.msra.mxu0 0.0
      %4236 = vmatpush.msra.mxu0 0.0
      %4237 = vmatpush.msra.mxu0 0.0
      %4238 = vmatpush.msra.mxu0 0.0
      %4239 = vmatpush.msra.mxu0 0.0
      %4240 = vmatpush.msra.mxu0 0.0
      %4241 = vmatpush.msra.mxu0 0.0
      %4242 = vmatpush.msra.mxu0 0.0
      %4243 = vmatpush.msra.mxu0 0.0
      %4244 = vmatpush.msra.mxu0 %v3899
      %4245 = vmatmul.f32.gmra.mxu0 %v4227
      %v4246 = vpop.f32.mrf.mxu0
      %v4247 = vadd.f32 0.0, %v4246
      %4248 = vdwg.mxu0
      %v4249 = vsel %vm1216, %v4178, 0.0
      %v4250 = vsel %vm1216, %v4201, 0.0
      %v4251 = vadd.f32 %v4249, %v4250
      %v4252 = vsel %vm1216, %v4224, 0.0
      %v4253 = vadd.f32 %v4251, %v4252
      %v4254 = vsel %vm1216, %v4247, 0.0
      %v4255 = vadd.f32 %v4253, %v4254
      %v4257 = vperm.slane %v3900, 0
      %v4259 = vadd.f32 %v4255, %v4257
      %v4260 = vadd.f32 %v3553, %v4259
      %v4261 = vsel %vm1216, %v4260, 0.0
      %4262 = vadd.xlane.f32.xlu0 %v4261
      %v4263 = vpop.xlane.xlu0 %4262
      %v4264 = vmul.f32 %v4263, %v1835
      %v4265 = vsub.f32 %v4260, %v4264
      %v4266 = vmul.f32 %v4265, %v4265
      %v4267 = vsel %vm1216, %v4266, 0.0
      %4268 = vadd.xlane.f32.xlu0 %v4267
      %v4269 = vpop.xlane.xlu0 %4268
      %v4270 = vmul.f32 %v4269, %v1835
      %v4271 = vadd.f32 %v4270, 1e-05
      %v4272 = vrsqrt.pop %v4271
      %v4273 = vmul.f32 %v4272, %v4271
      %v4274 = vmul.f32 %v4273, %v4272
      %v4275 = vmul.f32 0.5, %v4274
      %v4276 = vsub.f32 1.5, %v4275
      %v4277 = vmul.f32 %v4272, %v4276
      %vm4278 = vweird.f32 %v4271
      %vm4279 = vweird.f32 %v4272
      %vm4280 = vmor %vm4278, %vm4279
      %v4281 = vsel %vm4280, %v4272, %v4277
      %v4282 = vmul.f32 %v4265, %v4281
      %v4283 = vperm.slane %v2823, 2
      %v4284 = vmul.f32 %v4282, %v4283
      %v4285 = vperm.slane %v2823, 3
      %v4286 = vadd.f32 %v4284, %v4285
      %v4287 = vld [vmem:[%s57] sm:$0xff]
      %v4288 = vld [vmem:[%s57 + $0x8] sm:$0xff]
      %v4289 = vld [vmem:[%s57 + $0x10] sm:$0xff]
      %v4290 = vld [vmem:[%s57 + $0x18] sm:$0xff]
      %v4291 = vld [vmem:[%s59] sm:$0x1]
      %v4292 = vld [vmem:[%s61] sm:$0xff]
      %v4293 = vld [vmem:[%s61 + $0x8] sm:$0xff]
      %v4294 = vld [vmem:[%s61 + $0x10] sm:$0xff]
      %v4295 = vld [vmem:[%s61 + $0x18] sm:$0xff]
      %v4296 = vld [vmem:[%s61 + $0x20] sm:$0xff]
      %v4297 = vld [vmem:[%s61 + $0x28] sm:$0xff]
      %v4298 = vld [vmem:[%s61 + $0x30] sm:$0xff]
      %v4299 = vld [vmem:[%s61 + $0x38] sm:$0xff]
      %v4300 = vld [vmem:[%s63] sm:$0x1]
      %v4302 = vperm.slane %v4291, 0
      %v4305 = vsel %vm1216, %v4286, 0
      %4307 = vmatpush.msra.mxu0 0.0
      %4308 = vmatpush.msra.mxu0 0.0
      %4309 = vmatpush.msra.mxu0 0.0
      %4310 = vmatpush.msra.mxu0 0.0
      %4311 = vmatpush.msra.mxu0 0.0
      %4312 = vmatpush.msra.mxu0 0.0
      %4313 = vmatpush.msra.mxu0 0.0
      %4314 = vmatpush.msra.mxu0 0.0
      %4315 = vmatpush.msra.mxu0 0.0
      %4316 = vmatpush.msra.mxu0 0.0
      %4317 = vmatpush.msra.mxu0 0.0
      %4318 = vmatpush.msra.mxu0 0.0
      %4319 = vmatpush.msra.mxu0 %v4290
      %4320 = vmatpush.msra.mxu0 %v4289
      %4321 = vmatpush.msra.mxu0 %v4288
      %4322 = vmatpush.msra.mxu0 %v4287
      %4323 = vmatmul.f32.gmra.mxu0 %v4305
      %v4324 = vpop.f32.mrf.mxu0
      %v4325 = vadd.f32 %v4302, %v4324
      %4326 = vdwg.mxu0
      %v4327 = vmax.f32 %v4325, 0.0
      %v4329 = vperm.slane %v4300, 0
      %v4332 = vsel %vm1903, %v4327, 0
      %4334 = vmatpush.msra.mxu0 0.0
      %4335 = vmatpush.msra.mxu0 0.0
      %4336 = vmatpush.msra.mxu0 0.0
      %4337 = vmatpush.msra.mxu0 0.0
      %4338 = vmatpush.msra.mxu0 0.0
      %4339 = vmatpush.msra.mxu0 0.0
      %4340 = vmatpush.msra.mxu0 0.0
      %4341 = vmatpush.msra.mxu0 0.0
      %4342 = vmatpush.msra.mxu0 %v4299
      %4343 = vmatpush.msra.mxu0 %v4298
      %4344 = vmatpush.msra.mxu0 %v4297
      %4345 = vmatpush.msra.mxu0 %v4296
      %4346 = vmatpush.msra.mxu0 %v4295
      %4347 = vmatpush.msra.mxu0 %v4294
      %4348 = vmatpush.msra.mxu0 %v4293
      %4349 = vmatpush.msra.mxu0 %v4292
      %4350 = vmatmul.f32.gmra.mxu0 %v4332
      %v4351 = vpop.f32.mrf.mxu0
      %v4352 = vadd.f32 %v4329, %v4351
      %4353 = vdwg.mxu0
      %v4354 = vadd.f32 %v4286, %v4352
      %v4355 = vsel %vm1216, %v4354, 0.0
      %4356 = vadd.xlane.f32.xlu0 %v4355
      %v4357 = vpop.xlane.xlu0 %4356
      %v4358 = vmul.f32 %v4357, %v1835
      %v4359 = vsub.f32 %v4354, %v4358
      %v4360 = vmul.f32 %v4359, %v4359
      %v4361 = vsel %vm1216, %v4360, 0.0
      %4362 = vadd.xlane.f32.xlu0 %v4361
      %v4363 = vpop.xlane.xlu0 %4362
      %v4364 = vmul.f32 %v4363, %v1835
      %v4365 = vadd.f32 %v4364, 1e-05
      %v4366 = vrsqrt.pop %v4365
      %v4367 = vmul.f32 %v4366, %v4365
      %v4368 = vmul.f32 %v4367, %v4366
      %v4369 = vmul.f32 0.5, %v4368
      %v4370 = vsub.f32 1.5, %v4369
      %v4371 = vmul.f32 %v4366, %v4370
      %vm4372 = vweird.f32 %v4365
      %vm4373 = vweird.f32 %v4366
      %vm4374 = vmor %vm4372, %vm4373
      %v4375 = vsel %vm4374, %v4366, %v4371
      %v4376 = vmul.f32 %v4359, %v4375
      %v4377 = vperm.slane %v2823, 4
      %v4378 = vmul.f32 %v4376, %v4377
      %v4379 = vperm.slane %v2823, 5
      %v4380 = vadd.f32 %v4378, %v4379
      %s4381 = scalar_lea.vmem %s65, 8
      %v4382 = vld [vmem:[%s4381] sm:$0x3f]
      %s4383 = scalar_lea.vmem %s37, 384
      %v4384 = vld [vmem:[%s4383] sm:$0xff]
      %v4385 = vld [vmem:[%s4383 + $0x8] sm:$0xff]
      %v4386 = vld [vmem:[%s4383 + $0x10] sm:$0xff]
      %v4387 = vld [vmem:[%s4383 + $0x18] sm:$0xff]
      %v4388 = vld [vmem:[%s4383 + $0x20] sm:$0xff]
      %v4389 = vld [vmem:[%s4383 + $0x28] sm:$0xff]
      %v4390 = vld [vmem:[%s4383 + $0x30] sm:$0xff]
      %v4391 = vld [vmem:[%s4383 + $0x38] sm:$0xff]
      %v4392 = vld [vmem:[%s4383 + $0x40] sm:$0xff]
      %v4393 = vld [vmem:[%s4383 + $0x48] sm:$0xff]
      %v4394 = vld [vmem:[%s4383 + $0x50] sm:$0xff]
      %v4395 = vld [vmem:[%s4383 + $0x58] sm:$0xff]
      %v4396 = vld [vmem:[%s4383 + $0x60] sm:$0xff]
      %v4397 = vld [vmem:[%s4383 + $0x68] sm:$0xff]
      %v4398 = vld [vmem:[%s4383 + $0x70] sm:$0xff]
      %v4399 = vld [vmem:[%s4383 + $0x78] sm:$0xff]
      %v4400 = vld [vmem:[%s4383 + $0x80] sm:$0xff]
      %v4401 = vld [vmem:[%s4383 + $0x88] sm:$0xff]
      %v4402 = vld [vmem:[%s4383 + $0x90] sm:$0xff]
      %v4403 = vld [vmem:[%s4383 + $0x98] sm:$0xff]
      %v4404 = vld [vmem:[%s4383 + $0xa0] sm:$0xff]
      %v4405 = vld [vmem:[%s4383 + $0xa8] sm:$0xff]
      %v4406 = vld [vmem:[%s4383 + $0xb0] sm:$0xff]
      %v4407 = vld [vmem:[%s4383 + $0xb8] sm:$0xff]
      %v4408 = vld [vmem:[%s4383 + $0xc0] sm:$0xff]
      %v4409 = vld [vmem:[%s4383 + $0xc8] sm:$0xff]
      %v4410 = vld [vmem:[%s4383 + $0xd0] sm:$0xff]
      %v4411 = vld [vmem:[%s4383 + $0xd8] sm:$0xff]
      %v4412 = vld [vmem:[%s4383 + $0xe0] sm:$0xff]
      %v4413 = vld [vmem:[%s4383 + $0xe8] sm:$0xff]
      %v4414 = vld [vmem:[%s4383 + $0xf0] sm:$0xff]
      %v4415 = vld [vmem:[%s4383 + $0xf8] sm:$0xff]
      %v4416 = vld [vmem:[%s4383 + $0x100] sm:$0xff]
      %v4417 = vld [vmem:[%s4383 + $0x108] sm:$0xff]
      %v4418 = vld [vmem:[%s4383 + $0x110] sm:$0xff]
      %v4419 = vld [vmem:[%s4383 + $0x118] sm:$0xff]
      %v4420 = vld [vmem:[%s4383 + $0x120] sm:$0xff]
      %v4421 = vld [vmem:[%s4383 + $0x128] sm:$0xff]
      %v4422 = vld [vmem:[%s4383 + $0x130] sm:$0xff]
      %v4423 = vld [vmem:[%s4383 + $0x138] sm:$0xff]
      %v4424 = vld [vmem:[%s4383 + $0x140] sm:$0xff]
      %v4425 = vld [vmem:[%s4383 + $0x148] sm:$0xff]
      %v4426 = vld [vmem:[%s4383 + $0x150] sm:$0xff]
      %v4427 = vld [vmem:[%s4383 + $0x158] sm:$0xff]
      %v4428 = vld [vmem:[%s4383 + $0x160] sm:$0xff]
      %v4429 = vld [vmem:[%s4383 + $0x168] sm:$0xff]
      %v4430 = vld [vmem:[%s4383 + $0x170] sm:$0xff]
      %v4431 = vld [vmem:[%s4383 + $0x178] sm:$0xff]
      %s4432 = scalar_lea.vmem %s39, 12
      %v4433 = vld [vmem:[%s4432] sm:$0x1]
      %v4434 = vld [vmem:[%s4432 + $0x1] sm:$0x1]
      %v4435 = vld [vmem:[%s4432 + $0x2] sm:$0x1]
      %v4436 = vld [vmem:[%s4432 + $0x3] sm:$0x1]
      %v4437 = vld [vmem:[%s4432 + $0x4] sm:$0x1]
      %v4438 = vld [vmem:[%s4432 + $0x5] sm:$0x1]
      %v4439 = vld [vmem:[%s4432 + $0x6] sm:$0x1]
      %v4440 = vld [vmem:[%s4432 + $0x7] sm:$0x1]
      %v4441 = vld [vmem:[%s4432 + $0x8] sm:$0x1]
      %v4442 = vld [vmem:[%s4432 + $0x9] sm:$0x1]
      %v4443 = vld [vmem:[%s4432 + $0xa] sm:$0x1]
      %v4444 = vld [vmem:[%s4432 + $0xb] sm:$0x1]
      %v4457 = vperm.slane %v4433, 0
      %v4458 = vperm.slane %v4434, 0
      %v4459 = vperm.slane %v4435, 0
      %v4460 = vperm.slane %v4436, 0
      %v4461 = vperm.slane %v4437, 0
      %v4462 = vperm.slane %v4438, 0
      %v4463 = vperm.slane %v4439, 0
      %v4464 = vperm.slane %v4440, 0
      %v4465 = vperm.slane %v4441, 0
      %v4466 = vperm.slane %v4442, 0
      %v4467 = vperm.slane %v4443, 0
      %v4468 = vperm.slane %v4444, 0
      %v4482 = vsel %vm1216, %v4380, 0
      %4484 = vmatpush.msra.mxu0 0.0
      %4485 = vmatpush.msra.mxu0 0.0
      %4486 = vmatpush.msra.mxu0 0.0
      %4487 = vmatpush.msra.mxu0 0.0
      %4488 = vmatpush.msra.mxu0 0.0
      %4489 = vmatpush.msra.mxu0 0.0
      %4490 = vmatpush.msra.mxu0 0.0
      %4491 = vmatpush.msra.mxu0 0.0
      %4492 = vmatpush.msra.mxu0 0.0
      %4493 = vmatpush.msra.mxu0 0.0
      %4494 = vmatpush.msra.mxu0 0.0
      %4495 = vmatpush.msra.mxu0 0.0
      %4496 = vmatpush.msra.mxu0 %v4387
      %4497 = vmatpush.msra.mxu0 %v4386
      %4498 = vmatpush.msra.mxu0 %v4385
      %4499 = vmatpush.msra.mxu0 %v4384
      %4500 = vmatmul.f32.gmra.mxu0 %v4482
      %v4501 = vpop.f32.mrf.mxu0
      %v4502 = vadd.f32 %v4457, %v4501
      %4503 = vdwg.mxu0
      %4504 = vmatpush.msra.mxu0 0.0
      %4505 = vmatpush.msra.mxu0 0.0
      %4506 = vmatpush.msra.mxu0 0.0
      %4507 = vmatpush.msra.mxu0 0.0
      %4508 = vmatpush.msra.mxu0 0.0
      %4509 = vmatpush.msra.mxu0 0.0
      %4510 = vmatpush.msra.mxu0 0.0
      %4511 = vmatpush.msra.mxu0 0.0
      %4512 = vmatpush.msra.mxu0 0.0
      %4513 = vmatpush.msra.mxu0 0.0
      %4514 = vmatpush.msra.mxu0 0.0
      %4515 = vmatpush.msra.mxu0 0.0
      %4516 = vmatpush.msra.mxu0 %v4391
      %4517 = vmatpush.msra.mxu0 %v4390
      %4518 = vmatpush.msra.mxu0 %v4389
      %4519 = vmatpush.msra.mxu0 %v4388
      %4520 = vmatmul.f32.gmra.mxu0 %v4482
      %v4521 = vpop.f32.mrf.mxu0
      %v4522 = vadd.f32 %v4458, %v4521
      %4523 = vdwg.mxu0
      %4524 = vmatpush.msra.mxu0 0.0
      %4525 = vmatpush.msra.mxu0 0.0
      %4526 = vmatpush.msra.mxu0 0.0
      %4527 = vmatpush.msra.mxu0 0.0
      %4528 = vmatpush.msra.mxu0 0.0
      %4529 = vmatpush.msra.mxu0 0.0
      %4530 = vmatpush.msra.mxu0 0.0
      %4531 = vmatpush.msra.mxu0 0.0
      %4532 = vmatpush.msra.mxu0 0.0
      %4533 = vmatpush.msra.mxu0 0.0
      %4534 = vmatpush.msra.mxu0 0.0
      %4535 = vmatpush.msra.mxu0 0.0
      %4536 = vmatpush.msra.mxu0 %v4395
      %4537 = vmatpush.msra.mxu0 %v4394
      %4538 = vmatpush.msra.mxu0 %v4393
      %4539 = vmatpush.msra.mxu0 %v4392
      %4540 = vmatmul.f32.gmra.mxu0 %v4482
      %v4541 = vpop.f32.mrf.mxu0
      %v4542 = vadd.f32 %v4459, %v4541
      %4543 = vdwg.mxu0
      %4544 = vmatpush.msra.mxu0 0.0
      %4545 = vmatpush.msra.mxu0 0.0
      %4546 = vmatpush.msra.mxu0 0.0
      %4547 = vmatpush.msra.mxu0 0.0
      %4548 = vmatpush.msra.mxu0 0.0
      %4549 = vmatpush.msra.mxu0 0.0
      %4550 = vmatpush.msra.mxu0 0.0
      %4551 = vmatpush.msra.mxu0 0.0
      %4552 = vmatpush.msra.mxu0 0.0
      %4553 = vmatpush.msra.mxu0 0.0
      %4554 = vmatpush.msra.mxu0 0.0
      %4555 = vmatpush.msra.mxu0 0.0
      %4556 = vmatpush.msra.mxu0 %v4399
      %4557 = vmatpush.msra.mxu0 %v4398
      %4558 = vmatpush.msra.mxu0 %v4397
      %4559 = vmatpush.msra.mxu0 %v4396
      %4560 = vmatmul.f32.gmra.mxu0 %v4482
      %v4561 = vpop.f32.mrf.mxu0
      %v4562 = vadd.f32 %v4460, %v4561
      %4563 = vdwg.mxu0
      %4564 = vmatpush.msra.mxu0 0.0
      %4565 = vmatpush.msra.mxu0 0.0
      %4566 = vmatpush.msra.mxu0 0.0
      %4567 = vmatpush.msra.mxu0 0.0
      %4568 = vmatpush.msra.mxu0 0.0
      %4569 = vmatpush.msra.mxu0 0.0
      %4570 = vmatpush.msra.mxu0 0.0
      %4571 = vmatpush.msra.mxu0 0.0
      %4572 = vmatpush.msra.mxu0 0.0
      %4573 = vmatpush.msra.mxu0 0.0
      %4574 = vmatpush.msra.mxu0 0.0
      %4575 = vmatpush.msra.mxu0 0.0
      %4576 = vmatpush.msra.mxu0 %v4403
      %4577 = vmatpush.msra.mxu0 %v4402
      %4578 = vmatpush.msra.mxu0 %v4401
      %4579 = vmatpush.msra.mxu0 %v4400
      %4580 = vmatmul.f32.gmra.mxu0 %v4482
      %v4581 = vpop.f32.mrf.mxu0
      %v4582 = vadd.f32 %v4461, %v4581
      %4583 = vdwg.mxu0
      %4584 = vmatpush.msra.mxu0 0.0
      %4585 = vmatpush.msra.mxu0 0.0
      %4586 = vmatpush.msra.mxu0 0.0
      %4587 = vmatpush.msra.mxu0 0.0
      %4588 = vmatpush.msra.mxu0 0.0
      %4589 = vmatpush.msra.mxu0 0.0
      %4590 = vmatpush.msra.mxu0 0.0
      %4591 = vmatpush.msra.mxu0 0.0
      %4592 = vmatpush.msra.mxu0 0.0
      %4593 = vmatpush.msra.mxu0 0.0
      %4594 = vmatpush.msra.mxu0 0.0
      %4595 = vmatpush.msra.mxu0 0.0
      %4596 = vmatpush.msra.mxu0 %v4407
      %4597 = vmatpush.msra.mxu0 %v4406
      %4598 = vmatpush.msra.mxu0 %v4405
      %4599 = vmatpush.msra.mxu0 %v4404
      %4600 = vmatmul.f32.gmra.mxu0 %v4482
      %v4601 = vpop.f32.mrf.mxu0
      %v4602 = vadd.f32 %v4462, %v4601
      %4603 = vdwg.mxu0
      %4604 = vmatpush.msra.mxu0 0.0
      %4605 = vmatpush.msra.mxu0 0.0
      %4606 = vmatpush.msra.mxu0 0.0
      %4607 = vmatpush.msra.mxu0 0.0
      %4608 = vmatpush.msra.mxu0 0.0
      %4609 = vmatpush.msra.mxu0 0.0
      %4610 = vmatpush.msra.mxu0 0.0
      %4611 = vmatpush.msra.mxu0 0.0
      %4612 = vmatpush.msra.mxu0 0.0
      %4613 = vmatpush.msra.mxu0 0.0
      %4614 = vmatpush.msra.mxu0 0.0
      %4615 = vmatpush.msra.mxu0 0.0
      %4616 = vmatpush.msra.mxu0 %v4411
      %4617 = vmatpush.msra.mxu0 %v4410
      %4618 = vmatpush.msra.mxu0 %v4409
      %4619 = vmatpush.msra.mxu0 %v4408
      %4620 = vmatmul.f32.gmra.mxu0 %v4482
      %v4621 = vpop.f32.mrf.mxu0
      %v4622 = vadd.f32 %v4463, %v4621
      %4623 = vdwg.mxu0
      %4624 = vmatpush.msra.mxu0 0.0
      %4625 = vmatpush.msra.mxu0 0.0
      %4626 = vmatpush.msra.mxu0 0.0
      %4627 = vmatpush.msra.mxu0 0.0
      %4628 = vmatpush.msra.mxu0 0.0
      %4629 = vmatpush.msra.mxu0 0.0
      %4630 = vmatpush.msra.mxu0 0.0
      %4631 = vmatpush.msra.mxu0 0.0
      %4632 = vmatpush.msra.mxu0 0.0
      %4633 = vmatpush.msra.mxu0 0.0
      %4634 = vmatpush.msra.mxu0 0.0
      %4635 = vmatpush.msra.mxu0 0.0
      %4636 = vmatpush.msra.mxu0 %v4415
      %4637 = vmatpush.msra.mxu0 %v4414
      %4638 = vmatpush.msra.mxu0 %v4413
      %4639 = vmatpush.msra.mxu0 %v4412
      %4640 = vmatmul.f32.gmra.mxu0 %v4482
      %v4641 = vpop.f32.mrf.mxu0
      %v4642 = vadd.f32 %v4464, %v4641
      %4643 = vdwg.mxu0
      %4644 = vmatpush.msra.mxu0 0.0
      %4645 = vmatpush.msra.mxu0 0.0
      %4646 = vmatpush.msra.mxu0 0.0
      %4647 = vmatpush.msra.mxu0 0.0
      %4648 = vmatpush.msra.mxu0 0.0
      %4649 = vmatpush.msra.mxu0 0.0
      %4650 = vmatpush.msra.mxu0 0.0
      %4651 = vmatpush.msra.mxu0 0.0
      %4652 = vmatpush.msra.mxu0 0.0
      %4653 = vmatpush.msra.mxu0 0.0
      %4654 = vmatpush.msra.mxu0 0.0
      %4655 = vmatpush.msra.mxu0 0.0
      %4656 = vmatpush.msra.mxu0 %v4419
      %4657 = vmatpush.msra.mxu0 %v4418
      %4658 = vmatpush.msra.mxu0 %v4417
      %4659 = vmatpush.msra.mxu0 %v4416
      %4660 = vmatmul.f32.gmra.mxu0 %v4482
      %v4661 = vpop.f32.mrf.mxu0
      %v4662 = vadd.f32 %v4465, %v4661
      %4663 = vdwg.mxu0
      %4664 = vmatpush.msra.mxu0 0.0
      %4665 = vmatpush.msra.mxu0 0.0
      %4666 = vmatpush.msra.mxu0 0.0
      %4667 = vmatpush.msra.mxu0 0.0
      %4668 = vmatpush.msra.mxu0 0.0
      %4669 = vmatpush.msra.mxu0 0.0
      %4670 = vmatpush.msra.mxu0 0.0
      %4671 = vmatpush.msra.mxu0 0.0
      %4672 = vmatpush.msra.mxu0 0.0
      %4673 = vmatpush.msra.mxu0 0.0
      %4674 = vmatpush.msra.mxu0 0.0
      %4675 = vmatpush.msra.mxu0 0.0
      %4676 = vmatpush.msra.mxu0 %v4423
      %4677 = vmatpush.msra.mxu0 %v4422
      %4678 = vmatpush.msra.mxu0 %v4421
      %4679 = vmatpush.msra.mxu0 %v4420
      %4680 = vmatmul.f32.gmra.mxu0 %v4482
      %v4681 = vpop.f32.mrf.mxu0
      %v4682 = vadd.f32 %v4466, %v4681
      %4683 = vdwg.mxu0
      %4684 = vmatpush.msra.mxu0 0.0
      %4685 = vmatpush.msra.mxu0 0.0
      %4686 = vmatpush.msra.mxu0 0.0
      %4687 = vmatpush.msra.mxu0 0.0
      %4688 = vmatpush.msra.mxu0 0.0
      %4689 = vmatpush.msra.mxu0 0.0
      %4690 = vmatpush.msra.mxu0 0.0
      %4691 = vmatpush.msra.mxu0 0.0
      %4692 = vmatpush.msra.mxu0 0.0
      %4693 = vmatpush.msra.mxu0 0.0
      %4694 = vmatpush.msra.mxu0 0.0
      %4695 = vmatpush.msra.mxu0 0.0
      %4696 = vmatpush.msra.mxu0 %v4427
      %4697 = vmatpush.msra.mxu0 %v4426
      %4698 = vmatpush.msra.mxu0 %v4425
      %4699 = vmatpush.msra.mxu0 %v4424
      %4700 = vmatmul.f32.gmra.mxu0 %v4482
      %v4701 = vpop.f32.mrf.mxu0
      %v4702 = vadd.f32 %v4467, %v4701
      %4703 = vdwg.mxu0
      %4704 = vmatpush.msra.mxu0 0.0
      %4705 = vmatpush.msra.mxu0 0.0
      %4706 = vmatpush.msra.mxu0 0.0
      %4707 = vmatpush.msra.mxu0 0.0
      %4708 = vmatpush.msra.mxu0 0.0
      %4709 = vmatpush.msra.mxu0 0.0
      %4710 = vmatpush.msra.mxu0 0.0
      %4711 = vmatpush.msra.mxu0 0.0
      %4712 = vmatpush.msra.mxu0 0.0
      %4713 = vmatpush.msra.mxu0 0.0
      %4714 = vmatpush.msra.mxu0 0.0
      %4715 = vmatpush.msra.mxu0 0.0
      %4716 = vmatpush.msra.mxu0 %v4431
      %4717 = vmatpush.msra.mxu0 %v4430
      %4718 = vmatpush.msra.mxu0 %v4429
      %4719 = vmatpush.msra.mxu0 %v4428
      %4720 = vmatmul.f32.gmra.mxu0 %v4482
      %v4721 = vpop.f32.mrf.mxu0
      %v4722 = vadd.f32 %v4468, %v4721
      %4723 = vdwg.mxu0
      %s4724 = scalar_lea.vmem %s41, 32
      %v4725 = vld [vmem:[%s4724] sm:$0xff]
      %v4726 = vld [vmem:[%s4724 + $0x8] sm:$0xff]
      %v4727 = vld [vmem:[%s4724 + $0x10] sm:$0xff]
      %v4728 = vld [vmem:[%s4724 + $0x18] sm:$0xff]
      %s4729 = scalar_lea.vmem %s43, 1
      %v4730 = vld [vmem:[%s4729] sm:$0x1]
      %v4732 = vsel %vm1465, %v4502, 0
      %v4735 = vsel %vm1465, %v4582, 0
      %4737 = vmatpush.xpose.msra.mxu0 0.0
      %4738 = vmatpush.xpose.msra.mxu0 0.0
      %4739 = vmatpush.xpose.msra.mxu0 0.0
      %4740 = vmatpush.xpose.msra.mxu0 0.0
      %4741 = vmatpush.xpose.msra.mxu0 0.0
      %4742 = vmatpush.xpose.msra.mxu0 0.0
      %4743 = vmatpush.xpose.msra.mxu0 0.0
      %4744 = vmatpush.xpose.msra.mxu0 0.0
      %4745 = vmatpush.xpose.msra.mxu0 0.0
      %4746 = vmatpush.xpose.msra.mxu0 0.0
      %4747 = vmatpush.xpose.msra.mxu0 0.0
      %4748 = vmatpush.xpose.msra.mxu0 0.0
      %4749 = vmatpush.xpose.msra.mxu0 0.0
      %4750 = vmatpush.xpose.msra.mxu0 0.0
      %4751 = vmatpush.xpose.msra.mxu0 0.0
      %4752 = vmatpush.xpose.msra.mxu0 %v4735
      %4753 = vmatmul.f32.gmra.mxu0 %v4732
      %v4754 = vpop.f32.mrf.mxu0
      %v4755 = vadd.f32 %v2822, %v4754
      %4756 = vdwg.mxu0
      %v4758 = vsel %vm1465, %v4522, 0
      %v4761 = vsel %vm1465, %v4602, 0
      %4763 = vmatpush.xpose.msra.mxu0 0.0
      %4764 = vmatpush.xpose.msra.mxu0 0.0
      %4765 = vmatpush.xpose.msra.mxu0 0.0
      %4766 = vmatpush.xpose.msra.mxu0 0.0
      %4767 = vmatpush.xpose.msra.mxu0 0.0
      %4768 = vmatpush.xpose.msra.mxu0 0.0
      %4769 = vmatpush.xpose.msra.mxu0 0.0
      %4770 = vmatpush.xpose.msra.mxu0 0.0
      %4771 = vmatpush.xpose.msra.mxu0 0.0
      %4772 = vmatpush.xpose.msra.mxu0 0.0
      %4773 = vmatpush.xpose.msra.mxu0 0.0
      %4774 = vmatpush.xpose.msra.mxu0 0.0
      %4775 = vmatpush.xpose.msra.mxu0 0.0
      %4776 = vmatpush.xpose.msra.mxu0 0.0
      %4777 = vmatpush.xpose.msra.mxu0 0.0
      %4778 = vmatpush.xpose.msra.mxu0 %v4761
      %4779 = vmatmul.f32.gmra.mxu0 %v4758
      %v4780 = vpop.f32.mrf.mxu0
      %v4781 = vadd.f32 %v2822, %v4780
      %4782 = vdwg.mxu0
      %v4784 = vsel %vm1465, %v4542, 0
      %v4787 = vsel %vm1465, %v4622, 0
      %4789 = vmatpush.xpose.msra.mxu0 0.0
      %4790 = vmatpush.xpose.msra.mxu0 0.0
      %4791 = vmatpush.xpose.msra.mxu0 0.0
      %4792 = vmatpush.xpose.msra.mxu0 0.0
      %4793 = vmatpush.xpose.msra.mxu0 0.0
      %4794 = vmatpush.xpose.msra.mxu0 0.0
      %4795 = vmatpush.xpose.msra.mxu0 0.0
      %4796 = vmatpush.xpose.msra.mxu0 0.0
      %4797 = vmatpush.xpose.msra.mxu0 0.0
      %4798 = vmatpush.xpose.msra.mxu0 0.0
      %4799 = vmatpush.xpose.msra.mxu0 0.0
      %4800 = vmatpush.xpose.msra.mxu0 0.0
      %4801 = vmatpush.xpose.msra.mxu0 0.0
      %4802 = vmatpush.xpose.msra.mxu0 0.0
      %4803 = vmatpush.xpose.msra.mxu0 0.0
      %4804 = vmatpush.xpose.msra.mxu0 %v4787
      %4805 = vmatmul.f32.gmra.mxu0 %v4784
      %v4806 = vpop.f32.mrf.mxu0
      %v4807 = vadd.f32 %v2822, %v4806
      %4808 = vdwg.mxu0
      %v4810 = vsel %vm1465, %v4562, 0
      %v4813 = vsel %vm1465, %v4642, 0
      %4815 = vmatpush.xpose.msra.mxu0 0.0
      %4816 = vmatpush.xpose.msra.mxu0 0.0
      %4817 = vmatpush.xpose.msra.mxu0 0.0
      %4818 = vmatpush.xpose.msra.mxu0 0.0
      %4819 = vmatpush.xpose.msra.mxu0 0.0
      %4820 = vmatpush.xpose.msra.mxu0 0.0
      %4821 = vmatpush.xpose.msra.mxu0 0.0
      %4822 = vmatpush.xpose.msra.mxu0 0.0
      %4823 = vmatpush.xpose.msra.mxu0 0.0
      %4824 = vmatpush.xpose.msra.mxu0 0.0
      %4825 = vmatpush.xpose.msra.mxu0 0.0
      %4826 = vmatpush.xpose.msra.mxu0 0.0
      %4827 = vmatpush.xpose.msra.mxu0 0.0
      %4828 = vmatpush.xpose.msra.mxu0 0.0
      %4829 = vmatpush.xpose.msra.mxu0 0.0
      %4830 = vmatpush.xpose.msra.mxu0 %v4813
      %4831 = vmatmul.f32.gmra.mxu0 %v4810
      %v4832 = vpop.f32.mrf.mxu0
      %v4833 = vadd.f32 %v2822, %v4832
      %4834 = vdwg.mxu0
      %v4835 = vsel %vm1465, %v4755, -inf
      %4836 = vmax.xlane.f32.xlu0 %v4835
      %v4837 = vpop.xlane.xlu0 %4836
      %v4838 = vsel %vm1465, %v4781, -inf
      %4839 = vmax.xlane.f32.xlu0 %v4838
      %v4840 = vpop.xlane.xlu0 %4839
      %v4841 = vsel %vm1465, %v4807, -inf
      %4842 = vmax.xlane.f32.xlu0 %v4841
      %v4843 = vpop.xlane.xlu0 %4842
      %v4844 = vsel %vm1465, %v4833, -inf
      %4845 = vmax.xlane.f32.xlu0 %v4844
      %v4846 = vpop.xlane.xlu0 %4845
      %v4847 = vsub.f32 %v4755, %v4837
      %v4848 = vsub.f32 %v4781, %v4840
      %v4849 = vsub.f32 %v4807, %v4843
      %v4850 = vsub.f32 %v4833, %v4846
      %v4851 = vmul.f32 %v4847, 1.442695
      %v4852 = vpow.pop %v4851
      %v4853 = vmul.f32 %v4848, 1.442695
      %v4854 = vpow.pop %v4853
      %v4855 = vmul.f32 %v4849, 1.442695
      %v4856 = vpow.pop %v4855
      %v4857 = vmul.f32 %v4850, 1.442695
      %v4858 = vpow.pop %v4857
      %v4859 = vsel %vm1465, %v4852, 0.0
      %4860 = vadd.xlane.f32.xlu0 %v4859
      %v4861 = vpop.xlane.xlu0 %4860
      %v4862 = vsel %vm1465, %v4854, 0.0
      %4863 = vadd.xlane.f32.xlu0 %v4862
      %v4864 = vpop.xlane.xlu0 %4863
      %v4865 = vsel %vm1465, %v4856, 0.0
      %4866 = vadd.xlane.f32.xlu0 %v4865
      %v4867 = vpop.xlane.xlu0 %4866
      %v4868 = vsel %vm1465, %v4858, 0.0
      %4869 = vadd.xlane.f32.xlu0 %v4868
      %v4870 = vpop.xlane.xlu0 %4869
      %v4871 = vmax.f32 %v4861, 1e-30
      %v4872 = vmax.f32 %v4864, 1e-30
      %v4873 = vmax.f32 %v4867, 1e-30
      %v4874 = vmax.f32 %v4870, 1e-30
      %v4875 = vrcp.pop %v4871
      %v4876 = vrcp.pop %v4872
      %v4877 = vrcp.pop %v4873
      %v4878 = vrcp.pop %v4874
      %v4879 = vmul.f32 %v4861, %v4875
      %v4880 = vmul.f32 %v4864, %v4876
      %v4881 = vmul.f32 %v4867, %v4877
      %v4882 = vmul.f32 %v4870, %v4878
      %v4883 = vsub.f32 2.0, %v4879
      %v4884 = vsub.f32 2.0, %v4880
      %v4885 = vsub.f32 2.0, %v4881
      %v4886 = vsub.f32 2.0, %v4882
      %v4887 = vmul.f32 %v4875, %v4883
      %v4888 = vmul.f32 %v4876, %v4884
      %v4889 = vmul.f32 %v4877, %v4885
      %v4890 = vmul.f32 %v4878, %v4886
      %v4891 = vmul.f32 %v4852, %v4887
      %v4892 = vmul.f32 %v4854, %v4888
      %v4893 = vmul.f32 %v4856, %v4889
      %v4894 = vmul.f32 %v4858, %v4890
      %v4896 = vsel %vm1465, %v4891, 0
      %4898 = vmatpush.msra.mxu0 0.0
      %4899 = vmatpush.msra.mxu0 0.0
      %4900 = vmatpush.msra.mxu0 0.0
      %4901 = vmatpush.msra.mxu0 0.0
      %4902 = vmatpush.msra.mxu0 0.0
      %4903 = vmatpush.msra.mxu0 0.0
      %4904 = vmatpush.msra.mxu0 0.0
      %4905 = vmatpush.msra.mxu0 0.0
      %4906 = vmatpush.msra.mxu0 0.0
      %4907 = vmatpush.msra.mxu0 0.0
      %4908 = vmatpush.msra.mxu0 0.0
      %4909 = vmatpush.msra.mxu0 0.0
      %4910 = vmatpush.msra.mxu0 0.0
      %4911 = vmatpush.msra.mxu0 0.0
      %4912 = vmatpush.msra.mxu0 0.0
      %4913 = vmatpush.msra.mxu0 %v4662
      %4914 = vmatmul.f32.gmra.mxu0 %v4896
      %v4915 = vpop.f32.mrf.mxu0
      %v4916 = vadd.f32 0.0, %v4915
      %4917 = vdwg.mxu0
      %v4919 = vsel %vm1465, %v4892, 0
      %4921 = vmatpush.msra.mxu0 0.0
      %4922 = vmatpush.msra.mxu0 0.0
      %4923 = vmatpush.msra.mxu0 0.0
      %4924 = vmatpush.msra.mxu0 0.0
      %4925 = vmatpush.msra.mxu0 0.0
      %4926 = vmatpush.msra.mxu0 0.0
      %4927 = vmatpush.msra.mxu0 0.0
      %4928 = vmatpush.msra.mxu0 0.0
      %4929 = vmatpush.msra.mxu0 0.0
      %4930 = vmatpush.msra.mxu0 0.0
      %4931 = vmatpush.msra.mxu0 0.0
      %4932 = vmatpush.msra.mxu0 0.0
      %4933 = vmatpush.msra.mxu0 0.0
      %4934 = vmatpush.msra.mxu0 0.0
      %4935 = vmatpush.msra.mxu0 0.0
      %4936 = vmatpush.msra.mxu0 %v4682
      %4937 = vmatmul.f32.gmra.mxu0 %v4919
      %v4938 = vpop.f32.mrf.mxu0
      %v4939 = vadd.f32 0.0, %v4938
      %4940 = vdwg.mxu0
      %v4942 = vsel %vm1465, %v4893, 0
      %4944 = vmatpush.msra.mxu0 0.0
      %4945 = vmatpush.msra.mxu0 0.0
      %4946 = vmatpush.msra.mxu0 0.0
      %4947 = vmatpush.msra.mxu0 0.0
      %4948 = vmatpush.msra.mxu0 0.0
      %4949 = vmatpush.msra.mxu0 0.0
      %4950 = vmatpush.msra.mxu0 0.0
      %4951 = vmatpush.msra.mxu0 0.0
      %4952 = vmatpush.msra.mxu0 0.0
      %4953 = vmatpush.msra.mxu0 0.0
      %4954 = vmatpush.msra.mxu0 0.0
      %4955 = vmatpush.msra.mxu0 0.0
      %4956 = vmatpush.msra.mxu0 0.0
      %4957 = vmatpush.msra.mxu0 0.0
      %4958 = vmatpush.msra.mxu0 0.0
      %4959 = vmatpush.msra.mxu0 %v4702
      %4960 = vmatmul.f32.gmra.mxu0 %v4942
      %v4961 = vpop.f32.mrf.mxu0
      %v4962 = vadd.f32 0.0, %v4961
      %4963 = vdwg.mxu0
      %v4965 = vsel %vm1465, %v4894, 0
      %4967 = vmatpush.msra.mxu0 0.0
      %4968 = vmatpush.msra.mxu0 0.0
      %4969 = vmatpush.msra.mxu0 0.0
      %4970 = vmatpush.msra.mxu0 0.0
      %4971 = vmatpush.msra.mxu0 0.0
      %4972 = vmatpush.msra.mxu0 0.0
      %4973 = vmatpush.msra.mxu0 0.0
      %4974 = vmatpush.msra.mxu0 0.0
      %4975 = vmatpush.msra.mxu0 0.0
      %4976 = vmatpush.msra.mxu0 0.0
      %4977 = vmatpush.msra.mxu0 0.0
      %4978 = vmatpush.msra.mxu0 0.0
      %4979 = vmatpush.msra.mxu0 0.0
      %4980 = vmatpush.msra.mxu0 0.0
      %4981 = vmatpush.msra.mxu0 0.0
      %4982 = vmatpush.msra.mxu0 %v4722
      %4983 = vmatmul.f32.gmra.mxu0 %v4965
      %v4984 = vpop.f32.mrf.mxu0
      %v4985 = vadd.f32 0.0, %v4984
      %4986 = vdwg.mxu0
      %v4988 = vsel %vm1465, %v4916, 0
      %4990 = vmatpush.msra.mxu0 0.0
      %4991 = vmatpush.msra.mxu0 0.0
      %4992 = vmatpush.msra.mxu0 0.0
      %4993 = vmatpush.msra.mxu0 0.0
      %4994 = vmatpush.msra.mxu0 0.0
      %4995 = vmatpush.msra.mxu0 0.0
      %4996 = vmatpush.msra.mxu0 0.0
      %4997 = vmatpush.msra.mxu0 0.0
      %4998 = vmatpush.msra.mxu0 0.0
      %4999 = vmatpush.msra.mxu0 0.0
      %5000 = vmatpush.msra.mxu0 0.0
      %5001 = vmatpush.msra.mxu0 0.0
      %5002 = vmatpush.msra.mxu0 0.0
      %5003 = vmatpush.msra.mxu0 0.0
      %5004 = vmatpush.msra.mxu0 0.0
      %5005 = vmatpush.msra.mxu0 %v4725
      %5006 = vmatmul.f32.gmra.mxu0 %v4988
      %v5007 = vpop.f32.mrf.mxu0
      %v5008 = vadd.f32 0.0, %v5007
      %5009 = vdwg.mxu0
      %v5011 = vsel %vm1465, %v4939, 0
      %5013 = vmatpush.msra.mxu0 0.0
      %5014 = vmatpush.msra.mxu0 0.0
      %5015 = vmatpush.msra.mxu0 0.0
      %5016 = vmatpush.msra.mxu0 0.0
      %5017 = vmatpush.msra.mxu0 0.0
      %5018 = vmatpush.msra.mxu0 0.0
      %5019 = vmatpush.msra.mxu0 0.0
      %5020 = vmatpush.msra.mxu0 0.0
      %5021 = vmatpush.msra.mxu0 0.0
      %5022 = vmatpush.msra.mxu0 0.0
      %5023 = vmatpush.msra.mxu0 0.0
      %5024 = vmatpush.msra.mxu0 0.0
      %5025 = vmatpush.msra.mxu0 0.0
      %5026 = vmatpush.msra.mxu0 0.0
      %5027 = vmatpush.msra.mxu0 0.0
      %5028 = vmatpush.msra.mxu0 %v4726
      %5029 = vmatmul.f32.gmra.mxu0 %v5011
      %v5030 = vpop.f32.mrf.mxu0
      %v5031 = vadd.f32 0.0, %v5030
      %5032 = vdwg.mxu0
      %v5034 = vsel %vm1465, %v4962, 0
      %5036 = vmatpush.msra.mxu0 0.0
      %5037 = vmatpush.msra.mxu0 0.0
      %5038 = vmatpush.msra.mxu0 0.0
      %5039 = vmatpush.msra.mxu0 0.0
      %5040 = vmatpush.msra.mxu0 0.0
      %5041 = vmatpush.msra.mxu0 0.0
      %5042 = vmatpush.msra.mxu0 0.0
      %5043 = vmatpush.msra.mxu0 0.0
      %5044 = vmatpush.msra.mxu0 0.0
      %5045 = vmatpush.msra.mxu0 0.0
      %5046 = vmatpush.msra.mxu0 0.0
      %5047 = vmatpush.msra.mxu0 0.0
      %5048 = vmatpush.msra.mxu0 0.0
      %5049 = vmatpush.msra.mxu0 0.0
      %5050 = vmatpush.msra.mxu0 0.0
      %5051 = vmatpush.msra.mxu0 %v4727
      %5052 = vmatmul.f32.gmra.mxu0 %v5034
      %v5053 = vpop.f32.mrf.mxu0
      %v5054 = vadd.f32 0.0, %v5053
      %5055 = vdwg.mxu0
      %v5057 = vsel %vm1465, %v4985, 0
      %5059 = vmatpush.msra.mxu0 0.0
      %5060 = vmatpush.msra.mxu0 0.0
      %5061 = vmatpush.msra.mxu0 0.0
      %5062 = vmatpush.msra.mxu0 0.0
      %5063 = vmatpush.msra.mxu0 0.0
      %5064 = vmatpush.msra.mxu0 0.0
      %5065 = vmatpush.msra.mxu0 0.0
      %5066 = vmatpush.msra.mxu0 0.0
      %5067 = vmatpush.msra.mxu0 0.0
      %5068 = vmatpush.msra.mxu0 0.0
      %5069 = vmatpush.msra.mxu0 0.0
      %5070 = vmatpush.msra.mxu0 0.0
      %5071 = vmatpush.msra.mxu0 0.0
      %5072 = vmatpush.msra.mxu0 0.0
      %5073 = vmatpush.msra.mxu0 0.0
      %5074 = vmatpush.msra.mxu0 %v4728
      %5075 = vmatmul.f32.gmra.mxu0 %v5057
      %v5076 = vpop.f32.mrf.mxu0
      %v5077 = vadd.f32 0.0, %v5076
      %5078 = vdwg.mxu0
      %v5079 = vsel %vm1216, %v5008, 0.0
      %v5080 = vsel %vm1216, %v5031, 0.0
      %v5081 = vadd.f32 %v5079, %v5080
      %v5082 = vsel %vm1216, %v5054, 0.0
      %v5083 = vadd.f32 %v5081, %v5082
      %v5084 = vsel %vm1216, %v5077, 0.0
      %v5085 = vadd.f32 %v5083, %v5084
      %v5087 = vperm.slane %v4730, 0
      %v5089 = vadd.f32 %v5085, %v5087
      %v5090 = vadd.f32 %v4380, %v5089
      %v5091 = vsel %vm1216, %v5090, 0.0
      %5092 = vadd.xlane.f32.xlu0 %v5091
      %v5093 = vpop.xlane.xlu0 %5092
      %v5094 = vmul.f32 %v5093, %v1835
      %v5095 = vsub.f32 %v5090, %v5094
      %v5096 = vmul.f32 %v5095, %v5095
      %v5097 = vsel %vm1216, %v5096, 0.0
      %5098 = vadd.xlane.f32.xlu0 %v5097
      %v5099 = vpop.xlane.xlu0 %5098
      %v5100 = vmul.f32 %v5099, %v1835
      %v5101 = vadd.f32 %v5100, 1e-05
      %v5102 = vrsqrt.pop %v5101
      %v5103 = vmul.f32 %v5102, %v5101
      %v5104 = vmul.f32 %v5103, %v5102
      %v5105 = vmul.f32 0.5, %v5104
      %v5106 = vsub.f32 1.5, %v5105
      %v5107 = vmul.f32 %v5102, %v5106
      %vm5108 = vweird.f32 %v5101
      %vm5109 = vweird.f32 %v5102
      %vm5110 = vmor %vm5108, %vm5109
      %v5111 = vsel %vm5110, %v5102, %v5107
      %v5112 = vmul.f32 %v5095, %v5111
      %v5113 = vperm.slane %v4382, 0
      %v5114 = vmul.f32 %v5112, %v5113
      %v5115 = vperm.slane %v4382, 1
      %v5116 = vadd.f32 %v5114, %v5115
      %s5117 = scalar_lea.vmem %s45, 128
      %v5118 = vld [vmem:[%s5117] sm:$0xff]
      %v5119 = vld [vmem:[%s5117 + $0x8] sm:$0xff]
      %v5120 = vld [vmem:[%s5117 + $0x10] sm:$0xff]
      %v5121 = vld [vmem:[%s5117 + $0x18] sm:$0xff]
      %v5122 = vld [vmem:[%s5117 + $0x20] sm:$0xff]
      %v5123 = vld [vmem:[%s5117 + $0x28] sm:$0xff]
      %v5124 = vld [vmem:[%s5117 + $0x30] sm:$0xff]
      %v5125 = vld [vmem:[%s5117 + $0x38] sm:$0xff]
      %v5126 = vld [vmem:[%s5117 + $0x40] sm:$0xff]
      %v5127 = vld [vmem:[%s5117 + $0x48] sm:$0xff]
      %v5128 = vld [vmem:[%s5117 + $0x50] sm:$0xff]
      %v5129 = vld [vmem:[%s5117 + $0x58] sm:$0xff]
      %v5130 = vld [vmem:[%s5117 + $0x60] sm:$0xff]
      %v5131 = vld [vmem:[%s5117 + $0x68] sm:$0xff]
      %v5132 = vld [vmem:[%s5117 + $0x70] sm:$0xff]
      %v5133 = vld [vmem:[%s5117 + $0x78] sm:$0xff]
      %s5134 = scalar_lea.vmem %s47, 4
      %v5135 = vld [vmem:[%s5134] sm:$0x1]
      %v5136 = vld [vmem:[%s5134 + $0x1] sm:$0x1]
      %v5137 = vld [vmem:[%s5134 + $0x2] sm:$0x1]
      %v5138 = vld [vmem:[%s5134 + $0x3] sm:$0x1]
      %v5143 = vperm.slane %v5135, 0
      %v5144 = vperm.slane %v5136, 0
      %v5145 = vperm.slane %v5137, 0
      %v5146 = vperm.slane %v5138, 0
      %v5152 = vsel %vm1216, %v5116, 0
      %5154 = vmatpush.msra.mxu0 0.0
      %5155 = vmatpush.msra.mxu0 0.0
      %5156 = vmatpush.msra.mxu0 0.0
      %5157 = vmatpush.msra.mxu0 0.0
      %5158 = vmatpush.msra.mxu0 0.0
      %5159 = vmatpush.msra.mxu0 0.0
      %5160 = vmatpush.msra.mxu0 0.0
      %5161 = vmatpush.msra.mxu0 0.0
      %5162 = vmatpush.msra.mxu0 0.0
      %5163 = vmatpush.msra.mxu0 0.0
      %5164 = vmatpush.msra.mxu0 0.0
      %5165 = vmatpush.msra.mxu0 0.0
      %5166 = vmatpush.msra.mxu0 %v5121
      %5167 = vmatpush.msra.mxu0 %v5120
      %5168 = vmatpush.msra.mxu0 %v5119
      %5169 = vmatpush.msra.mxu0 %v5118
      %5170 = vmatmul.f32.gmra.mxu0 %v5152
      %v5171 = vpop.f32.mrf.mxu0
      %v5172 = vadd.f32 %v5143, %v5171
      %5173 = vdwg.mxu0
      %5174 = vmatpush.msra.mxu0 0.0
      %5175 = vmatpush.msra.mxu0 0.0
      %5176 = vmatpush.msra.mxu0 0.0
      %5177 = vmatpush.msra.mxu0 0.0
      %5178 = vmatpush.msra.mxu0 0.0
      %5179 = vmatpush.msra.mxu0 0.0
      %5180 = vmatpush.msra.mxu0 0.0
      %5181 = vmatpush.msra.mxu0 0.0
      %5182 = vmatpush.msra.mxu0 0.0
      %5183 = vmatpush.msra.mxu0 0.0
      %5184 = vmatpush.msra.mxu0 0.0
      %5185 = vmatpush.msra.mxu0 0.0
      %5186 = vmatpush.msra.mxu0 %v5125
      %5187 = vmatpush.msra.mxu0 %v5124
      %5188 = vmatpush.msra.mxu0 %v5123
      %5189 = vmatpush.msra.mxu0 %v5122
      %5190 = vmatmul.f32.gmra.mxu0 %v5152
      %v5191 = vpop.f32.mrf.mxu0
      %v5192 = vadd.f32 %v5144, %v5191
      %5193 = vdwg.mxu0
      %5194 = vmatpush.msra.mxu0 0.0
      %5195 = vmatpush.msra.mxu0 0.0
      %5196 = vmatpush.msra.mxu0 0.0
      %5197 = vmatpush.msra.mxu0 0.0
      %5198 = vmatpush.msra.mxu0 0.0
      %5199 = vmatpush.msra.mxu0 0.0
      %5200 = vmatpush.msra.mxu0 0.0
      %5201 = vmatpush.msra.mxu0 0.0
      %5202 = vmatpush.msra.mxu0 0.0
      %5203 = vmatpush.msra.mxu0 0.0
      %5204 = vmatpush.msra.mxu0 0.0
      %5205 = vmatpush.msra.mxu0 0.0
      %5206 = vmatpush.msra.mxu0 %v5129
      %5207 = vmatpush.msra.mxu0 %v5128
      %5208 = vmatpush.msra.mxu0 %v5127
      %5209 = vmatpush.msra.mxu0 %v5126
      %5210 = vmatmul.f32.gmra.mxu0 %v5152
      %v5211 = vpop.f32.mrf.mxu0
      %v5212 = vadd.f32 %v5145, %v5211
      %5213 = vdwg.mxu0
      %5214 = vmatpush.msra.mxu0 0.0
      %5215 = vmatpush.msra.mxu0 0.0
      %5216 = vmatpush.msra.mxu0 0.0
      %5217 = vmatpush.msra.mxu0 0.0
      %5218 = vmatpush.msra.mxu0 0.0
      %5219 = vmatpush.msra.mxu0 0.0
      %5220 = vmatpush.msra.mxu0 0.0
      %5221 = vmatpush.msra.mxu0 0.0
      %5222 = vmatpush.msra.mxu0 0.0
      %5223 = vmatpush.msra.mxu0 0.0
      %5224 = vmatpush.msra.mxu0 0.0
      %5225 = vmatpush.msra.mxu0 0.0
      %5226 = vmatpush.msra.mxu0 %v5133
      %5227 = vmatpush.msra.mxu0 %v5132
      %5228 = vmatpush.msra.mxu0 %v5131
      %5229 = vmatpush.msra.mxu0 %v5130
      %5230 = vmatmul.f32.gmra.mxu0 %v5152
      %v5231 = vpop.f32.mrf.mxu0
      %v5232 = vadd.f32 %v5146, %v5231
      %5233 = vdwg.mxu0
      %s5234 = scalar_lea.vmem %s49, 256
      %v5235 = vld [vmem:[%s5234] sm:$0xff]
      %v5236 = vld [vmem:[%s5234 + $0x8] sm:$0xff]
      %v5237 = vld [vmem:[%s5234 + $0x10] sm:$0xff]
      %v5238 = vld [vmem:[%s5234 + $0x18] sm:$0xff]
      %v5239 = vld [vmem:[%s5234 + $0x20] sm:$0xff]
      %v5240 = vld [vmem:[%s5234 + $0x28] sm:$0xff]
      %v5241 = vld [vmem:[%s5234 + $0x30] sm:$0xff]
      %v5242 = vld [vmem:[%s5234 + $0x38] sm:$0xff]
      %v5243 = vld [vmem:[%s5234 + $0x40] sm:$0xff]
      %v5244 = vld [vmem:[%s5234 + $0x48] sm:$0xff]
      %v5245 = vld [vmem:[%s5234 + $0x50] sm:$0xff]
      %v5246 = vld [vmem:[%s5234 + $0x58] sm:$0xff]
      %v5247 = vld [vmem:[%s5234 + $0x60] sm:$0xff]
      %v5248 = vld [vmem:[%s5234 + $0x68] sm:$0xff]
      %v5249 = vld [vmem:[%s5234 + $0x70] sm:$0xff]
      %v5250 = vld [vmem:[%s5234 + $0x78] sm:$0xff]
      %v5251 = vld [vmem:[%s5234 + $0x80] sm:$0xff]
      %v5252 = vld [vmem:[%s5234 + $0x88] sm:$0xff]
      %v5253 = vld [vmem:[%s5234 + $0x90] sm:$0xff]
      %v5254 = vld [vmem:[%s5234 + $0x98] sm:$0xff]
      %v5255 = vld [vmem:[%s5234 + $0xa0] sm:$0xff]
      %v5256 = vld [vmem:[%s5234 + $0xa8] sm:$0xff]
      %v5257 = vld [vmem:[%s5234 + $0xb0] sm:$0xff]
      %v5258 = vld [vmem:[%s5234 + $0xb8] sm:$0xff]
      %v5259 = vld [vmem:[%s5234 + $0xc0] sm:$0xff]
      %v5260 = vld [vmem:[%s5234 + $0xc8] sm:$0xff]
      %v5261 = vld [vmem:[%s5234 + $0xd0] sm:$0xff]
      %v5262 = vld [vmem:[%s5234 + $0xd8] sm:$0xff]
      %v5263 = vld [vmem:[%s5234 + $0xe0] sm:$0xff]
      %v5264 = vld [vmem:[%s5234 + $0xe8] sm:$0xff]
      %v5265 = vld [vmem:[%s5234 + $0xf0] sm:$0xff]
      %v5266 = vld [vmem:[%s5234 + $0xf8] sm:$0xff]
      %s5267 = scalar_lea.vmem %s51, 8
      %v5268 = vld [vmem:[%s5267] sm:$0x1]
      %v5269 = vld [vmem:[%s5267 + $0x1] sm:$0x1]
      %v5270 = vld [vmem:[%s5267 + $0x2] sm:$0x1]
      %v5271 = vld [vmem:[%s5267 + $0x3] sm:$0x1]
      %v5272 = vld [vmem:[%s5267 + $0x4] sm:$0x1]
      %v5273 = vld [vmem:[%s5267 + $0x5] sm:$0x1]
      %v5274 = vld [vmem:[%s5267 + $0x6] sm:$0x1]
      %v5275 = vld [vmem:[%s5267 + $0x7] sm:$0x1]
      %v5284 = vperm.slane %v5268, 0
      %v5285 = vperm.slane %v5269, 0
      %v5286 = vperm.slane %v5270, 0
      %v5287 = vperm.slane %v5271, 0
      %v5288 = vperm.slane %v5272, 0
      %v5289 = vperm.slane %v5273, 0
      %v5290 = vperm.slane %v5274, 0
      %v5291 = vperm.slane %v5275, 0
      %5300 = vmatpush.msra.mxu0 0.0
      %5301 = vmatpush.msra.mxu0 0.0
      %5302 = vmatpush.msra.mxu0 0.0
      %5303 = vmatpush.msra.mxu0 0.0
      %5304 = vmatpush.msra.mxu0 0.0
      %5305 = vmatpush.msra.mxu0 0.0
      %5306 = vmatpush.msra.mxu0 0.0
      %5307 = vmatpush.msra.mxu0 0.0
      %5308 = vmatpush.msra.mxu0 0.0
      %5309 = vmatpush.msra.mxu0 0.0
      %5310 = vmatpush.msra.mxu0 0.0
      %5311 = vmatpush.msra.mxu0 0.0
      %5312 = vmatpush.msra.mxu0 %v5238
      %5313 = vmatpush.msra.mxu0 %v5237
      %5314 = vmatpush.msra.mxu0 %v5236
      %5315 = vmatpush.msra.mxu0 %v5235
      %5316 = vmatmul.f32.gmra.mxu0 %v3734
      %v5317 = vpop.f32.mrf.mxu0
      %v5318 = vadd.f32 %v5284, %v5317
      %5319 = vdwg.mxu0
      %5320 = vmatpush.msra.mxu0 0.0
      %5321 = vmatpush.msra.mxu0 0.0
      %5322 = vmatpush.msra.mxu0 0.0
      %5323 = vmatpush.msra.mxu0 0.0
      %5324 = vmatpush.msra.mxu0 0.0
      %5325 = vmatpush.msra.mxu0 0.0
      %5326 = vmatpush.msra.mxu0 0.0
      %5327 = vmatpush.msra.mxu0 0.0
      %5328 = vmatpush.msra.mxu0 0.0
      %5329 = vmatpush.msra.mxu0 0.0
      %5330 = vmatpush.msra.mxu0 0.0
      %5331 = vmatpush.msra.mxu0 0.0
      %5332 = vmatpush.msra.mxu0 %v5242
      %5333 = vmatpush.msra.mxu0 %v5241
      %5334 = vmatpush.msra.mxu0 %v5240
      %5335 = vmatpush.msra.mxu0 %v5239
      %5336 = vmatmul.f32.gmra.mxu0 %v3734
      %v5337 = vpop.f32.mrf.mxu0
      %v5338 = vadd.f32 %v5285, %v5337
      %5339 = vdwg.mxu0
      %5340 = vmatpush.msra.mxu0 0.0
      %5341 = vmatpush.msra.mxu0 0.0
      %5342 = vmatpush.msra.mxu0 0.0
      %5343 = vmatpush.msra.mxu0 0.0
      %5344 = vmatpush.msra.mxu0 0.0
      %5345 = vmatpush.msra.mxu0 0.0
      %5346 = vmatpush.msra.mxu0 0.0
      %5347 = vmatpush.msra.mxu0 0.0
      %5348 = vmatpush.msra.mxu0 0.0
      %5349 = vmatpush.msra.mxu0 0.0
      %5350 = vmatpush.msra.mxu0 0.0
      %5351 = vmatpush.msra.mxu0 0.0
      %5352 = vmatpush.msra.mxu0 %v5246
      %5353 = vmatpush.msra.mxu0 %v5245
      %5354 = vmatpush.msra.mxu0 %v5244
      %5355 = vmatpush.msra.mxu0 %v5243
      %5356 = vmatmul.f32.gmra.mxu0 %v3734
      %v5357 = vpop.f32.mrf.mxu0
      %v5358 = vadd.f32 %v5286, %v5357
      %5359 = vdwg.mxu0
      %5360 = vmatpush.msra.mxu0 0.0
      %5361 = vmatpush.msra.mxu0 0.0
      %5362 = vmatpush.msra.mxu0 0.0
      %5363 = vmatpush.msra.mxu0 0.0
      %5364 = vmatpush.msra.mxu0 0.0
      %5365 = vmatpush.msra.mxu0 0.0
      %5366 = vmatpush.msra.mxu0 0.0
      %5367 = vmatpush.msra.mxu0 0.0
      %5368 = vmatpush.msra.mxu0 0.0
      %5369 = vmatpush.msra.mxu0 0.0
      %5370 = vmatpush.msra.mxu0 0.0
      %5371 = vmatpush.msra.mxu0 0.0
      %5372 = vmatpush.msra.mxu0 %v5250
      %5373 = vmatpush.msra.mxu0 %v5249
      %5374 = vmatpush.msra.mxu0 %v5248
      %5375 = vmatpush.msra.mxu0 %v5247
      %5376 = vmatmul.f32.gmra.mxu0 %v3734
      %v5377 = vpop.f32.mrf.mxu0
      %v5378 = vadd.f32 %v5287, %v5377
      %5379 = vdwg.mxu0
      %5380 = vmatpush.msra.mxu0 0.0
      %5381 = vmatpush.msra.mxu0 0.0
      %5382 = vmatpush.msra.mxu0 0.0
      %5383 = vmatpush.msra.mxu0 0.0
      %5384 = vmatpush.msra.mxu0 0.0
      %5385 = vmatpush.msra.mxu0 0.0
      %5386 = vmatpush.msra.mxu0 0.0
      %5387 = vmatpush.msra.mxu0 0.0
      %5388 = vmatpush.msra.mxu0 0.0
      %5389 = vmatpush.msra.mxu0 0.0
      %5390 = vmatpush.msra.mxu0 0.0
      %5391 = vmatpush.msra.mxu0 0.0
      %5392 = vmatpush.msra.mxu0 %v5254
      %5393 = vmatpush.msra.mxu0 %v5253
      %5394 = vmatpush.msra.mxu0 %v5252
      %5395 = vmatpush.msra.mxu0 %v5251
      %5396 = vmatmul.f32.gmra.mxu0 %v3734
      %v5397 = vpop.f32.mrf.mxu0
      %v5398 = vadd.f32 %v5288, %v5397
      %5399 = vdwg.mxu0
      %5400 = vmatpush.msra.mxu0 0.0
      %5401 = vmatpush.msra.mxu0 0.0
      %5402 = vmatpush.msra.mxu0 0.0
      %5403 = vmatpush.msra.mxu0 0.0
      %5404 = vmatpush.msra.mxu0 0.0
      %5405 = vmatpush.msra.mxu0 0.0
      %5406 = vmatpush.msra.mxu0 0.0
      %5407 = vmatpush.msra.mxu0 0.0
      %5408 = vmatpush.msra.mxu0 0.0
      %5409 = vmatpush.msra.mxu0 0.0
      %5410 = vmatpush.msra.mxu0 0.0
      %5411 = vmatpush.msra.mxu0 0.0
      %5412 = vmatpush.msra.mxu0 %v5258
      %5413 = vmatpush.msra.mxu0 %v5257
      %5414 = vmatpush.msra.mxu0 %v5256
      %5415 = vmatpush.msra.mxu0 %v5255
      %5416 = vmatmul.f32.gmra.mxu0 %v3734
      %v5417 = vpop.f32.mrf.mxu0
      %v5418 = vadd.f32 %v5289, %v5417
      %5419 = vdwg.mxu0
      %5420 = vmatpush.msra.mxu0 0.0
      %5421 = vmatpush.msra.mxu0 0.0
      %5422 = vmatpush.msra.mxu0 0.0
      %5423 = vmatpush.msra.mxu0 0.0
      %5424 = vmatpush.msra.mxu0 0.0
      %5425 = vmatpush.msra.mxu0 0.0
      %5426 = vmatpush.msra.mxu0 0.0
      %5427 = vmatpush.msra.mxu0 0.0
      %5428 = vmatpush.msra.mxu0 0.0
      %5429 = vmatpush.msra.mxu0 0.0
      %5430 = vmatpush.msra.mxu0 0.0
      %5431 = vmatpush.msra.mxu0 0.0
      %5432 = vmatpush.msra.mxu0 %v5262
      %5433 = vmatpush.msra.mxu0 %v5261
      %5434 = vmatpush.msra.mxu0 %v5260
      %5435 = vmatpush.msra.mxu0 %v5259
      %5436 = vmatmul.f32.gmra.mxu0 %v3734
      %v5437 = vpop.f32.mrf.mxu0
      %v5438 = vadd.f32 %v5290, %v5437
      %5439 = vdwg.mxu0
      %5440 = vmatpush.msra.mxu0 0.0
      %5441 = vmatpush.msra.mxu0 0.0
      %5442 = vmatpush.msra.mxu0 0.0
      %5443 = vmatpush.msra.mxu0 0.0
      %5444 = vmatpush.msra.mxu0 0.0
      %5445 = vmatpush.msra.mxu0 0.0
      %5446 = vmatpush.msra.mxu0 0.0
      %5447 = vmatpush.msra.mxu0 0.0
      %5448 = vmatpush.msra.mxu0 0.0
      %5449 = vmatpush.msra.mxu0 0.0
      %5450 = vmatpush.msra.mxu0 0.0
      %5451 = vmatpush.msra.mxu0 0.0
      %5452 = vmatpush.msra.mxu0 %v5266
      %5453 = vmatpush.msra.mxu0 %v5265
      %5454 = vmatpush.msra.mxu0 %v5264
      %5455 = vmatpush.msra.mxu0 %v5263
      %5456 = vmatmul.f32.gmra.mxu0 %v3734
      %v5457 = vpop.f32.mrf.mxu0
      %v5458 = vadd.f32 %v5291, %v5457
      %5459 = vdwg.mxu0
      %s5460 = scalar_lea.vmem %s53, 32
      %v5461 = vld [vmem:[%s5460] sm:$0xff]
      %v5462 = vld [vmem:[%s5460 + $0x8] sm:$0xff]
      %v5463 = vld [vmem:[%s5460 + $0x10] sm:$0xff]
      %v5464 = vld [vmem:[%s5460 + $0x18] sm:$0xff]
      %s5465 = scalar_lea.vmem %s55, 1
      %v5466 = vld [vmem:[%s5465] sm:$0x1]
      %v5468 = vsel %vm1465, %v5172, 0
      %v5471 = vsel %vm1465, %v5318, 0
      %5473 = vmatpush.xpose.msra.mxu0 0.0
      %5474 = vmatpush.xpose.msra.mxu0 0.0
      %5475 = vmatpush.xpose.msra.mxu0 0.0
      %5476 = vmatpush.xpose.msra.mxu0 0.0
      %5477 = vmatpush.xpose.msra.mxu0 0.0
      %5478 = vmatpush.xpose.msra.mxu0 0.0
      %5479 = vmatpush.xpose.msra.mxu0 0.0
      %5480 = vmatpush.xpose.msra.mxu0 0.0
      %5481 = vmatpush.xpose.msra.mxu0 0.0
      %5482 = vmatpush.xpose.msra.mxu0 0.0
      %5483 = vmatpush.xpose.msra.mxu0 0.0
      %5484 = vmatpush.xpose.msra.mxu0 0.0
      %5485 = vmatpush.xpose.msra.mxu0 0.0
      %5486 = vmatpush.xpose.msra.mxu0 0.0
      %5487 = vmatpush.xpose.msra.mxu0 0.0
      %5488 = vmatpush.xpose.msra.mxu0 %v5471
      %5489 = vmatmul.f32.gmra.mxu0 %v5468
      %v5490 = vpop.f32.mrf.mxu0
      %v5491 = vadd.f32 0.0, %v5490
      %5492 = vdwg.mxu0
      %v5494 = vsel %vm1465, %v5192, 0
      %v5497 = vsel %vm1465, %v5338, 0
      %5499 = vmatpush.xpose.msra.mxu0 0.0
      %5500 = vmatpush.xpose.msra.mxu0 0.0
      %5501 = vmatpush.xpose.msra.mxu0 0.0
      %5502 = vmatpush.xpose.msra.mxu0 0.0
      %5503 = vmatpush.xpose.msra.mxu0 0.0
      %5504 = vmatpush.xpose.msra.mxu0 0.0
      %5505 = vmatpush.xpose.msra.mxu0 0.0
      %5506 = vmatpush.xpose.msra.mxu0 0.0
      %5507 = vmatpush.xpose.msra.mxu0 0.0
      %5508 = vmatpush.xpose.msra.mxu0 0.0
      %5509 = vmatpush.xpose.msra.mxu0 0.0
      %5510 = vmatpush.xpose.msra.mxu0 0.0
      %5511 = vmatpush.xpose.msra.mxu0 0.0
      %5512 = vmatpush.xpose.msra.mxu0 0.0
      %5513 = vmatpush.xpose.msra.mxu0 0.0
      %5514 = vmatpush.xpose.msra.mxu0 %v5497
      %5515 = vmatmul.f32.gmra.mxu0 %v5494
      %v5516 = vpop.f32.mrf.mxu0
      %v5517 = vadd.f32 0.0, %v5516
      %5518 = vdwg.mxu0
      %v5520 = vsel %vm1465, %v5212, 0
      %v5523 = vsel %vm1465, %v5358, 0
      %5525 = vmatpush.xpose.msra.mxu0 0.0
      %5526 = vmatpush.xpose.msra.mxu0 0.0
      %5527 = vmatpush.xpose.msra.mxu0 0.0
      %5528 = vmatpush.xpose.msra.mxu0 0.0
      %5529 = vmatpush.xpose.msra.mxu0 0.0
      %5530 = vmatpush.xpose.msra.mxu0 0.0
      %5531 = vmatpush.xpose.msra.mxu0 0.0
      %5532 = vmatpush.xpose.msra.mxu0 0.0
      %5533 = vmatpush.xpose.msra.mxu0 0.0
      %5534 = vmatpush.xpose.msra.mxu0 0.0
      %5535 = vmatpush.xpose.msra.mxu0 0.0
      %5536 = vmatpush.xpose.msra.mxu0 0.0
      %5537 = vmatpush.xpose.msra.mxu0 0.0
      %5538 = vmatpush.xpose.msra.mxu0 0.0
      %5539 = vmatpush.xpose.msra.mxu0 0.0
      %5540 = vmatpush.xpose.msra.mxu0 %v5523
      %5541 = vmatmul.f32.gmra.mxu0 %v5520
      %v5542 = vpop.f32.mrf.mxu0
      %v5543 = vadd.f32 0.0, %v5542
      %5544 = vdwg.mxu0
      %v5546 = vsel %vm1465, %v5232, 0
      %v5549 = vsel %vm1465, %v5378, 0
      %5551 = vmatpush.xpose.msra.mxu0 0.0
      %5552 = vmatpush.xpose.msra.mxu0 0.0
      %5553 = vmatpush.xpose.msra.mxu0 0.0
      %5554 = vmatpush.xpose.msra.mxu0 0.0
      %5555 = vmatpush.xpose.msra.mxu0 0.0
      %5556 = vmatpush.xpose.msra.mxu0 0.0
      %5557 = vmatpush.xpose.msra.mxu0 0.0
      %5558 = vmatpush.xpose.msra.mxu0 0.0
      %5559 = vmatpush.xpose.msra.mxu0 0.0
      %5560 = vmatpush.xpose.msra.mxu0 0.0
      %5561 = vmatpush.xpose.msra.mxu0 0.0
      %5562 = vmatpush.xpose.msra.mxu0 0.0
      %5563 = vmatpush.xpose.msra.mxu0 0.0
      %5564 = vmatpush.xpose.msra.mxu0 0.0
      %5565 = vmatpush.xpose.msra.mxu0 0.0
      %5566 = vmatpush.xpose.msra.mxu0 %v5549
      %5567 = vmatmul.f32.gmra.mxu0 %v5546
      %v5568 = vpop.f32.mrf.mxu0
      %v5569 = vadd.f32 0.0, %v5568
      %5570 = vdwg.mxu0
      %v5571 = vsel %vm1465, %v5491, -inf
      %5572 = vmax.xlane.f32.xlu0 %v5571
      %v5573 = vpop.xlane.xlu0 %5572
      %v5574 = vsel %vm1465, %v5517, -inf
      %5575 = vmax.xlane.f32.xlu0 %v5574
      %v5576 = vpop.xlane.xlu0 %5575
      %v5577 = vsel %vm1465, %v5543, -inf
      %5578 = vmax.xlane.f32.xlu0 %v5577
      %v5579 = vpop.xlane.xlu0 %5578
      %v5580 = vsel %vm1465, %v5569, -inf
      %5581 = vmax.xlane.f32.xlu0 %v5580
      %v5582 = vpop.xlane.xlu0 %5581
      %v5583 = vsub.f32 %v5491, %v5573
      %v5584 = vsub.f32 %v5517, %v5576
      %v5585 = vsub.f32 %v5543, %v5579
      %v5586 = vsub.f32 %v5569, %v5582
      %v5587 = vmul.f32 %v5583, 1.442695
      %v5588 = vpow.pop %v5587
      %v5589 = vmul.f32 %v5584, 1.442695
      %v5590 = vpow.pop %v5589
      %v5591 = vmul.f32 %v5585, 1.442695
      %v5592 = vpow.pop %v5591
      %v5593 = vmul.f32 %v5586, 1.442695
      %v5594 = vpow.pop %v5593
      %v5595 = vsel %vm1465, %v5588, 0.0
      %5596 = vadd.xlane.f32.xlu0 %v5595
      %v5597 = vpop.xlane.xlu0 %5596
      %v5598 = vsel %vm1465, %v5590, 0.0
      %5599 = vadd.xlane.f32.xlu0 %v5598
      %v5600 = vpop.xlane.xlu0 %5599
      %v5601 = vsel %vm1465, %v5592, 0.0
      %5602 = vadd.xlane.f32.xlu0 %v5601
      %v5603 = vpop.xlane.xlu0 %5602
      %v5604 = vsel %vm1465, %v5594, 0.0
      %5605 = vadd.xlane.f32.xlu0 %v5604
      %v5606 = vpop.xlane.xlu0 %5605
      %v5607 = vmax.f32 %v5597, 1e-30
      %v5608 = vmax.f32 %v5600, 1e-30
      %v5609 = vmax.f32 %v5603, 1e-30
      %v5610 = vmax.f32 %v5606, 1e-30
      %v5611 = vrcp.pop %v5607
      %v5612 = vrcp.pop %v5608
      %v5613 = vrcp.pop %v5609
      %v5614 = vrcp.pop %v5610
      %v5615 = vmul.f32 %v5597, %v5611
      %v5616 = vmul.f32 %v5600, %v5612
      %v5617 = vmul.f32 %v5603, %v5613
      %v5618 = vmul.f32 %v5606, %v5614
      %v5619 = vsub.f32 2.0, %v5615
      %v5620 = vsub.f32 2.0, %v5616
      %v5621 = vsub.f32 2.0, %v5617
      %v5622 = vsub.f32 2.0, %v5618
      %v5623 = vmul.f32 %v5611, %v5619
      %v5624 = vmul.f32 %v5612, %v5620
      %v5625 = vmul.f32 %v5613, %v5621
      %v5626 = vmul.f32 %v5614, %v5622
      %v5627 = vmul.f32 %v5588, %v5623
      %v5628 = vmul.f32 %v5590, %v5624
      %v5629 = vmul.f32 %v5592, %v5625
      %v5630 = vmul.f32 %v5594, %v5626
      %v5632 = vsel %vm1465, %v5627, 0
      %5634 = vmatpush.msra.mxu0 0.0
      %5635 = vmatpush.msra.mxu0 0.0
      %5636 = vmatpush.msra.mxu0 0.0
      %5637 = vmatpush.msra.mxu0 0.0
      %5638 = vmatpush.msra.mxu0 0.0
      %5639 = vmatpush.msra.mxu0 0.0
      %5640 = vmatpush.msra.mxu0 0.0
      %5641 = vmatpush.msra.mxu0 0.0
      %5642 = vmatpush.msra.mxu0 0.0
      %5643 = vmatpush.msra.mxu0 0.0
      %5644 = vmatpush.msra.mxu0 0.0
      %5645 = vmatpush.msra.mxu0 0.0
      %5646 = vmatpush.msra.mxu0 0.0
      %5647 = vmatpush.msra.mxu0 0.0
      %5648 = vmatpush.msra.mxu0 0.0
      %5649 = vmatpush.msra.mxu0 %v5398
      %5650 = vmatmul.f32.gmra.mxu0 %v5632
      %v5651 = vpop.f32.mrf.mxu0
      %v5652 = vadd.f32 0.0, %v5651
      %5653 = vdwg.mxu0
      %v5655 = vsel %vm1465, %v5628, 0
      %5657 = vmatpush.msra.mxu0 0.0
      %5658 = vmatpush.msra.mxu0 0.0
      %5659 = vmatpush.msra.mxu0 0.0
      %5660 = vmatpush.msra.mxu0 0.0
      %5661 = vmatpush.msra.mxu0 0.0
      %5662 = vmatpush.msra.mxu0 0.0
      %5663 = vmatpush.msra.mxu0 0.0
      %5664 = vmatpush.msra.mxu0 0.0
      %5665 = vmatpush.msra.mxu0 0.0
      %5666 = vmatpush.msra.mxu0 0.0
      %5667 = vmatpush.msra.mxu0 0.0
      %5668 = vmatpush.msra.mxu0 0.0
      %5669 = vmatpush.msra.mxu0 0.0
      %5670 = vmatpush.msra.mxu0 0.0
      %5671 = vmatpush.msra.mxu0 0.0
      %5672 = vmatpush.msra.mxu0 %v5418
      %5673 = vmatmul.f32.gmra.mxu0 %v5655
      %v5674 = vpop.f32.mrf.mxu0
      %v5675 = vadd.f32 0.0, %v5674
      %5676 = vdwg.mxu0
      %v5678 = vsel %vm1465, %v5629, 0
      %5680 = vmatpush.msra.mxu0 0.0
      %5681 = vmatpush.msra.mxu0 0.0
      %5682 = vmatpush.msra.mxu0 0.0
      %5683 = vmatpush.msra.mxu0 0.0
      %5684 = vmatpush.msra.mxu0 0.0
      %5685 = vmatpush.msra.mxu0 0.0
      %5686 = vmatpush.msra.mxu0 0.0
      %5687 = vmatpush.msra.mxu0 0.0
      %5688 = vmatpush.msra.mxu0 0.0
      %5689 = vmatpush.msra.mxu0 0.0
      %5690 = vmatpush.msra.mxu0 0.0
      %5691 = vmatpush.msra.mxu0 0.0
      %5692 = vmatpush.msra.mxu0 0.0
      %5693 = vmatpush.msra.mxu0 0.0
      %5694 = vmatpush.msra.mxu0 0.0
      %5695 = vmatpush.msra.mxu0 %v5438
      %5696 = vmatmul.f32.gmra.mxu0 %v5678
      %v5697 = vpop.f32.mrf.mxu0
      %v5698 = vadd.f32 0.0, %v5697
      %5699 = vdwg.mxu0
      %v5701 = vsel %vm1465, %v5630, 0
      %5703 = vmatpush.msra.mxu0 0.0
      %5704 = vmatpush.msra.mxu0 0.0
      %5705 = vmatpush.msra.mxu0 0.0
      %5706 = vmatpush.msra.mxu0 0.0
      %5707 = vmatpush.msra.mxu0 0.0
      %5708 = vmatpush.msra.mxu0 0.0
      %5709 = vmatpush.msra.mxu0 0.0
      %5710 = vmatpush.msra.mxu0 0.0
      %5711 = vmatpush.msra.mxu0 0.0
      %5712 = vmatpush.msra.mxu0 0.0
      %5713 = vmatpush.msra.mxu0 0.0
      %5714 = vmatpush.msra.mxu0 0.0
      %5715 = vmatpush.msra.mxu0 0.0
      %5716 = vmatpush.msra.mxu0 0.0
      %5717 = vmatpush.msra.mxu0 0.0
      %5718 = vmatpush.msra.mxu0 %v5458
      %5719 = vmatmul.f32.gmra.mxu0 %v5701
      %v5720 = vpop.f32.mrf.mxu0
      %v5721 = vadd.f32 0.0, %v5720
      %5722 = vdwg.mxu0
      %v5724 = vsel %vm1465, %v5652, 0
      %5726 = vmatpush.msra.mxu0 0.0
      %5727 = vmatpush.msra.mxu0 0.0
      %5728 = vmatpush.msra.mxu0 0.0
      %5729 = vmatpush.msra.mxu0 0.0
      %5730 = vmatpush.msra.mxu0 0.0
      %5731 = vmatpush.msra.mxu0 0.0
      %5732 = vmatpush.msra.mxu0 0.0
      %5733 = vmatpush.msra.mxu0 0.0
      %5734 = vmatpush.msra.mxu0 0.0
      %5735 = vmatpush.msra.mxu0 0.0
      %5736 = vmatpush.msra.mxu0 0.0
      %5737 = vmatpush.msra.mxu0 0.0
      %5738 = vmatpush.msra.mxu0 0.0
      %5739 = vmatpush.msra.mxu0 0.0
      %5740 = vmatpush.msra.mxu0 0.0
      %5741 = vmatpush.msra.mxu0 %v5461
      %5742 = vmatmul.f32.gmra.mxu0 %v5724
      %v5743 = vpop.f32.mrf.mxu0
      %v5744 = vadd.f32 0.0, %v5743
      %5745 = vdwg.mxu0
      %v5747 = vsel %vm1465, %v5675, 0
      %5749 = vmatpush.msra.mxu0 0.0
      %5750 = vmatpush.msra.mxu0 0.0
      %5751 = vmatpush.msra.mxu0 0.0
      %5752 = vmatpush.msra.mxu0 0.0
      %5753 = vmatpush.msra.mxu0 0.0
      %5754 = vmatpush.msra.mxu0 0.0
      %5755 = vmatpush.msra.mxu0 0.0
      %5756 = vmatpush.msra.mxu0 0.0
      %5757 = vmatpush.msra.mxu0 0.0
      %5758 = vmatpush.msra.mxu0 0.0
      %5759 = vmatpush.msra.mxu0 0.0
      %5760 = vmatpush.msra.mxu0 0.0
      %5761 = vmatpush.msra.mxu0 0.0
      %5762 = vmatpush.msra.mxu0 0.0
      %5763 = vmatpush.msra.mxu0 0.0
      %5764 = vmatpush.msra.mxu0 %v5462
      %5765 = vmatmul.f32.gmra.mxu0 %v5747
      %v5766 = vpop.f32.mrf.mxu0
      %v5767 = vadd.f32 0.0, %v5766
      %5768 = vdwg.mxu0
      %v5770 = vsel %vm1465, %v5698, 0
      %5772 = vmatpush.msra.mxu0 0.0
      %5773 = vmatpush.msra.mxu0 0.0
      %5774 = vmatpush.msra.mxu0 0.0
      %5775 = vmatpush.msra.mxu0 0.0
      %5776 = vmatpush.msra.mxu0 0.0
      %5777 = vmatpush.msra.mxu0 0.0
      %5778 = vmatpush.msra.mxu0 0.0
      %5779 = vmatpush.msra.mxu0 0.0
      %5780 = vmatpush.msra.mxu0 0.0
      %5781 = vmatpush.msra.mxu0 0.0
      %5782 = vmatpush.msra.mxu0 0.0
      %5783 = vmatpush.msra.mxu0 0.0
      %5784 = vmatpush.msra.mxu0 0.0
      %5785 = vmatpush.msra.mxu0 0.0
      %5786 = vmatpush.msra.mxu0 0.0
      %5787 = vmatpush.msra.mxu0 %v5463
      %5788 = vmatmul.f32.gmra.mxu0 %v5770
      %v5789 = vpop.f32.mrf.mxu0
      %v5790 = vadd.f32 0.0, %v5789
      %5791 = vdwg.mxu0
      %v5793 = vsel %vm1465, %v5721, 0
      %5795 = vmatpush.msra.mxu0 0.0
      %5796 = vmatpush.msra.mxu0 0.0
      %5797 = vmatpush.msra.mxu0 0.0
      %5798 = vmatpush.msra.mxu0 0.0
      %5799 = vmatpush.msra.mxu0 0.0
      %5800 = vmatpush.msra.mxu0 0.0
      %5801 = vmatpush.msra.mxu0 0.0
      %5802 = vmatpush.msra.mxu0 0.0
      %5803 = vmatpush.msra.mxu0 0.0
      %5804 = vmatpush.msra.mxu0 0.0
      %5805 = vmatpush.msra.mxu0 0.0
      %5806 = vmatpush.msra.mxu0 0.0
      %5807 = vmatpush.msra.mxu0 0.0
      %5808 = vmatpush.msra.mxu0 0.0
      %5809 = vmatpush.msra.mxu0 0.0
      %5810 = vmatpush.msra.mxu0 %v5464
      %5811 = vmatmul.f32.gmra.mxu0 %v5793
      %v5812 = vpop.f32.mrf.mxu0
      %v5813 = vadd.f32 0.0, %v5812
      %5814 = vdwg.mxu0
      %v5815 = vsel %vm1216, %v5744, 0.0
      %v5816 = vsel %vm1216, %v5767, 0.0
      %v5817 = vadd.f32 %v5815, %v5816
      %v5818 = vsel %vm1216, %v5790, 0.0
      %v5819 = vadd.f32 %v5817, %v5818
      %v5820 = vsel %vm1216, %v5813, 0.0
      %v5821 = vadd.f32 %v5819, %v5820
      %v5823 = vperm.slane %v5466, 0
      %v5825 = vadd.f32 %v5821, %v5823
      %v5826 = vadd.f32 %v5116, %v5825
      %v5827 = vsel %vm1216, %v5826, 0.0
      %5828 = vadd.xlane.f32.xlu0 %v5827
      %v5829 = vpop.xlane.xlu0 %5828
      %v5830 = vmul.f32 %v5829, %v1835
      %v5831 = vsub.f32 %v5826, %v5830
      %v5832 = vmul.f32 %v5831, %v5831
      %v5833 = vsel %vm1216, %v5832, 0.0
      %5834 = vadd.xlane.f32.xlu0 %v5833
      %v5835 = vpop.xlane.xlu0 %5834
      %v5836 = vmul.f32 %v5835, %v1835
      %v5837 = vadd.f32 %v5836, 1e-05
      %v5838 = vrsqrt.pop %v5837
      %v5839 = vmul.f32 %v5838, %v5837
      %v5840 = vmul.f32 %v5839, %v5838
      %v5841 = vmul.f32 0.5, %v5840
      %v5842 = vsub.f32 1.5, %v5841
      %v5843 = vmul.f32 %v5838, %v5842
      %vm5844 = vweird.f32 %v5837
      %vm5845 = vweird.f32 %v5838
      %vm5846 = vmor %vm5844, %vm5845
      %v5847 = vsel %vm5846, %v5838, %v5843
      %v5848 = vmul.f32 %v5831, %v5847
      %v5849 = vperm.slane %v4382, 2
      %v5850 = vmul.f32 %v5848, %v5849
      %v5851 = vperm.slane %v4382, 3
      %v5852 = vadd.f32 %v5850, %v5851
      %s5853 = scalar_lea.vmem %s57, 32
      %v5854 = vld [vmem:[%s5853] sm:$0xff]
      %v5855 = vld [vmem:[%s5853 + $0x8] sm:$0xff]
      %v5856 = vld [vmem:[%s5853 + $0x10] sm:$0xff]
      %v5857 = vld [vmem:[%s5853 + $0x18] sm:$0xff]
      %s5858 = scalar_lea.vmem %s59, 1
      %v5859 = vld [vmem:[%s5858] sm:$0x1]
      %s5860 = scalar_lea.vmem %s61, 64
      %v5861 = vld [vmem:[%s5860] sm:$0xff]
      %v5862 = vld [vmem:[%s5860 + $0x8] sm:$0xff]
      %v5863 = vld [vmem:[%s5860 + $0x10] sm:$0xff]
      %v5864 = vld [vmem:[%s5860 + $0x18] sm:$0xff]
      %v5865 = vld [vmem:[%s5860 + $0x20] sm:$0xff]
      %v5866 = vld [vmem:[%s5860 + $0x28] sm:$0xff]
      %v5867 = vld [vmem:[%s5860 + $0x30] sm:$0xff]
      %v5868 = vld [vmem:[%s5860 + $0x38] sm:$0xff]
      %s5869 = scalar_lea.vmem %s63, 1
      %v5870 = vld [vmem:[%s5869] sm:$0x1]
      %v5872 = vperm.slane %v5859, 0
      %v5875 = vsel %vm1216, %v5852, 0
      %5877 = vmatpush.msra.mxu0 0.0
      %5878 = vmatpush.msra.mxu0 0.0
      %5879 = vmatpush.msra.mxu0 0.0
      %5880 = vmatpush.msra.mxu0 0.0
      %5881 = vmatpush.msra.mxu0 0.0
      %5882 = vmatpush.msra.mxu0 0.0
      %5883 = vmatpush.msra.mxu0 0.0
      %5884 = vmatpush.msra.mxu0 0.0
      %5885 = vmatpush.msra.mxu0 0.0
      %5886 = vmatpush.msra.mxu0 0.0
      %5887 = vmatpush.msra.mxu0 0.0
      %5888 = vmatpush.msra.mxu0 0.0
      %5889 = vmatpush.msra.mxu0 %v5857
      %5890 = vmatpush.msra.mxu0 %v5856
      %5891 = vmatpush.msra.mxu0 %v5855
      %5892 = vmatpush.msra.mxu0 %v5854
      %5893 = vmatmul.f32.gmra.mxu0 %v5875
      %v5894 = vpop.f32.mrf.mxu0
      %v5895 = vadd.f32 %v5872, %v5894
      %5896 = vdwg.mxu0
      %v5897 = vmax.f32 %v5895, 0.0
      %v5899 = vperm.slane %v5870, 0
      %v5902 = vsel %vm1903, %v5897, 0
      %5904 = vmatpush.msra.mxu0 0.0
      %5905 = vmatpush.msra.mxu0 0.0
      %5906 = vmatpush.msra.mxu0 0.0
      %5907 = vmatpush.msra.mxu0 0.0
      %5908 = vmatpush.msra.mxu0 0.0
      %5909 = vmatpush.msra.mxu0 0.0
      %5910 = vmatpush.msra.mxu0 0.0
      %5911 = vmatpush.msra.mxu0 0.0
      %5912 = vmatpush.msra.mxu0 %v5868
      %5913 = vmatpush.msra.mxu0 %v5867
      %5914 = vmatpush.msra.mxu0 %v5866
      %5915 = vmatpush.msra.mxu0 %v5865
      %5916 = vmatpush.msra.mxu0 %v5864
      %5917 = vmatpush.msra.mxu0 %v5863
      %5918 = vmatpush.msra.mxu0 %v5862
      %5919 = vmatpush.msra.mxu0 %v5861
      %5920 = vmatmul.f32.gmra.mxu0 %v5902
      %v5921 = vpop.f32.mrf.mxu0
      %v5922 = vadd.f32 %v5899, %v5921
      %5923 = vdwg.mxu0
      %v5924 = vadd.f32 %v5852, %v5922
      %v5925 = vsel %vm1216, %v5924, 0.0
      %5926 = vadd.xlane.f32.xlu0 %v5925
      %v5927 = vpop.xlane.xlu0 %5926
      %v5928 = vmul.f32 %v5927, %v1835
      %v5929 = vsub.f32 %v5924, %v5928
      %v5930 = vmul.f32 %v5929, %v5929
      %v5931 = vsel %vm1216, %v5930, 0.0
      %5932 = vadd.xlane.f32.xlu0 %v5931
      %v5933 = vpop.xlane.xlu0 %5932
      %v5934 = vmul.f32 %v5933, %v1835
      %v5935 = vadd.f32 %v5934, 1e-05
      %v5936 = vrsqrt.pop %v5935
      %v5937 = vmul.f32 %v5936, %v5935
      %v5938 = vmul.f32 %v5937, %v5936
      %v5939 = vmul.f32 0.5, %v5938
      %v5940 = vsub.f32 1.5, %v5939
      %v5941 = vmul.f32 %v5936, %v5940
      %vm5942 = vweird.f32 %v5935
      %vm5943 = vweird.f32 %v5936
      %vm5944 = vmor %vm5942, %vm5943
      %v5945 = vsel %vm5944, %v5936, %v5941
      %v5946 = vmul.f32 %v5929, %v5945
      %v5947 = vperm.slane %v4382, 4
      %v5948 = vmul.f32 %v5946, %v5947
      %v5949 = vperm.slane %v4382, 5
      %v5950 = vadd.f32 %v5948, %v5949
      %v5951 = vld [vmem:[%s67] sm:$0xff]
      %v5952 = vld [vmem:[%s67 + $0x8] sm:$0xff]
      %v5953 = vld [vmem:[%s67 + $0x10] sm:$0xff]
      %v5954 = vld [vmem:[%s67 + $0x18] sm:$0xff]
      %v5955 = vld [vmem:[%s69] sm:$0x1]
      %v5957 = vperm.slane %v5955, 0
      %v5960 = vsel %vm1216, %v5950, 0
      %5962 = vmatpush.msra.mxu0 0.0
      %5963 = vmatpush.msra.mxu0 0.0
      %5964 = vmatpush.msra.mxu0 0.0
      %5965 = vmatpush.msra.mxu0 0.0
      %5966 = vmatpush.msra.mxu0 0.0
      %5967 = vmatpush.msra.mxu0 0.0
      %5968 = vmatpush.msra.mxu0 0.0
      %5969 = vmatpush.msra.mxu0 0.0
      %5970 = vmatpush.msra.mxu0 0.0
      %5971 = vmatpush.msra.mxu0 0.0
      %5972 = vmatpush.msra.mxu0 0.0
      %5973 = vmatpush.msra.mxu0 0.0
      %5974 = vmatpush.msra.mxu0 %v5954
      %5975 = vmatpush.msra.mxu0 %v5953
      %5976 = vmatpush.msra.mxu0 %v5952
      %5977 = vmatpush.msra.mxu0 %v5951
      %5978 = vmatmul.f32.gmra.mxu0 %v5960
      %v5979 = vpop.f32.mrf.mxu0
      %v5980 = vadd.f32 %v5957, %v5979
      %5981 = vdwg.mxu0
      %5982 = vst [vmem:[%s1082] sm:$0xff] %v5980
      %p5983 = scmp.lt.s32.totalorder %s82, 1
      %s5984 = scalar_select %p5983, %s82, 1
      %s5985 = smul.addr %s5984, 8
      %s5986 = scalar_lea.vmem %s71, %s5985
      // Predicated region
      $region161: #{transformer_forward.1} parent=159 // pred_check
        %p5987 = pneg %p845
      $region162: #{transformer_forward.1} parent=159 // pred_check_branch
        %5989 = sbr.rel (%p5987) target = $region164
      $region163: #{transformer_forward.1} parent=159 // pred_region
        _
      $region164: #{transformer_forward.1} parent=159 // pred_fallthru
        _
    $region160: #{transformer_forward.1} parent=5 // pred_fallthru
      _
    %p5990 = scmp.le.s32.totalorder 2, %s77
    // Predicated region
    $region165: #{transformer_forward.1} parent=5 // pred_check
      %p5991 = pneg %p5990
    $region166: #{transformer_forward.1} parent=5 // pred_check_branch
      %5993 = sbr.rel (%p5991) target = $region168
    $region167: #{transformer_forward.1} parent=5 // pred_region
      %s5994 = ssub.s32 %s77, 2
      // Predicated region
      $region169: #{transformer_forward.1} parent=167 // pred_check
        %p5995 = pneg %p851
      $region170: #{transformer_forward.1} parent=167 // pred_check_branch
        %5997 = sbr.rel (%p5995) target = $region172
      $region171: #{transformer_forward.1} parent=167 // pred_region
        %p5998 = scmp.lt.s32.totalorder %s83, 1
        %s5999 = scalar_select %p5998, %s83, 1
        %s6000 = smul.addr %s5999, 8
        %s6001 = scalar_lea.vmem %s71, %s6000
      $region172: #{transformer_forward.1} parent=167 // pred_fallthru
        _
    $region168: #{transformer_forward.1} parent=5 // pred_fallthru
      _
  $region6: #{transformer_forward.1} parent=0 // loop_footer
    %s81 = sadd.s32 1, %s77
  $region7: #{transformer_forward.1} parent=0 // loop_footer_branch
    %76 = sbr.rel target = $region3
  $region8: #{transformer_forward.1} parent=0 // loop_exit
    _

</llo_original>
